<compile_context>
chip_gen: v6e
topology: v6e:2x2x1
jax: 0.10.0
libtpu: 0.0.40
codegen_flags: <defaults>
</compile_context>

<pallas_src>
import math
import numpy as np
import jax
import jax.numpy as jnp
from jax.experimental import pallas as pl
from jax.experimental.pallas import tpu as pltpu

# ----------------------------- model config ---------------------------------
VOCAB   = 64                 # synthetic vocab
VPAD    = 128                # vocab padded to a full lane width (lane-dense out)
HIDDEN  = 32
NHEAD   = 4
DHEAD   = HIDDEN // NHEAD
MAXLEN  = 32                 # fixed padded sequence length (>= S + L - 1)
NT      = NHEAD * MAXLEN     # 128: all heads packed along lanes of the score tile

R, L, K = 10, 20, 10         # as in qa_model.__init__
EPSILON = 1e-6

CB      = 8                                              # candidates per grid step
N_CAND  = R * (L - 1)                                    # 190 span-extension candidates
N_TOTAL = ((N_CAND + 2 * CB - 1) // (2 * CB)) * (2 * CB) # 192: multiple of 2*CB (v7x balance)

PARAM_ORDER = ['ln1g', 'ln1b', 'wqkv', 'bqkv', 'wproj', 'bproj',
               'ln2g', 'ln2b', 'wfc', 'bfc', 'wo', 'bo',
               'lnfg', 'lnfb', 'whead']


# -------- static masks (hoisted out of the kernel body, DMA'd once) ----------
def _build_consts():
    kv = np.zeros((NT, HIDDEN), np.float32)          # block-diag head mask for K/V
    ss = np.zeros((NT, NT), np.float32)              # per-head segment-sum matrix
    for h in range(NHEAD):
        kv[h * MAXLEN:(h + 1) * MAXLEN, h * DHEAD:(h + 1) * DHEAD] = 1.0
        ss[h * MAXLEN:(h + 1) * MAXLEN, h * MAXLEN:(h + 1) * MAXLEN] = 1.0
    i = np.arange(MAXLEN)[:, None]
    j = np.tile(np.arange(MAXLEN)[None, :], (1, NHEAD))
    cb = np.where(j <= i, 0.0, -1e30).astype(np.float32)        # [T, NT] causal bias
    vb = np.full((1, VPAD), -1e30, np.float32)                  # mask padded vocab lanes
    vb[0, :VOCAB] = 0.0
    scale = 1.0 / math.sqrt(DHEAD)                   # fold attention scale into K mask
    return (jnp.asarray(kv * scale), jnp.asarray(kv), jnp.asarray(cb),
            jnp.asarray(ss), jnp.asarray(vb))


_KMASK, _VMASK, _CBIAS, _SEGSUM, _VBIAS = _build_consts()


# ----------------------------- Pallas kernel --------------------------------
def lm_kernel(rowwin_ref,
              x_ref, ln1g_ref, ln1b_ref, wqkv_ref, bqkv_ref, wproj_ref, bproj_ref,
              ln2g_ref, ln2b_ref, wfc_ref, bfc_ref, wo_ref, bo_ref,
              lnfg_ref, lnfb_ref, whead_ref,
              kmask_ref, vmask_ref, cbias_ref, segsum_ref, vbias_ref,
              out_ref):
    """CB candidates per grid step.

    x_ref:   [CB, T, H]   token + position embeddings of CB candidate prefixes
    out_ref: [CB, 8, VPAD] log-probabilities of rows [rowwin[c], rowwin[c]+8)
    """
    def layer_norm(v, g, b):
        mu = jnp.mean(v, axis=-1, keepdims=True)
        var = jnp.mean((v - mu) ** 2, axis=-1, keepdims=True)
        return (v - mu) * jax.lax.rsqrt(var + 1e-5) * g + b

    base = pl.program_id(0) * CB

    xres_rows = []                          # per-candidate post-attention residual [8, H]
    for i in range(CB):                     # short fixed loop, fully unrolled
        w = pl.multiple_of(rowwin_ref[base + i], 8)

        # ---- K / V from ALL rows of this candidate (1-layer model: per-position) ----
        x_full = x_ref[i]                                               # [T, H]
        h1 = layer_norm(x_full, ln1g_ref[...], ln1b_ref[...])
        qkv = jnp.dot(h1, wqkv_ref[...],
                      preferred_element_type=jnp.float32) + bqkv_ref[...]
        k = qkv[:, HIDDEN:2 * HIDDEN]
        v = qkv[:, 2 * HIDDEN:]
        # heads packed along sublanes; 1/sqrt(DHEAD) pre-folded into kmask
        k_pack = jnp.concatenate([k] * NHEAD, axis=0) * kmask_ref[...]  # [NT, H]
        v_pack = jnp.concatenate([v] * NHEAD, axis=0) * vmask_ref[...]  # [NT, H]

        # ---- Q / attention only for the consumed 8-row, sublane-aligned window ----
        xw = x_ref[i, pl.ds(w, 8), :]                                   # [8, H]
        h1w = layer_norm(xw, ln1g_ref[...], ln1b_ref[...])
        qw = (jnp.dot(h1w, wqkv_ref[...], preferred_element_type=jnp.float32)
              + bqkv_ref[...])[:, :HIDDEN]                              # [8, H]

        # all-head scores in ONE full-width MXU pass: [8, NT] = [8, 128]
        s = jax.lax.dot_general(qw, k_pack, (((1,), (1,)), ((), ())),
                                preferred_element_type=jnp.float32)
        s = s + cbias_ref[pl.ds(w, 8), :]                               # causal mask rows
        m = jnp.max(s, axis=-1, keepdims=True)
        p = jnp.exp(s - m)
        # per-head softmax denominators broadcast back with one block-diag matmul
        denom = jnp.dot(p, segsum_ref[...], preferred_element_type=jnp.float32)
        p = p * pl.reciprocal(denom, approx=True)                       # EUP, not VALU
        attn = jnp.dot(p, v_pack, preferred_element_type=jnp.float32)   # [8, H]
        xres = xw + jnp.dot(attn, wproj_ref[...],
                            preferred_element_type=jnp.float32) + bproj_ref[...]
        xres_rows.append(xres)

    # ---- MLP (gelu_new) + final LN + LM head, batched over CB stacked windows ----
    xcat = jnp.concatenate(xres_rows, axis=0)                           # [CB*8, H]
    h2 = layer_norm(xcat, ln2g_ref[...], ln2b_ref[...])
    f = jnp.dot(h2, wfc_ref[...], preferred_element_type=jnp.float32) + bfc_ref[...]
    c0 = 0.7978845608028654  # sqrt(2/pi)
    f = 0.5 * f * (1.0 + jnp.tanh(c0 * (f + 0.044715 * f * f * f)))
    xcat = xcat + jnp.dot(f, wo_ref[...],
                          preferred_element_type=jnp.float32) + bo_ref[...]

    hf = layer_norm(xcat, lnfg_ref[...], lnfb_ref[...])
    logits = jnp.dot(hf, whead_ref[...],
                     preferred_element_type=jnp.float32) + vbias_ref[...]   # [CB*8, VPAD]
    mx = jnp.max(logits, axis=-1, keepdims=True)
    z = logits - mx
    lse = jnp.log(jnp.sum(jnp.exp(z), axis=-1, keepdims=True))
    out_ref[...] = (z - lse).reshape(CB, 8, VPAD)


def _const_spec(a):
    # whole array as one block, kept VMEM-resident across the grid
    return pl.BlockSpec(a.shape, lambda c, rw: (0,) * a.ndim)


@jax.jit
def lm_logprob_windows(params, ids_batch, rowwin):
    """ids_batch: [N_TOTAL, MAXLEN] int32, rowwin: [N_TOTAL] int32 (multiples of 8)
       -> [N_TOTAL, 8, VPAD] row-wise log-probs of rows [rowwin[c], rowwin[c]+8)."""
    x = params['wte'][ids_batch] + params['wpe'][None, :, :]    # embedding gather (glue)
    ws = [params[name] for name in PARAM_ORDER]
    consts = [_KMASK, _VMASK, _CBIAS, _SEGSUM, _VBIAS]

    grid_spec = pltpu.PrefetchScalarGridSpec(
        num_scalar_prefetch=1,                                  # rowwin -> SMEM
        grid=(N_TOTAL // CB,),
        in_specs=([pl.BlockSpec((CB, MAXLEN, HIDDEN), lambda c, rw: (c, 0, 0))]
                  + [_const_spec(w) for w in ws]
                  + [_const_spec(a) for a in consts]),
        out_specs=pl.BlockSpec((CB, 8, VPAD), lambda c, rw: (c, 0, 0)),
    )
    return pl.pallas_call(
        lm_kernel,
        out_shape=jax.ShapeDtypeStruct((N_TOTAL, 8, VPAD), jnp.float32),
        grid_spec=grid_spec,
        compiler_params=pltpu.CompilerParams(
            dimension_semantics=("parallel",)),                 # shards candidates on v7x
    )(rowwin, x, *ws, *consts)


# ----------------------------- qa_model glue ---------------------------------
def compute_logprob(params, input_ids, attention_mask):
    """Mirrors qa_model.compute_logprob for batch == 1 (reuses the single compiled
    N_TOTAL-shaped pallas_call; only slot 0 carries real data)."""
    ids = np.asarray(input_ids, np.int32).reshape(-1)
    n = ids.shape[0]
    assert 1 <= n <= MAXLEN, "sequence must fit in MAXLEN"
    padded = np.zeros((N_TOTAL, MAXLEN), np.int32)
    padded[0, :n] = ids
    row = n - 1
    win = (row // 8) * 8
    rowwin = np.zeros((N_TOTAL,), np.int32)
    rowwin[0] = win
    out = lm_logprob_windows(params, jnp.asarray(padded),
                             jnp.asarray(rowwin, jnp.int32))    # [N_TOTAL, 8, VPAD]
    lp_row = out[0, row - win]                                  # == outputs[0][:, -1, :]
    gathered = lp_row[jnp.asarray(ids)]                         # index_select(logprob, 1, ids)
    am = jnp.asarray(attention_mask, jnp.float32).reshape(-1)
    return (gathered / am).reshape(1, -1)


def candidate_spans(params, input_ids, attention_mask):
    batch = input_ids.shape[0]                   # reference only supports batch == 1
    ids_np = np.asarray(input_ids)
    am_np = np.asarray(attention_mask, np.float32)
    logprob = np.full((batch, R, L), -np.inf, dtype=np.float32)      # log(zeros)

    lp_first = compute_logprob(params, input_ids, attention_mask)    # [1, S]
    lp_first_np = np.asarray(lp_first)

    first_token_index = []
    for b in range(batch):
        _, idxs = jax.lax.top_k(lp_first[b], R)
        first_token_index.append(np.asarray(idxs))

    N = N_CAND
    for b in range(batch):
        seq = ids_np[b]
        S = seq.shape[0]
        prefix_len = int(am_np[b].sum())
        assert prefix_len + L - 1 <= MAXLEN, "MAXLEN must cover prefix + longest span"

        # --- build ALL R*(L-1) candidate prefixes (padded to N_TOTAL) for ONE call ---
        cand_ids = np.zeros((N_TOTAL, MAXLEN), np.int32)
        rowwin   = np.zeros((N_TOTAL,), np.int32)
        row_in_w = np.zeros((N,), np.int32)
        next_tok = np.zeros((N,), np.int32)
        valid    = np.zeros((N,), bool)
        c = 0
        for i, index in enumerate(first_token_index[b]):
            index = int(index)
            for l in range(L - 1):
                row_c = prefix_len + l                 # last real position of candidate
                cand_ids[c, :prefix_len] = seq[:prefix_len]
                span = seq[index:min(index + l + 1, S)]
                cand_ids[c, prefix_len:prefix_len + span.shape[0]] = span
                rowwin[c] = (row_c // 8) * 8
                row_in_w[c] = row_c - rowwin[c]
                if index + l + 1 < S:
                    valid[c] = True
                    next_tok[c] = seq[index + l + 1]
                c += 1

        # --- ONE gridded pallas_call over all candidates (24 grid steps of CB=8) ---
        wins = lm_logprob_windows(params, jnp.asarray(cand_ids),
                                  jnp.asarray(rowwin, dtype=jnp.int32))  # [N_TOTAL, 8, VPAD]
        wins_np = np.asarray(wins)[:N]
        lp_next = wins_np[np.arange(N), row_in_w, next_tok].reshape(R, L - 1)
        valid = valid.reshape(R, L - 1)

        # --- same cumulative recurrence as the reference (host glue) ---
        for i, index in enumerate(first_token_index[b]):
            index = int(index)
            for l in range(L - 1):
                if valid[i, l]:
                    if l == 0:
                        logprob[b, i, 0] = lp_first_np[b, index]
                    logprob[b, i, l + 1] = lp_next[i, l] + logprob[b, i, l]

    topk_vals, topk_idx = [], []
    for b in range(batch):
        v, ix = jax.lax.top_k(jnp.asarray(logprob[b].reshape(-1)), K)
        topk_vals.append(v)
        topk_idx.append(np.asarray(ix))

    batch_spans = []
    for b in range(batch):
        spans = []
        for i in topk_idx[b]:
            i = int(i)
            # TODO(synk): original indexes first_token_index[int(i/L)] (an indexing
            # bug that crashes for i >= L); implemented the clearly intended lookup.
            start = int(first_token_index[b][i // L])
            length = i % L
            spans.append([start, start + length + 1])
        batch_spans.append(spans)
    return topk_vals, batch_spans


def qa_forward(params, input_ids, input_mask, answers):
    batch = input_ids.shape[0]
    probs, preds = candidate_spans(params, input_ids, input_mask)
    loss = jnp.float32(0.0)
    topk = 0
    top1 = 0
    for b in range(batch):
        if len(answers[b]) > 0:
            target_prob = jnp.ones((K,), jnp.float32)
            log_p = jax.nn.log_softmax(probs[b])
            t = jax.nn.softmax(target_prob)
            loss = loss + jnp.mean(t * (jnp.log(t) - log_p))   # F.kl_div(...,'none').mean()
        else:
            target_prob = np.full((K,), EPSILON, np.float32)
            correct = []
            for kk in range(K):
                if preds[b][kk][0] == answers[b][0] and preds[b][kk][1] == answers[b][1]:
                    correct.append(kk)
                    topk += 1
                    if int(jnp.argmax(probs[b])) == kk:
                        top1 += 1
            if correct:
                for kk in correct:
                    target_prob[kk] = (1.0 - (K - len(correct)) * EPSILON) / len(correct)
                    t = jax.nn.softmax(jnp.asarray(target_prob))
                    log_p = jax.nn.log_softmax(probs[b])
                    loss = loss + jnp.mean(t * (jnp.log(t) - log_p))
    return probs, preds, topk, top1, loss


# ----------------------------- parameters ------------------------------------
def init_params(key):
    def norm(k_, shape, std=0.02):
        return std * jax.random.normal(k_, shape, jnp.float32)

    ks = jax.random.split(key, 6)
    wte = norm(ks[0], (VOCAB, HIDDEN))
    params = {
        'wte':  wte,
        'wpe':  norm(ks[1], (MAXLEN, HIDDEN)),
        'ln1g': jnp.ones((1, HIDDEN), jnp.float32),
        'ln1b': jnp.zeros((1, HIDDEN), jnp.float32),
        'wqkv': norm(ks[2], (HIDDEN, 3 * HIDDEN)),
        'bqkv': jnp.zeros((1, 3 * HIDDEN), jnp.float32),
        'wproj': norm(ks[3], (HIDDEN, HIDDEN)),
        'bproj': jnp.zeros((1, HIDDEN), jnp.float32),
        'ln2g': jnp.ones((1, HIDDEN), jnp.float32),
        'ln2b': jnp.zeros((1, HIDDEN), jnp.float32),
        'wfc':  norm(ks[4], (HIDDEN, 4 * HIDDEN)),
        'bfc':  jnp.zeros((1, 4 * HIDDEN), jnp.float32),
        'wo':   norm(ks[5], (4 * HIDDEN, HIDDEN)),
        'bo':   jnp.zeros((1, HIDDEN), jnp.float32),
        'lnfg': jnp.ones((1, HIDDEN), jnp.float32),
        'lnfb': jnp.zeros((1, HIDDEN), jnp.float32),
    }
    # tied LM head, stored [H, VPAD] (zero-padded, lane-dense output)
    params['whead'] = jnp.zeros((HIDDEN, VPAD), jnp.float32).at[:, :VOCAB].set(wte.T)
    return params


# ----------------------------- main -------------------------------------------
if __name__ == "__main__":
    key = jax.random.PRNGKey(0)
    params = init_params(key)

    S = 12                                   # seq >= R (torch.topk(..., R) requirement)
    # NOTE: the reference torch code only works for batch == 1 (it relies on
    # input_ids.squeeze() being 1-D inside compute_logprob), so we use batch = 1.
    input_ids = jax.random.randint(jax.random.fold_in(key, 1), (1, S), 0, VOCAB,
                                   dtype=jnp.int32)
    input_mask = jnp.ones((1, S), jnp.float32)
    answers = [[2, 5]]                       # non-empty -> uniform-target KL branch

    probs, preds, topk, top1, loss = qa_forward(params, input_ids, input_mask, answers)
    jax.block_until_ready(loss)
    jax.block_until_ready(probs[0])
    assert np.isfinite(float(loss))
    print("KERNEL_OK")
</pallas_src>

<mosaic_0001>
module attributes {stable_mosaic.version = 11 : i64} {
  func.func @lm_kernel(%arg0: i32, %arg1: memref<192xi32, #tpu.memory_space<smem>>, %arg2: memref<8x32x32xf32, #tpu.memory_space<vmem>>, %arg3: memref<1x32xf32, #tpu.memory_space<vmem>>, %arg4: memref<1x32xf32, #tpu.memory_space<vmem>>, %arg5: memref<32x96xf32, #tpu.memory_space<vmem>>, %arg6: memref<1x96xf32, #tpu.memory_space<vmem>>, %arg7: memref<32x32xf32, #tpu.memory_space<vmem>>, %arg8: memref<1x32xf32, #tpu.memory_space<vmem>>, %arg9: memref<1x32xf32, #tpu.memory_space<vmem>>, %arg10: memref<1x32xf32, #tpu.memory_space<vmem>>, %arg11: memref<32x128xf32, #tpu.memory_space<vmem>>, %arg12: memref<1x128xf32, #tpu.memory_space<vmem>>, %arg13: memref<128x32xf32, #tpu.memory_space<vmem>>, %arg14: memref<1x32xf32, #tpu.memory_space<vmem>>, %arg15: memref<1x32xf32, #tpu.memory_space<vmem>>, %arg16: memref<1x32xf32, #tpu.memory_space<vmem>>, %arg17: memref<32x128xf32, #tpu.memory_space<vmem>>, %arg18: memref<128x32xf32, #tpu.memory_space<vmem>>, %arg19: memref<128x32xf32, #tpu.memory_space<vmem>>, %arg20: memref<32x128xf32, #tpu.memory_space<vmem>>, %arg21: memref<128x128xf32, #tpu.memory_space<vmem>>, %arg22: memref<1x128xf32, #tpu.memory_space<vmem>>, %arg23: memref<8x8x128xf32, #tpu.memory_space<vmem>>) attributes {dimension_semantics = [#tpu.dimension_semantics<parallel>], iteration_bounds = array<i64: 24>, scalar_prefetch = 1 : i64, scratch_operands = 0 : i64, tpu.core_type = #tpu.core_type<tc>, window_params = [{transform_indices = @transform_0, window_bounds = array<i64: 8, 32, 32>}, {pipeline_mode = #tpu.pipeline_mode<synchronous>, transform_indices = @transform_1, window_bounds = array<i64: 1, 32>}, {pipeline_mode = #tpu.pipeline_mode<synchronous>, transform_indices = @transform_2, window_bounds = array<i64: 1, 32>}, {pipeline_mode = #tpu.pipeline_mode<synchronous>, transform_indices = @transform_3, window_bounds = array<i64: 32, 96>}, {pipeline_mode = #tpu.pipeline_mode<synchronous>, transform_indices = @transform_4, window_bounds = array<i64: 1, 96>}, {pipeline_mode = #tpu.pipeline_mode<synchronous>, transform_indices = @transform_5, window_bounds = array<i64: 32, 32>}, {pipeline_mode = #tpu.pipeline_mode<synchronous>, transform_indices = @transform_6, window_bounds = array<i64: 1, 32>}, {pipeline_mode = #tpu.pipeline_mode<synchronous>, transform_indices = @transform_7, window_bounds = array<i64: 1, 32>}, {pipeline_mode = #tpu.pipeline_mode<synchronous>, transform_indices = @transform_8, window_bounds = array<i64: 1, 32>}, {pipeline_mode = #tpu.pipeline_mode<synchronous>, transform_indices = @transform_9, window_bounds = array<i64: 32, 128>}, {pipeline_mode = #tpu.pipeline_mode<synchronous>, transform_indices = @transform_10, window_bounds = array<i64: 1, 128>}, {pipeline_mode = #tpu.pipeline_mode<synchronous>, transform_indices = @transform_11, window_bounds = array<i64: 128, 32>}, {pipeline_mode = #tpu.pipeline_mode<synchronous>, transform_indices = @transform_12, window_bounds = array<i64: 1, 32>}, {pipeline_mode = #tpu.pipeline_mode<synchronous>, transform_indices = @transform_13, window_bounds = array<i64: 1, 32>}, {pipeline_mode = #tpu.pipeline_mode<synchronous>, transform_indices = @transform_14, window_bounds = array<i64: 1, 32>}, {pipeline_mode = #tpu.pipeline_mode<synchronous>, transform_indices = @transform_15, window_bounds = array<i64: 32, 128>}, {pipeline_mode = #tpu.pipeline_mode<synchronous>, transform_indices = @transform_16, window_bounds = array<i64: 128, 32>}, {pipeline_mode = #tpu.pipeline_mode<synchronous>, transform_indices = @transform_17, window_bounds = array<i64: 128, 32>}, {pipeline_mode = #tpu.pipeline_mode<synchronous>, transform_indices = @transform_18, window_bounds = array<i64: 32, 128>}, {pipeline_mode = #tpu.pipeline_mode<synchronous>, transform_indices = @transform_19, window_bounds = array<i64: 128, 128>}, {pipeline_mode = #tpu.pipeline_mode<synchronous>, transform_indices = @transform_20, window_bounds = array<i64: 1, 128>}, {transform_indices = @transform_21, window_bounds = array<i64: 8, 8, 128>}]} {
    %c8_i32 = arith.constant 8 : i32
    %0 = arith.muli %arg0, %c8_i32 : i32
    %c0_i32 = arith.constant 0 : i32
    %1 = arith.addi %0, %c0_i32 : i32
    %2 = arith.index_cast %1 : i32 to index
    %3 = memref.load %arg1[%2] : memref<192xi32, #tpu.memory_space<smem>>
    %4 = tpu.assume_multiple %3, 8 : i32
    %c0 = arith.constant 0 : index
    %c0_0 = arith.constant 0 : index
    %c0_1 = arith.constant 0 : index
    %5 = vector.load %arg2[%c0, %c0_0, %c0_1] : memref<8x32x32xf32, #tpu.memory_space<vmem>>, vector<1x32x32xf32>
    %6 = vector.shape_cast %5 : vector<1x32x32xf32> to vector<32x32xf32>
    %c0_2 = arith.constant 0 : index
    %c0_3 = arith.constant 0 : index
    %7 = vector.load %arg3[%c0_2, %c0_3] : memref<1x32xf32, #tpu.memory_space<vmem>>, vector<1x32xf32>
    %c0_4 = arith.constant 0 : index
    %c0_5 = arith.constant 0 : index
    %8 = vector.load %arg4[%c0_4, %c0_5] : memref<1x32xf32, #tpu.memory_space<vmem>>, vector<1x32xf32>
    %cst = arith.constant dense<0.000000e+00> : vector<32xf32>
    %9 = vector.multi_reduction <add>, %6, %cst [1] : vector<32x32xf32> to vector<32xf32>
    %10 = vector.shape_cast %9 : vector<32xf32> to vector<32x1xf32>
    %cst_6 = arith.constant 3.200000e+01 : f32
    %11 = vector.broadcast %cst_6 : f32 to vector<32x1xf32>
    %12 = arith.divf %10, %11 : vector<32x1xf32>
    %13 = vector.broadcast %12 : vector<32x1xf32> to vector<32x32xf32>
    %14 = arith.subf %6, %13 : vector<32x32xf32>
    %15 = arith.mulf %14, %14 : vector<32x32xf32>
    %cst_7 = arith.constant dense<0.000000e+00> : vector<32xf32>
    %16 = vector.multi_reduction <add>, %15, %cst_7 [1] : vector<32x32xf32> to vector<32xf32>
    %17 = vector.shape_cast %16 : vector<32xf32> to vector<32x1xf32>
    %cst_8 = arith.constant 3.200000e+01 : f32
    %18 = vector.broadcast %cst_8 : f32 to vector<32x1xf32>
    %19 = arith.divf %17, %18 : vector<32x1xf32>
    %20 = vector.broadcast %12 : vector<32x1xf32> to vector<32x32xf32>
    %21 = arith.subf %6, %20 : vector<32x32xf32>
    %cst_9 = arith.constant 9.99999974E-6 : f32
    %22 = vector.broadcast %cst_9 : f32 to vector<32x1xf32>
    %23 = arith.addf %19, %22 : vector<32x1xf32>
    %24 = math.rsqrt %23 : vector<32x1xf32>
    %25 = vector.broadcast %24 : vector<32x1xf32> to vector<32x32xf32>
    %26 = arith.mulf %21, %25 : vector<32x32xf32>
    %27 = vector.broadcast %7 : vector<1x32xf32> to vector<32x32xf32>
    %28 = arith.mulf %26, %27 : vector<32x32xf32>
    %29 = vector.broadcast %8 : vector<1x32xf32> to vector<32x32xf32>
    %30 = arith.addf %28, %29 : vector<32x32xf32>
    %c0_10 = arith.constant 0 : index
    %c0_11 = arith.constant 0 : index
    %31 = vector.load %arg5[%c0_10, %c0_11] : memref<32x96xf32, #tpu.memory_space<vmem>>, vector<32x96xf32>
    %cst_12 = arith.constant dense<0.000000e+00> : vector<32x96xf32>
    %32 = tpu.matmul %30, %31, %cst_12 {dimension_numbers = #tpu.dot_dimension_numbers<[1], [0], [0], [1], [0, 0, 1, 1], [], []>} : vector<32x32xf32>, vector<32x96xf32>, vector<32x96xf32> -> vector<32x96xf32>
    %c0_13 = arith.constant 0 : index
    %c0_14 = arith.constant 0 : index
    %33 = vector.load %arg6[%c0_13, %c0_14] : memref<1x96xf32, #tpu.memory_space<vmem>>, vector<1x96xf32>
    %34 = vector.broadcast %33 : vector<1x96xf32> to vector<32x96xf32>
    %35 = arith.addf %32, %34 : vector<32x96xf32>
    %36 = vector.extract_strided_slice %35 {offsets = [0, 32], sizes = [32, 32], strides = [1, 1]} : vector<32x96xf32> to vector<32x32xf32>
    %37 = vector.extract_strided_slice %35 {offsets = [0, 64], sizes = [32, 32], strides = [1, 1]} : vector<32x96xf32> to vector<32x32xf32>
    %38 = tpu.concatenate %36, %36, %36, %36 in 0 : vector<32x32xf32>, vector<32x32xf32>, vector<32x32xf32>, vector<32x32xf32> -> vector<128x32xf32>
    %c0_15 = arith.constant 0 : index
    %c0_16 = arith.constant 0 : index
    %39 = vector.load %arg18[%c0_15, %c0_16] : memref<128x32xf32, #tpu.memory_space<vmem>>, vector<128x32xf32>
    %40 = arith.mulf %38, %39 : vector<128x32xf32>
    %41 = tpu.concatenate %37, %37, %37, %37 in 0 : vector<32x32xf32>, vector<32x32xf32>, vector<32x32xf32>, vector<32x32xf32> -> vector<128x32xf32>
    %c0_17 = arith.constant 0 : index
    %c0_18 = arith.constant 0 : index
    %42 = vector.load %arg19[%c0_17, %c0_18] : memref<128x32xf32, #tpu.memory_space<vmem>>, vector<128x32xf32>
    %43 = arith.mulf %41, %42 : vector<128x32xf32>
    %c0_19 = arith.constant 0 : index
    %44 = arith.index_cast %4 : i32 to index
    %c0_20 = arith.constant 0 : index
    %45 = vector.load %arg2[%c0_19, %44, %c0_20] : memref<8x32x32xf32, #tpu.memory_space<vmem>>, vector<1x8x32xf32>
    %46 = vector.shape_cast %45 : vector<1x8x32xf32> to vector<8x32xf32>
    %c0_21 = arith.constant 0 : index
    %c0_22 = arith.constant 0 : index
    %47 = vector.load %arg3[%c0_21, %c0_22] : memref<1x32xf32, #tpu.memory_space<vmem>>, vector<1x32xf32>
    %c0_23 = arith.constant 0 : index
    %c0_24 = arith.constant 0 : index
    %48 = vector.load %arg4[%c0_23, %c0_24] : memref<1x32xf32, #tpu.memory_space<vmem>>, vector<1x32xf32>
    %cst_25 = arith.constant dense<0.000000e+00> : vector<8xf32>
    %49 = vector.multi_reduction <add>, %46, %cst_25 [1] : vector<8x32xf32> to vector<8xf32>
    %50 = vector.shape_cast %49 : vector<8xf32> to vector<8x1xf32>
    %cst_26 = arith.constant 3.200000e+01 : f32
    %51 = vector.broadcast %cst_26 : f32 to vector<8x1xf32>
    %52 = arith.divf %50, %51 : vector<8x1xf32>
    %53 = vector.broadcast %52 : vector<8x1xf32> to vector<8x32xf32>
    %54 = arith.subf %46, %53 : vector<8x32xf32>
    %55 = arith.mulf %54, %54 : vector<8x32xf32>
    %cst_27 = arith.constant dense<0.000000e+00> : vector<8xf32>
    %56 = vector.multi_reduction <add>, %55, %cst_27 [1] : vector<8x32xf32> to vector<8xf32>
    %57 = vector.shape_cast %56 : vector<8xf32> to vector<8x1xf32>
    %cst_28 = arith.constant 3.200000e+01 : f32
    %58 = vector.broadcast %cst_28 : f32 to vector<8x1xf32>
    %59 = arith.divf %57, %58 : vector<8x1xf32>
    %60 = vector.broadcast %52 : vector<8x1xf32> to vector<8x32xf32>
    %61 = arith.subf %46, %60 : vector<8x32xf32>
    %cst_29 = arith.constant 9.99999974E-6 : f32
    %62 = vector.broadcast %cst_29 : f32 to vector<8x1xf32>
    %63 = arith.addf %59, %62 : vector<8x1xf32>
    %64 = math.rsqrt %63 : vector<8x1xf32>
    %65 = vector.broadcast %64 : vector<8x1xf32> to vector<8x32xf32>
    %66 = arith.mulf %61, %65 : vector<8x32xf32>
    %67 = vector.broadcast %47 : vector<1x32xf32> to vector<8x32xf32>
    %68 = arith.mulf %66, %67 : vector<8x32xf32>
    %69 = vector.broadcast %48 : vector<1x32xf32> to vector<8x32xf32>
    %70 = arith.addf %68, %69 : vector<8x32xf32>
    %c0_30 = arith.constant 0 : index
    %c0_31 = arith.constant 0 : index
    %71 = vector.load %arg5[%c0_30, %c0_31] : memref<32x96xf32, #tpu.memory_space<vmem>>, vector<32x96xf32>
    %cst_32 = arith.constant dense<0.000000e+00> : vector<8x96xf32>
    %72 = tpu.matmul %70, %71, %cst_32 {dimension_numbers = #tpu.dot_dimension_numbers<[1], [0], [0], [1], [0, 0, 1, 1], [], []>} : vector<8x32xf32>, vector<32x96xf32>, vector<8x96xf32> -> vector<8x96xf32>
    %c0_33 = arith.constant 0 : index
    %c0_34 = arith.constant 0 : index
    %73 = vector.load %arg6[%c0_33, %c0_34] : memref<1x96xf32, #tpu.memory_space<vmem>>, vector<1x96xf32>
    %74 = vector.broadcast %73 : vector<1x96xf32> to vector<8x96xf32>
    %75 = arith.addf %72, %74 : vector<8x96xf32>
    %76 = vector.extract_strided_slice %75 {offsets = [0, 0], sizes = [8, 32], strides = [1, 1]} : vector<8x96xf32> to vector<8x32xf32>
    %cst_35 = arith.constant dense<0.000000e+00> : vector<8x128xf32>
    %77 = tpu.matmul %76, %40, %cst_35 {dimension_numbers = #tpu.dot_dimension_numbers<[1], [1], [0], [0], [0, 0, 1, 0], [], []>} : vector<8x32xf32>, vector<128x32xf32>, vector<8x128xf32> -> vector<8x128xf32>
    %78 = arith.index_cast %4 : i32 to index
    %c0_36 = arith.constant 0 : index
    %79 = vector.load %arg20[%78, %c0_36] : memref<32x128xf32, #tpu.memory_space<vmem>>, vector<8x128xf32>
    %80 = arith.addf %77, %79 : vector<8x128xf32>
    %cst_37 = arith.constant dense<0xFF800000> : vector<8xf32>
    %81 = vector.multi_reduction <maximumf>, %80, %cst_37 [1] : vector<8x128xf32> to vector<8xf32>
    %82 = vector.shape_cast %81 : vector<8xf32> to vector<8x1xf32>
    %83 = vector.broadcast %82 : vector<8x1xf32> to vector<8x128xf32>
    %84 = arith.subf %80, %83 : vector<8x128xf32>
    %85 = math.exp %84 : vector<8x128xf32>
    %c0_38 = arith.constant 0 : index
    %c0_39 = arith.constant 0 : index
    %86 = vector.load %arg21[%c0_38, %c0_39] : memref<128x128xf32, #tpu.memory_space<vmem>>, vector<128x128xf32>
    %cst_40 = arith.constant dense<0.000000e+00> : vector<8x128xf32>
    %87 = tpu.matmul %85, %86, %cst_40 {dimension_numbers = #tpu.dot_dimension_numbers<[1], [0], [0], [1], [0, 0, 1, 1], [], []>} : vector<8x128xf32>, vector<128x128xf32>, vector<8x128xf32> -> vector<8x128xf32>
    %88 = tpu.reciprocal %87 {approx = true} : vector<8x128xf32> -> vector<8x128xf32>
    %89 = arith.mulf %85, %88 : vector<8x128xf32>
    %cst_41 = arith.constant dense<0.000000e+00> : vector<8x32xf32>
    %90 = tpu.matmul %89, %43, %cst_41 {dimension_numbers = #tpu.dot_dimension_numbers<[1], [0], [0], [1], [0, 0, 1, 1], [], []>} : vector<8x128xf32>, vector<128x32xf32>, vector<8x32xf32> -> vector<8x32xf32>
    %c0_42 = arith.constant 0 : index
    %c0_43 = arith.constant 0 : index
    %91 = vector.load %arg7[%c0_42, %c0_43] : memref<32x32xf32, #tpu.memory_space<vmem>>, vector<32x32xf32>
    %cst_44 = arith.constant dense<0.000000e+00> : vector<8x32xf32>
    %92 = tpu.matmul %90, %91, %cst_44 {dimension_numbers = #tpu.dot_dimension_numbers<[1], [0], [0], [1], [0, 0, 1, 1], [], []>} : vector<8x32xf32>, vector<32x32xf32>, vector<8x32xf32> -> vector<8x32xf32>
    %93 = arith.addf %46, %92 : vector<8x32xf32>
    %c0_45 = arith.constant 0 : index
    %c0_46 = arith.constant 0 : index
    %94 = vector.load %arg8[%c0_45, %c0_46] : memref<1x32xf32, #tpu.memory_space<vmem>>, vector<1x32xf32>
    %95 = vector.broadcast %94 : vector<1x32xf32> to vector<8x32xf32>
    %96 = arith.addf %93, %95 : vector<8x32xf32>
    %c1_i32 = arith.constant 1 : i32
    %97 = arith.addi %0, %c1_i32 : i32
    %98 = arith.index_cast %97 : i32 to index
    %99 = memref.load %arg1[%98] : memref<192xi32, #tpu.memory_space<smem>>
    %100 = tpu.assume_multiple %99, 8 : i32
    %c1 = arith.constant 1 : index
    %c0_47 = arith.constant 0 : index
    %c0_48 = arith.constant 0 : index
    %101 = vector.load %arg2[%c1, %c0_47, %c0_48] : memref<8x32x32xf32, #tpu.memory_space<vmem>>, vector<1x32x32xf32>
    %102 = vector.shape_cast %101 : vector<1x32x32xf32> to vector<32x32xf32>
    %c0_49 = arith.constant 0 : index
    %c0_50 = arith.constant 0 : index
    %103 = vector.load %arg3[%c0_49, %c0_50] : memref<1x32xf32, #tpu.memory_space<vmem>>, vector<1x32xf32>
    %c0_51 = arith.constant 0 : index
    %c0_52 = arith.constant 0 : index
    %104 = vector.load %arg4[%c0_51, %c0_52] : memref<1x32xf32, #tpu.memory_space<vmem>>, vector<1x32xf32>
    %cst_53 = arith.constant dense<0.000000e+00> : vector<32xf32>
    %105 = vector.multi_reduction <add>, %102, %cst_53 [1] : vector<32x32xf32> to vector<32xf32>
    %106 = vector.shape_cast %105 : vector<32xf32> to vector<32x1xf32>
    %cst_54 = arith.constant 3.200000e+01 : f32
    %107 = vector.broadcast %cst_54 : f32 to vector<32x1xf32>
    %108 = arith.divf %106, %107 : vector<32x1xf32>
    %109 = vector.broadcast %108 : vector<32x1xf32> to vector<32x32xf32>
    %110 = arith.subf %102, %109 : vector<32x32xf32>
    %111 = arith.mulf %110, %110 : vector<32x32xf32>
    %cst_55 = arith.constant dense<0.000000e+00> : vector<32xf32>
    %112 = vector.multi_reduction <add>, %111, %cst_55 [1] : vector<32x32xf32> to vector<32xf32>
    %113 = vector.shape_cast %112 : vector<32xf32> to vector<32x1xf32>
    %cst_56 = arith.constant 3.200000e+01 : f32
    %114 = vector.broadcast %cst_56 : f32 to vector<32x1xf32>
    %115 = arith.divf %113, %114 : vector<32x1xf32>
    %116 = vector.broadcast %108 : vector<32x1xf32> to vector<32x32xf32>
    %117 = arith.subf %102, %116 : vector<32x32xf32>
    %cst_57 = arith.constant 9.99999974E-6 : f32
    %118 = vector.broadcast %cst_57 : f32 to vector<32x1xf32>
    %119 = arith.addf %115, %118 : vector<32x1xf32>
    %120 = math.rsqrt %119 : vector<32x1xf32>
    %121 = vector.broadcast %120 : vector<32x1xf32> to vector<32x32xf32>
    %122 = arith.mulf %117, %121 : vector<32x32xf32>
    %123 = vector.broadcast %103 : vector<1x32xf32> to vector<32x32xf32>
    %124 = arith.mulf %122, %123 : vector<32x32xf32>
    %125 = vector.broadcast %104 : vector<1x32xf32> to vector<32x32xf32>
    %126 = arith.addf %124, %125 : vector<32x32xf32>
    %c0_58 = arith.constant 0 : index
    %c0_59 = arith.constant 0 : index
    %127 = vector.load %arg5[%c0_58, %c0_59] : memref<32x96xf32, #tpu.memory_space<vmem>>, vector<32x96xf32>
    %cst_60 = arith.constant dense<0.000000e+00> : vector<32x96xf32>
    %128 = tpu.matmul %126, %127, %cst_60 {dimension_numbers = #tpu.dot_dimension_numbers<[1], [0], [0], [1], [0, 0, 1, 1], [], []>} : vector<32x32xf32>, vector<32x96xf32>, vector<32x96xf32> -> vector<32x96xf32>
    %c0_61 = arith.constant 0 : index
    %c0_62 = arith.constant 0 : index
    %129 = vector.load %arg6[%c0_61, %c0_62] : memref<1x96xf32, #tpu.memory_space<vmem>>, vector<1x96xf32>
    %130 = vector.broadcast %129 : vector<1x96xf32> to vector<32x96xf32>
    %131 = arith.addf %128, %130 : vector<32x96xf32>
    %132 = vector.extract_strided_slice %131 {offsets = [0, 32], sizes = [32, 32], strides = [1, 1]} : vector<32x96xf32> to vector<32x32xf32>
    %133 = vector.extract_strided_slice %131 {offsets = [0, 64], sizes = [32, 32], strides = [1, 1]} : vector<32x96xf32> to vector<32x32xf32>
    %134 = tpu.concatenate %132, %132, %132, %132 in 0 : vector<32x32xf32>, vector<32x32xf32>, vector<32x32xf32>, vector<32x32xf32> -> vector<128x32xf32>
    %c0_63 = arith.constant 0 : index
    %c0_64 = arith.constant 0 : index
    %135 = vector.load %arg18[%c0_63, %c0_64] : memref<128x32xf32, #tpu.memory_space<vmem>>, vector<128x32xf32>
    %136 = arith.mulf %134, %135 : vector<128x32xf32>
    %137 = tpu.concatenate %133, %133, %133, %133 in 0 : vector<32x32xf32>, vector<32x32xf32>, vector<32x32xf32>, vector<32x32xf32> -> vector<128x32xf32>
    %c0_65 = arith.constant 0 : index
    %c0_66 = arith.constant 0 : index
    %138 = vector.load %arg19[%c0_65, %c0_66] : memref<128x32xf32, #tpu.memory_space<vmem>>, vector<128x32xf32>
    %139 = arith.mulf %137, %138 : vector<128x32xf32>
    %c1_67 = arith.constant 1 : index
    %140 = arith.index_cast %100 : i32 to index
    %c0_68 = arith.constant 0 : index
    %141 = vector.load %arg2[%c1_67, %140, %c0_68] : memref<8x32x32xf32, #tpu.memory_space<vmem>>, vector<1x8x32xf32>
    %142 = vector.shape_cast %141 : vector<1x8x32xf32> to vector<8x32xf32>
    %c0_69 = arith.constant 0 : index
    %c0_70 = arith.constant 0 : index
    %143 = vector.load %arg3[%c0_69, %c0_70] : memref<1x32xf32, #tpu.memory_space<vmem>>, vector<1x32xf32>
    %c0_71 = arith.constant 0 : index
    %c0_72 = arith.constant 0 : index
    %144 = vector.load %arg4[%c0_71, %c0_72] : memref<1x32xf32, #tpu.memory_space<vmem>>, vector<1x32xf32>
    %cst_73 = arith.constant dense<0.000000e+00> : vector<8xf32>
    %145 = vector.multi_reduction <add>, %142, %cst_73 [1] : vector<8x32xf32> to vector<8xf32>
    %146 = vector.shape_cast %145 : vector<8xf32> to vector<8x1xf32>
    %cst_74 = arith.constant 3.200000e+01 : f32
    %147 = vector.broadcast %cst_74 : f32 to vector<8x1xf32>
    %148 = arith.divf %146, %147 : vector<8x1xf32>
    %149 = vector.broadcast %148 : vector<8x1xf32> to vector<8x32xf32>
    %150 = arith.subf %142, %149 : vector<8x32xf32>
    %151 = arith.mulf %150, %150 : vector<8x32xf32>
    %cst_75 = arith.constant dense<0.000000e+00> : vector<8xf32>
    %152 = vector.multi_reduction <add>, %151, %cst_75 [1] : vector<8x32xf32> to vector<8xf32>
    %153 = vector.shape_cast %152 : vector<8xf32> to vector<8x1xf32>
    %cst_76 = arith.constant 3.200000e+01 : f32
    %154 = vector.broadcast %cst_76 : f32 to vector<8x1xf32>
    %155 = arith.divf %153, %154 : vector<8x1xf32>
    %156 = vector.broadcast %148 : vector<8x1xf32> to vector<8x32xf32>
    %157 = arith.subf %142, %156 : vector<8x32xf32>
    %cst_77 = arith.constant 9.99999974E-6 : f32
    %158 = vector.broadcast %cst_77 : f32 to vector<8x1xf32>
    %159 = arith.addf %155, %158 : vector<8x1xf32>
    %160 = math.rsqrt %159 : vector<8x1xf32>
    %161 = vector.broadcast %160 : vector<8x1xf32> to vector<8x32xf32>
    %162 = arith.mulf %157, %161 : vector<8x32xf32>
    %163 = vector.broadcast %143 : vector<1x32xf32> to vector<8x32xf32>
    %164 = arith.mulf %162, %163 : vector<8x32xf32>
    %165 = vector.broadcast %144 : vector<1x32xf32> to vector<8x32xf32>
    %166 = arith.addf %164, %165 : vector<8x32xf32>
    %c0_78 = arith.constant 0 : index
    %c0_79 = arith.constant 0 : index
    %167 = vector.load %arg5[%c0_78, %c0_79] : memref<32x96xf32, #tpu.memory_space<vmem>>, vector<32x96xf32>
    %cst_80 = arith.constant dense<0.000000e+00> : vector<8x96xf32>
    %168 = tpu.matmul %166, %167, %cst_80 {dimension_numbers = #tpu.dot_dimension_numbers<[1], [0], [0], [1], [0, 0, 1, 1], [], []>} : vector<8x32xf32>, vector<32x96xf32>, vector<8x96xf32> -> vector<8x96xf32>
    %c0_81 = arith.constant 0 : index
    %c0_82 = arith.constant 0 : index
    %169 = vector.load %arg6[%c0_81, %c0_82] : memref<1x96xf32, #tpu.memory_space<vmem>>, vector<1x96xf32>
    %170 = vector.broadcast %169 : vector<1x96xf32> to vector<8x96xf32>
    %171 = arith.addf %168, %170 : vector<8x96xf32>
    %172 = vector.extract_strided_slice %171 {offsets = [0, 0], sizes = [8, 32], strides = [1, 1]} : vector<8x96xf32> to vector<8x32xf32>
    %cst_83 = arith.constant dense<0.000000e+00> : vector<8x128xf32>
    %173 = tpu.matmul %172, %136, %cst_83 {dimension_numbers = #tpu.dot_dimension_numbers<[1], [1], [0], [0], [0, 0, 1, 0], [], []>} : vector<8x32xf32>, vector<128x32xf32>, vector<8x128xf32> -> vector<8x128xf32>
    %174 = arith.index_cast %100 : i32 to index
    %c0_84 = arith.constant 0 : index
    %175 = vector.load %arg20[%174, %c0_84] : memref<32x128xf32, #tpu.memory_space<vmem>>, vector<8x128xf32>
    %176 = arith.addf %173, %175 : vector<8x128xf32>
    %cst_85 = arith.constant dense<0xFF800000> : vector<8xf32>
    %177 = vector.multi_reduction <maximumf>, %176, %cst_85 [1] : vector<8x128xf32> to vector<8xf32>
    %178 = vector.shape_cast %177 : vector<8xf32> to vector<8x1xf32>
    %179 = vector.broadcast %178 : vector<8x1xf32> to vector<8x128xf32>
    %180 = arith.subf %176, %179 : vector<8x128xf32>
    %181 = math.exp %180 : vector<8x128xf32>
    %c0_86 = arith.constant 0 : index
    %c0_87 = arith.constant 0 : index
    %182 = vector.load %arg21[%c0_86, %c0_87] : memref<128x128xf32, #tpu.memory_space<vmem>>, vector<128x128xf32>
    %cst_88 = arith.constant dense<0.000000e+00> : vector<8x128xf32>
    %183 = tpu.matmul %181, %182, %cst_88 {dimension_numbers = #tpu.dot_dimension_numbers<[1], [0], [0], [1], [0, 0, 1, 1], [], []>} : vector<8x128xf32>, vector<128x128xf32>, vector<8x128xf32> -> vector<8x128xf32>
    %184 = tpu.reciprocal %183 {approx = true} : vector<8x128xf32> -> vector<8x128xf32>
    %185 = arith.mulf %181, %184 : vector<8x128xf32>
    %cst_89 = arith.constant dense<0.000000e+00> : vector<8x32xf32>
    %186 = tpu.matmul %185, %139, %cst_89 {dimension_numbers = #tpu.dot_dimension_numbers<[1], [0], [0], [1], [0, 0, 1, 1], [], []>} : vector<8x128xf32>, vector<128x32xf32>, vector<8x32xf32> -> vector<8x32xf32>
    %c0_90 = arith.constant 0 : index
    %c0_91 = arith.constant 0 : index
    %187 = vector.load %arg7[%c0_90, %c0_91] : memref<32x32xf32, #tpu.memory_space<vmem>>, vector<32x32xf32>
    %cst_92 = arith.constant dense<0.000000e+00> : vector<8x32xf32>
    %188 = tpu.matmul %186, %187, %cst_92 {dimension_numbers = #tpu.dot_dimension_numbers<[1], [0], [0], [1], [0, 0, 1, 1], [], []>} : vector<8x32xf32>, vector<32x32xf32>, vector<8x32xf32> -> vector<8x32xf32>
    %189 = arith.addf %142, %188 : vector<8x32xf32>
    %c0_93 = arith.constant 0 : index
    %c0_94 = arith.constant 0 : index
    %190 = vector.load %arg8[%c0_93, %c0_94] : memref<1x32xf32, #tpu.memory_space<vmem>>, vector<1x32xf32>
    %191 = vector.broadcast %190 : vector<1x32xf32> to vector<8x32xf32>
    %192 = arith.addf %189, %191 : vector<8x32xf32>
    %c2_i32 = arith.constant 2 : i32
    %193 = arith.addi %0, %c2_i32 : i32
    %194 = arith.index_cast %193 : i32 to index
    %195 = memref.load %arg1[%194] : memref<192xi32, #tpu.memory_space<smem>>
    %196 = tpu.assume_multiple %195, 8 : i32
    %c2 = arith.constant 2 : index
    %c0_95 = arith.constant 0 : index
    %c0_96 = arith.constant 0 : index
    %197 = vector.load %arg2[%c2, %c0_95, %c0_96] : memref<8x32x32xf32, #tpu.memory_space<vmem>>, vector<1x32x32xf32>
    %198 = vector.shape_cast %197 : vector<1x32x32xf32> to vector<32x32xf32>
    %c0_97 = arith.constant 0 : index
    %c0_98 = arith.constant 0 : index
    %199 = vector.load %arg3[%c0_97, %c0_98] : memref<1x32xf32, #tpu.memory_space<vmem>>, vector<1x32xf32>
    %c0_99 = arith.constant 0 : index
    %c0_100 = arith.constant 0 : index
    %200 = vector.load %arg4[%c0_99, %c0_100] : memref<1x32xf32, #tpu.memory_space<vmem>>, vector<1x32xf32>
    %cst_101 = arith.constant dense<0.000000e+00> : vector<32xf32>
    %201 = vector.multi_reduction <add>, %198, %cst_101 [1] : vector<32x32xf32> to vector<32xf32>
    %202 = vector.shape_cast %201 : vector<32xf32> to vector<32x1xf32>
    %cst_102 = arith.constant 3.200000e+01 : f32
    %203 = vector.broadcast %cst_102 : f32 to vector<32x1xf32>
    %204 = arith.divf %202, %203 : vector<32x1xf32>
    %205 = vector.broadcast %204 : vector<32x1xf32> to vector<32x32xf32>
    %206 = arith.subf %198, %205 : vector<32x32xf32>
    %207 = arith.mulf %206, %206 : vector<32x32xf32>
    %cst_103 = arith.constant dense<0.000000e+00> : vector<32xf32>
    %208 = vector.multi_reduction <add>, %207, %cst_103 [1] : vector<32x32xf32> to vector<32xf32>
    %209 = vector.shape_cast %208 : vector<32xf32> to vector<32x1xf32>
    %cst_104 = arith.constant 3.200000e+01 : f32
    %210 = vector.broadcast %cst_104 : f32 to vector<32x1xf32>
    %211 = arith.divf %209, %210 : vector<32x1xf32>
    %212 = vector.broadcast %204 : vector<32x1xf32> to vector<32x32xf32>
    %213 = arith.subf %198, %212 : vector<32x32xf32>
    %cst_105 = arith.constant 9.99999974E-6 : f32
    %214 = vector.broadcast %cst_105 : f32 to vector<32x1xf32>
    %215 = arith.addf %211, %214 : vector<32x1xf32>
    %216 = math.rsqrt %215 : vector<32x1xf32>
    %217 = vector.broadcast %216 : vector<32x1xf32> to vector<32x32xf32>
    %218 = arith.mulf %213, %217 : vector<32x32xf32>
    %219 = vector.broadcast %199 : vector<1x32xf32> to vector<32x32xf32>
    %220 = arith.mulf %218, %219 : vector<32x32xf32>
    %221 = vector.broadcast %200 : vector<1x32xf32> to vector<32x32xf32>
    %222 = arith.addf %220, %221 : vector<32x32xf32>
    %c0_106 = arith.constant 0 : index
    %c0_107 = arith.constant 0 : index
    %223 = vector.load %arg5[%c0_106, %c0_107] : memref<32x96xf32, #tpu.memory_space<vmem>>, vector<32x96xf32>
    %cst_108 = arith.constant dense<0.000000e+00> : vector<32x96xf32>
    %224 = tpu.matmul %222, %223, %cst_108 {dimension_numbers = #tpu.dot_dimension_numbers<[1], [0], [0], [1], [0, 0, 1, 1], [], []>} : vector<32x32xf32>, vector<32x96xf32>, vector<32x96xf32> -> vector<32x96xf32>
    %c0_109 = arith.constant 0 : index
    %c0_110 = arith.constant 0 : index
    %225 = vector.load %arg6[%c0_109, %c0_110] : memref<1x96xf32, #tpu.memory_space<vmem>>, vector<1x96xf32>
    %226 = vector.broadcast %225 : vector<1x96xf32> to vector<32x96xf32>
    %227 = arith.addf %224, %226 : vector<32x96xf32>
    %228 = vector.extract_strided_slice %227 {offsets = [0, 32], sizes = [32, 32], strides = [1, 1]} : vector<32x96xf32> to vector<32x32xf32>
    %229 = vector.extract_strided_slice %227 {offsets = [0, 64], sizes = [32, 32], strides = [1, 1]} : vector<32x96xf32> to vector<32x32xf32>
    %230 = tpu.concatenate %228, %228, %228, %228 in 0 : vector<32x32xf32>, vector<32x32xf32>, vector<32x32xf32>, vector<32x32xf32> -> vector<128x32xf32>
    %c0_111 = arith.constant 0 : index
    %c0_112 = arith.constant 0 : index
    %231 = vector.load %arg18[%c0_111, %c0_112] : memref<128x32xf32, #tpu.memory_space<vmem>>, vector<128x32xf32>
    %232 = arith.mulf %230, %231 : vector<128x32xf32>
    %233 = tpu.concatenate %229, %229, %229, %229 in 0 : vector<32x32xf32>, vector<32x32xf32>, vector<32x32xf32>, vector<32x32xf32> -> vector<128x32xf32>
    %c0_113 = arith.constant 0 : index
    %c0_114 = arith.constant 0 : index
    %234 = vector.load %arg19[%c0_113, %c0_114] : memref<128x32xf32, #tpu.memory_space<vmem>>, vector<128x32xf32>
    %235 = arith.mulf %233, %234 : vector<128x32xf32>
    %c2_115 = arith.constant 2 : index
    %236 = arith.index_cast %196 : i32 to index
    %c0_116 = arith.constant 0 : index
    %237 = vector.load %arg2[%c2_115, %236, %c0_116] : memref<8x32x32xf32, #tpu.memory_space<vmem>>, vector<1x8x32xf32>
    %238 = vector.shape_cast %237 : vector<1x8x32xf32> to vector<8x32xf32>
    %c0_117 = arith.constant 0 : index
    %c0_118 = arith.constant 0 : index
    %239 = vector.load %arg3[%c0_117, %c0_118] : memref<1x32xf32, #tpu.memory_space<vmem>>, vector<1x32xf32>
    %c0_119 = arith.constant 0 : index
    %c0_120 = arith.constant 0 : index
    %240 = vector.load %arg4[%c0_119, %c0_120] : memref<1x32xf32, #tpu.memory_space<vmem>>, vector<1x32xf32>
    %cst_121 = arith.constant dense<0.000000e+00> : vector<8xf32>
    %241 = vector.multi_reduction <add>, %238, %cst_121 [1] : vector<8x32xf32> to vector<8xf32>
    %242 = vector.shape_cast %241 : vector<8xf32> to vector<8x1xf32>
    %cst_122 = arith.constant 3.200000e+01 : f32
    %243 = vector.broadcast %cst_122 : f32 to vector<8x1xf32>
    %244 = arith.divf %242, %243 : vector<8x1xf32>
    %245 = vector.broadcast %244 : vector<8x1xf32> to vector<8x32xf32>
    %246 = arith.subf %238, %245 : vector<8x32xf32>
    %247 = arith.mulf %246, %246 : vector<8x32xf32>
    %cst_123 = arith.constant dense<0.000000e+00> : vector<8xf32>
    %248 = vector.multi_reduction <add>, %247, %cst_123 [1] : vector<8x32xf32> to vector<8xf32>
    %249 = vector.shape_cast %248 : vector<8xf32> to vector<8x1xf32>
    %cst_124 = arith.constant 3.200000e+01 : f32
    %250 = vector.broadcast %cst_124 : f32 to vector<8x1xf32>
    %251 = arith.divf %249, %250 : vector<8x1xf32>
    %252 = vector.broadcast %244 : vector<8x1xf32> to vector<8x32xf32>
    %253 = arith.subf %238, %252 : vector<8x32xf32>
    %cst_125 = arith.constant 9.99999974E-6 : f32
    %254 = vector.broadcast %cst_125 : f32 to vector<8x1xf32>
    %255 = arith.addf %251, %254 : vector<8x1xf32>
    %256 = math.rsqrt %255 : vector<8x1xf32>
    %257 = vector.broadcast %256 : vector<8x1xf32> to vector<8x32xf32>
    %258 = arith.mulf %253, %257 : vector<8x32xf32>
    %259 = vector.broadcast %239 : vector<1x32xf32> to vector<8x32xf32>
    %260 = arith.mulf %258, %259 : vector<8x32xf32>
    %261 = vector.broadcast %240 : vector<1x32xf32> to vector<8x32xf32>
    %262 = arith.addf %260, %261 : vector<8x32xf32>
    %c0_126 = arith.constant 0 : index
    %c0_127 = arith.constant 0 : index
    %263 = vector.load %arg5[%c0_126, %c0_127] : memref<32x96xf32, #tpu.memory_space<vmem>>, vector<32x96xf32>
    %cst_128 = arith.constant dense<0.000000e+00> : vector<8x96xf32>
    %264 = tpu.matmul %262, %263, %cst_128 {dimension_numbers = #tpu.dot_dimension_numbers<[1], [0], [0], [1], [0, 0, 1, 1], [], []>} : vector<8x32xf32>, vector<32x96xf32>, vector<8x96xf32> -> vector<8x96xf32>
    %c0_129 = arith.constant 0 : index
    %c0_130 = arith.constant 0 : index
    %265 = vector.load %arg6[%c0_129, %c0_130] : memref<1x96xf32, #tpu.memory_space<vmem>>, vector<1x96xf32>
    %266 = vector.broadcast %265 : vector<1x96xf32> to vector<8x96xf32>
    %267 = arith.addf %264, %266 : vector<8x96xf32>
    %268 = vector.extract_strided_slice %267 {offsets = [0, 0], sizes = [8, 32], strides = [1, 1]} : vector<8x96xf32> to vector<8x32xf32>
    %cst_131 = arith.constant dense<0.000000e+00> : vector<8x128xf32>
    %269 = tpu.matmul %268, %232, %cst_131 {dimension_numbers = #tpu.dot_dimension_numbers<[1], [1], [0], [0], [0, 0, 1, 0], [], []>} : vector<8x32xf32>, vector<128x32xf32>, vector<8x128xf32> -> vector<8x128xf32>
    %270 = arith.index_cast %196 : i32 to index
    %c0_132 = arith.constant 0 : index
    %271 = vector.load %arg20[%270, %c0_132] : memref<32x128xf32, #tpu.memory_space<vmem>>, vector<8x128xf32>
    %272 = arith.addf %269, %271 : vector<8x128xf32>
    %cst_133 = arith.constant dense<0xFF800000> : vector<8xf32>
    %273 = vector.multi_reduction <maximumf>, %272, %cst_133 [1] : vector<8x128xf32> to vector<8xf32>
    %274 = vector.shape_cast %273 : vector<8xf32> to vector<8x1xf32>
    %275 = vector.broadcast %274 : vector<8x1xf32> to vector<8x128xf32>
    %276 = arith.subf %272, %275 : vector<8x128xf32>
    %277 = math.exp %276 : vector<8x128xf32>
    %c0_134 = arith.constant 0 : index
    %c0_135 = arith.constant 0 : index
    %278 = vector.load %arg21[%c0_134, %c0_135] : memref<128x128xf32, #tpu.memory_space<vmem>>, vector<128x128xf32>
    %cst_136 = arith.constant dense<0.000000e+00> : vector<8x128xf32>
    %279 = tpu.matmul %277, %278, %cst_136 {dimension_numbers = #tpu.dot_dimension_numbers<[1], [0], [0], [1], [0, 0, 1, 1], [], []>} : vector<8x128xf32>, vector<128x128xf32>, vector<8x128xf32> -> vector<8x128xf32>
    %280 = tpu.reciprocal %279 {approx = true} : vector<8x128xf32> -> vector<8x128xf32>
    %281 = arith.mulf %277, %280 : vector<8x128xf32>
    %cst_137 = arith.constant dense<0.000000e+00> : vector<8x32xf32>
    %282 = tpu.matmul %281, %235, %cst_137 {dimension_numbers = #tpu.dot_dimension_numbers<[1], [0], [0], [1], [0, 0, 1, 1], [], []>} : vector<8x128xf32>, vector<128x32xf32>, vector<8x32xf32> -> vector<8x32xf32>
    %c0_138 = arith.constant 0 : index
    %c0_139 = arith.constant 0 : index
    %283 = vector.load %arg7[%c0_138, %c0_139] : memref<32x32xf32, #tpu.memory_space<vmem>>, vector<32x32xf32>
    %cst_140 = arith.constant dense<0.000000e+00> : vector<8x32xf32>
    %284 = tpu.matmul %282, %283, %cst_140 {dimension_numbers = #tpu.dot_dimension_numbers<[1], [0], [0], [1], [0, 0, 1, 1], [], []>} : vector<8x32xf32>, vector<32x32xf32>, vector<8x32xf32> -> vector<8x32xf32>
    %285 = arith.addf %238, %284 : vector<8x32xf32>
    %c0_141 = arith.constant 0 : index
    %c0_142 = arith.constant 0 : index
    %286 = vector.load %arg8[%c0_141, %c0_142] : memref<1x32xf32, #tpu.memory_space<vmem>>, vector<1x32xf32>
    %287 = vector.broadcast %286 : vector<1x32xf32> to vector<8x32xf32>
    %288 = arith.addf %285, %287 : vector<8x32xf32>
    %c3_i32 = arith.constant 3 : i32
    %289 = arith.addi %0, %c3_i32 : i32
    %290 = arith.index_cast %289 : i32 to index
    %291 = memref.load %arg1[%290] : memref<192xi32, #tpu.memory_space<smem>>
    %292 = tpu.assume_multiple %291, 8 : i32
    %c3 = arith.constant 3 : index
    %c0_143 = arith.constant 0 : index
    %c0_144 = arith.constant 0 : index
    %293 = vector.load %arg2[%c3, %c0_143, %c0_144] : memref<8x32x32xf32, #tpu.memory_space<vmem>>, vector<1x32x32xf32>
    %294 = vector.shape_cast %293 : vector<1x32x32xf32> to vector<32x32xf32>
    %c0_145 = arith.constant 0 : index
    %c0_146 = arith.constant 0 : index
    %295 = vector.load %arg3[%c0_145, %c0_146] : memref<1x32xf32, #tpu.memory_space<vmem>>, vector<1x32xf32>
    %c0_147 = arith.constant 0 : index
    %c0_148 = arith.constant 0 : index
    %296 = vector.load %arg4[%c0_147, %c0_148] : memref<1x32xf32, #tpu.memory_space<vmem>>, vector<1x32xf32>
    %cst_149 = arith.constant dense<0.000000e+00> : vector<32xf32>
    %297 = vector.multi_reduction <add>, %294, %cst_149 [1] : vector<32x32xf32> to vector<32xf32>
    %298 = vector.shape_cast %297 : vector<32xf32> to vector<32x1xf32>
    %cst_150 = arith.constant 3.200000e+01 : f32
    %299 = vector.broadcast %cst_150 : f32 to vector<32x1xf32>
    %300 = arith.divf %298, %299 : vector<32x1xf32>
    %301 = vector.broadcast %300 : vector<32x1xf32> to vector<32x32xf32>
    %302 = arith.subf %294, %301 : vector<32x32xf32>
    %303 = arith.mulf %302, %302 : vector<32x32xf32>
    %cst_151 = arith.constant dense<0.000000e+00> : vector<32xf32>
    %304 = vector.multi_reduction <add>, %303, %cst_151 [1] : vector<32x32xf32> to vector<32xf32>
    %305 = vector.shape_cast %304 : vector<32xf32> to vector<32x1xf32>
    %cst_152 = arith.constant 3.200000e+01 : f32
    %306 = vector.broadcast %cst_152 : f32 to vector<32x1xf32>
    %307 = arith.divf %305, %306 : vector<32x1xf32>
    %308 = vector.broadcast %300 : vector<32x1xf32> to vector<32x32xf32>
    %309 = arith.subf %294, %308 : vector<32x32xf32>
    %cst_153 = arith.constant 9.99999974E-6 : f32
    %310 = vector.broadcast %cst_153 : f32 to vector<32x1xf32>
    %311 = arith.addf %307, %310 : vector<32x1xf32>
    %312 = math.rsqrt %311 : vector<32x1xf32>
    %313 = vector.broadcast %312 : vector<32x1xf32> to vector<32x32xf32>
    %314 = arith.mulf %309, %313 : vector<32x32xf32>
    %315 = vector.broadcast %295 : vector<1x32xf32> to vector<32x32xf32>
    %316 = arith.mulf %314, %315 : vector<32x32xf32>
    %317 = vector.broadcast %296 : vector<1x32xf32> to vector<32x32xf32>
    %318 = arith.addf %316, %317 : vector<32x32xf32>
    %c0_154 = arith.constant 0 : index
    %c0_155 = arith.constant 0 : index
    %319 = vector.load %arg5[%c0_154, %c0_155] : memref<32x96xf32, #tpu.memory_space<vmem>>, vector<32x96xf32>
    %cst_156 = arith.constant dense<0.000000e+00> : vector<32x96xf32>
    %320 = tpu.matmul %318, %319, %cst_156 {dimension_numbers = #tpu.dot_dimension_numbers<[1], [0], [0], [1], [0, 0, 1, 1], [], []>} : vector<32x32xf32>, vector<32x96xf32>, vector<32x96xf32> -> vector<32x96xf32>
    %c0_157 = arith.constant 0 : index
    %c0_158 = arith.constant 0 : index
    %321 = vector.load %arg6[%c0_157, %c0_158] : memref<1x96xf32, #tpu.memory_space<vmem>>, vector<1x96xf32>
    %322 = vector.broadcast %321 : vector<1x96xf32> to vector<32x96xf32>
    %323 = arith.addf %320, %322 : vector<32x96xf32>
    %324 = vector.extract_strided_slice %323 {offsets = [0, 32], sizes = [32, 32], strides = [1, 1]} : vector<32x96xf32> to vector<32x32xf32>
    %325 = vector.extract_strided_slice %323 {offsets = [0, 64], sizes = [32, 32], strides = [1, 1]} : vector<32x96xf32> to vector<32x32xf32>
    %326 = tpu.concatenate %324, %324, %324, %324 in 0 : vector<32x32xf32>, vector<32x32xf32>, vector<32x32xf32>, vector<32x32xf32> -> vector<128x32xf32>
    %c0_159 = arith.constant 0 : index
    %c0_160 = arith.constant 0 : index
    %327 = vector.load %arg18[%c0_159, %c0_160] : memref<128x32xf32, #tpu.memory_space<vmem>>, vector<128x32xf32>
    %328 = arith.mulf %326, %327 : vector<128x32xf32>
    %329 = tpu.concatenate %325, %325, %325, %325 in 0 : vector<32x32xf32>, vector<32x32xf32>, vector<32x32xf32>, vector<32x32xf32> -> vector<128x32xf32>
    %c0_161 = arith.constant 0 : index
    %c0_162 = arith.constant 0 : index
    %330 = vector.load %arg19[%c0_161, %c0_162] : memref<128x32xf32, #tpu.memory_space<vmem>>, vector<128x32xf32>
    %331 = arith.mulf %329, %330 : vector<128x32xf32>
    %c3_163 = arith.constant 3 : index
    %332 = arith.index_cast %292 : i32 to index
    %c0_164 = arith.constant 0 : index
    %333 = vector.load %arg2[%c3_163, %332, %c0_164] : memref<8x32x32xf32, #tpu.memory_space<vmem>>, vector<1x8x32xf32>
    %334 = vector.shape_cast %333 : vector<1x8x32xf32> to vector<8x32xf32>
    %c0_165 = arith.constant 0 : index
    %c0_166 = arith.constant 0 : index
    %335 = vector.load %arg3[%c0_165, %c0_166] : memref<1x32xf32, #tpu.memory_space<vmem>>, vector<1x32xf32>
    %c0_167 = arith.constant 0 : index
    %c0_168 = arith.constant 0 : index
    %336 = vector.load %arg4[%c0_167, %c0_168] : memref<1x32xf32, #tpu.memory_space<vmem>>, vector<1x32xf32>
    %cst_169 = arith.constant dense<0.000000e+00> : vector<8xf32>
    %337 = vector.multi_reduction <add>, %334, %cst_169 [1] : vector<8x32xf32> to vector<8xf32>
    %338 = vector.shape_cast %337 : vector<8xf32> to vector<8x1xf32>
    %cst_170 = arith.constant 3.200000e+01 : f32
    %339 = vector.broadcast %cst_170 : f32 to vector<8x1xf32>
    %340 = arith.divf %338, %339 : vector<8x1xf32>
    %341 = vector.broadcast %340 : vector<8x1xf32> to vector<8x32xf32>
    %342 = arith.subf %334, %341 : vector<8x32xf32>
    %343 = arith.mulf %342, %342 : vector<8x32xf32>
    %cst_171 = arith.constant dense<0.000000e+00> : vector<8xf32>
    %344 = vector.multi_reduction <add>, %343, %cst_171 [1] : vector<8x32xf32> to vector<8xf32>
    %345 = vector.shape_cast %344 : vector<8xf32> to vector<8x1xf32>
    %cst_172 = arith.constant 3.200000e+01 : f32
    %346 = vector.broadcast %cst_172 : f32 to vector<8x1xf32>
    %347 = arith.divf %345, %346 : vector<8x1xf32>
    %348 = vector.broadcast %340 : vector<8x1xf32> to vector<8x32xf32>
    %349 = arith.subf %334, %348 : vector<8x32xf32>
    %cst_173 = arith.constant 9.99999974E-6 : f32
    %350 = vector.broadcast %cst_173 : f32 to vector<8x1xf32>
    %351 = arith.addf %347, %350 : vector<8x1xf32>
    %352 = math.rsqrt %351 : vector<8x1xf32>
    %353 = vector.broadcast %352 : vector<8x1xf32> to vector<8x32xf32>
    %354 = arith.mulf %349, %353 : vector<8x32xf32>
    %355 = vector.broadcast %335 : vector<1x32xf32> to vector<8x32xf32>
    %356 = arith.mulf %354, %355 : vector<8x32xf32>
    %357 = vector.broadcast %336 : vector<1x32xf32> to vector<8x32xf32>
    %358 = arith.addf %356, %357 : vector<8x32xf32>
    %c0_174 = arith.constant 0 : index
    %c0_175 = arith.constant 0 : index
    %359 = vector.load %arg5[%c0_174, %c0_175] : memref<32x96xf32, #tpu.memory_space<vmem>>, vector<32x96xf32>
    %cst_176 = arith.constant dense<0.000000e+00> : vector<8x96xf32>
    %360 = tpu.matmul %358, %359, %cst_176 {dimension_numbers = #tpu.dot_dimension_numbers<[1], [0], [0], [1], [0, 0, 1, 1], [], []>} : vector<8x32xf32>, vector<32x96xf32>, vector<8x96xf32> -> vector<8x96xf32>
    %c0_177 = arith.constant 0 : index
    %c0_178 = arith.constant 0 : index
    %361 = vector.load %arg6[%c0_177, %c0_178] : memref<1x96xf32, #tpu.memory_space<vmem>>, vector<1x96xf32>
    %362 = vector.broadcast %361 : vector<1x96xf32> to vector<8x96xf32>
    %363 = arith.addf %360, %362 : vector<8x96xf32>
    %364 = vector.extract_strided_slice %363 {offsets = [0, 0], sizes = [8, 32], strides = [1, 1]} : vector<8x96xf32> to vector<8x32xf32>
    %cst_179 = arith.constant dense<0.000000e+00> : vector<8x128xf32>
    %365 = tpu.matmul %364, %328, %cst_179 {dimension_numbers = #tpu.dot_dimension_numbers<[1], [1], [0], [0], [0, 0, 1, 0], [], []>} : vector<8x32xf32>, vector<128x32xf32>, vector<8x128xf32> -> vector<8x128xf32>
    %366 = arith.index_cast %292 : i32 to index
    %c0_180 = arith.constant 0 : index
    %367 = vector.load %arg20[%366, %c0_180] : memref<32x128xf32, #tpu.memory_space<vmem>>, vector<8x128xf32>
    %368 = arith.addf %365, %367 : vector<8x128xf32>
    %cst_181 = arith.constant dense<0xFF800000> : vector<8xf32>
    %369 = vector.multi_reduction <maximumf>, %368, %cst_181 [1] : vector<8x128xf32> to vector<8xf32>
    %370 = vector.shape_cast %369 : vector<8xf32> to vector<8x1xf32>
    %371 = vector.broadcast %370 : vector<8x1xf32> to vector<8x128xf32>
    %372 = arith.subf %368, %371 : vector<8x128xf32>
    %373 = math.exp %372 : vector<8x128xf32>
    %c0_182 = arith.constant 0 : index
    %c0_183 = arith.constant 0 : index
    %374 = vector.load %arg21[%c0_182, %c0_183] : memref<128x128xf32, #tpu.memory_space<vmem>>, vector<128x128xf32>
    %cst_184 = arith.constant dense<0.000000e+00> : vector<8x128xf32>
    %375 = tpu.matmul %373, %374, %cst_184 {dimension_numbers = #tpu.dot_dimension_numbers<[1], [0], [0], [1], [0, 0, 1, 1], [], []>} : vector<8x128xf32>, vector<128x128xf32>, vector<8x128xf32> -> vector<8x128xf32>
    %376 = tpu.reciprocal %375 {approx = true} : vector<8x128xf32> -> vector<8x128xf32>
    %377 = arith.mulf %373, %376 : vector<8x128xf32>
    %cst_185 = arith.constant dense<0.000000e+00> : vector<8x32xf32>
    %378 = tpu.matmul %377, %331, %cst_185 {dimension_numbers = #tpu.dot_dimension_numbers<[1], [0], [0], [1], [0, 0, 1, 1], [], []>} : vector<8x128xf32>, vector<128x32xf32>, vector<8x32xf32> -> vector<8x32xf32>
    %c0_186 = arith.constant 0 : index
    %c0_187 = arith.constant 0 : index
    %379 = vector.load %arg7[%c0_186, %c0_187] : memref<32x32xf32, #tpu.memory_space<vmem>>, vector<32x32xf32>
    %cst_188 = arith.constant dense<0.000000e+00> : vector<8x32xf32>
    %380 = tpu.matmul %378, %379, %cst_188 {dimension_numbers = #tpu.dot_dimension_numbers<[1], [0], [0], [1], [0, 0, 1, 1], [], []>} : vector<8x32xf32>, vector<32x32xf32>, vector<8x32xf32> -> vector<8x32xf32>
    %381 = arith.addf %334, %380 : vector<8x32xf32>
    %c0_189 = arith.constant 0 : index
    %c0_190 = arith.constant 0 : index
    %382 = vector.load %arg8[%c0_189, %c0_190] : memref<1x32xf32, #tpu.memory_space<vmem>>, vector<1x32xf32>
    %383 = vector.broadcast %382 : vector<1x32xf32> to vector<8x32xf32>
    %384 = arith.addf %381, %383 : vector<8x32xf32>
    %c4_i32 = arith.constant 4 : i32
    %385 = arith.addi %0, %c4_i32 : i32
    %386 = arith.index_cast %385 : i32 to index
    %387 = memref.load %arg1[%386] : memref<192xi32, #tpu.memory_space<smem>>
    %388 = tpu.assume_multiple %387, 8 : i32
    %c4 = arith.constant 4 : index
    %c0_191 = arith.constant 0 : index
    %c0_192 = arith.constant 0 : index
    %389 = vector.load %arg2[%c4, %c0_191, %c0_192] : memref<8x32x32xf32, #tpu.memory_space<vmem>>, vector<1x32x32xf32>
    %390 = vector.shape_cast %389 : vector<1x32x32xf32> to vector<32x32xf32>
    %c0_193 = arith.constant 0 : index
    %c0_194 = arith.constant 0 : index
    %391 = vector.load %arg3[%c0_193, %c0_194] : memref<1x32xf32, #tpu.memory_space<vmem>>, vector<1x32xf32>
    %c0_195 = arith.constant 0 : index
    %c0_196 = arith.constant 0 : index
    %392 = vector.load %arg4[%c0_195, %c0_196] : memref<1x32xf32, #tpu.memory_space<vmem>>, vector<1x32xf32>
    %cst_197 = arith.constant dense<0.000000e+00> : vector<32xf32>
    %393 = vector.multi_reduction <add>, %390, %cst_197 [1] : vector<32x32xf32> to vector<32xf32>
    %394 = vector.shape_cast %393 : vector<32xf32> to vector<32x1xf32>
    %cst_198 = arith.constant 3.200000e+01 : f32
    %395 = vector.broadcast %cst_198 : f32 to vector<32x1xf32>
    %396 = arith.divf %394, %395 : vector<32x1xf32>
    %397 = vector.broadcast %396 : vector<32x1xf32> to vector<32x32xf32>
    %398 = arith.subf %390, %397 : vector<32x32xf32>
    %399 = arith.mulf %398, %398 : vector<32x32xf32>
    %cst_199 = arith.constant dense<0.000000e+00> : vector<32xf32>
    %400 = vector.multi_reduction <add>, %399, %cst_199 [1] : vector<32x32xf32> to vector<32xf32>
    %401 = vector.shape_cast %400 : vector<32xf32> to vector<32x1xf32>
    %cst_200 = arith.constant 3.200000e+01 : f32
    %402 = vector.broadcast %cst_200 : f32 to vector<32x1xf32>
    %403 = arith.divf %401, %402 : vector<32x1xf32>
    %404 = vector.broadcast %396 : vector<32x1xf32> to vector<32x32xf32>
    %405 = arith.subf %390, %404 : vector<32x32xf32>
    %cst_201 = arith.constant 9.99999974E-6 : f32
    %406 = vector.broadcast %cst_201 : f32 to vector<32x1xf32>
    %407 = arith.addf %403, %406 : vector<32x1xf32>
    %408 = math.rsqrt %407 : vector<32x1xf32>
    %409 = vector.broadcast %408 : vector<32x1xf32> to vector<32x32xf32>
    %410 = arith.mulf %405, %409 : vector<32x32xf32>
    %411 = vector.broadcast %391 : vector<1x32xf32> to vector<32x32xf32>
    %412 = arith.mulf %410, %411 : vector<32x32xf32>
    %413 = vector.broadcast %392 : vector<1x32xf32> to vector<32x32xf32>
    %414 = arith.addf %412, %413 : vector<32x32xf32>
    %c0_202 = arith.constant 0 : index
    %c0_203 = arith.constant 0 : index
    %415 = vector.load %arg5[%c0_202, %c0_203] : memref<32x96xf32, #tpu.memory_space<vmem>>, vector<32x96xf32>
    %cst_204 = arith.constant dense<0.000000e+00> : vector<32x96xf32>
    %416 = tpu.matmul %414, %415, %cst_204 {dimension_numbers = #tpu.dot_dimension_numbers<[1], [0], [0], [1], [0, 0, 1, 1], [], []>} : vector<32x32xf32>, vector<32x96xf32>, vector<32x96xf32> -> vector<32x96xf32>
    %c0_205 = arith.constant 0 : index
    %c0_206 = arith.constant 0 : index
    %417 = vector.load %arg6[%c0_205, %c0_206] : memref<1x96xf32, #tpu.memory_space<vmem>>, vector<1x96xf32>
    %418 = vector.broadcast %417 : vector<1x96xf32> to vector<32x96xf32>
    %419 = arith.addf %416, %418 : vector<32x96xf32>
    %420 = vector.extract_strided_slice %419 {offsets = [0, 32], sizes = [32, 32], strides = [1, 1]} : vector<32x96xf32> to vector<32x32xf32>
    %421 = vector.extract_strided_slice %419 {offsets = [0, 64], sizes = [32, 32], strides = [1, 1]} : vector<32x96xf32> to vector<32x32xf32>
    %422 = tpu.concatenate %420, %420, %420, %420 in 0 : vector<32x32xf32>, vector<32x32xf32>, vector<32x32xf32>, vector<32x32xf32> -> vector<128x32xf32>
    %c0_207 = arith.constant 0 : index
    %c0_208 = arith.constant 0 : index
    %423 = vector.load %arg18[%c0_207, %c0_208] : memref<128x32xf32, #tpu.memory_space<vmem>>, vector<128x32xf32>
    %424 = arith.mulf %422, %423 : vector<128x32xf32>
    %425 = tpu.concatenate %421, %421, %421, %421 in 0 : vector<32x32xf32>, vector<32x32xf32>, vector<32x32xf32>, vector<32x32xf32> -> vector<128x32xf32>
    %c0_209 = arith.constant 0 : index
    %c0_210 = arith.constant 0 : index
    %426 = vector.load %arg19[%c0_209, %c0_210] : memref<128x32xf32, #tpu.memory_space<vmem>>, vector<128x32xf32>
    %427 = arith.mulf %425, %426 : vector<128x32xf32>
    %c4_211 = arith.constant 4 : index
    %428 = arith.index_cast %388 : i32 to index
    %c0_212 = arith.constant 0 : index
    %429 = vector.load %arg2[%c4_211, %428, %c0_212] : memref<8x32x32xf32, #tpu.memory_space<vmem>>, vector<1x8x32xf32>
    %430 = vector.shape_cast %429 : vector<1x8x32xf32> to vector<8x32xf32>
    %c0_213 = arith.constant 0 : index
    %c0_214 = arith.constant 0 : index
    %431 = vector.load %arg3[%c0_213, %c0_214] : memref<1x32xf32, #tpu.memory_space<vmem>>, vector<1x32xf32>
    %c0_215 = arith.constant 0 : index
    %c0_216 = arith.constant 0 : index
    %432 = vector.load %arg4[%c0_215, %c0_216] : memref<1x32xf32, #tpu.memory_space<vmem>>, vector<1x32xf32>
    %cst_217 = arith.constant dense<0.000000e+00> : vector<8xf32>
    %433 = vector.multi_reduction <add>, %430, %cst_217 [1] : vector<8x32xf32> to vector<8xf32>
    %434 = vector.shape_cast %433 : vector<8xf32> to vector<8x1xf32>
    %cst_218 = arith.constant 3.200000e+01 : f32
    %435 = vector.broadcast %cst_218 : f32 to vector<8x1xf32>
    %436 = arith.divf %434, %435 : vector<8x1xf32>
    %437 = vector.broadcast %436 : vector<8x1xf32> to vector<8x32xf32>
    %438 = arith.subf %430, %437 : vector<8x32xf32>
    %439 = arith.mulf %438, %438 : vector<8x32xf32>
    %cst_219 = arith.constant dense<0.000000e+00> : vector<8xf32>
    %440 = vector.multi_reduction <add>, %439, %cst_219 [1] : vector<8x32xf32> to vector<8xf32>
    %441 = vector.shape_cast %440 : vector<8xf32> to vector<8x1xf32>
    %cst_220 = arith.constant 3.200000e+01 : f32
    %442 = vector.broadcast %cst_220 : f32 to vector<8x1xf32>
    %443 = arith.divf %441, %442 : vector<8x1xf32>
    %444 = vector.broadcast %436 : vector<8x1xf32> to vector<8x32xf32>
    %445 = arith.subf %430, %444 : vector<8x32xf32>
    %cst_221 = arith.constant 9.99999974E-6 : f32
    %446 = vector.broadcast %cst_221 : f32 to vector<8x1xf32>
    %447 = arith.addf %443, %446 : vector<8x1xf32>
    %448 = math.rsqrt %447 : vector<8x1xf32>
    %449 = vector.broadcast %448 : vector<8x1xf32> to vector<8x32xf32>
    %450 = arith.mulf %445, %449 : vector<8x32xf32>
    %451 = vector.broadcast %431 : vector<1x32xf32> to vector<8x32xf32>
    %452 = arith.mulf %450, %451 : vector<8x32xf32>
    %453 = vector.broadcast %432 : vector<1x32xf32> to vector<8x32xf32>
    %454 = arith.addf %452, %453 : vector<8x32xf32>
    %c0_222 = arith.constant 0 : index
    %c0_223 = arith.constant 0 : index
    %455 = vector.load %arg5[%c0_222, %c0_223] : memref<32x96xf32, #tpu.memory_space<vmem>>, vector<32x96xf32>
    %cst_224 = arith.constant dense<0.000000e+00> : vector<8x96xf32>
    %456 = tpu.matmul %454, %455, %cst_224 {dimension_numbers = #tpu.dot_dimension_numbers<[1], [0], [0], [1], [0, 0, 1, 1], [], []>} : vector<8x32xf32>, vector<32x96xf32>, vector<8x96xf32> -> vector<8x96xf32>
    %c0_225 = arith.constant 0 : index
    %c0_226 = arith.constant 0 : index
    %457 = vector.load %arg6[%c0_225, %c0_226] : memref<1x96xf32, #tpu.memory_space<vmem>>, vector<1x96xf32>
    %458 = vector.broadcast %457 : vector<1x96xf32> to vector<8x96xf32>
    %459 = arith.addf %456, %458 : vector<8x96xf32>
    %460 = vector.extract_strided_slice %459 {offsets = [0, 0], sizes = [8, 32], strides = [1, 1]} : vector<8x96xf32> to vector<8x32xf32>
    %cst_227 = arith.constant dense<0.000000e+00> : vector<8x128xf32>
    %461 = tpu.matmul %460, %424, %cst_227 {dimension_numbers = #tpu.dot_dimension_numbers<[1], [1], [0], [0], [0, 0, 1, 0], [], []>} : vector<8x32xf32>, vector<128x32xf32>, vector<8x128xf32> -> vector<8x128xf32>
    %462 = arith.index_cast %388 : i32 to index
    %c0_228 = arith.constant 0 : index
    %463 = vector.load %arg20[%462, %c0_228] : memref<32x128xf32, #tpu.memory_space<vmem>>, vector<8x128xf32>
    %464 = arith.addf %461, %463 : vector<8x128xf32>
    %cst_229 = arith.constant dense<0xFF800000> : vector<8xf32>
    %465 = vector.multi_reduction <maximumf>, %464, %cst_229 [1] : vector<8x128xf32> to vector<8xf32>
    %466 = vector.shape_cast %465 : vector<8xf32> to vector<8x1xf32>
    %467 = vector.broadcast %466 : vector<8x1xf32> to vector<8x128xf32>
    %468 = arith.subf %464, %467 : vector<8x128xf32>
    %469 = math.exp %468 : vector<8x128xf32>
    %c0_230 = arith.constant 0 : index
    %c0_231 = arith.constant 0 : index
    %470 = vector.load %arg21[%c0_230, %c0_231] : memref<128x128xf32, #tpu.memory_space<vmem>>, vector<128x128xf32>
    %cst_232 = arith.constant dense<0.000000e+00> : vector<8x128xf32>
    %471 = tpu.matmul %469, %470, %cst_232 {dimension_numbers = #tpu.dot_dimension_numbers<[1], [0], [0], [1], [0, 0, 1, 1], [], []>} : vector<8x128xf32>, vector<128x128xf32>, vector<8x128xf32> -> vector<8x128xf32>
    %472 = tpu.reciprocal %471 {approx = true} : vector<8x128xf32> -> vector<8x128xf32>
    %473 = arith.mulf %469, %472 : vector<8x128xf32>
    %cst_233 = arith.constant dense<0.000000e+00> : vector<8x32xf32>
    %474 = tpu.matmul %473, %427, %cst_233 {dimension_numbers = #tpu.dot_dimension_numbers<[1], [0], [0], [1], [0, 0, 1, 1], [], []>} : vector<8x128xf32>, vector<128x32xf32>, vector<8x32xf32> -> vector<8x32xf32>
    %c0_234 = arith.constant 0 : index
    %c0_235 = arith.constant 0 : index
    %475 = vector.load %arg7[%c0_234, %c0_235] : memref<32x32xf32, #tpu.memory_space<vmem>>, vector<32x32xf32>
    %cst_236 = arith.constant dense<0.000000e+00> : vector<8x32xf32>
    %476 = tpu.matmul %474, %475, %cst_236 {dimension_numbers = #tpu.dot_dimension_numbers<[1], [0], [0], [1], [0, 0, 1, 1], [], []>} : vector<8x32xf32>, vector<32x32xf32>, vector<8x32xf32> -> vector<8x32xf32>
    %477 = arith.addf %430, %476 : vector<8x32xf32>
    %c0_237 = arith.constant 0 : index
    %c0_238 = arith.constant 0 : index
    %478 = vector.load %arg8[%c0_237, %c0_238] : memref<1x32xf32, #tpu.memory_space<vmem>>, vector<1x32xf32>
    %479 = vector.broadcast %478 : vector<1x32xf32> to vector<8x32xf32>
    %480 = arith.addf %477, %479 : vector<8x32xf32>
    %c5_i32 = arith.constant 5 : i32
    %481 = arith.addi %0, %c5_i32 : i32
    %482 = arith.index_cast %481 : i32 to index
    %483 = memref.load %arg1[%482] : memref<192xi32, #tpu.memory_space<smem>>
    %484 = tpu.assume_multiple %483, 8 : i32
    %c5 = arith.constant 5 : index
    %c0_239 = arith.constant 0 : index
    %c0_240 = arith.constant 0 : index
    %485 = vector.load %arg2[%c5, %c0_239, %c0_240] : memref<8x32x32xf32, #tpu.memory_space<vmem>>, vector<1x32x32xf32>
    %486 = vector.shape_cast %485 : vector<1x32x32xf32> to vector<32x32xf32>
    %c0_241 = arith.constant 0 : index
    %c0_242 = arith.constant 0 : index
    %487 = vector.load %arg3[%c0_241, %c0_242] : memref<1x32xf32, #tpu.memory_space<vmem>>, vector<1x32xf32>
    %c0_243 = arith.constant 0 : index
    %c0_244 = arith.constant 0 : index
    %488 = vector.load %arg4[%c0_243, %c0_244] : memref<1x32xf32, #tpu.memory_space<vmem>>, vector<1x32xf32>
    %cst_245 = arith.constant dense<0.000000e+00> : vector<32xf32>
    %489 = vector.multi_reduction <add>, %486, %cst_245 [1] : vector<32x32xf32> to vector<32xf32>
    %490 = vector.shape_cast %489 : vector<32xf32> to vector<32x1xf32>
    %cst_246 = arith.constant 3.200000e+01 : f32
    %491 = vector.broadcast %cst_246 : f32 to vector<32x1xf32>
    %492 = arith.divf %490, %491 : vector<32x1xf32>
    %493 = vector.broadcast %492 : vector<32x1xf32> to vector<32x32xf32>
    %494 = arith.subf %486, %493 : vector<32x32xf32>
    %495 = arith.mulf %494, %494 : vector<32x32xf32>
    %cst_247 = arith.constant dense<0.000000e+00> : vector<32xf32>
    %496 = vector.multi_reduction <add>, %495, %cst_247 [1] : vector<32x32xf32> to vector<32xf32>
    %497 = vector.shape_cast %496 : vector<32xf32> to vector<32x1xf32>
    %cst_248 = arith.constant 3.200000e+01 : f32
    %498 = vector.broadcast %cst_248 : f32 to vector<32x1xf32>
    %499 = arith.divf %497, %498 : vector<32x1xf32>
    %500 = vector.broadcast %492 : vector<32x1xf32> to vector<32x32xf32>
    %501 = arith.subf %486, %500 : vector<32x32xf32>
    %cst_249 = arith.constant 9.99999974E-6 : f32
    %502 = vector.broadcast %cst_249 : f32 to vector<32x1xf32>
    %503 = arith.addf %499, %502 : vector<32x1xf32>
    %504 = math.rsqrt %503 : vector<32x1xf32>
    %505 = vector.broadcast %504 : vector<32x1xf32> to vector<32x32xf32>
    %506 = arith.mulf %501, %505 : vector<32x32xf32>
    %507 = vector.broadcast %487 : vector<1x32xf32> to vector<32x32xf32>
    %508 = arith.mulf %506, %507 : vector<32x32xf32>
    %509 = vector.broadcast %488 : vector<1x32xf32> to vector<32x32xf32>
    %510 = arith.addf %508, %509 : vector<32x32xf32>
    %c0_250 = arith.constant 0 : index
    %c0_251 = arith.constant 0 : index
    %511 = vector.load %arg5[%c0_250, %c0_251] : memref<32x96xf32, #tpu.memory_space<vmem>>, vector<32x96xf32>
    %cst_252 = arith.constant dense<0.000000e+00> : vector<32x96xf32>
    %512 = tpu.matmul %510, %511, %cst_252 {dimension_numbers = #tpu.dot_dimension_numbers<[1], [0], [0], [1], [0, 0, 1, 1], [], []>} : vector<32x32xf32>, vector<32x96xf32>, vector<32x96xf32> -> vector<32x96xf32>
    %c0_253 = arith.constant 0 : index
    %c0_254 = arith.constant 0 : index
    %513 = vector.load %arg6[%c0_253, %c0_254] : memref<1x96xf32, #tpu.memory_space<vmem>>, vector<1x96xf32>
    %514 = vector.broadcast %513 : vector<1x96xf32> to vector<32x96xf32>
    %515 = arith.addf %512, %514 : vector<32x96xf32>
    %516 = vector.extract_strided_slice %515 {offsets = [0, 32], sizes = [32, 32], strides = [1, 1]} : vector<32x96xf32> to vector<32x32xf32>
    %517 = vector.extract_strided_slice %515 {offsets = [0, 64], sizes = [32, 32], strides = [1, 1]} : vector<32x96xf32> to vector<32x32xf32>
    %518 = tpu.concatenate %516, %516, %516, %516 in 0 : vector<32x32xf32>, vector<32x32xf32>, vector<32x32xf32>, vector<32x32xf32> -> vector<128x32xf32>
    %c0_255 = arith.constant 0 : index
    %c0_256 = arith.constant 0 : index
    %519 = vector.load %arg18[%c0_255, %c0_256] : memref<128x32xf32, #tpu.memory_space<vmem>>, vector<128x32xf32>
    %520 = arith.mulf %518, %519 : vector<128x32xf32>
    %521 = tpu.concatenate %517, %517, %517, %517 in 0 : vector<32x32xf32>, vector<32x32xf32>, vector<32x32xf32>, vector<32x32xf32> -> vector<128x32xf32>
    %c0_257 = arith.constant 0 : index
    %c0_258 = arith.constant 0 : index
    %522 = vector.load %arg19[%c0_257, %c0_258] : memref<128x32xf32, #tpu.memory_space<vmem>>, vector<128x32xf32>
    %523 = arith.mulf %521, %522 : vector<128x32xf32>
    %c5_259 = arith.constant 5 : index
    %524 = arith.index_cast %484 : i32 to index
    %c0_260 = arith.constant 0 : index
    %525 = vector.load %arg2[%c5_259, %524, %c0_260] : memref<8x32x32xf32, #tpu.memory_space<vmem>>, vector<1x8x32xf32>
    %526 = vector.shape_cast %525 : vector<1x8x32xf32> to vector<8x32xf32>
    %c0_261 = arith.constant 0 : index
    %c0_262 = arith.constant 0 : index
    %527 = vector.load %arg3[%c0_261, %c0_262] : memref<1x32xf32, #tpu.memory_space<vmem>>, vector<1x32xf32>
    %c0_263 = arith.constant 0 : index
    %c0_264 = arith.constant 0 : index
    %528 = vector.load %arg4[%c0_263, %c0_264] : memref<1x32xf32, #tpu.memory_space<vmem>>, vector<1x32xf32>
    %cst_265 = arith.constant dense<0.000000e+00> : vector<8xf32>
    %529 = vector.multi_reduction <add>, %526, %cst_265 [1] : vector<8x32xf32> to vector<8xf32>
    %530 = vector.shape_cast %529 : vector<8xf32> to vector<8x1xf32>
    %cst_266 = arith.constant 3.200000e+01 : f32
    %531 = vector.broadcast %cst_266 : f32 to vector<8x1xf32>
    %532 = arith.divf %530, %531 : vector<8x1xf32>
    %533 = vector.broadcast %532 : vector<8x1xf32> to vector<8x32xf32>
    %534 = arith.subf %526, %533 : vector<8x32xf32>
    %535 = arith.mulf %534, %534 : vector<8x32xf32>
    %cst_267 = arith.constant dense<0.000000e+00> : vector<8xf32>
    %536 = vector.multi_reduction <add>, %535, %cst_267 [1] : vector<8x32xf32> to vector<8xf32>
    %537 = vector.shape_cast %536 : vector<8xf32> to vector<8x1xf32>
    %cst_268 = arith.constant 3.200000e+01 : f32
    %538 = vector.broadcast %cst_268 : f32 to vector<8x1xf32>
    %539 = arith.divf %537, %538 : vector<8x1xf32>
    %540 = vector.broadcast %532 : vector<8x1xf32> to vector<8x32xf32>
    %541 = arith.subf %526, %540 : vector<8x32xf32>
    %cst_269 = arith.constant 9.99999974E-6 : f32
    %542 = vector.broadcast %cst_269 : f32 to vector<8x1xf32>
    %543 = arith.addf %539, %542 : vector<8x1xf32>
    %544 = math.rsqrt %543 : vector<8x1xf32>
    %545 = vector.broadcast %544 : vector<8x1xf32> to vector<8x32xf32>
    %546 = arith.mulf %541, %545 : vector<8x32xf32>
    %547 = vector.broadcast %527 : vector<1x32xf32> to vector<8x32xf32>
    %548 = arith.mulf %546, %547 : vector<8x32xf32>
    %549 = vector.broadcast %528 : vector<1x32xf32> to vector<8x32xf32>
    %550 = arith.addf %548, %549 : vector<8x32xf32>
    %c0_270 = arith.constant 0 : index
    %c0_271 = arith.constant 0 : index
    %551 = vector.load %arg5[%c0_270, %c0_271] : memref<32x96xf32, #tpu.memory_space<vmem>>, vector<32x96xf32>
    %cst_272 = arith.constant dense<0.000000e+00> : vector<8x96xf32>
    %552 = tpu.matmul %550, %551, %cst_272 {dimension_numbers = #tpu.dot_dimension_numbers<[1], [0], [0], [1], [0, 0, 1, 1], [], []>} : vector<8x32xf32>, vector<32x96xf32>, vector<8x96xf32> -> vector<8x96xf32>
    %c0_273 = arith.constant 0 : index
    %c0_274 = arith.constant 0 : index
    %553 = vector.load %arg6[%c0_273, %c0_274] : memref<1x96xf32, #tpu.memory_space<vmem>>, vector<1x96xf32>
    %554 = vector.broadcast %553 : vector<1x96xf32> to vector<8x96xf32>
    %555 = arith.addf %552, %554 : vector<8x96xf32>
    %556 = vector.extract_strided_slice %555 {offsets = [0, 0], sizes = [8, 32], strides = [1, 1]} : vector<8x96xf32> to vector<8x32xf32>
    %cst_275 = arith.constant dense<0.000000e+00> : vector<8x128xf32>
    %557 = tpu.matmul %556, %520, %cst_275 {dimension_numbers = #tpu.dot_dimension_numbers<[1], [1], [0], [0], [0, 0, 1, 0], [], []>} : vector<8x32xf32>, vector<128x32xf32>, vector<8x128xf32> -> vector<8x128xf32>
    %558 = arith.index_cast %484 : i32 to index
    %c0_276 = arith.constant 0 : index
    %559 = vector.load %arg20[%558, %c0_276] : memref<32x128xf32, #tpu.memory_space<vmem>>, vector<8x128xf32>
    %560 = arith.addf %557, %559 : vector<8x128xf32>
    %cst_277 = arith.constant dense<0xFF800000> : vector<8xf32>
    %561 = vector.multi_reduction <maximumf>, %560, %cst_277 [1] : vector<8x128xf32> to vector<8xf32>
    %562 = vector.shape_cast %561 : vector<8xf32> to vector<8x1xf32>
    %563 = vector.broadcast %562 : vector<8x1xf32> to vector<8x128xf32>
    %564 = arith.subf %560, %563 : vector<8x128xf32>
    %565 = math.exp %564 : vector<8x128xf32>
    %c0_278 = arith.constant 0 : index
    %c0_279 = arith.constant 0 : index
    %566 = vector.load %arg21[%c0_278, %c0_279] : memref<128x128xf32, #tpu.memory_space<vmem>>, vector<128x128xf32>
    %cst_280 = arith.constant dense<0.000000e+00> : vector<8x128xf32>
    %567 = tpu.matmul %565, %566, %cst_280 {dimension_numbers = #tpu.dot_dimension_numbers<[1], [0], [0], [1], [0, 0, 1, 1], [], []>} : vector<8x128xf32>, vector<128x128xf32>, vector<8x128xf32> -> vector<8x128xf32>
    %568 = tpu.reciprocal %567 {approx = true} : vector<8x128xf32> -> vector<8x128xf32>
    %569 = arith.mulf %565, %568 : vector<8x128xf32>
    %cst_281 = arith.constant dense<0.000000e+00> : vector<8x32xf32>
    %570 = tpu.matmul %569, %523, %cst_281 {dimension_numbers = #tpu.dot_dimension_numbers<[1], [0], [0], [1], [0, 0, 1, 1], [], []>} : vector<8x128xf32>, vector<128x32xf32>, vector<8x32xf32> -> vector<8x32xf32>
    %c0_282 = arith.constant 0 : index
    %c0_283 = arith.constant 0 : index
    %571 = vector.load %arg7[%c0_282, %c0_283] : memref<32x32xf32, #tpu.memory_space<vmem>>, vector<32x32xf32>
    %cst_284 = arith.constant dense<0.000000e+00> : vector<8x32xf32>
    %572 = tpu.matmul %570, %571, %cst_284 {dimension_numbers = #tpu.dot_dimension_numbers<[1], [0], [0], [1], [0, 0, 1, 1], [], []>} : vector<8x32xf32>, vector<32x32xf32>, vector<8x32xf32> -> vector<8x32xf32>
    %573 = arith.addf %526, %572 : vector<8x32xf32>
    %c0_285 = arith.constant 0 : index
    %c0_286 = arith.constant 0 : index
    %574 = vector.load %arg8[%c0_285, %c0_286] : memref<1x32xf32, #tpu.memory_space<vmem>>, vector<1x32xf32>
    %575 = vector.broadcast %574 : vector<1x32xf32> to vector<8x32xf32>
    %576 = arith.addf %573, %575 : vector<8x32xf32>
    %c6_i32 = arith.constant 6 : i32
    %577 = arith.addi %0, %c6_i32 : i32
    %578 = arith.index_cast %577 : i32 to index
    %579 = memref.load %arg1[%578] : memref<192xi32, #tpu.memory_space<smem>>
    %580 = tpu.assume_multiple %579, 8 : i32
    %c6 = arith.constant 6 : index
    %c0_287 = arith.constant 0 : index
    %c0_288 = arith.constant 0 : index
    %581 = vector.load %arg2[%c6, %c0_287, %c0_288] : memref<8x32x32xf32, #tpu.memory_space<vmem>>, vector<1x32x32xf32>
    %582 = vector.shape_cast %581 : vector<1x32x32xf32> to vector<32x32xf32>
    %c0_289 = arith.constant 0 : index
    %c0_290 = arith.constant 0 : index
    %583 = vector.load %arg3[%c0_289, %c0_290] : memref<1x32xf32, #tpu.memory_space<vmem>>, vector<1x32xf32>
    %c0_291 = arith.constant 0 : index
    %c0_292 = arith.constant 0 : index
    %584 = vector.load %arg4[%c0_291, %c0_292] : memref<1x32xf32, #tpu.memory_space<vmem>>, vector<1x32xf32>
    %cst_293 = arith.constant dense<0.000000e+00> : vector<32xf32>
    %585 = vector.multi_reduction <add>, %582, %cst_293 [1] : vector<32x32xf32> to vector<32xf32>
    %586 = vector.shape_cast %585 : vector<32xf32> to vector<32x1xf32>
    %cst_294 = arith.constant 3.200000e+01 : f32
    %587 = vector.broadcast %cst_294 : f32 to vector<32x1xf32>
    %588 = arith.divf %586, %587 : vector<32x1xf32>
    %589 = vector.broadcast %588 : vector<32x1xf32> to vector<32x32xf32>
    %590 = arith.subf %582, %589 : vector<32x32xf32>
    %591 = arith.mulf %590, %590 : vector<32x32xf32>
    %cst_295 = arith.constant dense<0.000000e+00> : vector<32xf32>
    %592 = vector.multi_reduction <add>, %591, %cst_295 [1] : vector<32x32xf32> to vector<32xf32>
    %593 = vector.shape_cast %592 : vector<32xf32> to vector<32x1xf32>
    %cst_296 = arith.constant 3.200000e+01 : f32
    %594 = vector.broadcast %cst_296 : f32 to vector<32x1xf32>
    %595 = arith.divf %593, %594 : vector<32x1xf32>
    %596 = vector.broadcast %588 : vector<32x1xf32> to vector<32x32xf32>
    %597 = arith.subf %582, %596 : vector<32x32xf32>
    %cst_297 = arith.constant 9.99999974E-6 : f32
    %598 = vector.broadcast %cst_297 : f32 to vector<32x1xf32>
    %599 = arith.addf %595, %598 : vector<32x1xf32>
    %600 = math.rsqrt %599 : vector<32x1xf32>
    %601 = vector.broadcast %600 : vector<32x1xf32> to vector<32x32xf32>
    %602 = arith.mulf %597, %601 : vector<32x32xf32>
    %603 = vector.broadcast %583 : vector<1x32xf32> to vector<32x32xf32>
    %604 = arith.mulf %602, %603 : vector<32x32xf32>
    %605 = vector.broadcast %584 : vector<1x32xf32> to vector<32x32xf32>
    %606 = arith.addf %604, %605 : vector<32x32xf32>
    %c0_298 = arith.constant 0 : index
    %c0_299 = arith.constant 0 : index
    %607 = vector.load %arg5[%c0_298, %c0_299] : memref<32x96xf32, #tpu.memory_space<vmem>>, vector<32x96xf32>
    %cst_300 = arith.constant dense<0.000000e+00> : vector<32x96xf32>
    %608 = tpu.matmul %606, %607, %cst_300 {dimension_numbers = #tpu.dot_dimension_numbers<[1], [0], [0], [1], [0, 0, 1, 1], [], []>} : vector<32x32xf32>, vector<32x96xf32>, vector<32x96xf32> -> vector<32x96xf32>
    %c0_301 = arith.constant 0 : index
    %c0_302 = arith.constant 0 : index
    %609 = vector.load %arg6[%c0_301, %c0_302] : memref<1x96xf32, #tpu.memory_space<vmem>>, vector<1x96xf32>
    %610 = vector.broadcast %609 : vector<1x96xf32> to vector<32x96xf32>
    %611 = arith.addf %608, %610 : vector<32x96xf32>
    %612 = vector.extract_strided_slice %611 {offsets = [0, 32], sizes = [32, 32], strides = [1, 1]} : vector<32x96xf32> to vector<32x32xf32>
    %613 = vector.extract_strided_slice %611 {offsets = [0, 64], sizes = [32, 32], strides = [1, 1]} : vector<32x96xf32> to vector<32x32xf32>
    %614 = tpu.concatenate %612, %612, %612, %612 in 0 : vector<32x32xf32>, vector<32x32xf32>, vector<32x32xf32>, vector<32x32xf32> -> vector<128x32xf32>
    %c0_303 = arith.constant 0 : index
    %c0_304 = arith.constant 0 : index
    %615 = vector.load %arg18[%c0_303, %c0_304] : memref<128x32xf32, #tpu.memory_space<vmem>>, vector<128x32xf32>
    %616 = arith.mulf %614, %615 : vector<128x32xf32>
    %617 = tpu.concatenate %613, %613, %613, %613 in 0 : vector<32x32xf32>, vector<32x32xf32>, vector<32x32xf32>, vector<32x32xf32> -> vector<128x32xf32>
    %c0_305 = arith.constant 0 : index
    %c0_306 = arith.constant 0 : index
    %618 = vector.load %arg19[%c0_305, %c0_306] : memref<128x32xf32, #tpu.memory_space<vmem>>, vector<128x32xf32>
    %619 = arith.mulf %617, %618 : vector<128x32xf32>
    %c6_307 = arith.constant 6 : index
    %620 = arith.index_cast %580 : i32 to index
    %c0_308 = arith.constant 0 : index
    %621 = vector.load %arg2[%c6_307, %620, %c0_308] : memref<8x32x32xf32, #tpu.memory_space<vmem>>, vector<1x8x32xf32>
    %622 = vector.shape_cast %621 : vector<1x8x32xf32> to vector<8x32xf32>
    %c0_309 = arith.constant 0 : index
    %c0_310 = arith.constant 0 : index
    %623 = vector.load %arg3[%c0_309, %c0_310] : memref<1x32xf32, #tpu.memory_space<vmem>>, vector<1x32xf32>
    %c0_311 = arith.constant 0 : index
    %c0_312 = arith.constant 0 : index
    %624 = vector.load %arg4[%c0_311, %c0_312] : memref<1x32xf32, #tpu.memory_space<vmem>>, vector<1x32xf32>
    %cst_313 = arith.constant dense<0.000000e+00> : vector<8xf32>
    %625 = vector.multi_reduction <add>, %622, %cst_313 [1] : vector<8x32xf32> to vector<8xf32>
    %626 = vector.shape_cast %625 : vector<8xf32> to vector<8x1xf32>
    %cst_314 = arith.constant 3.200000e+01 : f32
    %627 = vector.broadcast %cst_314 : f32 to vector<8x1xf32>
    %628 = arith.divf %626, %627 : vector<8x1xf32>
    %629 = vector.broadcast %628 : vector<8x1xf32> to vector<8x32xf32>
    %630 = arith.subf %622, %629 : vector<8x32xf32>
    %631 = arith.mulf %630, %630 : vector<8x32xf32>
    %cst_315 = arith.constant dense<0.000000e+00> : vector<8xf32>
    %632 = vector.multi_reduction <add>, %631, %cst_315 [1] : vector<8x32xf32> to vector<8xf32>
    %633 = vector.shape_cast %632 : vector<8xf32> to vector<8x1xf32>
    %cst_316 = arith.constant 3.200000e+01 : f32
    %634 = vector.broadcast %cst_316 : f32 to vector<8x1xf32>
    %635 = arith.divf %633, %634 : vector<8x1xf32>
    %636 = vector.broadcast %628 : vector<8x1xf32> to vector<8x32xf32>
    %637 = arith.subf %622, %636 : vector<8x32xf32>
    %cst_317 = arith.constant 9.99999974E-6 : f32
    %638 = vector.broadcast %cst_317 : f32 to vector<8x1xf32>
    %639 = arith.addf %635, %638 : vector<8x1xf32>
    %640 = math.rsqrt %639 : vector<8x1xf32>
    %641 = vector.broadcast %640 : vector<8x1xf32> to vector<8x32xf32>
    %642 = arith.mulf %637, %641 : vector<8x32xf32>
    %643 = vector.broadcast %623 : vector<1x32xf32> to vector<8x32xf32>
    %644 = arith.mulf %642, %643 : vector<8x32xf32>
    %645 = vector.broadcast %624 : vector<1x32xf32> to vector<8x32xf32>
    %646 = arith.addf %644, %645 : vector<8x32xf32>
    %c0_318 = arith.constant 0 : index
    %c0_319 = arith.constant 0 : index
    %647 = vector.load %arg5[%c0_318, %c0_319] : memref<32x96xf32, #tpu.memory_space<vmem>>, vector<32x96xf32>
    %cst_320 = arith.constant dense<0.000000e+00> : vector<8x96xf32>
    %648 = tpu.matmul %646, %647, %cst_320 {dimension_numbers = #tpu.dot_dimension_numbers<[1], [0], [0], [1], [0, 0, 1, 1], [], []>} : vector<8x32xf32>, vector<32x96xf32>, vector<8x96xf32> -> vector<8x96xf32>
    %c0_321 = arith.constant 0 : index
    %c0_322 = arith.constant 0 : index
    %649 = vector.load %arg6[%c0_321, %c0_322] : memref<1x96xf32, #tpu.memory_space<vmem>>, vector<1x96xf32>
    %650 = vector.broadcast %649 : vector<1x96xf32> to vector<8x96xf32>
    %651 = arith.addf %648, %650 : vector<8x96xf32>
    %652 = vector.extract_strided_slice %651 {offsets = [0, 0], sizes = [8, 32], strides = [1, 1]} : vector<8x96xf32> to vector<8x32xf32>
    %cst_323 = arith.constant dense<0.000000e+00> : vector<8x128xf32>
    %653 = tpu.matmul %652, %616, %cst_323 {dimension_numbers = #tpu.dot_dimension_numbers<[1], [1], [0], [0], [0, 0, 1, 0], [], []>} : vector<8x32xf32>, vector<128x32xf32>, vector<8x128xf32> -> vector<8x128xf32>
    %654 = arith.index_cast %580 : i32 to index
    %c0_324 = arith.constant 0 : index
    %655 = vector.load %arg20[%654, %c0_324] : memref<32x128xf32, #tpu.memory_space<vmem>>, vector<8x128xf32>
    %656 = arith.addf %653, %655 : vector<8x128xf32>
    %cst_325 = arith.constant dense<0xFF800000> : vector<8xf32>
    %657 = vector.multi_reduction <maximumf>, %656, %cst_325 [1] : vector<8x128xf32> to vector<8xf32>
    %658 = vector.shape_cast %657 : vector<8xf32> to vector<8x1xf32>
    %659 = vector.broadcast %658 : vector<8x1xf32> to vector<8x128xf32>
    %660 = arith.subf %656, %659 : vector<8x128xf32>
    %661 = math.exp %660 : vector<8x128xf32>
    %c0_326 = arith.constant 0 : index
    %c0_327 = arith.constant 0 : index
    %662 = vector.load %arg21[%c0_326, %c0_327] : memref<128x128xf32, #tpu.memory_space<vmem>>, vector<128x128xf32>
    %cst_328 = arith.constant dense<0.000000e+00> : vector<8x128xf32>
    %663 = tpu.matmul %661, %662, %cst_328 {dimension_numbers = #tpu.dot_dimension_numbers<[1], [0], [0], [1], [0, 0, 1, 1], [], []>} : vector<8x128xf32>, vector<128x128xf32>, vector<8x128xf32> -> vector<8x128xf32>
    %664 = tpu.reciprocal %663 {approx = true} : vector<8x128xf32> -> vector<8x128xf32>
    %665 = arith.mulf %661, %664 : vector<8x128xf32>
    %cst_329 = arith.constant dense<0.000000e+00> : vector<8x32xf32>
    %666 = tpu.matmul %665, %619, %cst_329 {dimension_numbers = #tpu.dot_dimension_numbers<[1], [0], [0], [1], [0, 0, 1, 1], [], []>} : vector<8x128xf32>, vector<128x32xf32>, vector<8x32xf32> -> vector<8x32xf32>
    %c0_330 = arith.constant 0 : index
    %c0_331 = arith.constant 0 : index
    %667 = vector.load %arg7[%c0_330, %c0_331] : memref<32x32xf32, #tpu.memory_space<vmem>>, vector<32x32xf32>
    %cst_332 = arith.constant dense<0.000000e+00> : vector<8x32xf32>
    %668 = tpu.matmul %666, %667, %cst_332 {dimension_numbers = #tpu.dot_dimension_numbers<[1], [0], [0], [1], [0, 0, 1, 1], [], []>} : vector<8x32xf32>, vector<32x32xf32>, vector<8x32xf32> -> vector<8x32xf32>
    %669 = arith.addf %622, %668 : vector<8x32xf32>
    %c0_333 = arith.constant 0 : index
    %c0_334 = arith.constant 0 : index
    %670 = vector.load %arg8[%c0_333, %c0_334] : memref<1x32xf32, #tpu.memory_space<vmem>>, vector<1x32xf32>
    %671 = vector.broadcast %670 : vector<1x32xf32> to vector<8x32xf32>
    %672 = arith.addf %669, %671 : vector<8x32xf32>
    %c7_i32 = arith.constant 7 : i32
    %673 = arith.addi %0, %c7_i32 : i32
    %674 = arith.index_cast %673 : i32 to index
    %675 = memref.load %arg1[%674] : memref<192xi32, #tpu.memory_space<smem>>
    %676 = tpu.assume_multiple %675, 8 : i32
    %c7 = arith.constant 7 : index
    %c0_335 = arith.constant 0 : index
    %c0_336 = arith.constant 0 : index
    %677 = vector.load %arg2[%c7, %c0_335, %c0_336] : memref<8x32x32xf32, #tpu.memory_space<vmem>>, vector<1x32x32xf32>
    %678 = vector.shape_cast %677 : vector<1x32x32xf32> to vector<32x32xf32>
    %c0_337 = arith.constant 0 : index
    %c0_338 = arith.constant 0 : index
    %679 = vector.load %arg3[%c0_337, %c0_338] : memref<1x32xf32, #tpu.memory_space<vmem>>, vector<1x32xf32>
    %c0_339 = arith.constant 0 : index
    %c0_340 = arith.constant 0 : index
    %680 = vector.load %arg4[%c0_339, %c0_340] : memref<1x32xf32, #tpu.memory_space<vmem>>, vector<1x32xf32>
    %cst_341 = arith.constant dense<0.000000e+00> : vector<32xf32>
    %681 = vector.multi_reduction <add>, %678, %cst_341 [1] : vector<32x32xf32> to vector<32xf32>
    %682 = vector.shape_cast %681 : vector<32xf32> to vector<32x1xf32>
    %cst_342 = arith.constant 3.200000e+01 : f32
    %683 = vector.broadcast %cst_342 : f32 to vector<32x1xf32>
    %684 = arith.divf %682, %683 : vector<32x1xf32>
    %685 = vector.broadcast %684 : vector<32x1xf32> to vector<32x32xf32>
    %686 = arith.subf %678, %685 : vector<32x32xf32>
    %687 = arith.mulf %686, %686 : vector<32x32xf32>
    %cst_343 = arith.constant dense<0.000000e+00> : vector<32xf32>
    %688 = vector.multi_reduction <add>, %687, %cst_343 [1] : vector<32x32xf32> to vector<32xf32>
    %689 = vector.shape_cast %688 : vector<32xf32> to vector<32x1xf32>
    %cst_344 = arith.constant 3.200000e+01 : f32
    %690 = vector.broadcast %cst_344 : f32 to vector<32x1xf32>
    %691 = arith.divf %689, %690 : vector<32x1xf32>
    %692 = vector.broadcast %684 : vector<32x1xf32> to vector<32x32xf32>
    %693 = arith.subf %678, %692 : vector<32x32xf32>
    %cst_345 = arith.constant 9.99999974E-6 : f32
    %694 = vector.broadcast %cst_345 : f32 to vector<32x1xf32>
    %695 = arith.addf %691, %694 : vector<32x1xf32>
    %696 = math.rsqrt %695 : vector<32x1xf32>
    %697 = vector.broadcast %696 : vector<32x1xf32> to vector<32x32xf32>
    %698 = arith.mulf %693, %697 : vector<32x32xf32>
    %699 = vector.broadcast %679 : vector<1x32xf32> to vector<32x32xf32>
    %700 = arith.mulf %698, %699 : vector<32x32xf32>
    %701 = vector.broadcast %680 : vector<1x32xf32> to vector<32x32xf32>
    %702 = arith.addf %700, %701 : vector<32x32xf32>
    %c0_346 = arith.constant 0 : index
    %c0_347 = arith.constant 0 : index
    %703 = vector.load %arg5[%c0_346, %c0_347] : memref<32x96xf32, #tpu.memory_space<vmem>>, vector<32x96xf32>
    %cst_348 = arith.constant dense<0.000000e+00> : vector<32x96xf32>
    %704 = tpu.matmul %702, %703, %cst_348 {dimension_numbers = #tpu.dot_dimension_numbers<[1], [0], [0], [1], [0, 0, 1, 1], [], []>} : vector<32x32xf32>, vector<32x96xf32>, vector<32x96xf32> -> vector<32x96xf32>
    %c0_349 = arith.constant 0 : index
    %c0_350 = arith.constant 0 : index
    %705 = vector.load %arg6[%c0_349, %c0_350] : memref<1x96xf32, #tpu.memory_space<vmem>>, vector<1x96xf32>
    %706 = vector.broadcast %705 : vector<1x96xf32> to vector<32x96xf32>
    %707 = arith.addf %704, %706 : vector<32x96xf32>
    %708 = vector.extract_strided_slice %707 {offsets = [0, 32], sizes = [32, 32], strides = [1, 1]} : vector<32x96xf32> to vector<32x32xf32>
    %709 = vector.extract_strided_slice %707 {offsets = [0, 64], sizes = [32, 32], strides = [1, 1]} : vector<32x96xf32> to vector<32x32xf32>
    %710 = tpu.concatenate %708, %708, %708, %708 in 0 : vector<32x32xf32>, vector<32x32xf32>, vector<32x32xf32>, vector<32x32xf32> -> vector<128x32xf32>
    %c0_351 = arith.constant 0 : index
    %c0_352 = arith.constant 0 : index
    %711 = vector.load %arg18[%c0_351, %c0_352] : memref<128x32xf32, #tpu.memory_space<vmem>>, vector<128x32xf32>
    %712 = arith.mulf %710, %711 : vector<128x32xf32>
    %713 = tpu.concatenate %709, %709, %709, %709 in 0 : vector<32x32xf32>, vector<32x32xf32>, vector<32x32xf32>, vector<32x32xf32> -> vector<128x32xf32>
    %c0_353 = arith.constant 0 : index
    %c0_354 = arith.constant 0 : index
    %714 = vector.load %arg19[%c0_353, %c0_354] : memref<128x32xf32, #tpu.memory_space<vmem>>, vector<128x32xf32>
    %715 = arith.mulf %713, %714 : vector<128x32xf32>
    %c7_355 = arith.constant 7 : index
    %716 = arith.index_cast %676 : i32 to index
    %c0_356 = arith.constant 0 : index
    %717 = vector.load %arg2[%c7_355, %716, %c0_356] : memref<8x32x32xf32, #tpu.memory_space<vmem>>, vector<1x8x32xf32>
    %718 = vector.shape_cast %717 : vector<1x8x32xf32> to vector<8x32xf32>
    %c0_357 = arith.constant 0 : index
    %c0_358 = arith.constant 0 : index
    %719 = vector.load %arg3[%c0_357, %c0_358] : memref<1x32xf32, #tpu.memory_space<vmem>>, vector<1x32xf32>
    %c0_359 = arith.constant 0 : index
    %c0_360 = arith.constant 0 : index
    %720 = vector.load %arg4[%c0_359, %c0_360] : memref<1x32xf32, #tpu.memory_space<vmem>>, vector<1x32xf32>
    %cst_361 = arith.constant dense<0.000000e+00> : vector<8xf32>
    %721 = vector.multi_reduction <add>, %718, %cst_361 [1] : vector<8x32xf32> to vector<8xf32>
    %722 = vector.shape_cast %721 : vector<8xf32> to vector<8x1xf32>
    %cst_362 = arith.constant 3.200000e+01 : f32
    %723 = vector.broadcast %cst_362 : f32 to vector<8x1xf32>
    %724 = arith.divf %722, %723 : vector<8x1xf32>
    %725 = vector.broadcast %724 : vector<8x1xf32> to vector<8x32xf32>
    %726 = arith.subf %718, %725 : vector<8x32xf32>
    %727 = arith.mulf %726, %726 : vector<8x32xf32>
    %cst_363 = arith.constant dense<0.000000e+00> : vector<8xf32>
    %728 = vector.multi_reduction <add>, %727, %cst_363 [1] : vector<8x32xf32> to vector<8xf32>
    %729 = vector.shape_cast %728 : vector<8xf32> to vector<8x1xf32>
    %cst_364 = arith.constant 3.200000e+01 : f32
    %730 = vector.broadcast %cst_364 : f32 to vector<8x1xf32>
    %731 = arith.divf %729, %730 : vector<8x1xf32>
    %732 = vector.broadcast %724 : vector<8x1xf32> to vector<8x32xf32>
    %733 = arith.subf %718, %732 : vector<8x32xf32>
    %cst_365 = arith.constant 9.99999974E-6 : f32
    %734 = vector.broadcast %cst_365 : f32 to vector<8x1xf32>
    %735 = arith.addf %731, %734 : vector<8x1xf32>
    %736 = math.rsqrt %735 : vector<8x1xf32>
    %737 = vector.broadcast %736 : vector<8x1xf32> to vector<8x32xf32>
    %738 = arith.mulf %733, %737 : vector<8x32xf32>
    %739 = vector.broadcast %719 : vector<1x32xf32> to vector<8x32xf32>
    %740 = arith.mulf %738, %739 : vector<8x32xf32>
    %741 = vector.broadcast %720 : vector<1x32xf32> to vector<8x32xf32>
    %742 = arith.addf %740, %741 : vector<8x32xf32>
    %c0_366 = arith.constant 0 : index
    %c0_367 = arith.constant 0 : index
    %743 = vector.load %arg5[%c0_366, %c0_367] : memref<32x96xf32, #tpu.memory_space<vmem>>, vector<32x96xf32>
    %cst_368 = arith.constant dense<0.000000e+00> : vector<8x96xf32>
    %744 = tpu.matmul %742, %743, %cst_368 {dimension_numbers = #tpu.dot_dimension_numbers<[1], [0], [0], [1], [0, 0, 1, 1], [], []>} : vector<8x32xf32>, vector<32x96xf32>, vector<8x96xf32> -> vector<8x96xf32>
    %c0_369 = arith.constant 0 : index
    %c0_370 = arith.constant 0 : index
    %745 = vector.load %arg6[%c0_369, %c0_370] : memref<1x96xf32, #tpu.memory_space<vmem>>, vector<1x96xf32>
    %746 = vector.broadcast %745 : vector<1x96xf32> to vector<8x96xf32>
    %747 = arith.addf %744, %746 : vector<8x96xf32>
    %748 = vector.extract_strided_slice %747 {offsets = [0, 0], sizes = [8, 32], strides = [1, 1]} : vector<8x96xf32> to vector<8x32xf32>
    %cst_371 = arith.constant dense<0.000000e+00> : vector<8x128xf32>
    %749 = tpu.matmul %748, %712, %cst_371 {dimension_numbers = #tpu.dot_dimension_numbers<[1], [1], [0], [0], [0, 0, 1, 0], [], []>} : vector<8x32xf32>, vector<128x32xf32>, vector<8x128xf32> -> vector<8x128xf32>
    %750 = arith.index_cast %676 : i32 to index
    %c0_372 = arith.constant 0 : index
    %751 = vector.load %arg20[%750, %c0_372] : memref<32x128xf32, #tpu.memory_space<vmem>>, vector<8x128xf32>
    %752 = arith.addf %749, %751 : vector<8x128xf32>
    %cst_373 = arith.constant dense<0xFF800000> : vector<8xf32>
    %753 = vector.multi_reduction <maximumf>, %752, %cst_373 [1] : vector<8x128xf32> to vector<8xf32>
    %754 = vector.shape_cast %753 : vector<8xf32> to vector<8x1xf32>
    %755 = vector.broadcast %754 : vector<8x1xf32> to vector<8x128xf32>
    %756 = arith.subf %752, %755 : vector<8x128xf32>
    %757 = math.exp %756 : vector<8x128xf32>
    %c0_374 = arith.constant 0 : index
    %c0_375 = arith.constant 0 : index
    %758 = vector.load %arg21[%c0_374, %c0_375] : memref<128x128xf32, #tpu.memory_space<vmem>>, vector<128x128xf32>
    %cst_376 = arith.constant dense<0.000000e+00> : vector<8x128xf32>
    %759 = tpu.matmul %757, %758, %cst_376 {dimension_numbers = #tpu.dot_dimension_numbers<[1], [0], [0], [1], [0, 0, 1, 1], [], []>} : vector<8x128xf32>, vector<128x128xf32>, vector<8x128xf32> -> vector<8x128xf32>
    %760 = tpu.reciprocal %759 {approx = true} : vector<8x128xf32> -> vector<8x128xf32>
    %761 = arith.mulf %757, %760 : vector<8x128xf32>
    %cst_377 = arith.constant dense<0.000000e+00> : vector<8x32xf32>
    %762 = tpu.matmul %761, %715, %cst_377 {dimension_numbers = #tpu.dot_dimension_numbers<[1], [0], [0], [1], [0, 0, 1, 1], [], []>} : vector<8x128xf32>, vector<128x32xf32>, vector<8x32xf32> -> vector<8x32xf32>
    %c0_378 = arith.constant 0 : index
    %c0_379 = arith.constant 0 : index
    %763 = vector.load %arg7[%c0_378, %c0_379] : memref<32x32xf32, #tpu.memory_space<vmem>>, vector<32x32xf32>
    %cst_380 = arith.constant dense<0.000000e+00> : vector<8x32xf32>
    %764 = tpu.matmul %762, %763, %cst_380 {dimension_numbers = #tpu.dot_dimension_numbers<[1], [0], [0], [1], [0, 0, 1, 1], [], []>} : vector<8x32xf32>, vector<32x32xf32>, vector<8x32xf32> -> vector<8x32xf32>
    %765 = arith.addf %718, %764 : vector<8x32xf32>
    %c0_381 = arith.constant 0 : index
    %c0_382 = arith.constant 0 : index
    %766 = vector.load %arg8[%c0_381, %c0_382] : memref<1x32xf32, #tpu.memory_space<vmem>>, vector<1x32xf32>
    %767 = vector.broadcast %766 : vector<1x32xf32> to vector<8x32xf32>
    %768 = arith.addf %765, %767 : vector<8x32xf32>
    %769 = tpu.concatenate %96, %192, %288, %384, %480, %576, %672, %768 in 0 : vector<8x32xf32>, vector<8x32xf32>, vector<8x32xf32>, vector<8x32xf32>, vector<8x32xf32>, vector<8x32xf32>, vector<8x32xf32>, vector<8x32xf32> -> vector<64x32xf32>
    %c0_383 = arith.constant 0 : index
    %c0_384 = arith.constant 0 : index
    %770 = vector.load %arg9[%c0_383, %c0_384] : memref<1x32xf32, #tpu.memory_space<vmem>>, vector<1x32xf32>
    %c0_385 = arith.constant 0 : index
    %c0_386 = arith.constant 0 : index
    %771 = vector.load %arg10[%c0_385, %c0_386] : memref<1x32xf32, #tpu.memory_space<vmem>>, vector<1x32xf32>
    %cst_387 = arith.constant dense<0.000000e+00> : vector<64xf32>
    %772 = vector.multi_reduction <add>, %769, %cst_387 [1] : vector<64x32xf32> to vector<64xf32>
    %773 = vector.shape_cast %772 : vector<64xf32> to vector<64x1xf32>
    %cst_388 = arith.constant 3.200000e+01 : f32
    %774 = vector.broadcast %cst_388 : f32 to vector<64x1xf32>
    %775 = arith.divf %773, %774 : vector<64x1xf32>
    %776 = vector.broadcast %775 : vector<64x1xf32> to vector<64x32xf32>
    %777 = arith.subf %769, %776 : vector<64x32xf32>
    %778 = arith.mulf %777, %777 : vector<64x32xf32>
    %cst_389 = arith.constant dense<0.000000e+00> : vector<64xf32>
    %779 = vector.multi_reduction <add>, %778, %cst_389 [1] : vector<64x32xf32> to vector<64xf32>
    %780 = vector.shape_cast %779 : vector<64xf32> to vector<64x1xf32>
    %cst_390 = arith.constant 3.200000e+01 : f32
    %781 = vector.broadcast %cst_390 : f32 to vector<64x1xf32>
    %782 = arith.divf %780, %781 : vector<64x1xf32>
    %783 = vector.broadcast %775 : vector<64x1xf32> to vector<64x32xf32>
    %784 = arith.subf %769, %783 : vector<64x32xf32>
    %cst_391 = arith.constant 9.99999974E-6 : f32
    %785 = vector.broadcast %cst_391 : f32 to vector<64x1xf32>
    %786 = arith.addf %782, %785 : vector<64x1xf32>
    %787 = math.rsqrt %786 : vector<64x1xf32>
    %788 = vector.broadcast %787 : vector<64x1xf32> to vector<64x32xf32>
    %789 = arith.mulf %784, %788 : vector<64x32xf32>
    %790 = vector.broadcast %770 : vector<1x32xf32> to vector<64x32xf32>
    %791 = arith.mulf %789, %790 : vector<64x32xf32>
    %792 = vector.broadcast %771 : vector<1x32xf32> to vector<64x32xf32>
    %793 = arith.addf %791, %792 : vector<64x32xf32>
    %c0_392 = arith.constant 0 : index
    %c0_393 = arith.constant 0 : index
    %794 = vector.load %arg11[%c0_392, %c0_393] : memref<32x128xf32, #tpu.memory_space<vmem>>, vector<32x128xf32>
    %cst_394 = arith.constant dense<0.000000e+00> : vector<64x128xf32>
    %795 = tpu.matmul %793, %794, %cst_394 {dimension_numbers = #tpu.dot_dimension_numbers<[1], [0], [0], [1], [0, 0, 1, 1], [], []>} : vector<64x32xf32>, vector<32x128xf32>, vector<64x128xf32> -> vector<64x128xf32>
    %c0_395 = arith.constant 0 : index
    %c0_396 = arith.constant 0 : index
    %796 = vector.load %arg12[%c0_395, %c0_396] : memref<1x128xf32, #tpu.memory_space<vmem>>, vector<1x128xf32>
    %797 = vector.broadcast %796 : vector<1x128xf32> to vector<64x128xf32>
    %798 = arith.addf %795, %797 : vector<64x128xf32>
    %cst_397 = arith.constant 5.000000e-01 : f32
    %799 = vector.broadcast %cst_397 : f32 to vector<64x128xf32>
    %800 = arith.mulf %799, %798 : vector<64x128xf32>
    %cst_398 = arith.constant 4.471500e-02 : f32
    %801 = vector.broadcast %cst_398 : f32 to vector<64x128xf32>
    %802 = arith.mulf %801, %798 : vector<64x128xf32>
    %803 = arith.mulf %802, %798 : vector<64x128xf32>
    %804 = arith.mulf %803, %798 : vector<64x128xf32>
    %805 = arith.addf %798, %804 : vector<64x128xf32>
    %cst_399 = arith.constant 0.797884583 : f32
    %806 = vector.broadcast %cst_399 : f32 to vector<64x128xf32>
    %807 = arith.mulf %806, %805 : vector<64x128xf32>
    %808 = math.tanh %807 : vector<64x128xf32>
    %cst_400 = arith.constant 1.000000e+00 : f32
    %809 = vector.broadcast %cst_400 : f32 to vector<64x128xf32>
    %810 = arith.addf %809, %808 : vector<64x128xf32>
    %811 = arith.mulf %800, %810 : vector<64x128xf32>
    %c0_401 = arith.constant 0 : index
    %c0_402 = arith.constant 0 : index
    %812 = vector.load %arg13[%c0_401, %c0_402] : memref<128x32xf32, #tpu.memory_space<vmem>>, vector<128x32xf32>
    %cst_403 = arith.constant dense<0.000000e+00> : vector<64x32xf32>
    %813 = tpu.matmul %811, %812, %cst_403 {dimension_numbers = #tpu.dot_dimension_numbers<[1], [0], [0], [1], [0, 0, 1, 1], [], []>} : vector<64x128xf32>, vector<128x32xf32>, vector<64x32xf32> -> vector<64x32xf32>
    %814 = arith.addf %769, %813 : vector<64x32xf32>
    %c0_404 = arith.constant 0 : index
    %c0_405 = arith.constant 0 : index
    %815 = vector.load %arg14[%c0_404, %c0_405] : memref<1x32xf32, #tpu.memory_space<vmem>>, vector<1x32xf32>
    %816 = vector.broadcast %815 : vector<1x32xf32> to vector<64x32xf32>
    %817 = arith.addf %814, %816 : vector<64x32xf32>
    %c0_406 = arith.constant 0 : index
    %c0_407 = arith.constant 0 : index
    %818 = vector.load %arg15[%c0_406, %c0_407] : memref<1x32xf32, #tpu.memory_space<vmem>>, vector<1x32xf32>
    %c0_408 = arith.constant 0 : index
    %c0_409 = arith.constant 0 : index
    %819 = vector.load %arg16[%c0_408, %c0_409] : memref<1x32xf32, #tpu.memory_space<vmem>>, vector<1x32xf32>
    %cst_410 = arith.constant dense<0.000000e+00> : vector<64xf32>
    %820 = vector.multi_reduction <add>, %817, %cst_410 [1] : vector<64x32xf32> to vector<64xf32>
    %821 = vector.shape_cast %820 : vector<64xf32> to vector<64x1xf32>
    %cst_411 = arith.constant 3.200000e+01 : f32
    %822 = vector.broadcast %cst_411 : f32 to vector<64x1xf32>
    %823 = arith.divf %821, %822 : vector<64x1xf32>
    %824 = vector.broadcast %823 : vector<64x1xf32> to vector<64x32xf32>
    %825 = arith.subf %817, %824 : vector<64x32xf32>
    %826 = arith.mulf %825, %825 : vector<64x32xf32>
    %cst_412 = arith.constant dense<0.000000e+00> : vector<64xf32>
    %827 = vector.multi_reduction <add>, %826, %cst_412 [1] : vector<64x32xf32> to vector<64xf32>
    %828 = vector.shape_cast %827 : vector<64xf32> to vector<64x1xf32>
    %cst_413 = arith.constant 3.200000e+01 : f32
    %829 = vector.broadcast %cst_413 : f32 to vector<64x1xf32>
    %830 = arith.divf %828, %829 : vector<64x1xf32>
    %831 = vector.broadcast %823 : vector<64x1xf32> to vector<64x32xf32>
    %832 = arith.subf %817, %831 : vector<64x32xf32>
    %cst_414 = arith.constant 9.99999974E-6 : f32
    %833 = vector.broadcast %cst_414 : f32 to vector<64x1xf32>
    %834 = arith.addf %830, %833 : vector<64x1xf32>
    %835 = math.rsqrt %834 : vector<64x1xf32>
    %836 = vector.broadcast %835 : vector<64x1xf32> to vector<64x32xf32>
    %837 = arith.mulf %832, %836 : vector<64x32xf32>
    %838 = vector.broadcast %818 : vector<1x32xf32> to vector<64x32xf32>
    %839 = arith.mulf %837, %838 : vector<64x32xf32>
    %840 = vector.broadcast %819 : vector<1x32xf32> to vector<64x32xf32>
    %841 = arith.addf %839, %840 : vector<64x32xf32>
    %c0_415 = arith.constant 0 : index
    %c0_416 = arith.constant 0 : index
    %842 = vector.load %arg17[%c0_415, %c0_416] : memref<32x128xf32, #tpu.memory_space<vmem>>, vector<32x128xf32>
    %cst_417 = arith.constant dense<0.000000e+00> : vector<64x128xf32>
    %843 = tpu.matmul %841, %842, %cst_417 {dimension_numbers = #tpu.dot_dimension_numbers<[1], [0], [0], [1], [0, 0, 1, 1], [], []>} : vector<64x32xf32>, vector<32x128xf32>, vector<64x128xf32> -> vector<64x128xf32>
    %c0_418 = arith.constant 0 : index
    %c0_419 = arith.constant 0 : index
    %844 = vector.load %arg22[%c0_418, %c0_419] : memref<1x128xf32, #tpu.memory_space<vmem>>, vector<1x128xf32>
    %845 = vector.broadcast %844 : vector<1x128xf32> to vector<64x128xf32>
    %846 = arith.addf %843, %845 : vector<64x128xf32>
    %cst_420 = arith.constant dense<0xFF800000> : vector<64xf32>
    %847 = vector.multi_reduction <maximumf>, %846, %cst_420 [1] : vector<64x128xf32> to vector<64xf32>
    %848 = vector.shape_cast %847 : vector<64xf32> to vector<64x1xf32>
    %849 = vector.broadcast %848 : vector<64x1xf32> to vector<64x128xf32>
    %850 = arith.subf %846, %849 : vector<64x128xf32>
    %851 = math.exp %850 : vector<64x128xf32>
    %cst_421 = arith.constant dense<0.000000e+00> : vector<64xf32>
    %852 = vector.multi_reduction <add>, %851, %cst_421 [1] : vector<64x128xf32> to vector<64xf32>
    %853 = vector.shape_cast %852 : vector<64xf32> to vector<64x1xf32>
    %854 = math.log %853 : vector<64x1xf32>
    %855 = vector.broadcast %854 : vector<64x1xf32> to vector<64x128xf32>
    %856 = arith.subf %850, %855 : vector<64x128xf32>
    %857 = vector.shape_cast %856 : vector<64x128xf32> to vector<8x8x128xf32>
    %c0_422 = arith.constant 0 : index
    %c0_423 = arith.constant 0 : index
    %c0_424 = arith.constant 0 : index
    %858 = vector.load %arg23[%c0_422, %c0_423, %c0_424] : memref<8x8x128xf32, #tpu.memory_space<vmem>>, vector<8x8x128xf32>
    tpu.vector_store %arg23[%c0_422, %c0_423, %c0_424], %857 {strides = array<i32>} : memref<8x8x128xf32, #tpu.memory_space<vmem>>, vector<8x8x128xf32>,
    return
  }
  func.func @transform_0(%arg0: i32, %arg1: memref<192xi32, #tpu.memory_space<smem>>) -> (i32, i32, i32) {
    %c0_i32 = arith.constant 0 : i32
    %c0_i32_0 = arith.constant 0 : i32
    %c0_i32_1 = arith.constant 0 : i32
    return %arg0, %c0_i32, %c0_i32_0 : i32, i32, i32
  }
  func.func @transform_1(%arg0: i32, %arg1: memref<192xi32, #tpu.memory_space<smem>>) -> (i32, i32) {
    %c0_i32 = arith.constant 0 : i32
    %c0_i32_0 = arith.constant 0 : i32
    %c0_i32_1 = arith.constant 0 : i32
    return %c0_i32, %c0_i32_0 : i32, i32
  }
  func.func @transform_2(%arg0: i32, %arg1: memref<192xi32, #tpu.memory_space<smem>>) -> (i32, i32) {
    %c0_i32 = arith.constant 0 : i32
    %c0_i32_0 = arith.constant 0 : i32
    %c0_i32_1 = arith.constant 0 : i32
    return %c0_i32, %c0_i32_0 : i32, i32
  }
  func.func @transform_3(%arg0: i32, %arg1: memref<192xi32, #tpu.memory_space<smem>>) -> (i32, i32) {
    %c0_i32 = arith.constant 0 : i32
    %c0_i32_0 = arith.constant 0 : i32
    %c0_i32_1 = arith.constant 0 : i32
    return %c0_i32, %c0_i32_0 : i32, i32
  }
  func.func @transform_4(%arg0: i32, %arg1: memref<192xi32, #tpu.memory_space<smem>>) -> (i32, i32) {
    %c0_i32 = arith.constant 0 : i32
    %c0_i32_0 = arith.constant 0 : i32
    %c0_i32_1 = arith.constant 0 : i32
    return %c0_i32, %c0_i32_0 : i32, i32
  }
  func.func @transform_5(%arg0: i32, %arg1: memref<192xi32, #tpu.memory_space<smem>>) -> (i32, i32) {
    %c0_i32 = arith.constant 0 : i32
    %c0_i32_0 = arith.constant 0 : i32
    %c0_i32_1 = arith.constant 0 : i32
    return %c0_i32, %c0_i32_0 : i32, i32
  }
  func.func @transform_6(%arg0: i32, %arg1: memref<192xi32, #tpu.memory_space<smem>>) -> (i32, i32) {
    %c0_i32 = arith.constant 0 : i32
    %c0_i32_0 = arith.constant 0 : i32
    %c0_i32_1 = arith.constant 0 : i32
    return %c0_i32, %c0_i32_0 : i32, i32
  }
  func.func @transform_7(%arg0: i32, %arg1: memref<192xi32, #tpu.memory_space<smem>>) -> (i32, i32) {
    %c0_i32 = arith.constant 0 : i32
    %c0_i32_0 = arith.constant 0 : i32
    %c0_i32_1 = arith.constant 0 : i32
    return %c0_i32, %c0_i32_0 : i32, i32
  }
  func.func @transform_8(%arg0: i32, %arg1: memref<192xi32, #tpu.memory_space<smem>>) -> (i32, i32) {
    %c0_i32 = arith.constant 0 : i32
    %c0_i32_0 = arith.constant 0 : i32
    %c0_i32_1 = arith.constant 0 : i32
    return %c0_i32, %c0_i32_0 : i32, i32
  }
  func.func @transform_9(%arg0: i32, %arg1: memref<192xi32, #tpu.memory_space<smem>>) -> (i32, i32) {
    %c0_i32 = arith.constant 0 : i32
    %c0_i32_0 = arith.constant 0 : i32
    %c0_i32_1 = arith.constant 0 : i32
    return %c0_i32, %c0_i32_0 : i32, i32
  }
  func.func @transform_10(%arg0: i32, %arg1: memref<192xi32, #tpu.memory_space<smem>>) -> (i32, i32) {
    %c0_i32 = arith.constant 0 : i32
    %c0_i32_0 = arith.constant 0 : i32
    %c0_i32_1 = arith.constant 0 : i32
    return %c0_i32, %c0_i32_0 : i32, i32
  }
  func.func @transform_11(%arg0: i32, %arg1: memref<192xi32, #tpu.memory_space<smem>>) -> (i32, i32) {
    %c0_i32 = arith.constant 0 : i32
    %c0_i32_0 = arith.constant 0 : i32
    %c0_i32_1 = arith.constant 0 : i32
    return %c0_i32, %c0_i32_0 : i32, i32
  }
  func.func @transform_12(%arg0: i32, %arg1: memref<192xi32, #tpu.memory_space<smem>>) -> (i32, i32) {
    %c0_i32 = arith.constant 0 : i32
    %c0_i32_0 = arith.constant 0 : i32
    %c0_i32_1 = arith.constant 0 : i32
    return %c0_i32, %c0_i32_0 : i32, i32
  }
  func.func @transform_13(%arg0: i32, %arg1: memref<192xi32, #tpu.memory_space<smem>>) -> (i32, i32) {
    %c0_i32 = arith.constant 0 : i32
    %c0_i32_0 = arith.constant 0 : i32
    %c0_i32_1 = arith.constant 0 : i32
    return %c0_i32, %c0_i32_0 : i32, i32
  }
  func.func @transform_14(%arg0: i32, %arg1: memref<192xi32, #tpu.memory_space<smem>>) -> (i32, i32) {
    %c0_i32 = arith.constant 0 : i32
    %c0_i32_0 = arith.constant 0 : i32
    %c0_i32_1 = arith.constant 0 : i32
    return %c0_i32, %c0_i32_0 : i32, i32
  }
  func.func @transform_15(%arg0: i32, %arg1: memref<192xi32, #tpu.memory_space<smem>>) -> (i32, i32) {
    %c0_i32 = arith.constant 0 : i32
    %c0_i32_0 = arith.constant 0 : i32
    %c0_i32_1 = arith.constant 0 : i32
    return %c0_i32, %c0_i32_0 : i32, i32
  }
  func.func @transform_16(%arg0: i32, %arg1: memref<192xi32, #tpu.memory_space<smem>>) -> (i32, i32) {
    %c0_i32 = arith.constant 0 : i32
    %c0_i32_0 = arith.constant 0 : i32
    %c0_i32_1 = arith.constant 0 : i32
    return %c0_i32, %c0_i32_0 : i32, i32
  }
  func.func @transform_17(%arg0: i32, %arg1: memref<192xi32, #tpu.memory_space<smem>>) -> (i32, i32) {
    %c0_i32 = arith.constant 0 : i32
    %c0_i32_0 = arith.constant 0 : i32
    %c0_i32_1 = arith.constant 0 : i32
    return %c0_i32, %c0_i32_0 : i32, i32
  }
  func.func @transform_18(%arg0: i32, %arg1: memref<192xi32, #tpu.memory_space<smem>>) -> (i32, i32) {
    %c0_i32 = arith.constant 0 : i32
    %c0_i32_0 = arith.constant 0 : i32
    %c0_i32_1 = arith.constant 0 : i32
    return %c0_i32, %c0_i32_0 : i32, i32
  }
  func.func @transform_19(%arg0: i32, %arg1: memref<192xi32, #tpu.memory_space<smem>>) -> (i32, i32) {
    %c0_i32 = arith.constant 0 : i32
    %c0_i32_0 = arith.constant 0 : i32
    %c0_i32_1 = arith.constant 0 : i32
    return %c0_i32, %c0_i32_0 : i32, i32
  }
  func.func @transform_20(%arg0: i32, %arg1: memref<192xi32, #tpu.memory_space<smem>>) -> (i32, i32) {
    %c0_i32 = arith.constant 0 : i32
    %c0_i32_0 = arith.constant 0 : i32
    %c0_i32_1 = arith.constant 0 : i32
    return %c0_i32, %c0_i32_0 : i32, i32
  }
  func.func @transform_21(%arg0: i32, %arg1: memref<192xi32, #tpu.memory_space<smem>>) -> (i32, i32, i32) {
    %c0_i32 = arith.constant 0 : i32
    %c0_i32_0 = arith.constant 0 : i32
    %c0_i32_1 = arith.constant 0 : i32
    return %arg0, %c0_i32, %c0_i32_0 : i32, i32, i32
  }
}

</mosaic_0001>

<llo_original>
// kernel: lm_logprob_windows.1
$region0: #{lm_logprob_windows.1}
  #allocation0 [shape = 'u32[]', space=smem, size = 0x4, offset = 0x4, fixed_abs, tag = 'smem constant byte address 0x4 - core index']
  #allocation1 [shape = 'u32[144,128]{1,0:T(1,128)}', space=vmem, size = 0x12000, scoped, tag = 'internal scratch']
  #allocation2 [shape = 's32[1]{0}', space=sflag, size = 0x4, scoped, tag = 'scoped memory for lm_logprob_windows.1']
  #allocation3 [shape = 'u8[1024]{0}', space=smem, size = 0x400, scoped, tag = 'prefetched SMEM operand 0']
  %s0 = inlined_call_operand.vmem [shape: s32[192], index: 0, kind: input, shape index: {}]
  %s1 = inlined_call_operand.vmem [shape: f32[192,32,32], index: 1, kind: input, shape index: {}]
  %s2 = inlined_call_operand.vmem [shape: f32[1,32], index: 2, kind: input, shape index: {}]
  %s3 = inlined_call_operand.vmem [shape: f32[1,32], index: 3, kind: input, shape index: {}]
  %s4 = inlined_call_operand.vmem [shape: f32[32,96], index: 4, kind: input, shape index: {}]
  %s5 = inlined_call_operand.vmem [shape: f32[1,96], index: 5, kind: input, shape index: {}]
  %s6 = inlined_call_operand.vmem [shape: f32[32,32], index: 6, kind: input, shape index: {}]
  %s7 = inlined_call_operand.vmem [shape: f32[1,32], index: 7, kind: input, shape index: {}]
  %s8 = inlined_call_operand.vmem [shape: f32[1,32], index: 8, kind: input, shape index: {}]
  %s9 = inlined_call_operand.vmem [shape: f32[1,32], index: 9, kind: input, shape index: {}]
  %s10 = inlined_call_operand.vmem [shape: f32[32,128], index: 10, kind: input, shape index: {}]
  %s11 = inlined_call_operand.vmem [shape: f32[1,128], index: 11, kind: input, shape index: {}]
  %s12 = inlined_call_operand.vmem [shape: f32[128,32], index: 12, kind: input, shape index: {}]
  %s13 = inlined_call_operand.vmem [shape: f32[1,32], index: 13, kind: input, shape index: {}]
  %s14 = inlined_call_operand.vmem [shape: f32[1,32], index: 14, kind: input, shape index: {}]
  %s15 = inlined_call_operand.vmem [shape: f32[1,32], index: 15, kind: input, shape index: {}]
  %s16 = inlined_call_operand.vmem [shape: f32[32,128], index: 16, kind: input, shape index: {}]
  %s17 = inlined_call_operand.vmem [shape: f32[128,32], index: 17, kind: input, shape index: {}]
  %s18 = inlined_call_operand.vmem [shape: f32[128,32], index: 18, kind: input, shape index: {}]
  %s19 = inlined_call_operand.vmem [shape: f32[32,128], index: 19, kind: input, shape index: {}]
  %s20 = inlined_call_operand.vmem [shape: f32[128,128], index: 20, kind: input, shape index: {}]
  %s21 = inlined_call_operand.vmem [shape: f32[1,128], index: 21, kind: input, shape index: {}]
  %s22 = inlined_call_operand.hbm [shape: f32[192,8,128], index: 22, kind: output, shape index: {}]
  %s23 = sld [smem:[#allocation0]]
  $region117: #{lm_logprob_windows.1} parent=0
    _
  %s25 = ssub.s32 1, %s23
  %s26 = scalar_select 0, %s25, %s23
  %s27 = sshll.u32 %s0, 4
  %s28 = int_to_ptr.vmem [resolvable:$true] %s27
  %30 = dma.vmem_to_smem %s28, 32, [#allocation3], [#allocation2]
  %31 = dma.done [#allocation2], 32
  %32 = sfence
  $region1: #{lm_logprob_windows.1} parent=0
    #allocation4 [shape = 'u8[65536]{0}', space=vmem, size = 0x10000, scoped, tag = 'output window, operand 0']
    #allocation5 [shape = 's32[2]{0}', space=sflag, size = 0x8, scoped, tag = 'scoped memory for lm_logprob_windows.1']
    %33 = vsyncpa [#allocation5], 0
    %s34 = scalar_lea.sflag [#allocation5], 1
    %35 = vsyncpa %s34, 0
    loop: start=0, step=1, limit=26
    $region2: #{lm_logprob_windows.1} parent=1 // loop_pre_header
      _
    $region3: #{lm_logprob_windows.1} parent=1 // loop_header
      %s37 = sphi 0, %s41
      %p38 = scmp.ge.s32.totalorder %s37, 26
      %s47 = sphi 0, %s49
      %s50 = sphi 0, %s47
      %s51 = sphi 0, %s50
      %s67 = sphi 0, %s51
      %s71 = sphi 0, %s71
      %s73 = sphi 0, %s71
      %s74 = sphi 0, %s73
      %s88 = sphi 0, %s74
      %s92 = sphi 0, %s92
      %s94 = sphi 0, %s92
      %s95 = sphi 0, %s94
      %s109 = sphi 0, %s95
      %s113 = sphi 0, %s113
      %s115 = sphi 0, %s113
      %s116 = sphi 0, %s115
      %s130 = sphi 0, %s116
      %s134 = sphi 0, %s134
      %s136 = sphi 0, %s134
      %s137 = sphi 0, %s136
      %s151 = sphi 0, %s137
      %s155 = sphi 0, %s155
      %s157 = sphi 0, %s155
      %s158 = sphi 0, %s157
      %s172 = sphi 0, %s158
      %s176 = sphi 0, %s176
      %s178 = sphi 0, %s176
      %s179 = sphi 0, %s178
      %s193 = sphi 0, %s179
      %s197 = sphi 0, %s197
      %s199 = sphi 0, %s197
      %s200 = sphi 0, %s199
      %s214 = sphi 0, %s200
      %s218 = sphi 0, %s218
      %s220 = sphi 0, %s218
      %s221 = sphi 0, %s220
      %s235 = sphi 0, %s221
      %s239 = sphi 0, %s239
      %s241 = sphi 0, %s239
      %s242 = sphi 0, %s241
      %s256 = sphi 0, %s242
      %s260 = sphi 0, %s260
      %s262 = sphi 0, %s260
      %s263 = sphi 0, %s262
      %s277 = sphi 0, %s263
      %s281 = sphi 0, %s281
      %s283 = sphi 0, %s281
      %s284 = sphi 0, %s283
      %s298 = sphi 0, %s284
      %s302 = sphi 0, %s302
      %s304 = sphi 0, %s302
      %s305 = sphi 0, %s304
      %s319 = sphi 0, %s305
      %s323 = sphi 0, %s323
      %s325 = sphi 0, %s323
      %s326 = sphi 0, %s325
      %s340 = sphi 0, %s326
      %s344 = sphi 0, %s344
      %s346 = sphi 0, %s344
      %s347 = sphi 0, %s346
      %s361 = sphi 0, %s347
      %s365 = sphi 0, %s365
      %s367 = sphi 0, %s365
      %s368 = sphi 0, %s367
      %s382 = sphi 0, %s368
      %s386 = sphi 0, %s386
      %s388 = sphi 0, %s386
      %s389 = sphi 0, %s388
      %s403 = sphi 0, %s389
      %s407 = sphi 0, %s407
      %s409 = sphi 0, %s407
      %s410 = sphi 0, %s409
      %s424 = sphi 0, %s410
      %s428 = sphi 0, %s428
      %s430 = sphi 0, %s428
      %s431 = sphi 0, %s430
      %s445 = sphi 0, %s431
      %s449 = sphi 0, %s449
      %s451 = sphi 0, %s449
      %s452 = sphi 0, %s451
      %s466 = sphi 0, %s452
      %s470 = sphi 0, %s470
      %s472 = sphi 0, %s470
      %s473 = sphi 0, %s472
      %s487 = sphi 0, %s473
      %s493 = sphi 0, %s495
      %s496 = sphi 0, %s493
      %s497 = sphi 0, %s496
      %s513 = sphi 0, %s497
    $region4: #{lm_logprob_windows.1} parent=1 // loop_header_branch
      %40 = sbr.rel (%p38) target = $region8
    $region5: #{lm_logprob_windows.1} parent=1 // loop_body
      %s42 = ssub.s32 %s37, 1
      %s43 = ssub.s32 %s37, 2
      %s44 = sadd.s32 %s37, 1
      %s45 = ssub.s32 %s37, %s44
      %p46 = scmp.eq.s32.totalorder %s45, 0
      %s48 = sadd.s32 %s47, 1
      %s49 = scalar_select %p46, %s47, %s48
      %p52 = pneg %p46
      %p53 = scmp.eq.s32.totalorder %s37, 23
      %p54 = por %p52, %p53
      %p55 = scmp.ne.s32.totalorder %s47, %s50
      %p56 = scmp.eq.s32.totalorder %s37, 0
      %p57 = por %p55, %p56
      %p58 = scmp.ne.s32.totalorder %s47, %s50
      %p59 = scmp.eq.s32.totalorder %s42, 23
      %p60 = por %p58, %p59
      %p61 = scmp.ne.s32.totalorder %s50, %s51
      %p62 = scmp.eq.s32.totalorder %s42, 0
      %p63 = por %p61, %p62
      %p64 = scmp.ne.s32.totalorder %s50, %s51
      %p65 = scmp.eq.s32.totalorder %s43, 23
      %p66 = por %p64, %p65
      %p68 = scmp.ne.s32.totalorder %s51, %s67
      %p69 = scmp.eq.s32.totalorder %s43, 0
      %p70 = por %p68, %p69
      %s72 = sadd.s32 %s71, 1
      %p75 = scmp.eq.s32.totalorder %s37, 23
      %p76 = scmp.ne.s32.totalorder %s71, %s73
      %p77 = scmp.eq.s32.totalorder %s37, 0
      %p78 = por %p76, %p77
      %p79 = scmp.ne.s32.totalorder %s71, %s73
      %p80 = scmp.eq.s32.totalorder %s42, 23
      %p81 = por %p79, %p80
      %p82 = scmp.ne.s32.totalorder %s73, %s74
      %p83 = scmp.eq.s32.totalorder %s42, 0
      %p84 = por %p82, %p83
      %p85 = scmp.ne.s32.totalorder %s73, %s74
      %p86 = scmp.eq.s32.totalorder %s43, 23
      %p87 = por %p85, %p86
      %p89 = scmp.ne.s32.totalorder %s74, %s88
      %p90 = scmp.eq.s32.totalorder %s43, 0
      %p91 = por %p89, %p90
      %s93 = sadd.s32 %s92, 1
      %p96 = scmp.eq.s32.totalorder %s37, 23
      %p97 = scmp.ne.s32.totalorder %s92, %s94
      %p98 = scmp.eq.s32.totalorder %s37, 0
      %p99 = por %p97, %p98
      %p100 = scmp.ne.s32.totalorder %s92, %s94
      %p101 = scmp.eq.s32.totalorder %s42, 23
      %p102 = por %p100, %p101
      %p103 = scmp.ne.s32.totalorder %s94, %s95
      %p104 = scmp.eq.s32.totalorder %s42, 0
      %p105 = por %p103, %p104
      %p106 = scmp.ne.s32.totalorder %s94, %s95
      %p107 = scmp.eq.s32.totalorder %s43, 23
      %p108 = por %p106, %p107
      %p110 = scmp.ne.s32.totalorder %s95, %s109
      %p111 = scmp.eq.s32.totalorder %s43, 0
      %p112 = por %p110, %p111
      %s114 = sadd.s32 %s113, 1
      %p117 = scmp.eq.s32.totalorder %s37, 23
      %p118 = scmp.ne.s32.totalorder %s113, %s115
      %p119 = scmp.eq.s32.totalorder %s37, 0
      %p120 = por %p118, %p119
      %p121 = scmp.ne.s32.totalorder %s113, %s115
      %p122 = scmp.eq.s32.totalorder %s42, 23
      %p123 = por %p121, %p122
      %p124 = scmp.ne.s32.totalorder %s115, %s116
      %p125 = scmp.eq.s32.totalorder %s42, 0
      %p126 = por %p124, %p125
      %p127 = scmp.ne.s32.totalorder %s115, %s116
      %p128 = scmp.eq.s32.totalorder %s43, 23
      %p129 = por %p127, %p128
      %p131 = scmp.ne.s32.totalorder %s116, %s130
      %p132 = scmp.eq.s32.totalorder %s43, 0
      %p133 = por %p131, %p132
      %s135 = sadd.s32 %s134, 1
      %p138 = scmp.eq.s32.totalorder %s37, 23
      %p139 = scmp.ne.s32.totalorder %s134, %s136
      %p140 = scmp.eq.s32.totalorder %s37, 0
      %p141 = por %p139, %p140
      %p142 = scmp.ne.s32.totalorder %s134, %s136
      %p143 = scmp.eq.s32.totalorder %s42, 23
      %p144 = por %p142, %p143
      %p145 = scmp.ne.s32.totalorder %s136, %s137
      %p146 = scmp.eq.s32.totalorder %s42, 0
      %p147 = por %p145, %p146
      %p148 = scmp.ne.s32.totalorder %s136, %s137
      %p149 = scmp.eq.s32.totalorder %s43, 23
      %p150 = por %p148, %p149
      %p152 = scmp.ne.s32.totalorder %s137, %s151
      %p153 = scmp.eq.s32.totalorder %s43, 0
      %p154 = por %p152, %p153
      %s156 = sadd.s32 %s155, 1
      %p159 = scmp.eq.s32.totalorder %s37, 23
      %p160 = scmp.ne.s32.totalorder %s155, %s157
      %p161 = scmp.eq.s32.totalorder %s37, 0
      %p162 = por %p160, %p161
      %p163 = scmp.ne.s32.totalorder %s155, %s157
      %p164 = scmp.eq.s32.totalorder %s42, 23
      %p165 = por %p163, %p164
      %p166 = scmp.ne.s32.totalorder %s157, %s158
      %p167 = scmp.eq.s32.totalorder %s42, 0
      %p168 = por %p166, %p167
      %p169 = scmp.ne.s32.totalorder %s157, %s158
      %p170 = scmp.eq.s32.totalorder %s43, 23
      %p171 = por %p169, %p170
      %p173 = scmp.ne.s32.totalorder %s158, %s172
      %p174 = scmp.eq.s32.totalorder %s43, 0
      %p175 = por %p173, %p174
      %s177 = sadd.s32 %s176, 1
      %p180 = scmp.eq.s32.totalorder %s37, 23
      %p181 = scmp.ne.s32.totalorder %s176, %s178
      %p182 = scmp.eq.s32.totalorder %s37, 0
      %p183 = por %p181, %p182
      %p184 = scmp.ne.s32.totalorder %s176, %s178
      %p185 = scmp.eq.s32.totalorder %s42, 23
      %p186 = por %p184, %p185
      %p187 = scmp.ne.s32.totalorder %s178, %s179
      %p188 = scmp.eq.s32.totalorder %s42, 0
      %p189 = por %p187, %p188
      %p190 = scmp.ne.s32.totalorder %s178, %s179
      %p191 = scmp.eq.s32.totalorder %s43, 23
      %p192 = por %p190, %p191
      %p194 = scmp.ne.s32.totalorder %s179, %s193
      %p195 = scmp.eq.s32.totalorder %s43, 0
      %p196 = por %p194, %p195
      %s198 = sadd.s32 %s197, 1
      %p201 = scmp.eq.s32.totalorder %s37, 23
      %p202 = scmp.ne.s32.totalorder %s197, %s199
      %p203 = scmp.eq.s32.totalorder %s37, 0
      %p204 = por %p202, %p203
      %p205 = scmp.ne.s32.totalorder %s197, %s199
      %p206 = scmp.eq.s32.totalorder %s42, 23
      %p207 = por %p205, %p206
      %p208 = scmp.ne.s32.totalorder %s199, %s200
      %p209 = scmp.eq.s32.totalorder %s42, 0
      %p210 = por %p208, %p209
      %p211 = scmp.ne.s32.totalorder %s199, %s200
      %p212 = scmp.eq.s32.totalorder %s43, 23
      %p213 = por %p211, %p212
      %p215 = scmp.ne.s32.totalorder %s200, %s214
      %p216 = scmp.eq.s32.totalorder %s43, 0
      %p217 = por %p215, %p216
      %s219 = sadd.s32 %s218, 1
      %p222 = scmp.eq.s32.totalorder %s37, 23
      %p223 = scmp.ne.s32.totalorder %s218, %s220
      %p224 = scmp.eq.s32.totalorder %s37, 0
      %p225 = por %p223, %p224
      %p226 = scmp.ne.s32.totalorder %s218, %s220
      %p227 = scmp.eq.s32.totalorder %s42, 23
      %p228 = por %p226, %p227
      %p229 = scmp.ne.s32.totalorder %s220, %s221
      %p230 = scmp.eq.s32.totalorder %s42, 0
      %p231 = por %p229, %p230
      %p232 = scmp.ne.s32.totalorder %s220, %s221
      %p233 = scmp.eq.s32.totalorder %s43, 23
      %p234 = por %p232, %p233
      %p236 = scmp.ne.s32.totalorder %s221, %s235
      %p237 = scmp.eq.s32.totalorder %s43, 0
      %p238 = por %p236, %p237
      %s240 = sadd.s32 %s239, 1
      %p243 = scmp.eq.s32.totalorder %s37, 23
      %p244 = scmp.ne.s32.totalorder %s239, %s241
      %p245 = scmp.eq.s32.totalorder %s37, 0
      %p246 = por %p244, %p245
      %p247 = scmp.ne.s32.totalorder %s239, %s241
      %p248 = scmp.eq.s32.totalorder %s42, 23
      %p249 = por %p247, %p248
      %p250 = scmp.ne.s32.totalorder %s241, %s242
      %p251 = scmp.eq.s32.totalorder %s42, 0
      %p252 = por %p250, %p251
      %p253 = scmp.ne.s32.totalorder %s241, %s242
      %p254 = scmp.eq.s32.totalorder %s43, 23
      %p255 = por %p253, %p254
      %p257 = scmp.ne.s32.totalorder %s242, %s256
      %p258 = scmp.eq.s32.totalorder %s43, 0
      %p259 = por %p257, %p258
      %s261 = sadd.s32 %s260, 1
      %p264 = scmp.eq.s32.totalorder %s37, 23
      %p265 = scmp.ne.s32.totalorder %s260, %s262
      %p266 = scmp.eq.s32.totalorder %s37, 0
      %p267 = por %p265, %p266
      %p268 = scmp.ne.s32.totalorder %s260, %s262
      %p269 = scmp.eq.s32.totalorder %s42, 23
      %p270 = por %p268, %p269
      %p271 = scmp.ne.s32.totalorder %s262, %s263
      %p272 = scmp.eq.s32.totalorder %s42, 0
      %p273 = por %p271, %p272
      %p274 = scmp.ne.s32.totalorder %s262, %s263
      %p275 = scmp.eq.s32.totalorder %s43, 23
      %p276 = por %p274, %p275
      %p278 = scmp.ne.s32.totalorder %s263, %s277
      %p279 = scmp.eq.s32.totalorder %s43, 0
      %p280 = por %p278, %p279
      %s282 = sadd.s32 %s281, 1
      %p285 = scmp.eq.s32.totalorder %s37, 23
      %p286 = scmp.ne.s32.totalorder %s281, %s283
      %p287 = scmp.eq.s32.totalorder %s37, 0
      %p288 = por %p286, %p287
      %p289 = scmp.ne.s32.totalorder %s281, %s283
      %p290 = scmp.eq.s32.totalorder %s42, 23
      %p291 = por %p289, %p290
      %p292 = scmp.ne.s32.totalorder %s283, %s284
      %p293 = scmp.eq.s32.totalorder %s42, 0
      %p294 = por %p292, %p293
      %p295 = scmp.ne.s32.totalorder %s283, %s284
      %p296 = scmp.eq.s32.totalorder %s43, 23
      %p297 = por %p295, %p296
      %p299 = scmp.ne.s32.totalorder %s284, %s298
      %p300 = scmp.eq.s32.totalorder %s43, 0
      %p301 = por %p299, %p300
      %s303 = sadd.s32 %s302, 1
      %p306 = scmp.eq.s32.totalorder %s37, 23
      %p307 = scmp.ne.s32.totalorder %s302, %s304
      %p308 = scmp.eq.s32.totalorder %s37, 0
      %p309 = por %p307, %p308
      %p310 = scmp.ne.s32.totalorder %s302, %s304
      %p311 = scmp.eq.s32.totalorder %s42, 23
      %p312 = por %p310, %p311
      %p313 = scmp.ne.s32.totalorder %s304, %s305
      %p314 = scmp.eq.s32.totalorder %s42, 0
      %p315 = por %p313, %p314
      %p316 = scmp.ne.s32.totalorder %s304, %s305
      %p317 = scmp.eq.s32.totalorder %s43, 23
      %p318 = por %p316, %p317
      %p320 = scmp.ne.s32.totalorder %s305, %s319
      %p321 = scmp.eq.s32.totalorder %s43, 0
      %p322 = por %p320, %p321
      %s324 = sadd.s32 %s323, 1
      %p327 = scmp.eq.s32.totalorder %s37, 23
      %p328 = scmp.ne.s32.totalorder %s323, %s325
      %p329 = scmp.eq.s32.totalorder %s37, 0
      %p330 = por %p328, %p329
      %p331 = scmp.ne.s32.totalorder %s323, %s325
      %p332 = scmp.eq.s32.totalorder %s42, 23
      %p333 = por %p331, %p332
      %p334 = scmp.ne.s32.totalorder %s325, %s326
      %p335 = scmp.eq.s32.totalorder %s42, 0
      %p336 = por %p334, %p335
      %p337 = scmp.ne.s32.totalorder %s325, %s326
      %p338 = scmp.eq.s32.totalorder %s43, 23
      %p339 = por %p337, %p338
      %p341 = scmp.ne.s32.totalorder %s326, %s340
      %p342 = scmp.eq.s32.totalorder %s43, 0
      %p343 = por %p341, %p342
      %s345 = sadd.s32 %s344, 1
      %p348 = scmp.eq.s32.totalorder %s37, 23
      %p349 = scmp.ne.s32.totalorder %s344, %s346
      %p350 = scmp.eq.s32.totalorder %s37, 0
      %p351 = por %p349, %p350
      %p352 = scmp.ne.s32.totalorder %s344, %s346
      %p353 = scmp.eq.s32.totalorder %s42, 23
      %p354 = por %p352, %p353
      %p355 = scmp.ne.s32.totalorder %s346, %s347
      %p356 = scmp.eq.s32.totalorder %s42, 0
      %p357 = por %p355, %p356
      %p358 = scmp.ne.s32.totalorder %s346, %s347
      %p359 = scmp.eq.s32.totalorder %s43, 23
      %p360 = por %p358, %p359
      %p362 = scmp.ne.s32.totalorder %s347, %s361
      %p363 = scmp.eq.s32.totalorder %s43, 0
      %p364 = por %p362, %p363
      %s366 = sadd.s32 %s365, 1
      %p369 = scmp.eq.s32.totalorder %s37, 23
      %p370 = scmp.ne.s32.totalorder %s365, %s367
      %p371 = scmp.eq.s32.totalorder %s37, 0
      %p372 = por %p370, %p371
      %p373 = scmp.ne.s32.totalorder %s365, %s367
      %p374 = scmp.eq.s32.totalorder %s42, 23
      %p375 = por %p373, %p374
      %p376 = scmp.ne.s32.totalorder %s367, %s368
      %p377 = scmp.eq.s32.totalorder %s42, 0
      %p378 = por %p376, %p377
      %p379 = scmp.ne.s32.totalorder %s367, %s368
      %p380 = scmp.eq.s32.totalorder %s43, 23
      %p381 = por %p379, %p380
      %p383 = scmp.ne.s32.totalorder %s368, %s382
      %p384 = scmp.eq.s32.totalorder %s43, 0
      %p385 = por %p383, %p384
      %s387 = sadd.s32 %s386, 1
      %p390 = scmp.eq.s32.totalorder %s37, 23
      %p391 = scmp.ne.s32.totalorder %s386, %s388
      %p392 = scmp.eq.s32.totalorder %s37, 0
      %p393 = por %p391, %p392
      %p394 = scmp.ne.s32.totalorder %s386, %s388
      %p395 = scmp.eq.s32.totalorder %s42, 23
      %p396 = por %p394, %p395
      %p397 = scmp.ne.s32.totalorder %s388, %s389
      %p398 = scmp.eq.s32.totalorder %s42, 0
      %p399 = por %p397, %p398
      %p400 = scmp.ne.s32.totalorder %s388, %s389
      %p401 = scmp.eq.s32.totalorder %s43, 23
      %p402 = por %p400, %p401
      %p404 = scmp.ne.s32.totalorder %s389, %s403
      %p405 = scmp.eq.s32.totalorder %s43, 0
      %p406 = por %p404, %p405
      %s408 = sadd.s32 %s407, 1
      %p411 = scmp.eq.s32.totalorder %s37, 23
      %p412 = scmp.ne.s32.totalorder %s407, %s409
      %p413 = scmp.eq.s32.totalorder %s37, 0
      %p414 = por %p412, %p413
      %p415 = scmp.ne.s32.totalorder %s407, %s409
      %p416 = scmp.eq.s32.totalorder %s42, 23
      %p417 = por %p415, %p416
      %p418 = scmp.ne.s32.totalorder %s409, %s410
      %p419 = scmp.eq.s32.totalorder %s42, 0
      %p420 = por %p418, %p419
      %p421 = scmp.ne.s32.totalorder %s409, %s410
      %p422 = scmp.eq.s32.totalorder %s43, 23
      %p423 = por %p421, %p422
      %p425 = scmp.ne.s32.totalorder %s410, %s424
      %p426 = scmp.eq.s32.totalorder %s43, 0
      %p427 = por %p425, %p426
      %s429 = sadd.s32 %s428, 1
      %p432 = scmp.eq.s32.totalorder %s37, 23
      %p433 = scmp.ne.s32.totalorder %s428, %s430
      %p434 = scmp.eq.s32.totalorder %s37, 0
      %p435 = por %p433, %p434
      %p436 = scmp.ne.s32.totalorder %s428, %s430
      %p437 = scmp.eq.s32.totalorder %s42, 23
      %p438 = por %p436, %p437
      %p439 = scmp.ne.s32.totalorder %s430, %s431
      %p440 = scmp.eq.s32.totalorder %s42, 0
      %p441 = por %p439, %p440
      %p442 = scmp.ne.s32.totalorder %s430, %s431
      %p443 = scmp.eq.s32.totalorder %s43, 23
      %p444 = por %p442, %p443
      %p446 = scmp.ne.s32.totalorder %s431, %s445
      %p447 = scmp.eq.s32.totalorder %s43, 0
      %p448 = por %p446, %p447
      %s450 = sadd.s32 %s449, 1
      %p453 = scmp.eq.s32.totalorder %s37, 23
      %p454 = scmp.ne.s32.totalorder %s449, %s451
      %p455 = scmp.eq.s32.totalorder %s37, 0
      %p456 = por %p454, %p455
      %p457 = scmp.ne.s32.totalorder %s449, %s451
      %p458 = scmp.eq.s32.totalorder %s42, 23
      %p459 = por %p457, %p458
      %p460 = scmp.ne.s32.totalorder %s451, %s452
      %p461 = scmp.eq.s32.totalorder %s42, 0
      %p462 = por %p460, %p461
      %p463 = scmp.ne.s32.totalorder %s451, %s452
      %p464 = scmp.eq.s32.totalorder %s43, 23
      %p465 = por %p463, %p464
      %p467 = scmp.ne.s32.totalorder %s452, %s466
      %p468 = scmp.eq.s32.totalorder %s43, 0
      %p469 = por %p467, %p468
      %s471 = sadd.s32 %s470, 1
      %p474 = scmp.eq.s32.totalorder %s37, 23
      %p475 = scmp.ne.s32.totalorder %s470, %s472
      %p476 = scmp.eq.s32.totalorder %s37, 0
      %p477 = por %p475, %p476
      %p478 = scmp.ne.s32.totalorder %s470, %s472
      %p479 = scmp.eq.s32.totalorder %s42, 23
      %p480 = por %p478, %p479
      %p481 = scmp.ne.s32.totalorder %s472, %s473
      %p482 = scmp.eq.s32.totalorder %s42, 0
      %p483 = por %p481, %p482
      %p484 = scmp.ne.s32.totalorder %s472, %s473
      %p485 = scmp.eq.s32.totalorder %s43, 23
      %p486 = por %p484, %p485
      %p488 = scmp.ne.s32.totalorder %s473, %s487
      %p489 = scmp.eq.s32.totalorder %s43, 0
      %p490 = por %p488, %p489
      %s491 = ssub.s32 %s37, %s44
      %p492 = scmp.eq.s32.totalorder %s491, 0
      %s494 = sadd.s32 %s493, 1
      %s495 = scalar_select %p492, %s493, %s494
      %p498 = pneg %p492
      %p499 = scmp.eq.s32.totalorder %s37, 23
      %p500 = por %p498, %p499
      %p501 = scmp.ne.s32.totalorder %s493, %s496
      %p502 = scmp.eq.s32.totalorder %s37, 0
      %p503 = por %p501, %p502
      %p504 = scmp.ne.s32.totalorder %s493, %s496
      %p505 = scmp.eq.s32.totalorder %s42, 23
      %p506 = por %p504, %p505
      %p507 = scmp.ne.s32.totalorder %s496, %s497
      %p508 = scmp.eq.s32.totalorder %s42, 0
      %p509 = por %p507, %p508
      %p510 = scmp.ne.s32.totalorder %s496, %s497
      %p511 = scmp.eq.s32.totalorder %s43, 23
      %p512 = por %p510, %p511
      %p514 = scmp.ne.s32.totalorder %s497, %s513
      %p515 = scmp.eq.s32.totalorder %s43, 0
      %p516 = por %p514, %p515
      %p517 = scmp.le.s32.totalorder 1, %s37
      %p518 = scmp.lt.s32.totalorder %s37, 25
      %p519 = pnand %p517, %p518
      %p520 = pneg %p519
      // Predicated region
      $region9: #{lm_logprob_windows.1} parent=5 // pred_check
        _
      $region10: #{lm_logprob_windows.1} parent=5 // pred_check_branch
        %522 = sbr.rel (%p519) target = $region12
      $region11: #{lm_logprob_windows.1} parent=5 // pred_region
        %s523 = ssub.s32 %s37, 1
        // Predicated region
        $region13: #{lm_logprob_windows.1} parent=11 // pred_check
          %p524 = pneg %p84
        $region14: #{lm_logprob_windows.1} parent=11 // pred_check_branch
          %526 = sbr.rel (%p524) target = $region16
        $region15: #{lm_logprob_windows.1} parent=11 // pred_region
          _
        $region16: #{lm_logprob_windows.1} parent=11 // pred_fallthru
          _
        // Predicated region
        $region17: #{lm_logprob_windows.1} parent=11 // pred_check
          %p527 = pneg %p105
        $region18: #{lm_logprob_windows.1} parent=11 // pred_check_branch
          %529 = sbr.rel (%p527) target = $region20
        $region19: #{lm_logprob_windows.1} parent=11 // pred_region
          _
        $region20: #{lm_logprob_windows.1} parent=11 // pred_fallthru
          _
        // Predicated region
        $region21: #{lm_logprob_windows.1} parent=11 // pred_check
          %p530 = pneg %p126
        $region22: #{lm_logprob_windows.1} parent=11 // pred_check_branch
          %532 = sbr.rel (%p530) target = $region24
        $region23: #{lm_logprob_windows.1} parent=11 // pred_region
          _
        $region24: #{lm_logprob_windows.1} parent=11 // pred_fallthru
          _
        // Predicated region
        $region25: #{lm_logprob_windows.1} parent=11 // pred_check
          %p533 = pneg %p147
        $region26: #{lm_logprob_windows.1} parent=11 // pred_check_branch
          %535 = sbr.rel (%p533) target = $region28
        $region27: #{lm_logprob_windows.1} parent=11 // pred_region
          _
        $region28: #{lm_logprob_windows.1} parent=11 // pred_fallthru
          _
        // Predicated region
        $region29: #{lm_logprob_windows.1} parent=11 // pred_check
          %p536 = pneg %p168
        $region30: #{lm_logprob_windows.1} parent=11 // pred_check_branch
          %538 = sbr.rel (%p536) target = $region32
        $region31: #{lm_logprob_windows.1} parent=11 // pred_region
          _
        $region32: #{lm_logprob_windows.1} parent=11 // pred_fallthru
          _
        // Predicated region
        $region33: #{lm_logprob_windows.1} parent=11 // pred_check
          %p539 = pneg %p189
        $region34: #{lm_logprob_windows.1} parent=11 // pred_check_branch
          %541 = sbr.rel (%p539) target = $region36
        $region35: #{lm_logprob_windows.1} parent=11 // pred_region
          _
        $region36: #{lm_logprob_windows.1} parent=11 // pred_fallthru
          _
        // Predicated region
        $region37: #{lm_logprob_windows.1} parent=11 // pred_check
          %p542 = pneg %p210
        $region38: #{lm_logprob_windows.1} parent=11 // pred_check_branch
          %544 = sbr.rel (%p542) target = $region40
        $region39: #{lm_logprob_windows.1} parent=11 // pred_region
          _
        $region40: #{lm_logprob_windows.1} parent=11 // pred_fallthru
          _
        // Predicated region
        $region41: #{lm_logprob_windows.1} parent=11 // pred_check
          %p545 = pneg %p231
        $region42: #{lm_logprob_windows.1} parent=11 // pred_check_branch
          %547 = sbr.rel (%p545) target = $region44
        $region43: #{lm_logprob_windows.1} parent=11 // pred_region
          _
        $region44: #{lm_logprob_windows.1} parent=11 // pred_fallthru
          _
        // Predicated region
        $region45: #{lm_logprob_windows.1} parent=11 // pred_check
          %p548 = pneg %p252
        $region46: #{lm_logprob_windows.1} parent=11 // pred_check_branch
          %550 = sbr.rel (%p548) target = $region48
        $region47: #{lm_logprob_windows.1} parent=11 // pred_region
          _
        $region48: #{lm_logprob_windows.1} parent=11 // pred_fallthru
          _
        // Predicated region
        $region49: #{lm_logprob_windows.1} parent=11 // pred_check
          %p551 = pneg %p273
        $region50: #{lm_logprob_windows.1} parent=11 // pred_check_branch
          %553 = sbr.rel (%p551) target = $region52
        $region51: #{lm_logprob_windows.1} parent=11 // pred_region
          _
        $region52: #{lm_logprob_windows.1} parent=11 // pred_fallthru
          _
        // Predicated region
        $region53: #{lm_logprob_windows.1} parent=11 // pred_check
          %p554 = pneg %p294
        $region54: #{lm_logprob_windows.1} parent=11 // pred_check_branch
          %556 = sbr.rel (%p554) target = $region56
        $region55: #{lm_logprob_windows.1} parent=11 // pred_region
          _
        $region56: #{lm_logprob_windows.1} parent=11 // pred_fallthru
          _
        // Predicated region
        $region57: #{lm_logprob_windows.1} parent=11 // pred_check
          %p557 = pneg %p315
        $region58: #{lm_logprob_windows.1} parent=11 // pred_check_branch
          %559 = sbr.rel (%p557) target = $region60
        $region59: #{lm_logprob_windows.1} parent=11 // pred_region
          _
        $region60: #{lm_logprob_windows.1} parent=11 // pred_fallthru
          _
        // Predicated region
        $region61: #{lm_logprob_windows.1} parent=11 // pred_check
          %p560 = pneg %p336
        $region62: #{lm_logprob_windows.1} parent=11 // pred_check_branch
          %562 = sbr.rel (%p560) target = $region64
        $region63: #{lm_logprob_windows.1} parent=11 // pred_region
          _
        $region64: #{lm_logprob_windows.1} parent=11 // pred_fallthru
          _
        // Predicated region
        $region65: #{lm_logprob_windows.1} parent=11 // pred_check
          %p563 = pneg %p357
        $region66: #{lm_logprob_windows.1} parent=11 // pred_check_branch
          %565 = sbr.rel (%p563) target = $region68
        $region67: #{lm_logprob_windows.1} parent=11 // pred_region
          _
        $region68: #{lm_logprob_windows.1} parent=11 // pred_fallthru
          _
        // Predicated region
        $region69: #{lm_logprob_windows.1} parent=11 // pred_check
          %p566 = pneg %p378
        $region70: #{lm_logprob_windows.1} parent=11 // pred_check_branch
          %568 = sbr.rel (%p566) target = $region72
        $region71: #{lm_logprob_windows.1} parent=11 // pred_region
          _
        $region72: #{lm_logprob_windows.1} parent=11 // pred_fallthru
          _
        // Predicated region
        $region73: #{lm_logprob_windows.1} parent=11 // pred_check
          %p569 = pneg %p399
        $region74: #{lm_logprob_windows.1} parent=11 // pred_check_branch
          %571 = sbr.rel (%p569) target = $region76
        $region75: #{lm_logprob_windows.1} parent=11 // pred_region
          _
        $region76: #{lm_logprob_windows.1} parent=11 // pred_fallthru
          _
        // Predicated region
        $region77: #{lm_logprob_windows.1} parent=11 // pred_check
          %p572 = pneg %p420
        $region78: #{lm_logprob_windows.1} parent=11 // pred_check_branch
          %574 = sbr.rel (%p572) target = $region80
        $region79: #{lm_logprob_windows.1} parent=11 // pred_region
          _
        $region80: #{lm_logprob_windows.1} parent=11 // pred_fallthru
          _
        // Predicated region
        $region81: #{lm_logprob_windows.1} parent=11 // pred_check
          %p575 = pneg %p441
        $region82: #{lm_logprob_windows.1} parent=11 // pred_check_branch
          %577 = sbr.rel (%p575) target = $region84
        $region83: #{lm_logprob_windows.1} parent=11 // pred_region
          _
        $region84: #{lm_logprob_windows.1} parent=11 // pred_fallthru
          _
        // Predicated region
        $region85: #{lm_logprob_windows.1} parent=11 // pred_check
          %p578 = pneg %p462
        $region86: #{lm_logprob_windows.1} parent=11 // pred_check_branch
          %580 = sbr.rel (%p578) target = $region88
        $region87: #{lm_logprob_windows.1} parent=11 // pred_region
          _
        $region88: #{lm_logprob_windows.1} parent=11 // pred_fallthru
          _
        // Predicated region
        $region89: #{lm_logprob_windows.1} parent=11 // pred_check
          %p581 = pneg %p483
        $region90: #{lm_logprob_windows.1} parent=11 // pred_check_branch
          %583 = sbr.rel (%p581) target = $region92
        $region91: #{lm_logprob_windows.1} parent=11 // pred_region
          _
        $region92: #{lm_logprob_windows.1} parent=11 // pred_fallthru
          _
      $region12: #{lm_logprob_windows.1} parent=5 // pred_fallthru
        _
      %p584 = scmp.lt.s32.totalorder %s37, 24
      // Predicated region
      $region93: #{lm_logprob_windows.1} parent=5 // pred_check
        %p585 = pneg %p584
      $region94: #{lm_logprob_windows.1} parent=5 // pred_check_branch
        %587 = sbr.rel (%p585) target = $region96
      $region95: #{lm_logprob_windows.1} parent=5 // pred_region
        // Predicated region
        $region97: #{lm_logprob_windows.1} parent=95 // pred_check
          %p588 = pneg %p57
        $region98: #{lm_logprob_windows.1} parent=95 // pred_check_branch
          %590 = sbr.rel (%p588) target = $region100
        $region99: #{lm_logprob_windows.1} parent=95 // pred_region
          %s591 = smul.u32 8, %s37
          %p592 = scmp.lt.s32.totalorder %s591, 191
          %s593 = scalar_select %p592, %s591, 191
          %s594 = smul.addr %s593, 4
          %s595 = smul.addr %s594, 8
          %s596 = scalar_lea.vmem %s1, %s595
          %s597 = smul.u32 8, %s37
        $region100: #{lm_logprob_windows.1} parent=95 // pred_fallthru
          _
      $region96: #{lm_logprob_windows.1} parent=5 // pred_fallthru
        _
      %p598 = scmp.le.s32.totalorder 1, %s37
      %p599 = scmp.lt.s32.totalorder %s37, 25
      %p600 = pnand %p598, %p599
      %p601 = pneg %p600
      // Predicated region
      $region101: #{lm_logprob_windows.1} parent=5 // pred_check
        _
      $region102: #{lm_logprob_windows.1} parent=5 // pred_check_branch
        %603 = sbr.rel (%p600) target = $region104
      $region103: #{lm_logprob_windows.1} parent=5 // pred_region
        %s604 = ssub.s32 %s37, 1
        %s605 = smul.u32 8, %s42
        %p606 = scmp.lt.s32.totalorder %s605, 191
        %s607 = scalar_select %p606, %s605, 191
        %s608 = smul.addr %s607, 4
        %s609 = smul.addr %s608, 8
        %s610 = scalar_lea.vmem %s1, %s609
        %p611 = pneg %p63
        %p612 = pneg %p60
        %p613 = pneg %p84
        %p614 = pneg %p81
        %p615 = pneg %p105
        %p616 = pneg %p102
        %p617 = pneg %p126
        %p618 = pneg %p123
        %p619 = pneg %p147
        %p620 = pneg %p144
        %p621 = pneg %p168
        %p622 = pneg %p165
        %p623 = pneg %p189
        %p624 = pneg %p186
        %p625 = pneg %p210
        %p626 = pneg %p207
        %p627 = pneg %p231
        %p628 = pneg %p228
        %p629 = pneg %p252
        %p630 = pneg %p249
        %p631 = pneg %p273
        %p632 = pneg %p270
        %p633 = pneg %p294
        %p634 = pneg %p291
        %p635 = pneg %p315
        %p636 = pneg %p312
        %p637 = pneg %p336
        %p638 = pneg %p333
        %p639 = pneg %p357
        %p640 = pneg %p354
        %p641 = pneg %p378
        %p642 = pneg %p375
        %p643 = pneg %p399
        %p644 = pneg %p396
        %p645 = pneg %p420
        %p646 = pneg %p417
        %p647 = pneg %p441
        %p648 = pneg %p438
        %p649 = pneg %p462
        %p650 = pneg %p459
        %p651 = pneg %p483
        %p652 = pneg %p480
        %p653 = pneg %p509
        %p654 = pneg %p506
        %s655 = sand.u32 %s496, 1
        %s656 = scalar_lea.sflag [#allocation5], %s655
        %s657 = sand.u32 %s496, 1
        %s658 = smul.addr %s657, 64
        %s659 = scalar_lea.vmem [#allocation4], %s658
        %s660 = smul.u32 8, %s42
        %p661 = scmp.lt.s32.totalorder %s660, 191
        %s662 = scalar_select %p661, %s660, 191
        %s663 = smul.addr %s662, 4
        %s664 = smul.addr %s663, 8
        %s665 = scalar_lea.vmem %s1, %s664
        %s666 = smul.u32 8, %s42
        %s667 = smul.u32 8, %s42
        %s668 = smul.u32 %s42, 8
        %s669 = sld [smem:[#allocation3 + %s668]]
        %v670 = vld [vmem:[%s665] sm:$0xff]
        %v671 = vld [vmem:[%s665 + $0x8] sm:$0xff]
        %v672 = vld [vmem:[%s665 + $0x10] sm:$0xff]
        %v673 = vld [vmem:[%s665 + $0x18] sm:$0xff]
        %v674 = vld [vmem:[%s2] sm:$0x1]
        %v675 = vld [vmem:[%s3] sm:$0x1]
        %vm676 = vcmask 261120
        %v677 = vsel %vm676, %v670, 0.0
        %678 = vadd.xlane.f32.xlu0 %v677
        %v679 = vpop.xlane.xlu0 %678
        %v680 = vsel %vm676, %v671, 0.0
        %681 = vadd.xlane.f32.xlu0 %v680
        %v682 = vpop.xlane.xlu0 %681
        %v683 = vsel %vm676, %v672, 0.0
        %684 = vadd.xlane.f32.xlu0 %v683
        %v685 = vpop.xlane.xlu0 %684
        %v686 = vsel %vm676, %v673, 0.0
        %687 = vadd.xlane.f32.xlu0 %v686
        %v688 = vpop.xlane.xlu0 %687
        %v689 = vrcp.pop 32.0
        %v690 = vmul.f32 %v679, %v689
        %v691 = vmul.f32 %v682, %v689
        %v692 = vmul.f32 %v685, %v689
        %v693 = vmul.f32 %v688, %v689
        %v694 = vsub.f32 %v670, %v690
        %v695 = vsub.f32 %v671, %v691
        %v696 = vsub.f32 %v672, %v692
        %v697 = vsub.f32 %v673, %v693
        %v698 = vmul.f32 %v694, %v694
        %v699 = vmul.f32 %v695, %v695
        %v700 = vmul.f32 %v696, %v696
        %v701 = vmul.f32 %v697, %v697
        %v702 = vsel %vm676, %v698, 0.0
        %703 = vadd.xlane.f32.xlu0 %v702
        %v704 = vpop.xlane.xlu0 %703
        %v705 = vsel %vm676, %v699, 0.0
        %706 = vadd.xlane.f32.xlu0 %v705
        %v707 = vpop.xlane.xlu0 %706
        %v708 = vsel %vm676, %v700, 0.0
        %709 = vadd.xlane.f32.xlu0 %v708
        %v710 = vpop.xlane.xlu0 %709
        %v711 = vsel %vm676, %v701, 0.0
        %712 = vadd.xlane.f32.xlu0 %v711
        %v713 = vpop.xlane.xlu0 %712
        %v714 = vmul.f32 %v704, %v689
        %v715 = vmul.f32 %v707, %v689
        %v716 = vmul.f32 %v710, %v689
        %v717 = vmul.f32 %v713, %v689
        %v718 = vadd.f32 %v714, 1e-05
        %v719 = vadd.f32 %v715, 1e-05
        %v720 = vadd.f32 %v716, 1e-05
        %v721 = vadd.f32 %v717, 1e-05
        %v722 = vrsqrt.pop %v718
        %v723 = vrsqrt.pop %v719
        %v724 = vrsqrt.pop %v720
        %v725 = vrsqrt.pop %v721
        %v726 = vmul.f32 %v694, %v722
        %v727 = vmul.f32 %v695, %v723
        %v728 = vmul.f32 %v696, %v724
        %v729 = vmul.f32 %v697, %v725
        %v731 = vlaneseq
        %v732 = vshrl.u32 %v731, 7
        %v733 = vsub.s32 0, %v732
        %v734 = vrot.slane %v674, %v733
        %v736 = vmul.f32 %v726, %v734
        %v737 = vmul.f32 %v727, %v734
        %v738 = vmul.f32 %v728, %v734
        %v739 = vmul.f32 %v729, %v734
        %v741 = vlaneseq
        %v742 = vshrl.u32 %v741, 7
        %v743 = vsub.s32 0, %v742
        %v744 = vrot.slane %v675, %v743
        %v746 = vadd.f32 %v736, %v744
        %v747 = vadd.f32 %v737, %v744
        %v748 = vadd.f32 %v738, %v744
        %v749 = vadd.f32 %v739, %v744
        %v750 = vld [vmem:[%s4] sm:$0xff]
        %v751 = vld [vmem:[%s4 + $0x8] sm:$0xff]
        %v752 = vld [vmem:[%s4 + $0x10] sm:$0xff]
        %v753 = vld [vmem:[%s4 + $0x18] sm:$0xff]
        %v754 = vld [vmem:[%s5] sm:$0x1]
        %v756 = vlaneseq
        %v757 = vshrl.u32 %v756, 7
        %v758 = vsub.s32 0, %v757
        %v759 = vrot.slane %v754, %v758
        %v762 = vsel %vm676, %v746, 0
        %v765 = vsel %vm676, %v747, 0
        %v768 = vsel %vm676, %v748, 0
        %v771 = vsel %vm676, %v749, 0
        %773 = vmatprep.subr.mxu0 0.0
        %774 = vmatpush1.msra.mxu0 0.0
        %775 = vmatprep.subr.mxu0 0.0
        %776 = vmatpush1.msra.mxu0 0.0
        %777 = vmatprep.subr.mxu0 0.0
        %778 = vmatpush1.msra.mxu0 0.0
        %779 = vmatprep.subr.mxu0 0.0
        %780 = vmatpush1.msra.mxu0 0.0
        %781 = vmatprep.subr.mxu0 0.0
        %782 = vmatpush1.msra.mxu0 0.0
        %783 = vmatprep.subr.mxu0 0.0
        %784 = vmatpush1.msra.mxu0 0.0
        %785 = vmatprep.subr.mxu0 0.0
        %786 = vmatpush1.msra.mxu0 0.0
        %787 = vmatprep.subr.mxu0 0.0
        %788 = vmatpush1.msra.mxu0 0.0
        %789 = vmatprep.subr.mxu0 0.0
        %790 = vmatpush1.msra.mxu0 0.0
        %791 = vmatprep.subr.mxu0 0.0
        %792 = vmatpush1.msra.mxu0 0.0
        %793 = vmatprep.subr.mxu0 0.0
        %794 = vmatpush1.msra.mxu0 0.0
        %795 = vmatprep.subr.mxu0 0.0
        %796 = vmatpush1.msra.mxu0 0.0
        %797 = vmatprep.subr.mxu0 0.0
        %798 = vmatpush1.msra.mxu0 %v753
        %799 = vmatprep.subr.mxu0 0.0
        %800 = vmatpush1.msra.mxu0 %v752
        %801 = vmatprep.subr.mxu0 0.0
        %802 = vmatpush1.msra.mxu0 %v751
        %803 = vmatprep.subr.mxu0 0.0
        %804 = vmatpush1.msra.mxu0 %v750
        %805 = vmatprep.subr.mxu0 0.0
        %806 = vmatpush2.msra.mxu0 0.0
        %807 = vmatprep.subr.mxu0 0.0
        %808 = vmatpush2.msra.mxu0 0.0
        %809 = vmatprep.subr.mxu0 0.0
        %810 = vmatpush2.msra.mxu0 0.0
        %811 = vmatprep.subr.mxu0 0.0
        %812 = vmatpush2.msra.mxu0 0.0
        %813 = vmatprep.subr.mxu0 0.0
        %814 = vmatpush2.msra.mxu0 0.0
        %815 = vmatprep.subr.mxu0 0.0
        %816 = vmatpush2.msra.mxu0 0.0
        %817 = vmatprep.subr.mxu0 0.0
        %818 = vmatpush2.msra.mxu0 0.0
        %819 = vmatprep.subr.mxu0 0.0
        %820 = vmatpush2.msra.mxu0 0.0
        %821 = vmatprep.subr.mxu0 0.0
        %822 = vmatpush2.msra.mxu0 0.0
        %823 = vmatprep.subr.mxu0 0.0
        %824 = vmatpush2.msra.mxu0 0.0
        %825 = vmatprep.subr.mxu0 0.0
        %826 = vmatpush2.msra.mxu0 0.0
        %827 = vmatprep.subr.mxu0 0.0
        %828 = vmatpush2.msra.mxu0 0.0
        %829 = vmatprep.subr.mxu0 0.0
        %830 = vmatpush2.msra.mxu0 0.0
        %831 = vmatprep.subr.mxu0 0.0
        %832 = vmatpush2.msra.mxu0 0.0
        %833 = vmatprep.subr.mxu0 0.0
        %834 = vmatpush2.msra.mxu0 0.0
        %835 = vmatprep.subr.mxu0 0.0
        %836 = vmatpush2.msra.mxu0 0.0
        %837 = vmatprep.mubr.f32.mxu0 0.0
        %838 = vmatmul.mubr.f32.gmra.mxu0 %v762
        %v839 = vpop.f32.mrf.mxu0
        %v840 = vadd.f32 %v759, %v839
        %v841 = vpop.f32.mrf.mxu0
        %842 = vmatprep.mubr.f32.mxu0 0.0
        %843 = vmatmul.mubr.f32.gmra.mxu0 %v765
        %v844 = vpop.f32.mrf.mxu0
        %v845 = vadd.f32 %v759, %v844
        %v846 = vpop.f32.mrf.mxu0
        %847 = vmatprep.mubr.f32.mxu0 0.0
        %848 = vmatmul.mubr.f32.gmra.mxu0 %v768
        %v849 = vpop.f32.mrf.mxu0
        %v850 = vadd.f32 %v759, %v849
        %v851 = vpop.f32.mrf.mxu0
        %852 = vmatprep.mubr.f32.mxu0 0.0
        %853 = vmatmul.mubr.f32.gmra.mxu0 %v771
        %v854 = vpop.f32.mrf.mxu0
        %v855 = vadd.f32 %v759, %v854
        %v856 = vpop.f32.mrf.mxu0
        %857 = vdwg.mxu0
        %v858 = vld [vmem:[%s17] sm:$0xff]
        %v859 = vld [vmem:[%s17 + $0x8] sm:$0xff]
        %v860 = vld [vmem:[%s17 + $0x10] sm:$0xff]
        %v861 = vld [vmem:[%s17 + $0x18] sm:$0xff]
        %v862 = vld [vmem:[%s17 + $0x20] sm:$0xff]
        %v863 = vld [vmem:[%s17 + $0x28] sm:$0xff]
        %v864 = vld [vmem:[%s17 + $0x30] sm:$0xff]
        %v865 = vld [vmem:[%s17 + $0x38] sm:$0xff]
        %v866 = vld [vmem:[%s17 + $0x40] sm:$0xff]
        %v867 = vld [vmem:[%s17 + $0x48] sm:$0xff]
        %v868 = vld [vmem:[%s17 + $0x50] sm:$0xff]
        %v869 = vld [vmem:[%s17 + $0x58] sm:$0xff]
        %v870 = vld [vmem:[%s17 + $0x60] sm:$0xff]
        %v871 = vld [vmem:[%s17 + $0x68] sm:$0xff]
        %v872 = vld [vmem:[%s17 + $0x70] sm:$0xff]
        %v873 = vld [vmem:[%s17 + $0x78] sm:$0xff]
        %890 = vrot.lane.b32.xlu0 %v858, 32
        %v891 = vpop.permute.xlu0 %890
        %892 = vrot.lane.b32.xlu0 %v859, 32
        %v893 = vpop.permute.xlu0 %892
        %894 = vrot.lane.b32.xlu0 %v860, 32
        %v895 = vpop.permute.xlu0 %894
        %896 = vrot.lane.b32.xlu0 %v861, 32
        %v897 = vpop.permute.xlu0 %896
        %898 = vrot.lane.b32.xlu0 %v862, 32
        %v899 = vpop.permute.xlu0 %898
        %900 = vrot.lane.b32.xlu0 %v863, 32
        %v901 = vpop.permute.xlu0 %900
        %902 = vrot.lane.b32.xlu0 %v864, 32
        %v903 = vpop.permute.xlu0 %902
        %904 = vrot.lane.b32.xlu0 %v865, 32
        %v905 = vpop.permute.xlu0 %904
        %906 = vrot.lane.b32.xlu0 %v866, 32
        %v907 = vpop.permute.xlu0 %906
        %908 = vrot.lane.b32.xlu0 %v867, 32
        %v909 = vpop.permute.xlu0 %908
        %910 = vrot.lane.b32.xlu0 %v868, 32
        %v911 = vpop.permute.xlu0 %910
        %912 = vrot.lane.b32.xlu0 %v869, 32
        %v913 = vpop.permute.xlu0 %912
        %914 = vrot.lane.b32.xlu0 %v870, 32
        %v915 = vpop.permute.xlu0 %914
        %916 = vrot.lane.b32.xlu0 %v871, 32
        %v917 = vpop.permute.xlu0 %916
        %918 = vrot.lane.b32.xlu0 %v872, 32
        %v919 = vpop.permute.xlu0 %918
        %920 = vrot.lane.b32.xlu0 %v873, 32
        %v921 = vpop.permute.xlu0 %920
        %v938 = vmul.f32 %v840, %v891
        %v939 = vmul.f32 %v845, %v893
        %v940 = vmul.f32 %v850, %v895
        %v941 = vmul.f32 %v855, %v897
        %v942 = vmul.f32 %v840, %v899
        %v943 = vmul.f32 %v845, %v901
        %v944 = vmul.f32 %v850, %v903
        %v945 = vmul.f32 %v855, %v905
        %v946 = vmul.f32 %v840, %v907
        %v947 = vmul.f32 %v845, %v909
        %v948 = vmul.f32 %v850, %v911
        %v949 = vmul.f32 %v855, %v913
        %v950 = vmul.f32 %v840, %v915
        %v951 = vmul.f32 %v845, %v917
        %v952 = vmul.f32 %v850, %v919
        %v953 = vmul.f32 %v855, %v921
        %v954 = vld [vmem:[%s18] sm:$0xff]
        %v955 = vld [vmem:[%s18 + $0x8] sm:$0xff]
        %v956 = vld [vmem:[%s18 + $0x10] sm:$0xff]
        %v957 = vld [vmem:[%s18 + $0x18] sm:$0xff]
        %v958 = vld [vmem:[%s18 + $0x20] sm:$0xff]
        %v959 = vld [vmem:[%s18 + $0x28] sm:$0xff]
        %v960 = vld [vmem:[%s18 + $0x30] sm:$0xff]
        %v961 = vld [vmem:[%s18 + $0x38] sm:$0xff]
        %v962 = vld [vmem:[%s18 + $0x40] sm:$0xff]
        %v963 = vld [vmem:[%s18 + $0x48] sm:$0xff]
        %v964 = vld [vmem:[%s18 + $0x50] sm:$0xff]
        %v965 = vld [vmem:[%s18 + $0x58] sm:$0xff]
        %v966 = vld [vmem:[%s18 + $0x60] sm:$0xff]
        %v967 = vld [vmem:[%s18 + $0x68] sm:$0xff]
        %v968 = vld [vmem:[%s18 + $0x70] sm:$0xff]
        %v969 = vld [vmem:[%s18 + $0x78] sm:$0xff]
        %986 = vrot.lane.b32.xlu0 %v954, 64
        %v987 = vpop.permute.xlu0 %986
        %988 = vrot.lane.b32.xlu0 %v955, 64
        %v989 = vpop.permute.xlu0 %988
        %990 = vrot.lane.b32.xlu0 %v956, 64
        %v991 = vpop.permute.xlu0 %990
        %992 = vrot.lane.b32.xlu0 %v957, 64
        %v993 = vpop.permute.xlu0 %992
        %994 = vrot.lane.b32.xlu0 %v958, 64
        %v995 = vpop.permute.xlu0 %994
        %996 = vrot.lane.b32.xlu0 %v959, 64
        %v997 = vpop.permute.xlu0 %996
        %998 = vrot.lane.b32.xlu0 %v960, 64
        %v999 = vpop.permute.xlu0 %998
        %1000 = vrot.lane.b32.xlu0 %v961, 64
        %v1001 = vpop.permute.xlu0 %1000
        %1002 = vrot.lane.b32.xlu0 %v962, 64
        %v1003 = vpop.permute.xlu0 %1002
        %1004 = vrot.lane.b32.xlu0 %v963, 64
        %v1005 = vpop.permute.xlu0 %1004
        %1006 = vrot.lane.b32.xlu0 %v964, 64
        %v1007 = vpop.permute.xlu0 %1006
        %1008 = vrot.lane.b32.xlu0 %v965, 64
        %v1009 = vpop.permute.xlu0 %1008
        %1010 = vrot.lane.b32.xlu0 %v966, 64
        %v1011 = vpop.permute.xlu0 %1010
        %1012 = vrot.lane.b32.xlu0 %v967, 64
        %v1013 = vpop.permute.xlu0 %1012
        %1014 = vrot.lane.b32.xlu0 %v968, 64
        %v1015 = vpop.permute.xlu0 %1014
        %1016 = vrot.lane.b32.xlu0 %v969, 64
        %v1017 = vpop.permute.xlu0 %1016
        %v1034 = vmul.f32 %v840, %v987
        %v1035 = vmul.f32 %v845, %v989
        %v1036 = vmul.f32 %v850, %v991
        %v1037 = vmul.f32 %v855, %v993
        %v1038 = vmul.f32 %v840, %v995
        %v1039 = vmul.f32 %v845, %v997
        %v1040 = vmul.f32 %v850, %v999
        %v1041 = vmul.f32 %v855, %v1001
        %v1042 = vmul.f32 %v840, %v1003
        %v1043 = vmul.f32 %v845, %v1005
        %v1044 = vmul.f32 %v850, %v1007
        %v1045 = vmul.f32 %v855, %v1009
        %v1046 = vmul.f32 %v840, %v1011
        %v1047 = vmul.f32 %v845, %v1013
        %v1048 = vmul.f32 %v850, %v1015
        %v1049 = vmul.f32 %v855, %v1017
        %s1050 = scalar_lea.vmem %s665, %s669
        %v1051 = vld [vmem:[%s1050] sm:$0xff]
        %v1052 = vsel %vm676, %v1051, 0.0
        %1053 = vadd.xlane.f32.xlu0 %v1052
        %v1054 = vpop.xlane.xlu0 %1053
        %v1055 = vmul.f32 %v1054, %v689
        %v1056 = vsub.f32 %v1051, %v1055
        %v1057 = vmul.f32 %v1056, %v1056
        %v1058 = vsel %vm676, %v1057, 0.0
        %1059 = vadd.xlane.f32.xlu0 %v1058
        %v1060 = vpop.xlane.xlu0 %1059
        %v1061 = vmul.f32 %v1060, %v689
        %v1062 = vadd.f32 %v1061, 1e-05
        %v1063 = vrsqrt.pop %v1062
        %v1064 = vmul.f32 %v1056, %v1063
        %v1065 = vmul.f32 %v1064, %v734
        %v1066 = vadd.f32 %v1065, %v744
        %v1068 = vsel %vm676, %v1066, 0
        %1070 = vmatprep.subr.mxu0 0.0
        %1071 = vmatpush1.msra.mxu0 0.0
        %1072 = vmatprep.subr.mxu0 0.0
        %1073 = vmatpush1.msra.mxu0 0.0
        %1074 = vmatprep.subr.mxu0 0.0
        %1075 = vmatpush1.msra.mxu0 0.0
        %1076 = vmatprep.subr.mxu0 0.0
        %1077 = vmatpush1.msra.mxu0 0.0
        %1078 = vmatprep.subr.mxu0 0.0
        %1079 = vmatpush1.msra.mxu0 0.0
        %1080 = vmatprep.subr.mxu0 0.0
        %1081 = vmatpush1.msra.mxu0 0.0
        %1082 = vmatprep.subr.mxu0 0.0
        %1083 = vmatpush1.msra.mxu0 0.0
        %1084 = vmatprep.subr.mxu0 0.0
        %1085 = vmatpush1.msra.mxu0 0.0
        %1086 = vmatprep.subr.mxu0 0.0
        %1087 = vmatpush1.msra.mxu0 0.0
        %1088 = vmatprep.subr.mxu0 0.0
        %1089 = vmatpush1.msra.mxu0 0.0
        %1090 = vmatprep.subr.mxu0 0.0
        %1091 = vmatpush1.msra.mxu0 0.0
        %1092 = vmatprep.subr.mxu0 0.0
        %1093 = vmatpush1.msra.mxu0 0.0
        %1094 = vmatprep.subr.mxu0 0.0
        %1095 = vmatpush1.msra.mxu0 %v753
        %1096 = vmatprep.subr.mxu0 0.0
        %1097 = vmatpush1.msra.mxu0 %v752
        %1098 = vmatprep.subr.mxu0 0.0
        %1099 = vmatpush1.msra.mxu0 %v751
        %1100 = vmatprep.subr.mxu0 0.0
        %1101 = vmatpush1.msra.mxu0 %v750
        %1102 = vmatprep.subr.mxu0 0.0
        %1103 = vmatpush2.msra.mxu0 0.0
        %1104 = vmatprep.subr.mxu0 0.0
        %1105 = vmatpush2.msra.mxu0 0.0
        %1106 = vmatprep.subr.mxu0 0.0
        %1107 = vmatpush2.msra.mxu0 0.0
        %1108 = vmatprep.subr.mxu0 0.0
        %1109 = vmatpush2.msra.mxu0 0.0
        %1110 = vmatprep.subr.mxu0 0.0
        %1111 = vmatpush2.msra.mxu0 0.0
        %1112 = vmatprep.subr.mxu0 0.0
        %1113 = vmatpush2.msra.mxu0 0.0
        %1114 = vmatprep.subr.mxu0 0.0
        %1115 = vmatpush2.msra.mxu0 0.0
        %1116 = vmatprep.subr.mxu0 0.0
        %1117 = vmatpush2.msra.mxu0 0.0
        %1118 = vmatprep.subr.mxu0 0.0
        %1119 = vmatpush2.msra.mxu0 0.0
        %1120 = vmatprep.subr.mxu0 0.0
        %1121 = vmatpush2.msra.mxu0 0.0
        %1122 = vmatprep.subr.mxu0 0.0
        %1123 = vmatpush2.msra.mxu0 0.0
        %1124 = vmatprep.subr.mxu0 0.0
        %1125 = vmatpush2.msra.mxu0 0.0
        %1126 = vmatprep.subr.mxu0 0.0
        %1127 = vmatpush2.msra.mxu0 0.0
        %1128 = vmatprep.subr.mxu0 0.0
        %1129 = vmatpush2.msra.mxu0 0.0
        %1130 = vmatprep.subr.mxu0 0.0
        %1131 = vmatpush2.msra.mxu0 0.0
        %1132 = vmatprep.subr.mxu0 0.0
        %1133 = vmatpush2.msra.mxu0 0.0
        %1134 = vmatprep.mubr.f32.mxu0 0.0
        %1135 = vmatmul.mubr.f32.gmra.mxu0 %v1068
        %v1136 = vpop.f32.mrf.mxu0
        %v1137 = vadd.f32 %v759, %v1136
        %v1138 = vpop.f32.mrf.mxu0
        %1139 = vdwg.mxu0
        %s1140 = scalar_lea.vmem %s19, %s669
        %v1141 = vld [vmem:[%s1140] sm:$0xff]
        %1158 = vrot.lane.b32.xlu0 %v938, 96
        %v1159 = vpop.permute.xlu0 %1158
        %1160 = vrot.lane.b32.xlu0 %v939, 96
        %v1161 = vpop.permute.xlu0 %1160
        %1162 = vrot.lane.b32.xlu0 %v940, 96
        %v1163 = vpop.permute.xlu0 %1162
        %1164 = vrot.lane.b32.xlu0 %v941, 96
        %v1165 = vpop.permute.xlu0 %1164
        %1166 = vrot.lane.b32.xlu0 %v942, 96
        %v1167 = vpop.permute.xlu0 %1166
        %1168 = vrot.lane.b32.xlu0 %v943, 96
        %v1169 = vpop.permute.xlu0 %1168
        %1170 = vrot.lane.b32.xlu0 %v944, 96
        %v1171 = vpop.permute.xlu0 %1170
        %1172 = vrot.lane.b32.xlu0 %v945, 96
        %v1173 = vpop.permute.xlu0 %1172
        %1174 = vrot.lane.b32.xlu0 %v946, 96
        %v1175 = vpop.permute.xlu0 %1174
        %1176 = vrot.lane.b32.xlu0 %v947, 96
        %v1177 = vpop.permute.xlu0 %1176
        %1178 = vrot.lane.b32.xlu0 %v948, 96
        %v1179 = vpop.permute.xlu0 %1178
        %1180 = vrot.lane.b32.xlu0 %v949, 96
        %v1181 = vpop.permute.xlu0 %1180
        %1182 = vrot.lane.b32.xlu0 %v950, 96
        %v1183 = vpop.permute.xlu0 %1182
        %1184 = vrot.lane.b32.xlu0 %v951, 96
        %v1185 = vpop.permute.xlu0 %1184
        %1186 = vrot.lane.b32.xlu0 %v952, 96
        %v1187 = vpop.permute.xlu0 %1186
        %1188 = vrot.lane.b32.xlu0 %v953, 96
        %v1189 = vpop.permute.xlu0 %1188
        %v1191 = vsel %vm676, %v1137, 0
        %v1193 = vsel %vm676, %v1159, 0
        %v1195 = vsel %vm676, %v1161, 0
        %v1197 = vsel %vm676, %v1163, 0
        %v1199 = vsel %vm676, %v1165, 0
        %v1201 = vsel %vm676, %v1167, 0
        %v1203 = vsel %vm676, %v1169, 0
        %v1205 = vsel %vm676, %v1171, 0
        %v1207 = vsel %vm676, %v1173, 0
        %v1209 = vsel %vm676, %v1175, 0
        %v1211 = vsel %vm676, %v1177, 0
        %v1213 = vsel %vm676, %v1179, 0
        %v1215 = vsel %vm676, %v1181, 0
        %v1217 = vsel %vm676, %v1183, 0
        %v1219 = vsel %vm676, %v1185, 0
        %v1221 = vsel %vm676, %v1187, 0
        %v1223 = vsel %vm676, %v1189, 0
        %1225 = vmatprep.subr.mxu0 0.0
        %1226 = vmatpush1.xpose.msra.mxu0 %v1223
        %1227 = vmatprep.subr.mxu0 0.0
        %1228 = vmatpush1.xpose.msra.mxu0 %v1221
        %1229 = vmatprep.subr.mxu0 0.0
        %1230 = vmatpush1.xpose.msra.mxu0 %v1219
        %1231 = vmatprep.subr.mxu0 0.0
        %1232 = vmatpush1.xpose.msra.mxu0 %v1217
        %1233 = vmatprep.subr.mxu0 0.0
        %1234 = vmatpush1.xpose.msra.mxu0 %v1215
        %1235 = vmatprep.subr.mxu0 0.0
        %1236 = vmatpush1.xpose.msra.mxu0 %v1213
        %1237 = vmatprep.subr.mxu0 0.0
        %1238 = vmatpush1.xpose.msra.mxu0 %v1211
        %1239 = vmatprep.subr.mxu0 0.0
        %1240 = vmatpush1.xpose.msra.mxu0 %v1209
        %1241 = vmatprep.subr.mxu0 0.0
        %1242 = vmatpush1.xpose.msra.mxu0 %v1207
        %1243 = vmatprep.subr.mxu0 0.0
        %1244 = vmatpush1.xpose.msra.mxu0 %v1205
        %1245 = vmatprep.subr.mxu0 0.0
        %1246 = vmatpush1.xpose.msra.mxu0 %v1203
        %1247 = vmatprep.subr.mxu0 0.0
        %1248 = vmatpush1.xpose.msra.mxu0 %v1201
        %1249 = vmatprep.subr.mxu0 0.0
        %1250 = vmatpush1.xpose.msra.mxu0 %v1199
        %1251 = vmatprep.subr.mxu0 0.0
        %1252 = vmatpush1.xpose.msra.mxu0 %v1197
        %1253 = vmatprep.subr.mxu0 0.0
        %1254 = vmatpush1.xpose.msra.mxu0 %v1195
        %1255 = vmatprep.subr.mxu0 0.0
        %1256 = vmatpush1.xpose.msra.mxu0 %v1193
        %1257 = vmatprep.subr.mxu0 0.0
        %1258 = vmatpush2.xpose.msra.mxu0 0.0
        %1259 = vmatprep.subr.mxu0 0.0
        %1260 = vmatpush2.xpose.msra.mxu0 0.0
        %1261 = vmatprep.subr.mxu0 0.0
        %1262 = vmatpush2.xpose.msra.mxu0 0.0
        %1263 = vmatprep.subr.mxu0 0.0
        %1264 = vmatpush2.xpose.msra.mxu0 0.0
        %1265 = vmatprep.subr.mxu0 0.0
        %1266 = vmatpush2.xpose.msra.mxu0 0.0
        %1267 = vmatprep.subr.mxu0 0.0
        %1268 = vmatpush2.xpose.msra.mxu0 0.0
        %1269 = vmatprep.subr.mxu0 0.0
        %1270 = vmatpush2.xpose.msra.mxu0 0.0
        %1271 = vmatprep.subr.mxu0 0.0
        %1272 = vmatpush2.xpose.msra.mxu0 0.0
        %1273 = vmatprep.subr.mxu0 0.0
        %1274 = vmatpush2.xpose.msra.mxu0 0.0
        %1275 = vmatprep.subr.mxu0 0.0
        %1276 = vmatpush2.xpose.msra.mxu0 0.0
        %1277 = vmatprep.subr.mxu0 0.0
        %1278 = vmatpush2.xpose.msra.mxu0 0.0
        %1279 = vmatprep.subr.mxu0 0.0
        %1280 = vmatpush2.xpose.msra.mxu0 0.0
        %1281 = vmatprep.subr.mxu0 0.0
        %1282 = vmatpush2.xpose.msra.mxu0 0.0
        %1283 = vmatprep.subr.mxu0 0.0
        %1284 = vmatpush2.xpose.msra.mxu0 0.0
        %1285 = vmatprep.subr.mxu0 0.0
        %1286 = vmatpush2.xpose.msra.mxu0 0.0
        %1287 = vmatprep.subr.mxu0 0.0
        %1288 = vmatpush2.xpose.msra.mxu0 0.0
        %1289 = vmatprep.mubr.f32.mxu0 0.0
        %1290 = vmatmul.mubr.f32.gmra.mxu0 %v1191
        %v1291 = vpop.f32.mrf.mxu0
        %v1292 = vadd.f32 %v1141, %v1291
        %v1293 = vpop.f32.mrf.mxu0
        %1294 = vdwg.mxu0
        %1295 = vmax.xlane.f32.xlu0 %v1292
        %v1296 = vpop.xlane.xlu0 %1295
        %v1297 = vsub.f32 %v1292, %v1296
        %v1298 = vmul.f32 %v1297, 1.442695
        %v1299 = vpow.pop %v1298
        %v1300 = vld [vmem:[%s20] sm:$0xff]
        %v1301 = vld [vmem:[%s20 + $0x8] sm:$0xff]
        %v1302 = vld [vmem:[%s20 + $0x10] sm:$0xff]
        %v1303 = vld [vmem:[%s20 + $0x18] sm:$0xff]
        %v1304 = vld [vmem:[%s20 + $0x20] sm:$0xff]
        %v1305 = vld [vmem:[%s20 + $0x28] sm:$0xff]
        %v1306 = vld [vmem:[%s20 + $0x30] sm:$0xff]
        %v1307 = vld [vmem:[%s20 + $0x38] sm:$0xff]
        %v1308 = vld [vmem:[%s20 + $0x40] sm:$0xff]
        %v1309 = vld [vmem:[%s20 + $0x48] sm:$0xff]
        %v1310 = vld [vmem:[%s20 + $0x50] sm:$0xff]
        %v1311 = vld [vmem:[%s20 + $0x58] sm:$0xff]
        %v1312 = vld [vmem:[%s20 + $0x60] sm:$0xff]
        %v1313 = vld [vmem:[%s20 + $0x68] sm:$0xff]
        %v1314 = vld [vmem:[%s20 + $0x70] sm:$0xff]
        %v1315 = vld [vmem:[%s20 + $0x78] sm:$0xff]
        %1316 = vmatprep.subr.mxu0 0.0
        %1317 = vmatpush1.msra.mxu0 %v1315
        %1318 = vmatprep.subr.mxu0 0.0
        %1319 = vmatpush1.msra.mxu0 %v1314
        %1320 = vmatprep.subr.mxu0 0.0
        %1321 = vmatpush1.msra.mxu0 %v1313
        %1322 = vmatprep.subr.mxu0 0.0
        %1323 = vmatpush1.msra.mxu0 %v1312
        %1324 = vmatprep.subr.mxu0 0.0
        %1325 = vmatpush1.msra.mxu0 %v1311
        %1326 = vmatprep.subr.mxu0 0.0
        %1327 = vmatpush1.msra.mxu0 %v1310
        %1328 = vmatprep.subr.mxu0 0.0
        %1329 = vmatpush1.msra.mxu0 %v1309
        %1330 = vmatprep.subr.mxu0 0.0
        %1331 = vmatpush1.msra.mxu0 %v1308
        %1332 = vmatprep.subr.mxu0 0.0
        %1333 = vmatpush1.msra.mxu0 %v1307
        %1334 = vmatprep.subr.mxu0 0.0
        %1335 = vmatpush1.msra.mxu0 %v1306
        %1336 = vmatprep.subr.mxu0 0.0
        %1337 = vmatpush1.msra.mxu0 %v1305
        %1338 = vmatprep.subr.mxu0 0.0
        %1339 = vmatpush1.msra.mxu0 %v1304
        %1340 = vmatprep.subr.mxu0 0.0
        %1341 = vmatpush1.msra.mxu0 %v1303
        %1342 = vmatprep.subr.mxu0 0.0
        %1343 = vmatpush1.msra.mxu0 %v1302
        %1344 = vmatprep.subr.mxu0 0.0
        %1345 = vmatpush1.msra.mxu0 %v1301
        %1346 = vmatprep.subr.mxu0 0.0
        %1347 = vmatpush1.msra.mxu0 %v1300
        %1348 = vmatprep.subr.mxu0 0.0
        %1349 = vmatpush2.msra.mxu0 0.0
        %1350 = vmatprep.subr.mxu0 0.0
        %1351 = vmatpush2.msra.mxu0 0.0
        %1352 = vmatprep.subr.mxu0 0.0
        %1353 = vmatpush2.msra.mxu0 0.0
        %1354 = vmatprep.subr.mxu0 0.0
        %1355 = vmatpush2.msra.mxu0 0.0
        %1356 = vmatprep.subr.mxu0 0.0
        %1357 = vmatpush2.msra.mxu0 0.0
        %1358 = vmatprep.subr.mxu0 0.0
        %1359 = vmatpush2.msra.mxu0 0.0
        %1360 = vmatprep.subr.mxu0 0.0
        %1361 = vmatpush2.msra.mxu0 0.0
        %1362 = vmatprep.subr.mxu0 0.0
        %1363 = vmatpush2.msra.mxu0 0.0
        %1364 = vmatprep.subr.mxu0 0.0
        %1365 = vmatpush2.msra.mxu0 0.0
        %1366 = vmatprep.subr.mxu0 0.0
        %1367 = vmatpush2.msra.mxu0 0.0
        %1368 = vmatprep.subr.mxu0 0.0
        %1369 = vmatpush2.msra.mxu0 0.0
        %1370 = vmatprep.subr.mxu0 0.0
        %1371 = vmatpush2.msra.mxu0 0.0
        %1372 = vmatprep.subr.mxu0 0.0
        %1373 = vmatpush2.msra.mxu0 0.0
        %1374 = vmatprep.subr.mxu0 0.0
        %1375 = vmatpush2.msra.mxu0 0.0
        %1376 = vmatprep.subr.mxu0 0.0
        %1377 = vmatpush2.msra.mxu0 0.0
        %1378 = vmatprep.subr.mxu0 0.0
        %1379 = vmatpush2.msra.mxu0 0.0
        %1380 = vmatprep.mubr.f32.mxu0 0.0
        %1381 = vmatmul.mubr.f32.gmra.mxu0 %v1299
        %v1382 = vpop.f32.mrf.mxu0
        %v1383 = vadd.f32 0.0, %v1382
        %v1384 = vpop.f32.mrf.mxu0
        %1385 = vdwg.mxu0
        %v1386 = vrcp.pop %v1383
        %v1387 = vmul.f32 %v1299, %v1386
        %1404 = vrot.lane.b32.xlu0 %v1034, 64
        %v1405 = vpop.permute.xlu0 %1404
        %1406 = vrot.lane.b32.xlu0 %v1035, 64
        %v1407 = vpop.permute.xlu0 %1406
        %1408 = vrot.lane.b32.xlu0 %v1036, 64
        %v1409 = vpop.permute.xlu0 %1408
        %1410 = vrot.lane.b32.xlu0 %v1037, 64
        %v1411 = vpop.permute.xlu0 %1410
        %1412 = vrot.lane.b32.xlu0 %v1038, 64
        %v1413 = vpop.permute.xlu0 %1412
        %1414 = vrot.lane.b32.xlu0 %v1039, 64
        %v1415 = vpop.permute.xlu0 %1414
        %1416 = vrot.lane.b32.xlu0 %v1040, 64
        %v1417 = vpop.permute.xlu0 %1416
        %1418 = vrot.lane.b32.xlu0 %v1041, 64
        %v1419 = vpop.permute.xlu0 %1418
        %1420 = vrot.lane.b32.xlu0 %v1042, 64
        %v1421 = vpop.permute.xlu0 %1420
        %1422 = vrot.lane.b32.xlu0 %v1043, 64
        %v1423 = vpop.permute.xlu0 %1422
        %1424 = vrot.lane.b32.xlu0 %v1044, 64
        %v1425 = vpop.permute.xlu0 %1424
        %1426 = vrot.lane.b32.xlu0 %v1045, 64
        %v1427 = vpop.permute.xlu0 %1426
        %1428 = vrot.lane.b32.xlu0 %v1046, 64
        %v1429 = vpop.permute.xlu0 %1428
        %1430 = vrot.lane.b32.xlu0 %v1047, 64
        %v1431 = vpop.permute.xlu0 %1430
        %1432 = vrot.lane.b32.xlu0 %v1048, 64
        %v1433 = vpop.permute.xlu0 %1432
        %1434 = vrot.lane.b32.xlu0 %v1049, 64
        %v1435 = vpop.permute.xlu0 %1434
        %1452 = vmatprep.subr.mxu0 0.0
        %1453 = vmatpush1.msra.mxu0 %v1435
        %1454 = vmatprep.subr.mxu0 0.0
        %1455 = vmatpush1.msra.mxu0 %v1433
        %1456 = vmatprep.subr.mxu0 0.0
        %1457 = vmatpush1.msra.mxu0 %v1431
        %1458 = vmatprep.subr.mxu0 0.0
        %1459 = vmatpush1.msra.mxu0 %v1429
        %1460 = vmatprep.subr.mxu0 0.0
        %1461 = vmatpush1.msra.mxu0 %v1427
        %1462 = vmatprep.subr.mxu0 0.0
        %1463 = vmatpush1.msra.mxu0 %v1425
        %1464 = vmatprep.subr.mxu0 0.0
        %1465 = vmatpush1.msra.mxu0 %v1423
        %1466 = vmatprep.subr.mxu0 0.0
        %1467 = vmatpush1.msra.mxu0 %v1421
        %1468 = vmatprep.subr.mxu0 0.0
        %1469 = vmatpush1.msra.mxu0 %v1419
        %1470 = vmatprep.subr.mxu0 0.0
        %1471 = vmatpush1.msra.mxu0 %v1417
        %1472 = vmatprep.subr.mxu0 0.0
        %1473 = vmatpush1.msra.mxu0 %v1415
        %1474 = vmatprep.subr.mxu0 0.0
        %1475 = vmatpush1.msra.mxu0 %v1413
        %1476 = vmatprep.subr.mxu0 0.0
        %1477 = vmatpush1.msra.mxu0 %v1411
        %1478 = vmatprep.subr.mxu0 0.0
        %1479 = vmatpush1.msra.mxu0 %v1409
        %1480 = vmatprep.subr.mxu0 0.0
        %1481 = vmatpush1.msra.mxu0 %v1407
        %1482 = vmatprep.subr.mxu0 0.0
        %1483 = vmatpush1.msra.mxu0 %v1405
        %1484 = vmatprep.subr.mxu0 0.0
        %1485 = vmatpush2.msra.mxu0 0.0
        %1486 = vmatprep.subr.mxu0 0.0
        %1487 = vmatpush2.msra.mxu0 0.0
        %1488 = vmatprep.subr.mxu0 0.0
        %1489 = vmatpush2.msra.mxu0 0.0
        %1490 = vmatprep.subr.mxu0 0.0
        %1491 = vmatpush2.msra.mxu0 0.0
        %1492 = vmatprep.subr.mxu0 0.0
        %1493 = vmatpush2.msra.mxu0 0.0
        %1494 = vmatprep.subr.mxu0 0.0
        %1495 = vmatpush2.msra.mxu0 0.0
        %1496 = vmatprep.subr.mxu0 0.0
        %1497 = vmatpush2.msra.mxu0 0.0
        %1498 = vmatprep.subr.mxu0 0.0
        %1499 = vmatpush2.msra.mxu0 0.0
        %1500 = vmatprep.subr.mxu0 0.0
        %1501 = vmatpush2.msra.mxu0 0.0
        %1502 = vmatprep.subr.mxu0 0.0
        %1503 = vmatpush2.msra.mxu0 0.0
        %1504 = vmatprep.subr.mxu0 0.0
        %1505 = vmatpush2.msra.mxu0 0.0
        %1506 = vmatprep.subr.mxu0 0.0
        %1507 = vmatpush2.msra.mxu0 0.0
        %1508 = vmatprep.subr.mxu0 0.0
        %1509 = vmatpush2.msra.mxu0 0.0
        %1510 = vmatprep.subr.mxu0 0.0
        %1511 = vmatpush2.msra.mxu0 0.0
        %1512 = vmatprep.subr.mxu0 0.0
        %1513 = vmatpush2.msra.mxu0 0.0
        %1514 = vmatprep.subr.mxu0 0.0
        %1515 = vmatpush2.msra.mxu0 0.0
        %1516 = vmatprep.mubr.f32.mxu0 0.0
        %1517 = vmatmul.mubr.f32.gmra.mxu0 %v1387
        %v1518 = vpop.f32.mrf.mxu0
        %v1519 = vadd.f32 0.0, %v1518
        %v1520 = vpop.f32.mrf.mxu0
        %1521 = vdwg.mxu0
        %v1522 = vld [vmem:[%s6] sm:$0xff]
        %v1523 = vld [vmem:[%s6 + $0x8] sm:$0xff]
        %v1524 = vld [vmem:[%s6 + $0x10] sm:$0xff]
        %v1525 = vld [vmem:[%s6 + $0x18] sm:$0xff]
        %v1527 = vsel %vm676, %v1519, 0
        %1529 = vmatprep.subr.mxu0 0.0
        %1530 = vmatpush1.msra.mxu0 0.0
        %1531 = vmatprep.subr.mxu0 0.0
        %1532 = vmatpush1.msra.mxu0 0.0
        %1533 = vmatprep.subr.mxu0 0.0
        %1534 = vmatpush1.msra.mxu0 0.0
        %1535 = vmatprep.subr.mxu0 0.0
        %1536 = vmatpush1.msra.mxu0 0.0
        %1537 = vmatprep.subr.mxu0 0.0
        %1538 = vmatpush1.msra.mxu0 0.0
        %1539 = vmatprep.subr.mxu0 0.0
        %1540 = vmatpush1.msra.mxu0 0.0
        %1541 = vmatprep.subr.mxu0 0.0
        %1542 = vmatpush1.msra.mxu0 0.0
        %1543 = vmatprep.subr.mxu0 0.0
        %1544 = vmatpush1.msra.mxu0 0.0
        %1545 = vmatprep.subr.mxu0 0.0
        %1546 = vmatpush1.msra.mxu0 0.0
        %1547 = vmatprep.subr.mxu0 0.0
        %1548 = vmatpush1.msra.mxu0 0.0
        %1549 = vmatprep.subr.mxu0 0.0
        %1550 = vmatpush1.msra.mxu0 0.0
        %1551 = vmatprep.subr.mxu0 0.0
        %1552 = vmatpush1.msra.mxu0 0.0
        %1553 = vmatprep.subr.mxu0 0.0
        %1554 = vmatpush1.msra.mxu0 %v1525
        %1555 = vmatprep.subr.mxu0 0.0
        %1556 = vmatpush1.msra.mxu0 %v1524
        %1557 = vmatprep.subr.mxu0 0.0
        %1558 = vmatpush1.msra.mxu0 %v1523
        %1559 = vmatprep.subr.mxu0 0.0
        %1560 = vmatpush1.msra.mxu0 %v1522
        %1561 = vmatprep.subr.mxu0 0.0
        %1562 = vmatpush2.msra.mxu0 0.0
        %1563 = vmatprep.subr.mxu0 0.0
        %1564 = vmatpush2.msra.mxu0 0.0
        %1565 = vmatprep.subr.mxu0 0.0
        %1566 = vmatpush2.msra.mxu0 0.0
        %1567 = vmatprep.subr.mxu0 0.0
        %1568 = vmatpush2.msra.mxu0 0.0
        %1569 = vmatprep.subr.mxu0 0.0
        %1570 = vmatpush2.msra.mxu0 0.0
        %1571 = vmatprep.subr.mxu0 0.0
        %1572 = vmatpush2.msra.mxu0 0.0
        %1573 = vmatprep.subr.mxu0 0.0
        %1574 = vmatpush2.msra.mxu0 0.0
        %1575 = vmatprep.subr.mxu0 0.0
        %1576 = vmatpush2.msra.mxu0 0.0
        %1577 = vmatprep.subr.mxu0 0.0
        %1578 = vmatpush2.msra.mxu0 0.0
        %1579 = vmatprep.subr.mxu0 0.0
        %1580 = vmatpush2.msra.mxu0 0.0
        %1581 = vmatprep.subr.mxu0 0.0
        %1582 = vmatpush2.msra.mxu0 0.0
        %1583 = vmatprep.subr.mxu0 0.0
        %1584 = vmatpush2.msra.mxu0 0.0
        %1585 = vmatprep.subr.mxu0 0.0
        %1586 = vmatpush2.msra.mxu0 0.0
        %1587 = vmatprep.subr.mxu0 0.0
        %1588 = vmatpush2.msra.mxu0 0.0
        %1589 = vmatprep.subr.mxu0 0.0
        %1590 = vmatpush2.msra.mxu0 0.0
        %1591 = vmatprep.subr.mxu0 0.0
        %1592 = vmatpush2.msra.mxu0 0.0
        %1593 = vmatprep.mubr.f32.mxu0 0.0
        %1594 = vmatmul.mubr.f32.gmra.mxu0 %v1527
        %v1595 = vpop.f32.mrf.mxu0
        %v1596 = vadd.f32 0.0, %v1595
        %v1597 = vpop.f32.mrf.mxu0
        %1598 = vdwg.mxu0
        %v1599 = vadd.f32 %v1051, %v1596
        %v1600 = vld [vmem:[%s7] sm:$0x1]
        %v1602 = vlaneseq
        %v1603 = vshrl.u32 %v1602, 7
        %v1604 = vsub.s32 0, %v1603
        %v1605 = vrot.slane %v1600, %v1604
        %v1607 = vadd.f32 %v1599, %v1605
        %s1608 = sadd.s32 %s668, 1
        %s1609 = sld [smem:[#allocation3 + %s1608]]
        %s1610 = scalar_lea.vmem %s665, 32
        %v1611 = vld [vmem:[%s1610] sm:$0xff]
        %v1612 = vld [vmem:[%s1610 + $0x8] sm:$0xff]
        %v1613 = vld [vmem:[%s1610 + $0x10] sm:$0xff]
        %v1614 = vld [vmem:[%s1610 + $0x18] sm:$0xff]
        %v1615 = vsel %vm676, %v1611, 0.0
        %1616 = vadd.xlane.f32.xlu0 %v1615
        %v1617 = vpop.xlane.xlu0 %1616
        %v1618 = vsel %vm676, %v1612, 0.0
        %1619 = vadd.xlane.f32.xlu0 %v1618
        %v1620 = vpop.xlane.xlu0 %1619
        %v1621 = vsel %vm676, %v1613, 0.0
        %1622 = vadd.xlane.f32.xlu0 %v1621
        %v1623 = vpop.xlane.xlu0 %1622
        %v1624 = vsel %vm676, %v1614, 0.0
        %1625 = vadd.xlane.f32.xlu0 %v1624
        %v1626 = vpop.xlane.xlu0 %1625
        %v1627 = vmul.f32 %v1617, %v689
        %v1628 = vmul.f32 %v1620, %v689
        %v1629 = vmul.f32 %v1623, %v689
        %v1630 = vmul.f32 %v1626, %v689
        %v1631 = vsub.f32 %v1611, %v1627
        %v1632 = vsub.f32 %v1612, %v1628
        %v1633 = vsub.f32 %v1613, %v1629
        %v1634 = vsub.f32 %v1614, %v1630
        %v1635 = vmul.f32 %v1631, %v1631
        %v1636 = vmul.f32 %v1632, %v1632
        %v1637 = vmul.f32 %v1633, %v1633
        %v1638 = vmul.f32 %v1634, %v1634
        %v1639 = vsel %vm676, %v1635, 0.0
        %1640 = vadd.xlane.f32.xlu0 %v1639
        %v1641 = vpop.xlane.xlu0 %1640
        %v1642 = vsel %vm676, %v1636, 0.0
        %1643 = vadd.xlane.f32.xlu0 %v1642
        %v1644 = vpop.xlane.xlu0 %1643
        %v1645 = vsel %vm676, %v1637, 0.0
        %1646 = vadd.xlane.f32.xlu0 %v1645
        %v1647 = vpop.xlane.xlu0 %1646
        %v1648 = vsel %vm676, %v1638, 0.0
        %1649 = vadd.xlane.f32.xlu0 %v1648
        %v1650 = vpop.xlane.xlu0 %1649
        %v1651 = vmul.f32 %v1641, %v689
        %v1652 = vmul.f32 %v1644, %v689
        %v1653 = vmul.f32 %v1647, %v689
        %v1654 = vmul.f32 %v1650, %v689
        %v1655 = vadd.f32 %v1651, 1e-05
        %v1656 = vadd.f32 %v1652, 1e-05
        %v1657 = vadd.f32 %v1653, 1e-05
        %v1658 = vadd.f32 %v1654, 1e-05
        %v1659 = vrsqrt.pop %v1655
        %v1660 = vrsqrt.pop %v1656
        %v1661 = vrsqrt.pop %v1657
        %v1662 = vrsqrt.pop %v1658
        %v1663 = vmul.f32 %v1631, %v1659
        %v1664 = vmul.f32 %v1632, %v1660
        %v1665 = vmul.f32 %v1633, %v1661
        %v1666 = vmul.f32 %v1634, %v1662
        %v1667 = vmul.f32 %v1663, %v734
        %v1668 = vmul.f32 %v1664, %v734
        %v1669 = vmul.f32 %v1665, %v734
        %v1670 = vmul.f32 %v1666, %v734
        %v1671 = vadd.f32 %v1667, %v744
        %v1672 = vadd.f32 %v1668, %v744
        %v1673 = vadd.f32 %v1669, %v744
        %v1674 = vadd.f32 %v1670, %v744
        %v1676 = vsel %vm676, %v1671, 0
        %v1679 = vsel %vm676, %v1672, 0
        %v1682 = vsel %vm676, %v1673, 0
        %v1685 = vsel %vm676, %v1674, 0
        %1687 = vmatprep.subr.mxu0 0.0
        %1688 = vmatpush1.msra.mxu0 0.0
        %1689 = vmatprep.subr.mxu0 0.0
        %1690 = vmatpush1.msra.mxu0 0.0
        %1691 = vmatprep.subr.mxu0 0.0
        %1692 = vmatpush1.msra.mxu0 0.0
        %1693 = vmatprep.subr.mxu0 0.0
        %1694 = vmatpush1.msra.mxu0 0.0
        %1695 = vmatprep.subr.mxu0 0.0
        %1696 = vmatpush1.msra.mxu0 0.0
        %1697 = vmatprep.subr.mxu0 0.0
        %1698 = vmatpush1.msra.mxu0 0.0
        %1699 = vmatprep.subr.mxu0 0.0
        %1700 = vmatpush1.msra.mxu0 0.0
        %1701 = vmatprep.subr.mxu0 0.0
        %1702 = vmatpush1.msra.mxu0 0.0
        %1703 = vmatprep.subr.mxu0 0.0
        %1704 = vmatpush1.msra.mxu0 0.0
        %1705 = vmatprep.subr.mxu0 0.0
        %1706 = vmatpush1.msra.mxu0 0.0
        %1707 = vmatprep.subr.mxu0 0.0
        %1708 = vmatpush1.msra.mxu0 0.0
        %1709 = vmatprep.subr.mxu0 0.0
        %1710 = vmatpush1.msra.mxu0 0.0
        %1711 = vmatprep.subr.mxu0 0.0
        %1712 = vmatpush1.msra.mxu0 %v753
        %1713 = vmatprep.subr.mxu0 0.0
        %1714 = vmatpush1.msra.mxu0 %v752
        %1715 = vmatprep.subr.mxu0 0.0
        %1716 = vmatpush1.msra.mxu0 %v751
        %1717 = vmatprep.subr.mxu0 0.0
        %1718 = vmatpush1.msra.mxu0 %v750
        %1719 = vmatprep.subr.mxu0 0.0
        %1720 = vmatpush2.msra.mxu0 0.0
        %1721 = vmatprep.subr.mxu0 0.0
        %1722 = vmatpush2.msra.mxu0 0.0
        %1723 = vmatprep.subr.mxu0 0.0
        %1724 = vmatpush2.msra.mxu0 0.0
        %1725 = vmatprep.subr.mxu0 0.0
        %1726 = vmatpush2.msra.mxu0 0.0
        %1727 = vmatprep.subr.mxu0 0.0
        %1728 = vmatpush2.msra.mxu0 0.0
        %1729 = vmatprep.subr.mxu0 0.0
        %1730 = vmatpush2.msra.mxu0 0.0
        %1731 = vmatprep.subr.mxu0 0.0
        %1732 = vmatpush2.msra.mxu0 0.0
        %1733 = vmatprep.subr.mxu0 0.0
        %1734 = vmatpush2.msra.mxu0 0.0
        %1735 = vmatprep.subr.mxu0 0.0
        %1736 = vmatpush2.msra.mxu0 0.0
        %1737 = vmatprep.subr.mxu0 0.0
        %1738 = vmatpush2.msra.mxu0 0.0
        %1739 = vmatprep.subr.mxu0 0.0
        %1740 = vmatpush2.msra.mxu0 0.0
        %1741 = vmatprep.subr.mxu0 0.0
        %1742 = vmatpush2.msra.mxu0 0.0
        %1743 = vmatprep.subr.mxu0 0.0
        %1744 = vmatpush2.msra.mxu0 0.0
        %1745 = vmatprep.subr.mxu0 0.0
        %1746 = vmatpush2.msra.mxu0 0.0
        %1747 = vmatprep.subr.mxu0 0.0
        %1748 = vmatpush2.msra.mxu0 0.0
        %1749 = vmatprep.subr.mxu0 0.0
        %1750 = vmatpush2.msra.mxu0 0.0
        %1751 = vmatprep.mubr.f32.mxu0 0.0
        %1752 = vmatmul.mubr.f32.gmra.mxu0 %v1676
        %v1753 = vpop.f32.mrf.mxu0
        %v1754 = vadd.f32 %v759, %v1753
        %v1755 = vpop.f32.mrf.mxu0
        %1756 = vmatprep.mubr.f32.mxu0 0.0
        %1757 = vmatmul.mubr.f32.gmra.mxu0 %v1679
        %v1758 = vpop.f32.mrf.mxu0
        %v1759 = vadd.f32 %v759, %v1758
        %v1760 = vpop.f32.mrf.mxu0
        %1761 = vmatprep.mubr.f32.mxu0 0.0
        %1762 = vmatmul.mubr.f32.gmra.mxu0 %v1682
        %v1763 = vpop.f32.mrf.mxu0
        %v1764 = vadd.f32 %v759, %v1763
        %v1765 = vpop.f32.mrf.mxu0
        %1766 = vmatprep.mubr.f32.mxu0 0.0
        %1767 = vmatmul.mubr.f32.gmra.mxu0 %v1685
        %v1768 = vpop.f32.mrf.mxu0
        %v1769 = vadd.f32 %v759, %v1768
        %v1770 = vpop.f32.mrf.mxu0
        %1771 = vdwg.mxu0
        %v1772 = vmul.f32 %v1754, %v891
        %v1773 = vmul.f32 %v1759, %v893
        %v1774 = vmul.f32 %v1764, %v895
        %v1775 = vmul.f32 %v1769, %v897
        %v1776 = vmul.f32 %v1754, %v899
        %v1777 = vmul.f32 %v1759, %v901
        %v1778 = vmul.f32 %v1764, %v903
        %v1779 = vmul.f32 %v1769, %v905
        %v1780 = vmul.f32 %v1754, %v907
        %v1781 = vmul.f32 %v1759, %v909
        %v1782 = vmul.f32 %v1764, %v911
        %v1783 = vmul.f32 %v1769, %v913
        %v1784 = vmul.f32 %v1754, %v915
        %v1785 = vmul.f32 %v1759, %v917
        %v1786 = vmul.f32 %v1764, %v919
        %v1787 = vmul.f32 %v1769, %v921
        %v1788 = vmul.f32 %v1754, %v987
        %v1789 = vmul.f32 %v1759, %v989
        %v1790 = vmul.f32 %v1764, %v991
        %v1791 = vmul.f32 %v1769, %v993
        %v1792 = vmul.f32 %v1754, %v995
        %v1793 = vmul.f32 %v1759, %v997
        %v1794 = vmul.f32 %v1764, %v999
        %v1795 = vmul.f32 %v1769, %v1001
        %v1796 = vmul.f32 %v1754, %v1003
        %v1797 = vmul.f32 %v1759, %v1005
        %v1798 = vmul.f32 %v1764, %v1007
        %v1799 = vmul.f32 %v1769, %v1009
        %v1800 = vmul.f32 %v1754, %v1011
        %v1801 = vmul.f32 %v1759, %v1013
        %v1802 = vmul.f32 %v1764, %v1015
        %v1803 = vmul.f32 %v1769, %v1017
        %s1804 = sadd.s32 %s1609, 32
        %s1805 = scalar_lea.vmem %s665, %s1804
        %v1806 = vld [vmem:[%s1805] sm:$0xff]
        %v1807 = vsel %vm676, %v1806, 0.0
        %1808 = vadd.xlane.f32.xlu0 %v1807
        %v1809 = vpop.xlane.xlu0 %1808
        %v1810 = vmul.f32 %v1809, %v689
        %v1811 = vsub.f32 %v1806, %v1810
        %v1812 = vmul.f32 %v1811, %v1811
        %v1813 = vsel %vm676, %v1812, 0.0
        %1814 = vadd.xlane.f32.xlu0 %v1813
        %v1815 = vpop.xlane.xlu0 %1814
        %v1816 = vmul.f32 %v1815, %v689
        %v1817 = vadd.f32 %v1816, 1e-05
        %v1818 = vrsqrt.pop %v1817
        %v1819 = vmul.f32 %v1811, %v1818
        %v1820 = vmul.f32 %v1819, %v734
        %v1821 = vadd.f32 %v1820, %v744
        %v1823 = vsel %vm676, %v1821, 0
        %1825 = vmatprep.subr.mxu0 0.0
        %1826 = vmatpush1.msra.mxu0 0.0
        %1827 = vmatprep.subr.mxu0 0.0
        %1828 = vmatpush1.msra.mxu0 0.0
        %1829 = vmatprep.subr.mxu0 0.0
        %1830 = vmatpush1.msra.mxu0 0.0
        %1831 = vmatprep.subr.mxu0 0.0
        %1832 = vmatpush1.msra.mxu0 0.0
        %1833 = vmatprep.subr.mxu0 0.0
        %1834 = vmatpush1.msra.mxu0 0.0
        %1835 = vmatprep.subr.mxu0 0.0
        %1836 = vmatpush1.msra.mxu0 0.0
        %1837 = vmatprep.subr.mxu0 0.0
        %1838 = vmatpush1.msra.mxu0 0.0
        %1839 = vmatprep.subr.mxu0 0.0
        %1840 = vmatpush1.msra.mxu0 0.0
        %1841 = vmatprep.subr.mxu0 0.0
        %1842 = vmatpush1.msra.mxu0 0.0
        %1843 = vmatprep.subr.mxu0 0.0
        %1844 = vmatpush1.msra.mxu0 0.0
        %1845 = vmatprep.subr.mxu0 0.0
        %1846 = vmatpush1.msra.mxu0 0.0
        %1847 = vmatprep.subr.mxu0 0.0
        %1848 = vmatpush1.msra.mxu0 0.0
        %1849 = vmatprep.subr.mxu0 0.0
        %1850 = vmatpush1.msra.mxu0 %v753
        %1851 = vmatprep.subr.mxu0 0.0
        %1852 = vmatpush1.msra.mxu0 %v752
        %1853 = vmatprep.subr.mxu0 0.0
        %1854 = vmatpush1.msra.mxu0 %v751
        %1855 = vmatprep.subr.mxu0 0.0
        %1856 = vmatpush1.msra.mxu0 %v750
        %1857 = vmatprep.subr.mxu0 0.0
        %1858 = vmatpush2.msra.mxu0 0.0
        %1859 = vmatprep.subr.mxu0 0.0
        %1860 = vmatpush2.msra.mxu0 0.0
        %1861 = vmatprep.subr.mxu0 0.0
        %1862 = vmatpush2.msra.mxu0 0.0
        %1863 = vmatprep.subr.mxu0 0.0
        %1864 = vmatpush2.msra.mxu0 0.0
        %1865 = vmatprep.subr.mxu0 0.0
        %1866 = vmatpush2.msra.mxu0 0.0
        %1867 = vmatprep.subr.mxu0 0.0
        %1868 = vmatpush2.msra.mxu0 0.0
        %1869 = vmatprep.subr.mxu0 0.0
        %1870 = vmatpush2.msra.mxu0 0.0
        %1871 = vmatprep.subr.mxu0 0.0
        %1872 = vmatpush2.msra.mxu0 0.0
        %1873 = vmatprep.subr.mxu0 0.0
        %1874 = vmatpush2.msra.mxu0 0.0
        %1875 = vmatprep.subr.mxu0 0.0
        %1876 = vmatpush2.msra.mxu0 0.0
        %1877 = vmatprep.subr.mxu0 0.0
        %1878 = vmatpush2.msra.mxu0 0.0
        %1879 = vmatprep.subr.mxu0 0.0
        %1880 = vmatpush2.msra.mxu0 0.0
        %1881 = vmatprep.subr.mxu0 0.0
        %1882 = vmatpush2.msra.mxu0 0.0
        %1883 = vmatprep.subr.mxu0 0.0
        %1884 = vmatpush2.msra.mxu0 0.0
        %1885 = vmatprep.subr.mxu0 0.0
        %1886 = vmatpush2.msra.mxu0 0.0
        %1887 = vmatprep.subr.mxu0 0.0
        %1888 = vmatpush2.msra.mxu0 0.0
        %1889 = vmatprep.mubr.f32.mxu0 0.0
        %1890 = vmatmul.mubr.f32.gmra.mxu0 %v1823
        %v1891 = vpop.f32.mrf.mxu0
        %v1892 = vadd.f32 %v759, %v1891
        %v1893 = vpop.f32.mrf.mxu0
        %1894 = vdwg.mxu0
        %s1895 = scalar_lea.vmem %s19, %s1609
        %v1896 = vld [vmem:[%s1895] sm:$0xff]
        %1913 = vrot.lane.b32.xlu0 %v1772, 96
        %v1914 = vpop.permute.xlu0 %1913
        %1915 = vrot.lane.b32.xlu0 %v1773, 96
        %v1916 = vpop.permute.xlu0 %1915
        %1917 = vrot.lane.b32.xlu0 %v1774, 96
        %v1918 = vpop.permute.xlu0 %1917
        %1919 = vrot.lane.b32.xlu0 %v1775, 96
        %v1920 = vpop.permute.xlu0 %1919
        %1921 = vrot.lane.b32.xlu0 %v1776, 96
        %v1922 = vpop.permute.xlu0 %1921
        %1923 = vrot.lane.b32.xlu0 %v1777, 96
        %v1924 = vpop.permute.xlu0 %1923
        %1925 = vrot.lane.b32.xlu0 %v1778, 96
        %v1926 = vpop.permute.xlu0 %1925
        %1927 = vrot.lane.b32.xlu0 %v1779, 96
        %v1928 = vpop.permute.xlu0 %1927
        %1929 = vrot.lane.b32.xlu0 %v1780, 96
        %v1930 = vpop.permute.xlu0 %1929
        %1931 = vrot.lane.b32.xlu0 %v1781, 96
        %v1932 = vpop.permute.xlu0 %1931
        %1933 = vrot.lane.b32.xlu0 %v1782, 96
        %v1934 = vpop.permute.xlu0 %1933
        %1935 = vrot.lane.b32.xlu0 %v1783, 96
        %v1936 = vpop.permute.xlu0 %1935
        %1937 = vrot.lane.b32.xlu0 %v1784, 96
        %v1938 = vpop.permute.xlu0 %1937
        %1939 = vrot.lane.b32.xlu0 %v1785, 96
        %v1940 = vpop.permute.xlu0 %1939
        %1941 = vrot.lane.b32.xlu0 %v1786, 96
        %v1942 = vpop.permute.xlu0 %1941
        %1943 = vrot.lane.b32.xlu0 %v1787, 96
        %v1944 = vpop.permute.xlu0 %1943
        %v1946 = vsel %vm676, %v1892, 0
        %v1948 = vsel %vm676, %v1914, 0
        %v1950 = vsel %vm676, %v1916, 0
        %v1952 = vsel %vm676, %v1918, 0
        %v1954 = vsel %vm676, %v1920, 0
        %v1956 = vsel %vm676, %v1922, 0
        %v1958 = vsel %vm676, %v1924, 0
        %v1960 = vsel %vm676, %v1926, 0
        %v1962 = vsel %vm676, %v1928, 0
        %v1964 = vsel %vm676, %v1930, 0
        %v1966 = vsel %vm676, %v1932, 0
        %v1968 = vsel %vm676, %v1934, 0
        %v1970 = vsel %vm676, %v1936, 0
        %v1972 = vsel %vm676, %v1938, 0
        %v1974 = vsel %vm676, %v1940, 0
        %v1976 = vsel %vm676, %v1942, 0
        %v1978 = vsel %vm676, %v1944, 0
        %1980 = vmatprep.subr.mxu0 0.0
        %1981 = vmatpush1.xpose.msra.mxu0 %v1978
        %1982 = vmatprep.subr.mxu0 0.0
        %1983 = vmatpush1.xpose.msra.mxu0 %v1976
        %1984 = vmatprep.subr.mxu0 0.0
        %1985 = vmatpush1.xpose.msra.mxu0 %v1974
        %1986 = vmatprep.subr.mxu0 0.0
        %1987 = vmatpush1.xpose.msra.mxu0 %v1972
        %1988 = vmatprep.subr.mxu0 0.0
        %1989 = vmatpush1.xpose.msra.mxu0 %v1970
        %1990 = vmatprep.subr.mxu0 0.0
        %1991 = vmatpush1.xpose.msra.mxu0 %v1968
        %1992 = vmatprep.subr.mxu0 0.0
        %1993 = vmatpush1.xpose.msra.mxu0 %v1966
        %1994 = vmatprep.subr.mxu0 0.0
        %1995 = vmatpush1.xpose.msra.mxu0 %v1964
        %1996 = vmatprep.subr.mxu0 0.0
        %1997 = vmatpush1.xpose.msra.mxu0 %v1962
        %1998 = vmatprep.subr.mxu0 0.0
        %1999 = vmatpush1.xpose.msra.mxu0 %v1960
        %2000 = vmatprep.subr.mxu0 0.0
        %2001 = vmatpush1.xpose.msra.mxu0 %v1958
        %2002 = vmatprep.subr.mxu0 0.0
        %2003 = vmatpush1.xpose.msra.mxu0 %v1956
        %2004 = vmatprep.subr.mxu0 0.0
        %2005 = vmatpush1.xpose.msra.mxu0 %v1954
        %2006 = vmatprep.subr.mxu0 0.0
        %2007 = vmatpush1.xpose.msra.mxu0 %v1952
        %2008 = vmatprep.subr.mxu0 0.0
        %2009 = vmatpush1.xpose.msra.mxu0 %v1950
        %2010 = vmatprep.subr.mxu0 0.0
        %2011 = vmatpush1.xpose.msra.mxu0 %v1948
        %2012 = vmatprep.subr.mxu0 0.0
        %2013 = vmatpush2.xpose.msra.mxu0 0.0
        %2014 = vmatprep.subr.mxu0 0.0
        %2015 = vmatpush2.xpose.msra.mxu0 0.0
        %2016 = vmatprep.subr.mxu0 0.0
        %2017 = vmatpush2.xpose.msra.mxu0 0.0
        %2018 = vmatprep.subr.mxu0 0.0
        %2019 = vmatpush2.xpose.msra.mxu0 0.0
        %2020 = vmatprep.subr.mxu0 0.0
        %2021 = vmatpush2.xpose.msra.mxu0 0.0
        %2022 = vmatprep.subr.mxu0 0.0
        %2023 = vmatpush2.xpose.msra.mxu0 0.0
        %2024 = vmatprep.subr.mxu0 0.0
        %2025 = vmatpush2.xpose.msra.mxu0 0.0
        %2026 = vmatprep.subr.mxu0 0.0
        %2027 = vmatpush2.xpose.msra.mxu0 0.0
        %2028 = vmatprep.subr.mxu0 0.0
        %2029 = vmatpush2.xpose.msra.mxu0 0.0
        %2030 = vmatprep.subr.mxu0 0.0
        %2031 = vmatpush2.xpose.msra.mxu0 0.0
        %2032 = vmatprep.subr.mxu0 0.0
        %2033 = vmatpush2.xpose.msra.mxu0 0.0
        %2034 = vmatprep.subr.mxu0 0.0
        %2035 = vmatpush2.xpose.msra.mxu0 0.0
        %2036 = vmatprep.subr.mxu0 0.0
        %2037 = vmatpush2.xpose.msra.mxu0 0.0
        %2038 = vmatprep.subr.mxu0 0.0
        %2039 = vmatpush2.xpose.msra.mxu0 0.0
        %2040 = vmatprep.subr.mxu0 0.0
        %2041 = vmatpush2.xpose.msra.mxu0 0.0
        %2042 = vmatprep.subr.mxu0 0.0
        %2043 = vmatpush2.xpose.msra.mxu0 0.0
        %2044 = vmatprep.mubr.f32.mxu0 0.0
        %2045 = vmatmul.mubr.f32.gmra.mxu0 %v1946
        %v2046 = vpop.f32.mrf.mxu0
        %v2047 = vadd.f32 %v1896, %v2046
        %v2048 = vpop.f32.mrf.mxu0
        %2049 = vdwg.mxu0
        %2050 = vmax.xlane.f32.xlu0 %v2047
        %v2051 = vpop.xlane.xlu0 %2050
        %v2052 = vsub.f32 %v2047, %v2051
        %v2053 = vmul.f32 %v2052, 1.442695
        %v2054 = vpow.pop %v2053
        %2055 = vmatprep.subr.mxu0 0.0
        %2056 = vmatpush1.msra.mxu0 %v1315
        %2057 = vmatprep.subr.mxu0 0.0
        %2058 = vmatpush1.msra.mxu0 %v1314
        %2059 = vmatprep.subr.mxu0 0.0
        %2060 = vmatpush1.msra.mxu0 %v1313
        %2061 = vmatprep.subr.mxu0 0.0
        %2062 = vmatpush1.msra.mxu0 %v1312
        %2063 = vmatprep.subr.mxu0 0.0
        %2064 = vmatpush1.msra.mxu0 %v1311
        %2065 = vmatprep.subr.mxu0 0.0
        %2066 = vmatpush1.msra.mxu0 %v1310
        %2067 = vmatprep.subr.mxu0 0.0
        %2068 = vmatpush1.msra.mxu0 %v1309
        %2069 = vmatprep.subr.mxu0 0.0
        %2070 = vmatpush1.msra.mxu0 %v1308
        %2071 = vmatprep.subr.mxu0 0.0
        %2072 = vmatpush1.msra.mxu0 %v1307
        %2073 = vmatprep.subr.mxu0 0.0
        %2074 = vmatpush1.msra.mxu0 %v1306
        %2075 = vmatprep.subr.mxu0 0.0
        %2076 = vmatpush1.msra.mxu0 %v1305
        %2077 = vmatprep.subr.mxu0 0.0
        %2078 = vmatpush1.msra.mxu0 %v1304
        %2079 = vmatprep.subr.mxu0 0.0
        %2080 = vmatpush1.msra.mxu0 %v1303
        %2081 = vmatprep.subr.mxu0 0.0
        %2082 = vmatpush1.msra.mxu0 %v1302
        %2083 = vmatprep.subr.mxu0 0.0
        %2084 = vmatpush1.msra.mxu0 %v1301
        %2085 = vmatprep.subr.mxu0 0.0
        %2086 = vmatpush1.msra.mxu0 %v1300
        %2087 = vmatprep.subr.mxu0 0.0
        %2088 = vmatpush2.msra.mxu0 0.0
        %2089 = vmatprep.subr.mxu0 0.0
        %2090 = vmatpush2.msra.mxu0 0.0
        %2091 = vmatprep.subr.mxu0 0.0
        %2092 = vmatpush2.msra.mxu0 0.0
        %2093 = vmatprep.subr.mxu0 0.0
        %2094 = vmatpush2.msra.mxu0 0.0
        %2095 = vmatprep.subr.mxu0 0.0
        %2096 = vmatpush2.msra.mxu0 0.0
        %2097 = vmatprep.subr.mxu0 0.0
        %2098 = vmatpush2.msra.mxu0 0.0
        %2099 = vmatprep.subr.mxu0 0.0
        %2100 = vmatpush2.msra.mxu0 0.0
        %2101 = vmatprep.subr.mxu0 0.0
        %2102 = vmatpush2.msra.mxu0 0.0
        %2103 = vmatprep.subr.mxu0 0.0
        %2104 = vmatpush2.msra.mxu0 0.0
        %2105 = vmatprep.subr.mxu0 0.0
        %2106 = vmatpush2.msra.mxu0 0.0
        %2107 = vmatprep.subr.mxu0 0.0
        %2108 = vmatpush2.msra.mxu0 0.0
        %2109 = vmatprep.subr.mxu0 0.0
        %2110 = vmatpush2.msra.mxu0 0.0
        %2111 = vmatprep.subr.mxu0 0.0
        %2112 = vmatpush2.msra.mxu0 0.0
        %2113 = vmatprep.subr.mxu0 0.0
        %2114 = vmatpush2.msra.mxu0 0.0
        %2115 = vmatprep.subr.mxu0 0.0
        %2116 = vmatpush2.msra.mxu0 0.0
        %2117 = vmatprep.subr.mxu0 0.0
        %2118 = vmatpush2.msra.mxu0 0.0
        %2119 = vmatprep.mubr.f32.mxu0 0.0
        %2120 = vmatmul.mubr.f32.gmra.mxu0 %v2054
        %v2121 = vpop.f32.mrf.mxu0
        %v2122 = vadd.f32 0.0, %v2121
        %v2123 = vpop.f32.mrf.mxu0
        %2124 = vdwg.mxu0
        %v2125 = vrcp.pop %v2122
        %v2126 = vmul.f32 %v2054, %v2125
        %2143 = vrot.lane.b32.xlu0 %v1788, 64
        %v2144 = vpop.permute.xlu0 %2143
        %2145 = vrot.lane.b32.xlu0 %v1789, 64
        %v2146 = vpop.permute.xlu0 %2145
        %2147 = vrot.lane.b32.xlu0 %v1790, 64
        %v2148 = vpop.permute.xlu0 %2147
        %2149 = vrot.lane.b32.xlu0 %v1791, 64
        %v2150 = vpop.permute.xlu0 %2149
        %2151 = vrot.lane.b32.xlu0 %v1792, 64
        %v2152 = vpop.permute.xlu0 %2151
        %2153 = vrot.lane.b32.xlu0 %v1793, 64
        %v2154 = vpop.permute.xlu0 %2153
        %2155 = vrot.lane.b32.xlu0 %v1794, 64
        %v2156 = vpop.permute.xlu0 %2155
        %2157 = vrot.lane.b32.xlu0 %v1795, 64
        %v2158 = vpop.permute.xlu0 %2157
        %2159 = vrot.lane.b32.xlu0 %v1796, 64
        %v2160 = vpop.permute.xlu0 %2159
        %2161 = vrot.lane.b32.xlu0 %v1797, 64
        %v2162 = vpop.permute.xlu0 %2161
        %2163 = vrot.lane.b32.xlu0 %v1798, 64
        %v2164 = vpop.permute.xlu0 %2163
        %2165 = vrot.lane.b32.xlu0 %v1799, 64
        %v2166 = vpop.permute.xlu0 %2165
        %2167 = vrot.lane.b32.xlu0 %v1800, 64
        %v2168 = vpop.permute.xlu0 %2167
        %2169 = vrot.lane.b32.xlu0 %v1801, 64
        %v2170 = vpop.permute.xlu0 %2169
        %2171 = vrot.lane.b32.xlu0 %v1802, 64
        %v2172 = vpop.permute.xlu0 %2171
        %2173 = vrot.lane.b32.xlu0 %v1803, 64
        %v2174 = vpop.permute.xlu0 %2173
        %2191 = vmatprep.subr.mxu0 0.0
        %2192 = vmatpush1.msra.mxu0 %v2174
        %2193 = vmatprep.subr.mxu0 0.0
        %2194 = vmatpush1.msra.mxu0 %v2172
        %2195 = vmatprep.subr.mxu0 0.0
        %2196 = vmatpush1.msra.mxu0 %v2170
        %2197 = vmatprep.subr.mxu0 0.0
        %2198 = vmatpush1.msra.mxu0 %v2168
        %2199 = vmatprep.subr.mxu0 0.0
        %2200 = vmatpush1.msra.mxu0 %v2166
        %2201 = vmatprep.subr.mxu0 0.0
        %2202 = vmatpush1.msra.mxu0 %v2164
        %2203 = vmatprep.subr.mxu0 0.0
        %2204 = vmatpush1.msra.mxu0 %v2162
        %2205 = vmatprep.subr.mxu0 0.0
        %2206 = vmatpush1.msra.mxu0 %v2160
        %2207 = vmatprep.subr.mxu0 0.0
        %2208 = vmatpush1.msra.mxu0 %v2158
        %2209 = vmatprep.subr.mxu0 0.0
        %2210 = vmatpush1.msra.mxu0 %v2156
        %2211 = vmatprep.subr.mxu0 0.0
        %2212 = vmatpush1.msra.mxu0 %v2154
        %2213 = vmatprep.subr.mxu0 0.0
        %2214 = vmatpush1.msra.mxu0 %v2152
        %2215 = vmatprep.subr.mxu0 0.0
        %2216 = vmatpush1.msra.mxu0 %v2150
        %2217 = vmatprep.subr.mxu0 0.0
        %2218 = vmatpush1.msra.mxu0 %v2148
        %2219 = vmatprep.subr.mxu0 0.0
        %2220 = vmatpush1.msra.mxu0 %v2146
        %2221 = vmatprep.subr.mxu0 0.0
        %2222 = vmatpush1.msra.mxu0 %v2144
        %2223 = vmatprep.subr.mxu0 0.0
        %2224 = vmatpush2.msra.mxu0 0.0
        %2225 = vmatprep.subr.mxu0 0.0
        %2226 = vmatpush2.msra.mxu0 0.0
        %2227 = vmatprep.subr.mxu0 0.0
        %2228 = vmatpush2.msra.mxu0 0.0
        %2229 = vmatprep.subr.mxu0 0.0
        %2230 = vmatpush2.msra.mxu0 0.0
        %2231 = vmatprep.subr.mxu0 0.0
        %2232 = vmatpush2.msra.mxu0 0.0
        %2233 = vmatprep.subr.mxu0 0.0
        %2234 = vmatpush2.msra.mxu0 0.0
        %2235 = vmatprep.subr.mxu0 0.0
        %2236 = vmatpush2.msra.mxu0 0.0
        %2237 = vmatprep.subr.mxu0 0.0
        %2238 = vmatpush2.msra.mxu0 0.0
        %2239 = vmatprep.subr.mxu0 0.0
        %2240 = vmatpush2.msra.mxu0 0.0
        %2241 = vmatprep.subr.mxu0 0.0
        %2242 = vmatpush2.msra.mxu0 0.0
        %2243 = vmatprep.subr.mxu0 0.0
        %2244 = vmatpush2.msra.mxu0 0.0
        %2245 = vmatprep.subr.mxu0 0.0
        %2246 = vmatpush2.msra.mxu0 0.0
        %2247 = vmatprep.subr.mxu0 0.0
        %2248 = vmatpush2.msra.mxu0 0.0
        %2249 = vmatprep.subr.mxu0 0.0
        %2250 = vmatpush2.msra.mxu0 0.0
        %2251 = vmatprep.subr.mxu0 0.0
        %2252 = vmatpush2.msra.mxu0 0.0
        %2253 = vmatprep.subr.mxu0 0.0
        %2254 = vmatpush2.msra.mxu0 0.0
        %2255 = vmatprep.mubr.f32.mxu0 0.0
        %2256 = vmatmul.mubr.f32.gmra.mxu0 %v2126
        %v2257 = vpop.f32.mrf.mxu0
        %v2258 = vadd.f32 0.0, %v2257
        %v2259 = vpop.f32.mrf.mxu0
        %2260 = vdwg.mxu0
        %v2262 = vsel %vm676, %v2258, 0
        %2264 = vmatprep.subr.mxu0 0.0
        %2265 = vmatpush1.msra.mxu0 0.0
        %2266 = vmatprep.subr.mxu0 0.0
        %2267 = vmatpush1.msra.mxu0 0.0
        %2268 = vmatprep.subr.mxu0 0.0
        %2269 = vmatpush1.msra.mxu0 0.0
        %2270 = vmatprep.subr.mxu0 0.0
        %2271 = vmatpush1.msra.mxu0 0.0
        %2272 = vmatprep.subr.mxu0 0.0
        %2273 = vmatpush1.msra.mxu0 0.0
        %2274 = vmatprep.subr.mxu0 0.0
        %2275 = vmatpush1.msra.mxu0 0.0
        %2276 = vmatprep.subr.mxu0 0.0
        %2277 = vmatpush1.msra.mxu0 0.0
        %2278 = vmatprep.subr.mxu0 0.0
        %2279 = vmatpush1.msra.mxu0 0.0
        %2280 = vmatprep.subr.mxu0 0.0
        %2281 = vmatpush1.msra.mxu0 0.0
        %2282 = vmatprep.subr.mxu0 0.0
        %2283 = vmatpush1.msra.mxu0 0.0
        %2284 = vmatprep.subr.mxu0 0.0
        %2285 = vmatpush1.msra.mxu0 0.0
        %2286 = vmatprep.subr.mxu0 0.0
        %2287 = vmatpush1.msra.mxu0 0.0
        %2288 = vmatprep.subr.mxu0 0.0
        %2289 = vmatpush1.msra.mxu0 %v1525
        %2290 = vmatprep.subr.mxu0 0.0
        %2291 = vmatpush1.msra.mxu0 %v1524
        %2292 = vmatprep.subr.mxu0 0.0
        %2293 = vmatpush1.msra.mxu0 %v1523
        %2294 = vmatprep.subr.mxu0 0.0
        %2295 = vmatpush1.msra.mxu0 %v1522
        %2296 = vmatprep.subr.mxu0 0.0
        %2297 = vmatpush2.msra.mxu0 0.0
        %2298 = vmatprep.subr.mxu0 0.0
        %2299 = vmatpush2.msra.mxu0 0.0
        %2300 = vmatprep.subr.mxu0 0.0
        %2301 = vmatpush2.msra.mxu0 0.0
        %2302 = vmatprep.subr.mxu0 0.0
        %2303 = vmatpush2.msra.mxu0 0.0
        %2304 = vmatprep.subr.mxu0 0.0
        %2305 = vmatpush2.msra.mxu0 0.0
        %2306 = vmatprep.subr.mxu0 0.0
        %2307 = vmatpush2.msra.mxu0 0.0
        %2308 = vmatprep.subr.mxu0 0.0
        %2309 = vmatpush2.msra.mxu0 0.0
        %2310 = vmatprep.subr.mxu0 0.0
        %2311 = vmatpush2.msra.mxu0 0.0
        %2312 = vmatprep.subr.mxu0 0.0
        %2313 = vmatpush2.msra.mxu0 0.0
        %2314 = vmatprep.subr.mxu0 0.0
        %2315 = vmatpush2.msra.mxu0 0.0
        %2316 = vmatprep.subr.mxu0 0.0
        %2317 = vmatpush2.msra.mxu0 0.0
        %2318 = vmatprep.subr.mxu0 0.0
        %2319 = vmatpush2.msra.mxu0 0.0
        %2320 = vmatprep.subr.mxu0 0.0
        %2321 = vmatpush2.msra.mxu0 0.0
        %2322 = vmatprep.subr.mxu0 0.0
        %2323 = vmatpush2.msra.mxu0 0.0
        %2324 = vmatprep.subr.mxu0 0.0
        %2325 = vmatpush2.msra.mxu0 0.0
        %2326 = vmatprep.subr.mxu0 0.0
        %2327 = vmatpush2.msra.mxu0 0.0
        %2328 = vmatprep.mubr.f32.mxu0 0.0
        %2329 = vmatmul.mubr.f32.gmra.mxu0 %v2262
        %v2330 = vpop.f32.mrf.mxu0
        %v2331 = vadd.f32 0.0, %v2330
        %v2332 = vpop.f32.mrf.mxu0
        %2333 = vdwg.mxu0
        %v2334 = vadd.f32 %v1806, %v2331
        %v2335 = vadd.f32 %v2334, %v1605
        %s2336 = sadd.s32 %s668, 2
        %s2337 = sld [smem:[#allocation3 + %s2336]]
        %s2338 = scalar_lea.vmem %s665, 64
        %v2339 = vld [vmem:[%s2338] sm:$0xff]
        %v2340 = vld [vmem:[%s2338 + $0x8] sm:$0xff]
        %v2341 = vld [vmem:[%s2338 + $0x10] sm:$0xff]
        %v2342 = vld [vmem:[%s2338 + $0x18] sm:$0xff]
        %v2343 = vsel %vm676, %v2339, 0.0
        %2344 = vadd.xlane.f32.xlu0 %v2343
        %v2345 = vpop.xlane.xlu0 %2344
        %v2346 = vsel %vm676, %v2340, 0.0
        %2347 = vadd.xlane.f32.xlu0 %v2346
        %v2348 = vpop.xlane.xlu0 %2347
        %v2349 = vsel %vm676, %v2341, 0.0
        %2350 = vadd.xlane.f32.xlu0 %v2349
        %v2351 = vpop.xlane.xlu0 %2350
        %v2352 = vsel %vm676, %v2342, 0.0
        %2353 = vadd.xlane.f32.xlu0 %v2352
        %v2354 = vpop.xlane.xlu0 %2353
        %v2355 = vmul.f32 %v2345, %v689
        %v2356 = vmul.f32 %v2348, %v689
        %v2357 = vmul.f32 %v2351, %v689
        %v2358 = vmul.f32 %v2354, %v689
        %v2359 = vsub.f32 %v2339, %v2355
        %v2360 = vsub.f32 %v2340, %v2356
        %v2361 = vsub.f32 %v2341, %v2357
        %v2362 = vsub.f32 %v2342, %v2358
        %v2363 = vmul.f32 %v2359, %v2359
        %v2364 = vmul.f32 %v2360, %v2360
        %v2365 = vmul.f32 %v2361, %v2361
        %v2366 = vmul.f32 %v2362, %v2362
        %v2367 = vsel %vm676, %v2363, 0.0
        %2368 = vadd.xlane.f32.xlu0 %v2367
        %v2369 = vpop.xlane.xlu0 %2368
        %v2370 = vsel %vm676, %v2364, 0.0
        %2371 = vadd.xlane.f32.xlu0 %v2370
        %v2372 = vpop.xlane.xlu0 %2371
        %v2373 = vsel %vm676, %v2365, 0.0
        %2374 = vadd.xlane.f32.xlu0 %v2373
        %v2375 = vpop.xlane.xlu0 %2374
        %v2376 = vsel %vm676, %v2366, 0.0
        %2377 = vadd.xlane.f32.xlu0 %v2376
        %v2378 = vpop.xlane.xlu0 %2377
        %v2379 = vmul.f32 %v2369, %v689
        %v2380 = vmul.f32 %v2372, %v689
        %v2381 = vmul.f32 %v2375, %v689
        %v2382 = vmul.f32 %v2378, %v689
        %v2383 = vadd.f32 %v2379, 1e-05
        %v2384 = vadd.f32 %v2380, 1e-05
        %v2385 = vadd.f32 %v2381, 1e-05
        %v2386 = vadd.f32 %v2382, 1e-05
        %v2387 = vrsqrt.pop %v2383
        %v2388 = vrsqrt.pop %v2384
        %v2389 = vrsqrt.pop %v2385
        %v2390 = vrsqrt.pop %v2386
        %v2391 = vmul.f32 %v2359, %v2387
        %v2392 = vmul.f32 %v2360, %v2388
        %v2393 = vmul.f32 %v2361, %v2389
        %v2394 = vmul.f32 %v2362, %v2390
        %v2395 = vmul.f32 %v2391, %v734
        %v2396 = vmul.f32 %v2392, %v734
        %v2397 = vmul.f32 %v2393, %v734
        %v2398 = vmul.f32 %v2394, %v734
        %v2399 = vadd.f32 %v2395, %v744
        %v2400 = vadd.f32 %v2396, %v744
        %v2401 = vadd.f32 %v2397, %v744
        %v2402 = vadd.f32 %v2398, %v744
        %v2404 = vsel %vm676, %v2399, 0
        %v2407 = vsel %vm676, %v2400, 0
        %v2410 = vsel %vm676, %v2401, 0
        %v2413 = vsel %vm676, %v2402, 0
        %2415 = vmatprep.subr.mxu0 0.0
        %2416 = vmatpush1.msra.mxu0 0.0
        %2417 = vmatprep.subr.mxu0 0.0
        %2418 = vmatpush1.msra.mxu0 0.0
        %2419 = vmatprep.subr.mxu0 0.0
        %2420 = vmatpush1.msra.mxu0 0.0
        %2421 = vmatprep.subr.mxu0 0.0
        %2422 = vmatpush1.msra.mxu0 0.0
        %2423 = vmatprep.subr.mxu0 0.0
        %2424 = vmatpush1.msra.mxu0 0.0
        %2425 = vmatprep.subr.mxu0 0.0
        %2426 = vmatpush1.msra.mxu0 0.0
        %2427 = vmatprep.subr.mxu0 0.0
        %2428 = vmatpush1.msra.mxu0 0.0
        %2429 = vmatprep.subr.mxu0 0.0
        %2430 = vmatpush1.msra.mxu0 0.0
        %2431 = vmatprep.subr.mxu0 0.0
        %2432 = vmatpush1.msra.mxu0 0.0
        %2433 = vmatprep.subr.mxu0 0.0
        %2434 = vmatpush1.msra.mxu0 0.0
        %2435 = vmatprep.subr.mxu0 0.0
        %2436 = vmatpush1.msra.mxu0 0.0
        %2437 = vmatprep.subr.mxu0 0.0
        %2438 = vmatpush1.msra.mxu0 0.0
        %2439 = vmatprep.subr.mxu0 0.0
        %2440 = vmatpush1.msra.mxu0 %v753
        %2441 = vmatprep.subr.mxu0 0.0
        %2442 = vmatpush1.msra.mxu0 %v752
        %2443 = vmatprep.subr.mxu0 0.0
        %2444 = vmatpush1.msra.mxu0 %v751
        %2445 = vmatprep.subr.mxu0 0.0
        %2446 = vmatpush1.msra.mxu0 %v750
        %2447 = vmatprep.subr.mxu0 0.0
        %2448 = vmatpush2.msra.mxu0 0.0
        %2449 = vmatprep.subr.mxu0 0.0
        %2450 = vmatpush2.msra.mxu0 0.0
        %2451 = vmatprep.subr.mxu0 0.0
        %2452 = vmatpush2.msra.mxu0 0.0
        %2453 = vmatprep.subr.mxu0 0.0
        %2454 = vmatpush2.msra.mxu0 0.0
        %2455 = vmatprep.subr.mxu0 0.0
        %2456 = vmatpush2.msra.mxu0 0.0
        %2457 = vmatprep.subr.mxu0 0.0
        %2458 = vmatpush2.msra.mxu0 0.0
        %2459 = vmatprep.subr.mxu0 0.0
        %2460 = vmatpush2.msra.mxu0 0.0
        %2461 = vmatprep.subr.mxu0 0.0
        %2462 = vmatpush2.msra.mxu0 0.0
        %2463 = vmatprep.subr.mxu0 0.0
        %2464 = vmatpush2.msra.mxu0 0.0
        %2465 = vmatprep.subr.mxu0 0.0
        %2466 = vmatpush2.msra.mxu0 0.0
        %2467 = vmatprep.subr.mxu0 0.0
        %2468 = vmatpush2.msra.mxu0 0.0
        %2469 = vmatprep.subr.mxu0 0.0
        %2470 = vmatpush2.msra.mxu0 0.0
        %2471 = vmatprep.subr.mxu0 0.0
        %2472 = vmatpush2.msra.mxu0 0.0
        %2473 = vmatprep.subr.mxu0 0.0
        %2474 = vmatpush2.msra.mxu0 0.0
        %2475 = vmatprep.subr.mxu0 0.0
        %2476 = vmatpush2.msra.mxu0 0.0
        %2477 = vmatprep.subr.mxu0 0.0
        %2478 = vmatpush2.msra.mxu0 0.0
        %2479 = vmatprep.mubr.f32.mxu0 0.0
        %2480 = vmatmul.mubr.f32.gmra.mxu0 %v2404
        %v2481 = vpop.f32.mrf.mxu0
        %v2482 = vadd.f32 %v759, %v2481
        %v2483 = vpop.f32.mrf.mxu0
        %2484 = vmatprep.mubr.f32.mxu0 0.0
        %2485 = vmatmul.mubr.f32.gmra.mxu0 %v2407
        %v2486 = vpop.f32.mrf.mxu0
        %v2487 = vadd.f32 %v759, %v2486
        %v2488 = vpop.f32.mrf.mxu0
        %2489 = vmatprep.mubr.f32.mxu0 0.0
        %2490 = vmatmul.mubr.f32.gmra.mxu0 %v2410
        %v2491 = vpop.f32.mrf.mxu0
        %v2492 = vadd.f32 %v759, %v2491
        %v2493 = vpop.f32.mrf.mxu0
        %2494 = vmatprep.mubr.f32.mxu0 0.0
        %2495 = vmatmul.mubr.f32.gmra.mxu0 %v2413
        %v2496 = vpop.f32.mrf.mxu0
        %v2497 = vadd.f32 %v759, %v2496
        %v2498 = vpop.f32.mrf.mxu0
        %2499 = vdwg.mxu0
        %v2500 = vmul.f32 %v2482, %v891
        %v2501 = vmul.f32 %v2487, %v893
        %v2502 = vmul.f32 %v2492, %v895
        %v2503 = vmul.f32 %v2497, %v897
        %v2504 = vmul.f32 %v2482, %v899
        %v2505 = vmul.f32 %v2487, %v901
        %v2506 = vmul.f32 %v2492, %v903
        %v2507 = vmul.f32 %v2497, %v905
        %v2508 = vmul.f32 %v2482, %v907
        %v2509 = vmul.f32 %v2487, %v909
        %v2510 = vmul.f32 %v2492, %v911
        %v2511 = vmul.f32 %v2497, %v913
        %v2512 = vmul.f32 %v2482, %v915
        %v2513 = vmul.f32 %v2487, %v917
        %v2514 = vmul.f32 %v2492, %v919
        %v2515 = vmul.f32 %v2497, %v921
        %v2516 = vmul.f32 %v2482, %v987
        %v2517 = vmul.f32 %v2487, %v989
        %v2518 = vmul.f32 %v2492, %v991
        %v2519 = vmul.f32 %v2497, %v993
        %v2520 = vmul.f32 %v2482, %v995
        %v2521 = vmul.f32 %v2487, %v997
        %v2522 = vmul.f32 %v2492, %v999
        %v2523 = vmul.f32 %v2497, %v1001
        %v2524 = vmul.f32 %v2482, %v1003
        %v2525 = vmul.f32 %v2487, %v1005
        %v2526 = vmul.f32 %v2492, %v1007
        %v2527 = vmul.f32 %v2497, %v1009
        %v2528 = vmul.f32 %v2482, %v1011
        %v2529 = vmul.f32 %v2487, %v1013
        %v2530 = vmul.f32 %v2492, %v1015
        %v2531 = vmul.f32 %v2497, %v1017
        %s2532 = sadd.s32 %s2337, 64
        %s2533 = scalar_lea.vmem %s665, %s2532
        %v2534 = vld [vmem:[%s2533] sm:$0xff]
        %v2535 = vsel %vm676, %v2534, 0.0
        %2536 = vadd.xlane.f32.xlu0 %v2535
        %v2537 = vpop.xlane.xlu0 %2536
        %v2538 = vmul.f32 %v2537, %v689
        %v2539 = vsub.f32 %v2534, %v2538
        %v2540 = vmul.f32 %v2539, %v2539
        %v2541 = vsel %vm676, %v2540, 0.0
        %2542 = vadd.xlane.f32.xlu0 %v2541
        %v2543 = vpop.xlane.xlu0 %2542
        %v2544 = vmul.f32 %v2543, %v689
        %v2545 = vadd.f32 %v2544, 1e-05
        %v2546 = vrsqrt.pop %v2545
        %v2547 = vmul.f32 %v2539, %v2546
        %v2548 = vmul.f32 %v2547, %v734
        %v2549 = vadd.f32 %v2548, %v744
        %v2551 = vsel %vm676, %v2549, 0
        %2553 = vmatprep.subr.mxu0 0.0
        %2554 = vmatpush1.msra.mxu0 0.0
        %2555 = vmatprep.subr.mxu0 0.0
        %2556 = vmatpush1.msra.mxu0 0.0
        %2557 = vmatprep.subr.mxu0 0.0
        %2558 = vmatpush1.msra.mxu0 0.0
        %2559 = vmatprep.subr.mxu0 0.0
        %2560 = vmatpush1.msra.mxu0 0.0
        %2561 = vmatprep.subr.mxu0 0.0
        %2562 = vmatpush1.msra.mxu0 0.0
        %2563 = vmatprep.subr.mxu0 0.0
        %2564 = vmatpush1.msra.mxu0 0.0
        %2565 = vmatprep.subr.mxu0 0.0
        %2566 = vmatpush1.msra.mxu0 0.0
        %2567 = vmatprep.subr.mxu0 0.0
        %2568 = vmatpush1.msra.mxu0 0.0
        %2569 = vmatprep.subr.mxu0 0.0
        %2570 = vmatpush1.msra.mxu0 0.0
        %2571 = vmatprep.subr.mxu0 0.0
        %2572 = vmatpush1.msra.mxu0 0.0
        %2573 = vmatprep.subr.mxu0 0.0
        %2574 = vmatpush1.msra.mxu0 0.0
        %2575 = vmatprep.subr.mxu0 0.0
        %2576 = vmatpush1.msra.mxu0 0.0
        %2577 = vmatprep.subr.mxu0 0.0
        %2578 = vmatpush1.msra.mxu0 %v753
        %2579 = vmatprep.subr.mxu0 0.0
        %2580 = vmatpush1.msra.mxu0 %v752
        %2581 = vmatprep.subr.mxu0 0.0
        %2582 = vmatpush1.msra.mxu0 %v751
        %2583 = vmatprep.subr.mxu0 0.0
        %2584 = vmatpush1.msra.mxu0 %v750
        %2585 = vmatprep.subr.mxu0 0.0
        %2586 = vmatpush2.msra.mxu0 0.0
        %2587 = vmatprep.subr.mxu0 0.0
        %2588 = vmatpush2.msra.mxu0 0.0
        %2589 = vmatprep.subr.mxu0 0.0
        %2590 = vmatpush2.msra.mxu0 0.0
        %2591 = vmatprep.subr.mxu0 0.0
        %2592 = vmatpush2.msra.mxu0 0.0
        %2593 = vmatprep.subr.mxu0 0.0
        %2594 = vmatpush2.msra.mxu0 0.0
        %2595 = vmatprep.subr.mxu0 0.0
        %2596 = vmatpush2.msra.mxu0 0.0
        %2597 = vmatprep.subr.mxu0 0.0
        %2598 = vmatpush2.msra.mxu0 0.0
        %2599 = vmatprep.subr.mxu0 0.0
        %2600 = vmatpush2.msra.mxu0 0.0
        %2601 = vmatprep.subr.mxu0 0.0
        %2602 = vmatpush2.msra.mxu0 0.0
        %2603 = vmatprep.subr.mxu0 0.0
        %2604 = vmatpush2.msra.mxu0 0.0
        %2605 = vmatprep.subr.mxu0 0.0
        %2606 = vmatpush2.msra.mxu0 0.0
        %2607 = vmatprep.subr.mxu0 0.0
        %2608 = vmatpush2.msra.mxu0 0.0
        %2609 = vmatprep.subr.mxu0 0.0
        %2610 = vmatpush2.msra.mxu0 0.0
        %2611 = vmatprep.subr.mxu0 0.0
        %2612 = vmatpush2.msra.mxu0 0.0
        %2613 = vmatprep.subr.mxu0 0.0
        %2614 = vmatpush2.msra.mxu0 0.0
        %2615 = vmatprep.subr.mxu0 0.0
        %2616 = vmatpush2.msra.mxu0 0.0
        %2617 = vmatprep.mubr.f32.mxu0 0.0
        %2618 = vmatmul.mubr.f32.gmra.mxu0 %v2551
        %v2619 = vpop.f32.mrf.mxu0
        %v2620 = vadd.f32 %v759, %v2619
        %v2621 = vpop.f32.mrf.mxu0
        %2622 = vdwg.mxu0
        %s2623 = scalar_lea.vmem %s19, %s2337
        %v2624 = vld [vmem:[%s2623] sm:$0xff]
        %2641 = vrot.lane.b32.xlu0 %v2500, 96
        %v2642 = vpop.permute.xlu0 %2641
        %2643 = vrot.lane.b32.xlu0 %v2501, 96
        %v2644 = vpop.permute.xlu0 %2643
        %2645 = vrot.lane.b32.xlu0 %v2502, 96
        %v2646 = vpop.permute.xlu0 %2645
        %2647 = vrot.lane.b32.xlu0 %v2503, 96
        %v2648 = vpop.permute.xlu0 %2647
        %2649 = vrot.lane.b32.xlu0 %v2504, 96
        %v2650 = vpop.permute.xlu0 %2649
        %2651 = vrot.lane.b32.xlu0 %v2505, 96
        %v2652 = vpop.permute.xlu0 %2651
        %2653 = vrot.lane.b32.xlu0 %v2506, 96
        %v2654 = vpop.permute.xlu0 %2653
        %2655 = vrot.lane.b32.xlu0 %v2507, 96
        %v2656 = vpop.permute.xlu0 %2655
        %2657 = vrot.lane.b32.xlu0 %v2508, 96
        %v2658 = vpop.permute.xlu0 %2657
        %2659 = vrot.lane.b32.xlu0 %v2509, 96
        %v2660 = vpop.permute.xlu0 %2659
        %2661 = vrot.lane.b32.xlu0 %v2510, 96
        %v2662 = vpop.permute.xlu0 %2661
        %2663 = vrot.lane.b32.xlu0 %v2511, 96
        %v2664 = vpop.permute.xlu0 %2663
        %2665 = vrot.lane.b32.xlu0 %v2512, 96
        %v2666 = vpop.permute.xlu0 %2665
        %2667 = vrot.lane.b32.xlu0 %v2513, 96
        %v2668 = vpop.permute.xlu0 %2667
        %2669 = vrot.lane.b32.xlu0 %v2514, 96
        %v2670 = vpop.permute.xlu0 %2669
        %2671 = vrot.lane.b32.xlu0 %v2515, 96
        %v2672 = vpop.permute.xlu0 %2671
        %v2674 = vsel %vm676, %v2620, 0
        %v2676 = vsel %vm676, %v2642, 0
        %v2678 = vsel %vm676, %v2644, 0
        %v2680 = vsel %vm676, %v2646, 0
        %v2682 = vsel %vm676, %v2648, 0
        %v2684 = vsel %vm676, %v2650, 0
        %v2686 = vsel %vm676, %v2652, 0
        %v2688 = vsel %vm676, %v2654, 0
        %v2690 = vsel %vm676, %v2656, 0
        %v2692 = vsel %vm676, %v2658, 0
        %v2694 = vsel %vm676, %v2660, 0
        %v2696 = vsel %vm676, %v2662, 0
        %v2698 = vsel %vm676, %v2664, 0
        %v2700 = vsel %vm676, %v2666, 0
        %v2702 = vsel %vm676, %v2668, 0
        %v2704 = vsel %vm676, %v2670, 0
        %v2706 = vsel %vm676, %v2672, 0
        %2708 = vmatprep.subr.mxu0 0.0
        %2709 = vmatpush1.xpose.msra.mxu0 %v2706
        %2710 = vmatprep.subr.mxu0 0.0
        %2711 = vmatpush1.xpose.msra.mxu0 %v2704
        %2712 = vmatprep.subr.mxu0 0.0
        %2713 = vmatpush1.xpose.msra.mxu0 %v2702
        %2714 = vmatprep.subr.mxu0 0.0
        %2715 = vmatpush1.xpose.msra.mxu0 %v2700
        %2716 = vmatprep.subr.mxu0 0.0
        %2717 = vmatpush1.xpose.msra.mxu0 %v2698
        %2718 = vmatprep.subr.mxu0 0.0
        %2719 = vmatpush1.xpose.msra.mxu0 %v2696
        %2720 = vmatprep.subr.mxu0 0.0
        %2721 = vmatpush1.xpose.msra.mxu0 %v2694
        %2722 = vmatprep.subr.mxu0 0.0
        %2723 = vmatpush1.xpose.msra.mxu0 %v2692
        %2724 = vmatprep.subr.mxu0 0.0
        %2725 = vmatpush1.xpose.msra.mxu0 %v2690
        %2726 = vmatprep.subr.mxu0 0.0
        %2727 = vmatpush1.xpose.msra.mxu0 %v2688
        %2728 = vmatprep.subr.mxu0 0.0
        %2729 = vmatpush1.xpose.msra.mxu0 %v2686
        %2730 = vmatprep.subr.mxu0 0.0
        %2731 = vmatpush1.xpose.msra.mxu0 %v2684
        %2732 = vmatprep.subr.mxu0 0.0
        %2733 = vmatpush1.xpose.msra.mxu0 %v2682
        %2734 = vmatprep.subr.mxu0 0.0
        %2735 = vmatpush1.xpose.msra.mxu0 %v2680
        %2736 = vmatprep.subr.mxu0 0.0
        %2737 = vmatpush1.xpose.msra.mxu0 %v2678
        %2738 = vmatprep.subr.mxu0 0.0
        %2739 = vmatpush1.xpose.msra.mxu0 %v2676
        %2740 = vmatprep.subr.mxu0 0.0
        %2741 = vmatpush2.xpose.msra.mxu0 0.0
        %2742 = vmatprep.subr.mxu0 0.0
        %2743 = vmatpush2.xpose.msra.mxu0 0.0
        %2744 = vmatprep.subr.mxu0 0.0
        %2745 = vmatpush2.xpose.msra.mxu0 0.0
        %2746 = vmatprep.subr.mxu0 0.0
        %2747 = vmatpush2.xpose.msra.mxu0 0.0
        %2748 = vmatprep.subr.mxu0 0.0
        %2749 = vmatpush2.xpose.msra.mxu0 0.0
        %2750 = vmatprep.subr.mxu0 0.0
        %2751 = vmatpush2.xpose.msra.mxu0 0.0
        %2752 = vmatprep.subr.mxu0 0.0
        %2753 = vmatpush2.xpose.msra.mxu0 0.0
        %2754 = vmatprep.subr.mxu0 0.0
        %2755 = vmatpush2.xpose.msra.mxu0 0.0
        %2756 = vmatprep.subr.mxu0 0.0
        %2757 = vmatpush2.xpose.msra.mxu0 0.0
        %2758 = vmatprep.subr.mxu0 0.0
        %2759 = vmatpush2.xpose.msra.mxu0 0.0
        %2760 = vmatprep.subr.mxu0 0.0
        %2761 = vmatpush2.xpose.msra.mxu0 0.0
        %2762 = vmatprep.subr.mxu0 0.0
        %2763 = vmatpush2.xpose.msra.mxu0 0.0
        %2764 = vmatprep.subr.mxu0 0.0
        %2765 = vmatpush2.xpose.msra.mxu0 0.0
        %2766 = vmatprep.subr.mxu0 0.0
        %2767 = vmatpush2.xpose.msra.mxu0 0.0
        %2768 = vmatprep.subr.mxu0 0.0
        %2769 = vmatpush2.xpose.msra.mxu0 0.0
        %2770 = vmatprep.subr.mxu0 0.0
        %2771 = vmatpush2.xpose.msra.mxu0 0.0
        %2772 = vmatprep.mubr.f32.mxu0 0.0
        %2773 = vmatmul.mubr.f32.gmra.mxu0 %v2674
        %v2774 = vpop.f32.mrf.mxu0
        %v2775 = vadd.f32 %v2624, %v2774
        %v2776 = vpop.f32.mrf.mxu0
        %2777 = vdwg.mxu0
        %2778 = vmax.xlane.f32.xlu0 %v2775
        %v2779 = vpop.xlane.xlu0 %2778
        %v2780 = vsub.f32 %v2775, %v2779
        %v2781 = vmul.f32 %v2780, 1.442695
        %v2782 = vpow.pop %v2781
        %2783 = vmatprep.subr.mxu0 0.0
        %2784 = vmatpush1.msra.mxu0 %v1315
        %2785 = vmatprep.subr.mxu0 0.0
        %2786 = vmatpush1.msra.mxu0 %v1314
        %2787 = vmatprep.subr.mxu0 0.0
        %2788 = vmatpush1.msra.mxu0 %v1313
        %2789 = vmatprep.subr.mxu0 0.0
        %2790 = vmatpush1.msra.mxu0 %v1312
        %2791 = vmatprep.subr.mxu0 0.0
        %2792 = vmatpush1.msra.mxu0 %v1311
        %2793 = vmatprep.subr.mxu0 0.0
        %2794 = vmatpush1.msra.mxu0 %v1310
        %2795 = vmatprep.subr.mxu0 0.0
        %2796 = vmatpush1.msra.mxu0 %v1309
        %2797 = vmatprep.subr.mxu0 0.0
        %2798 = vmatpush1.msra.mxu0 %v1308
        %2799 = vmatprep.subr.mxu0 0.0
        %2800 = vmatpush1.msra.mxu0 %v1307
        %2801 = vmatprep.subr.mxu0 0.0
        %2802 = vmatpush1.msra.mxu0 %v1306
        %2803 = vmatprep.subr.mxu0 0.0
        %2804 = vmatpush1.msra.mxu0 %v1305
        %2805 = vmatprep.subr.mxu0 0.0
        %2806 = vmatpush1.msra.mxu0 %v1304
        %2807 = vmatprep.subr.mxu0 0.0
        %2808 = vmatpush1.msra.mxu0 %v1303
        %2809 = vmatprep.subr.mxu0 0.0
        %2810 = vmatpush1.msra.mxu0 %v1302
        %2811 = vmatprep.subr.mxu0 0.0
        %2812 = vmatpush1.msra.mxu0 %v1301
        %2813 = vmatprep.subr.mxu0 0.0
        %2814 = vmatpush1.msra.mxu0 %v1300
        %2815 = vmatprep.subr.mxu0 0.0
        %2816 = vmatpush2.msra.mxu0 0.0
        %2817 = vmatprep.subr.mxu0 0.0
        %2818 = vmatpush2.msra.mxu0 0.0
        %2819 = vmatprep.subr.mxu0 0.0
        %2820 = vmatpush2.msra.mxu0 0.0
        %2821 = vmatprep.subr.mxu0 0.0
        %2822 = vmatpush2.msra.mxu0 0.0
        %2823 = vmatprep.subr.mxu0 0.0
        %2824 = vmatpush2.msra.mxu0 0.0
        %2825 = vmatprep.subr.mxu0 0.0
        %2826 = vmatpush2.msra.mxu0 0.0
        %2827 = vmatprep.subr.mxu0 0.0
        %2828 = vmatpush2.msra.mxu0 0.0
        %2829 = vmatprep.subr.mxu0 0.0
        %2830 = vmatpush2.msra.mxu0 0.0
        %2831 = vmatprep.subr.mxu0 0.0
        %2832 = vmatpush2.msra.mxu0 0.0
        %2833 = vmatprep.subr.mxu0 0.0
        %2834 = vmatpush2.msra.mxu0 0.0
        %2835 = vmatprep.subr.mxu0 0.0
        %2836 = vmatpush2.msra.mxu0 0.0
        %2837 = vmatprep.subr.mxu0 0.0
        %2838 = vmatpush2.msra.mxu0 0.0
        %2839 = vmatprep.subr.mxu0 0.0
        %2840 = vmatpush2.msra.mxu0 0.0
        %2841 = vmatprep.subr.mxu0 0.0
        %2842 = vmatpush2.msra.mxu0 0.0
        %2843 = vmatprep.subr.mxu0 0.0
        %2844 = vmatpush2.msra.mxu0 0.0
        %2845 = vmatprep.subr.mxu0 0.0
        %2846 = vmatpush2.msra.mxu0 0.0
        %2847 = vmatprep.mubr.f32.mxu0 0.0
        %2848 = vmatmul.mubr.f32.gmra.mxu0 %v2782
        %v2849 = vpop.f32.mrf.mxu0
        %v2850 = vadd.f32 0.0, %v2849
        %v2851 = vpop.f32.mrf.mxu0
        %2852 = vdwg.mxu0
        %v2853 = vrcp.pop %v2850
        %v2854 = vmul.f32 %v2782, %v2853
        %2871 = vrot.lane.b32.xlu0 %v2516, 64
        %v2872 = vpop.permute.xlu0 %2871
        %2873 = vrot.lane.b32.xlu0 %v2517, 64
        %v2874 = vpop.permute.xlu0 %2873
        %2875 = vrot.lane.b32.xlu0 %v2518, 64
        %v2876 = vpop.permute.xlu0 %2875
        %2877 = vrot.lane.b32.xlu0 %v2519, 64
        %v2878 = vpop.permute.xlu0 %2877
        %2879 = vrot.lane.b32.xlu0 %v2520, 64
        %v2880 = vpop.permute.xlu0 %2879
        %2881 = vrot.lane.b32.xlu0 %v2521, 64
        %v2882 = vpop.permute.xlu0 %2881
        %2883 = vrot.lane.b32.xlu0 %v2522, 64
        %v2884 = vpop.permute.xlu0 %2883
        %2885 = vrot.lane.b32.xlu0 %v2523, 64
        %v2886 = vpop.permute.xlu0 %2885
        %2887 = vrot.lane.b32.xlu0 %v2524, 64
        %v2888 = vpop.permute.xlu0 %2887
        %2889 = vrot.lane.b32.xlu0 %v2525, 64
        %v2890 = vpop.permute.xlu0 %2889
        %2891 = vrot.lane.b32.xlu0 %v2526, 64
        %v2892 = vpop.permute.xlu0 %2891
        %2893 = vrot.lane.b32.xlu0 %v2527, 64
        %v2894 = vpop.permute.xlu0 %2893
        %2895 = vrot.lane.b32.xlu0 %v2528, 64
        %v2896 = vpop.permute.xlu0 %2895
        %2897 = vrot.lane.b32.xlu0 %v2529, 64
        %v2898 = vpop.permute.xlu0 %2897
        %2899 = vrot.lane.b32.xlu0 %v2530, 64
        %v2900 = vpop.permute.xlu0 %2899
        %2901 = vrot.lane.b32.xlu0 %v2531, 64
        %v2902 = vpop.permute.xlu0 %2901
        %2919 = vmatprep.subr.mxu0 0.0
        %2920 = vmatpush1.msra.mxu0 %v2902
        %2921 = vmatprep.subr.mxu0 0.0
        %2922 = vmatpush1.msra.mxu0 %v2900
        %2923 = vmatprep.subr.mxu0 0.0
        %2924 = vmatpush1.msra.mxu0 %v2898
        %2925 = vmatprep.subr.mxu0 0.0
        %2926 = vmatpush1.msra.mxu0 %v2896
        %2927 = vmatprep.subr.mxu0 0.0
        %2928 = vmatpush1.msra.mxu0 %v2894
        %2929 = vmatprep.subr.mxu0 0.0
        %2930 = vmatpush1.msra.mxu0 %v2892
        %2931 = vmatprep.subr.mxu0 0.0
        %2932 = vmatpush1.msra.mxu0 %v2890
        %2933 = vmatprep.subr.mxu0 0.0
        %2934 = vmatpush1.msra.mxu0 %v2888
        %2935 = vmatprep.subr.mxu0 0.0
        %2936 = vmatpush1.msra.mxu0 %v2886
        %2937 = vmatprep.subr.mxu0 0.0
        %2938 = vmatpush1.msra.mxu0 %v2884
        %2939 = vmatprep.subr.mxu0 0.0
        %2940 = vmatpush1.msra.mxu0 %v2882
        %2941 = vmatprep.subr.mxu0 0.0
        %2942 = vmatpush1.msra.mxu0 %v2880
        %2943 = vmatprep.subr.mxu0 0.0
        %2944 = vmatpush1.msra.mxu0 %v2878
        %2945 = vmatprep.subr.mxu0 0.0
        %2946 = vmatpush1.msra.mxu0 %v2876
        %2947 = vmatprep.subr.mxu0 0.0
        %2948 = vmatpush1.msra.mxu0 %v2874
        %2949 = vmatprep.subr.mxu0 0.0
        %2950 = vmatpush1.msra.mxu0 %v2872
        %2951 = vmatprep.subr.mxu0 0.0
        %2952 = vmatpush2.msra.mxu0 0.0
        %2953 = vmatprep.subr.mxu0 0.0
        %2954 = vmatpush2.msra.mxu0 0.0
        %2955 = vmatprep.subr.mxu0 0.0
        %2956 = vmatpush2.msra.mxu0 0.0
        %2957 = vmatprep.subr.mxu0 0.0
        %2958 = vmatpush2.msra.mxu0 0.0
        %2959 = vmatprep.subr.mxu0 0.0
        %2960 = vmatpush2.msra.mxu0 0.0
        %2961 = vmatprep.subr.mxu0 0.0
        %2962 = vmatpush2.msra.mxu0 0.0
        %2963 = vmatprep.subr.mxu0 0.0
        %2964 = vmatpush2.msra.mxu0 0.0
        %2965 = vmatprep.subr.mxu0 0.0
        %2966 = vmatpush2.msra.mxu0 0.0
        %2967 = vmatprep.subr.mxu0 0.0
        %2968 = vmatpush2.msra.mxu0 0.0
        %2969 = vmatprep.subr.mxu0 0.0
        %2970 = vmatpush2.msra.mxu0 0.0
        %2971 = vmatprep.subr.mxu0 0.0
        %2972 = vmatpush2.msra.mxu0 0.0
        %2973 = vmatprep.subr.mxu0 0.0
        %2974 = vmatpush2.msra.mxu0 0.0
        %2975 = vmatprep.subr.mxu0 0.0
        %2976 = vmatpush2.msra.mxu0 0.0
        %2977 = vmatprep.subr.mxu0 0.0
        %2978 = vmatpush2.msra.mxu0 0.0
        %2979 = vmatprep.subr.mxu0 0.0
        %2980 = vmatpush2.msra.mxu0 0.0
        %2981 = vmatprep.subr.mxu0 0.0
        %2982 = vmatpush2.msra.mxu0 0.0
        %2983 = vmatprep.mubr.f32.mxu0 0.0
        %2984 = vmatmul.mubr.f32.gmra.mxu0 %v2854
        %v2985 = vpop.f32.mrf.mxu0
        %v2986 = vadd.f32 0.0, %v2985
        %v2987 = vpop.f32.mrf.mxu0
        %2988 = vdwg.mxu0
        %v2990 = vsel %vm676, %v2986, 0
        %2992 = vmatprep.subr.mxu0 0.0
        %2993 = vmatpush1.msra.mxu0 0.0
        %2994 = vmatprep.subr.mxu0 0.0
        %2995 = vmatpush1.msra.mxu0 0.0
        %2996 = vmatprep.subr.mxu0 0.0
        %2997 = vmatpush1.msra.mxu0 0.0
        %2998 = vmatprep.subr.mxu0 0.0
        %2999 = vmatpush1.msra.mxu0 0.0
        %3000 = vmatprep.subr.mxu0 0.0
        %3001 = vmatpush1.msra.mxu0 0.0
        %3002 = vmatprep.subr.mxu0 0.0
        %3003 = vmatpush1.msra.mxu0 0.0
        %3004 = vmatprep.subr.mxu0 0.0
        %3005 = vmatpush1.msra.mxu0 0.0
        %3006 = vmatprep.subr.mxu0 0.0
        %3007 = vmatpush1.msra.mxu0 0.0
        %3008 = vmatprep.subr.mxu0 0.0
        %3009 = vmatpush1.msra.mxu0 0.0
        %3010 = vmatprep.subr.mxu0 0.0
        %3011 = vmatpush1.msra.mxu0 0.0
        %3012 = vmatprep.subr.mxu0 0.0
        %3013 = vmatpush1.msra.mxu0 0.0
        %3014 = vmatprep.subr.mxu0 0.0
        %3015 = vmatpush1.msra.mxu0 0.0
        %3016 = vmatprep.subr.mxu0 0.0
        %3017 = vmatpush1.msra.mxu0 %v1525
        %3018 = vmatprep.subr.mxu0 0.0
        %3019 = vmatpush1.msra.mxu0 %v1524
        %3020 = vmatprep.subr.mxu0 0.0
        %3021 = vmatpush1.msra.mxu0 %v1523
        %3022 = vmatprep.subr.mxu0 0.0
        %3023 = vmatpush1.msra.mxu0 %v1522
        %3024 = vmatprep.subr.mxu0 0.0
        %3025 = vmatpush2.msra.mxu0 0.0
        %3026 = vmatprep.subr.mxu0 0.0
        %3027 = vmatpush2.msra.mxu0 0.0
        %3028 = vmatprep.subr.mxu0 0.0
        %3029 = vmatpush2.msra.mxu0 0.0
        %3030 = vmatprep.subr.mxu0 0.0
        %3031 = vmatpush2.msra.mxu0 0.0
        %3032 = vmatprep.subr.mxu0 0.0
        %3033 = vmatpush2.msra.mxu0 0.0
        %3034 = vmatprep.subr.mxu0 0.0
        %3035 = vmatpush2.msra.mxu0 0.0
        %3036 = vmatprep.subr.mxu0 0.0
        %3037 = vmatpush2.msra.mxu0 0.0
        %3038 = vmatprep.subr.mxu0 0.0
        %3039 = vmatpush2.msra.mxu0 0.0
        %3040 = vmatprep.subr.mxu0 0.0
        %3041 = vmatpush2.msra.mxu0 0.0
        %3042 = vmatprep.subr.mxu0 0.0
        %3043 = vmatpush2.msra.mxu0 0.0
        %3044 = vmatprep.subr.mxu0 0.0
        %3045 = vmatpush2.msra.mxu0 0.0
        %3046 = vmatprep.subr.mxu0 0.0
        %3047 = vmatpush2.msra.mxu0 0.0
        %3048 = vmatprep.subr.mxu0 0.0
        %3049 = vmatpush2.msra.mxu0 0.0
        %3050 = vmatprep.subr.mxu0 0.0
        %3051 = vmatpush2.msra.mxu0 0.0
        %3052 = vmatprep.subr.mxu0 0.0
        %3053 = vmatpush2.msra.mxu0 0.0
        %3054 = vmatprep.subr.mxu0 0.0
        %3055 = vmatpush2.msra.mxu0 0.0
        %3056 = vmatprep.mubr.f32.mxu0 0.0
        %3057 = vmatmul.mubr.f32.gmra.mxu0 %v2990
        %v3058 = vpop.f32.mrf.mxu0
        %v3059 = vadd.f32 0.0, %v3058
        %v3060 = vpop.f32.mrf.mxu0
        %3061 = vdwg.mxu0
        %v3062 = vadd.f32 %v2534, %v3059
        %v3063 = vadd.f32 %v3062, %v1605
        %s3064 = sadd.s32 %s668, 3
        %s3065 = sld [smem:[#allocation3 + %s3064]]
        %s3066 = scalar_lea.vmem %s665, 96
        %v3067 = vld [vmem:[%s3066] sm:$0xff]
        %v3068 = vld [vmem:[%s3066 + $0x8] sm:$0xff]
        %v3069 = vld [vmem:[%s3066 + $0x10] sm:$0xff]
        %v3070 = vld [vmem:[%s3066 + $0x18] sm:$0xff]
        %v3071 = vsel %vm676, %v3067, 0.0
        %3072 = vadd.xlane.f32.xlu0 %v3071
        %v3073 = vpop.xlane.xlu0 %3072
        %v3074 = vsel %vm676, %v3068, 0.0
        %3075 = vadd.xlane.f32.xlu0 %v3074
        %v3076 = vpop.xlane.xlu0 %3075
        %v3077 = vsel %vm676, %v3069, 0.0
        %3078 = vadd.xlane.f32.xlu0 %v3077
        %v3079 = vpop.xlane.xlu0 %3078
        %v3080 = vsel %vm676, %v3070, 0.0
        %3081 = vadd.xlane.f32.xlu0 %v3080
        %v3082 = vpop.xlane.xlu0 %3081
        %v3083 = vmul.f32 %v3073, %v689
        %v3084 = vmul.f32 %v3076, %v689
        %v3085 = vmul.f32 %v3079, %v689
        %v3086 = vmul.f32 %v3082, %v689
        %v3087 = vsub.f32 %v3067, %v3083
        %v3088 = vsub.f32 %v3068, %v3084
        %v3089 = vsub.f32 %v3069, %v3085
        %v3090 = vsub.f32 %v3070, %v3086
        %v3091 = vmul.f32 %v3087, %v3087
        %v3092 = vmul.f32 %v3088, %v3088
        %v3093 = vmul.f32 %v3089, %v3089
        %v3094 = vmul.f32 %v3090, %v3090
        %v3095 = vsel %vm676, %v3091, 0.0
        %3096 = vadd.xlane.f32.xlu0 %v3095
        %v3097 = vpop.xlane.xlu0 %3096
        %v3098 = vsel %vm676, %v3092, 0.0
        %3099 = vadd.xlane.f32.xlu0 %v3098
        %v3100 = vpop.xlane.xlu0 %3099
        %v3101 = vsel %vm676, %v3093, 0.0
        %3102 = vadd.xlane.f32.xlu0 %v3101
        %v3103 = vpop.xlane.xlu0 %3102
        %v3104 = vsel %vm676, %v3094, 0.0
        %3105 = vadd.xlane.f32.xlu0 %v3104
        %v3106 = vpop.xlane.xlu0 %3105
        %v3107 = vmul.f32 %v3097, %v689
        %v3108 = vmul.f32 %v3100, %v689
        %v3109 = vmul.f32 %v3103, %v689
        %v3110 = vmul.f32 %v3106, %v689
        %v3111 = vadd.f32 %v3107, 1e-05
        %v3112 = vadd.f32 %v3108, 1e-05
        %v3113 = vadd.f32 %v3109, 1e-05
        %v3114 = vadd.f32 %v3110, 1e-05
        %v3115 = vrsqrt.pop %v3111
        %v3116 = vrsqrt.pop %v3112
        %v3117 = vrsqrt.pop %v3113
        %v3118 = vrsqrt.pop %v3114
        %v3119 = vmul.f32 %v3087, %v3115
        %v3120 = vmul.f32 %v3088, %v3116
        %v3121 = vmul.f32 %v3089, %v3117
        %v3122 = vmul.f32 %v3090, %v3118
        %v3123 = vmul.f32 %v3119, %v734
        %v3124 = vmul.f32 %v3120, %v734
        %v3125 = vmul.f32 %v3121, %v734
        %v3126 = vmul.f32 %v3122, %v734
        %v3127 = vadd.f32 %v3123, %v744
        %v3128 = vadd.f32 %v3124, %v744
        %v3129 = vadd.f32 %v3125, %v744
        %v3130 = vadd.f32 %v3126, %v744
        %v3132 = vsel %vm676, %v3127, 0
        %v3135 = vsel %vm676, %v3128, 0
        %v3138 = vsel %vm676, %v3129, 0
        %v3141 = vsel %vm676, %v3130, 0
        %3143 = vmatprep.subr.mxu0 0.0
        %3144 = vmatpush1.msra.mxu0 0.0
        %3145 = vmatprep.subr.mxu0 0.0
        %3146 = vmatpush1.msra.mxu0 0.0
        %3147 = vmatprep.subr.mxu0 0.0
        %3148 = vmatpush1.msra.mxu0 0.0
        %3149 = vmatprep.subr.mxu0 0.0
        %3150 = vmatpush1.msra.mxu0 0.0
        %3151 = vmatprep.subr.mxu0 0.0
        %3152 = vmatpush1.msra.mxu0 0.0
        %3153 = vmatprep.subr.mxu0 0.0
        %3154 = vmatpush1.msra.mxu0 0.0
        %3155 = vmatprep.subr.mxu0 0.0
        %3156 = vmatpush1.msra.mxu0 0.0
        %3157 = vmatprep.subr.mxu0 0.0
        %3158 = vmatpush1.msra.mxu0 0.0
        %3159 = vmatprep.subr.mxu0 0.0
        %3160 = vmatpush1.msra.mxu0 0.0
        %3161 = vmatprep.subr.mxu0 0.0
        %3162 = vmatpush1.msra.mxu0 0.0
        %3163 = vmatprep.subr.mxu0 0.0
        %3164 = vmatpush1.msra.mxu0 0.0
        %3165 = vmatprep.subr.mxu0 0.0
        %3166 = vmatpush1.msra.mxu0 0.0
        %3167 = vmatprep.subr.mxu0 0.0
        %3168 = vmatpush1.msra.mxu0 %v753
        %3169 = vmatprep.subr.mxu0 0.0
        %3170 = vmatpush1.msra.mxu0 %v752
        %3171 = vmatprep.subr.mxu0 0.0
        %3172 = vmatpush1.msra.mxu0 %v751
        %3173 = vmatprep.subr.mxu0 0.0
        %3174 = vmatpush1.msra.mxu0 %v750
        %3175 = vmatprep.subr.mxu0 0.0
        %3176 = vmatpush2.msra.mxu0 0.0
        %3177 = vmatprep.subr.mxu0 0.0
        %3178 = vmatpush2.msra.mxu0 0.0
        %3179 = vmatprep.subr.mxu0 0.0
        %3180 = vmatpush2.msra.mxu0 0.0
        %3181 = vmatprep.subr.mxu0 0.0
        %3182 = vmatpush2.msra.mxu0 0.0
        %3183 = vmatprep.subr.mxu0 0.0
        %3184 = vmatpush2.msra.mxu0 0.0
        %3185 = vmatprep.subr.mxu0 0.0
        %3186 = vmatpush2.msra.mxu0 0.0
        %3187 = vmatprep.subr.mxu0 0.0
        %3188 = vmatpush2.msra.mxu0 0.0
        %3189 = vmatprep.subr.mxu0 0.0
        %3190 = vmatpush2.msra.mxu0 0.0
        %3191 = vmatprep.subr.mxu0 0.0
        %3192 = vmatpush2.msra.mxu0 0.0
        %3193 = vmatprep.subr.mxu0 0.0
        %3194 = vmatpush2.msra.mxu0 0.0
        %3195 = vmatprep.subr.mxu0 0.0
        %3196 = vmatpush2.msra.mxu0 0.0
        %3197 = vmatprep.subr.mxu0 0.0
        %3198 = vmatpush2.msra.mxu0 0.0
        %3199 = vmatprep.subr.mxu0 0.0
        %3200 = vmatpush2.msra.mxu0 0.0
        %3201 = vmatprep.subr.mxu0 0.0
        %3202 = vmatpush2.msra.mxu0 0.0
        %3203 = vmatprep.subr.mxu0 0.0
        %3204 = vmatpush2.msra.mxu0 0.0
        %3205 = vmatprep.subr.mxu0 0.0
        %3206 = vmatpush2.msra.mxu0 0.0
        %3207 = vmatprep.mubr.f32.mxu0 0.0
        %3208 = vmatmul.mubr.f32.gmra.mxu0 %v3132
        %v3209 = vpop.f32.mrf.mxu0
        %v3210 = vadd.f32 %v759, %v3209
        %v3211 = vpop.f32.mrf.mxu0
        %3212 = vmatprep.mubr.f32.mxu0 0.0
        %3213 = vmatmul.mubr.f32.gmra.mxu0 %v3135
        %v3214 = vpop.f32.mrf.mxu0
        %v3215 = vadd.f32 %v759, %v3214
        %v3216 = vpop.f32.mrf.mxu0
        %3217 = vmatprep.mubr.f32.mxu0 0.0
        %3218 = vmatmul.mubr.f32.gmra.mxu0 %v3138
        %v3219 = vpop.f32.mrf.mxu0
        %v3220 = vadd.f32 %v759, %v3219
        %v3221 = vpop.f32.mrf.mxu0
        %3222 = vmatprep.mubr.f32.mxu0 0.0
        %3223 = vmatmul.mubr.f32.gmra.mxu0 %v3141
        %v3224 = vpop.f32.mrf.mxu0
        %v3225 = vadd.f32 %v759, %v3224
        %v3226 = vpop.f32.mrf.mxu0
        %3227 = vdwg.mxu0
        %v3228 = vmul.f32 %v3210, %v891
        %v3229 = vmul.f32 %v3215, %v893
        %v3230 = vmul.f32 %v3220, %v895
        %v3231 = vmul.f32 %v3225, %v897
        %v3232 = vmul.f32 %v3210, %v899
        %v3233 = vmul.f32 %v3215, %v901
        %v3234 = vmul.f32 %v3220, %v903
        %v3235 = vmul.f32 %v3225, %v905
        %v3236 = vmul.f32 %v3210, %v907
        %v3237 = vmul.f32 %v3215, %v909
        %v3238 = vmul.f32 %v3220, %v911
        %v3239 = vmul.f32 %v3225, %v913
        %v3240 = vmul.f32 %v3210, %v915
        %v3241 = vmul.f32 %v3215, %v917
        %v3242 = vmul.f32 %v3220, %v919
        %v3243 = vmul.f32 %v3225, %v921
        %v3244 = vmul.f32 %v3210, %v987
        %v3245 = vmul.f32 %v3215, %v989
        %v3246 = vmul.f32 %v3220, %v991
        %v3247 = vmul.f32 %v3225, %v993
        %v3248 = vmul.f32 %v3210, %v995
        %v3249 = vmul.f32 %v3215, %v997
        %v3250 = vmul.f32 %v3220, %v999
        %v3251 = vmul.f32 %v3225, %v1001
        %v3252 = vmul.f32 %v3210, %v1003
        %v3253 = vmul.f32 %v3215, %v1005
        %v3254 = vmul.f32 %v3220, %v1007
        %v3255 = vmul.f32 %v3225, %v1009
        %v3256 = vmul.f32 %v3210, %v1011
        %v3257 = vmul.f32 %v3215, %v1013
        %v3258 = vmul.f32 %v3220, %v1015
        %v3259 = vmul.f32 %v3225, %v1017
        %s3260 = sadd.s32 %s3065, 96
        %s3261 = scalar_lea.vmem %s665, %s3260
        %v3262 = vld [vmem:[%s3261] sm:$0xff]
        %v3263 = vsel %vm676, %v3262, 0.0
        %3264 = vadd.xlane.f32.xlu0 %v3263
        %v3265 = vpop.xlane.xlu0 %3264
        %v3266 = vmul.f32 %v3265, %v689
        %v3267 = vsub.f32 %v3262, %v3266
        %v3268 = vmul.f32 %v3267, %v3267
        %v3269 = vsel %vm676, %v3268, 0.0
        %3270 = vadd.xlane.f32.xlu0 %v3269
        %v3271 = vpop.xlane.xlu0 %3270
        %v3272 = vmul.f32 %v3271, %v689
        %v3273 = vadd.f32 %v3272, 1e-05
        %v3274 = vrsqrt.pop %v3273
        %v3275 = vmul.f32 %v3267, %v3274
        %v3276 = vmul.f32 %v3275, %v734
        %v3277 = vadd.f32 %v3276, %v744
        %v3279 = vsel %vm676, %v3277, 0
        %3281 = vmatprep.subr.mxu0 0.0
        %3282 = vmatpush1.msra.mxu0 0.0
        %3283 = vmatprep.subr.mxu0 0.0
        %3284 = vmatpush1.msra.mxu0 0.0
        %3285 = vmatprep.subr.mxu0 0.0
        %3286 = vmatpush1.msra.mxu0 0.0
        %3287 = vmatprep.subr.mxu0 0.0
        %3288 = vmatpush1.msra.mxu0 0.0
        %3289 = vmatprep.subr.mxu0 0.0
        %3290 = vmatpush1.msra.mxu0 0.0
        %3291 = vmatprep.subr.mxu0 0.0
        %3292 = vmatpush1.msra.mxu0 0.0
        %3293 = vmatprep.subr.mxu0 0.0
        %3294 = vmatpush1.msra.mxu0 0.0
        %3295 = vmatprep.subr.mxu0 0.0
        %3296 = vmatpush1.msra.mxu0 0.0
        %3297 = vmatprep.subr.mxu0 0.0
        %3298 = vmatpush1.msra.mxu0 0.0
        %3299 = vmatprep.subr.mxu0 0.0
        %3300 = vmatpush1.msra.mxu0 0.0
        %3301 = vmatprep.subr.mxu0 0.0
        %3302 = vmatpush1.msra.mxu0 0.0
        %3303 = vmatprep.subr.mxu0 0.0
        %3304 = vmatpush1.msra.mxu0 0.0
        %3305 = vmatprep.subr.mxu0 0.0
        %3306 = vmatpush1.msra.mxu0 %v753
        %3307 = vmatprep.subr.mxu0 0.0
        %3308 = vmatpush1.msra.mxu0 %v752
        %3309 = vmatprep.subr.mxu0 0.0
        %3310 = vmatpush1.msra.mxu0 %v751
        %3311 = vmatprep.subr.mxu0 0.0
        %3312 = vmatpush1.msra.mxu0 %v750
        %3313 = vmatprep.subr.mxu0 0.0
        %3314 = vmatpush2.msra.mxu0 0.0
        %3315 = vmatprep.subr.mxu0 0.0
        %3316 = vmatpush2.msra.mxu0 0.0
        %3317 = vmatprep.subr.mxu0 0.0
        %3318 = vmatpush2.msra.mxu0 0.0
        %3319 = vmatprep.subr.mxu0 0.0
        %3320 = vmatpush2.msra.mxu0 0.0
        %3321 = vmatprep.subr.mxu0 0.0
        %3322 = vmatpush2.msra.mxu0 0.0
        %3323 = vmatprep.subr.mxu0 0.0
        %3324 = vmatpush2.msra.mxu0 0.0
        %3325 = vmatprep.subr.mxu0 0.0
        %3326 = vmatpush2.msra.mxu0 0.0
        %3327 = vmatprep.subr.mxu0 0.0
        %3328 = vmatpush2.msra.mxu0 0.0
        %3329 = vmatprep.subr.mxu0 0.0
        %3330 = vmatpush2.msra.mxu0 0.0
        %3331 = vmatprep.subr.mxu0 0.0
        %3332 = vmatpush2.msra.mxu0 0.0
        %3333 = vmatprep.subr.mxu0 0.0
        %3334 = vmatpush2.msra.mxu0 0.0
        %3335 = vmatprep.subr.mxu0 0.0
        %3336 = vmatpush2.msra.mxu0 0.0
        %3337 = vmatprep.subr.mxu0 0.0
        %3338 = vmatpush2.msra.mxu0 0.0
        %3339 = vmatprep.subr.mxu0 0.0
        %3340 = vmatpush2.msra.mxu0 0.0
        %3341 = vmatprep.subr.mxu0 0.0
        %3342 = vmatpush2.msra.mxu0 0.0
        %3343 = vmatprep.subr.mxu0 0.0
        %3344 = vmatpush2.msra.mxu0 0.0
        %3345 = vmatprep.mubr.f32.mxu0 0.0
        %3346 = vmatmul.mubr.f32.gmra.mxu0 %v3279
        %v3347 = vpop.f32.mrf.mxu0
        %v3348 = vadd.f32 %v759, %v3347
        %v3349 = vpop.f32.mrf.mxu0
        %3350 = vdwg.mxu0
        %s3351 = scalar_lea.vmem %s19, %s3065
        %v3352 = vld [vmem:[%s3351] sm:$0xff]
        %3369 = vrot.lane.b32.xlu0 %v3228, 96
        %v3370 = vpop.permute.xlu0 %3369
        %3371 = vrot.lane.b32.xlu0 %v3229, 96
        %v3372 = vpop.permute.xlu0 %3371
        %3373 = vrot.lane.b32.xlu0 %v3230, 96
        %v3374 = vpop.permute.xlu0 %3373
        %3375 = vrot.lane.b32.xlu0 %v3231, 96
        %v3376 = vpop.permute.xlu0 %3375
        %3377 = vrot.lane.b32.xlu0 %v3232, 96
        %v3378 = vpop.permute.xlu0 %3377
        %3379 = vrot.lane.b32.xlu0 %v3233, 96
        %v3380 = vpop.permute.xlu0 %3379
        %3381 = vrot.lane.b32.xlu0 %v3234, 96
        %v3382 = vpop.permute.xlu0 %3381
        %3383 = vrot.lane.b32.xlu0 %v3235, 96
        %v3384 = vpop.permute.xlu0 %3383
        %3385 = vrot.lane.b32.xlu0 %v3236, 96
        %v3386 = vpop.permute.xlu0 %3385
        %3387 = vrot.lane.b32.xlu0 %v3237, 96
        %v3388 = vpop.permute.xlu0 %3387
        %3389 = vrot.lane.b32.xlu0 %v3238, 96
        %v3390 = vpop.permute.xlu0 %3389
        %3391 = vrot.lane.b32.xlu0 %v3239, 96
        %v3392 = vpop.permute.xlu0 %3391
        %3393 = vrot.lane.b32.xlu0 %v3240, 96
        %v3394 = vpop.permute.xlu0 %3393
        %3395 = vrot.lane.b32.xlu0 %v3241, 96
        %v3396 = vpop.permute.xlu0 %3395
        %3397 = vrot.lane.b32.xlu0 %v3242, 96
        %v3398 = vpop.permute.xlu0 %3397
        %3399 = vrot.lane.b32.xlu0 %v3243, 96
        %v3400 = vpop.permute.xlu0 %3399
        %v3402 = vsel %vm676, %v3348, 0
        %v3404 = vsel %vm676, %v3370, 0
        %v3406 = vsel %vm676, %v3372, 0
        %v3408 = vsel %vm676, %v3374, 0
        %v3410 = vsel %vm676, %v3376, 0
        %v3412 = vsel %vm676, %v3378, 0
        %v3414 = vsel %vm676, %v3380, 0
        %v3416 = vsel %vm676, %v3382, 0
        %v3418 = vsel %vm676, %v3384, 0
        %v3420 = vsel %vm676, %v3386, 0
        %v3422 = vsel %vm676, %v3388, 0
        %v3424 = vsel %vm676, %v3390, 0
        %v3426 = vsel %vm676, %v3392, 0
        %v3428 = vsel %vm676, %v3394, 0
        %v3430 = vsel %vm676, %v3396, 0
        %v3432 = vsel %vm676, %v3398, 0
        %v3434 = vsel %vm676, %v3400, 0
        %3436 = vmatprep.subr.mxu0 0.0
        %3437 = vmatpush1.xpose.msra.mxu0 %v3434
        %3438 = vmatprep.subr.mxu0 0.0
        %3439 = vmatpush1.xpose.msra.mxu0 %v3432
        %3440 = vmatprep.subr.mxu0 0.0
        %3441 = vmatpush1.xpose.msra.mxu0 %v3430
        %3442 = vmatprep.subr.mxu0 0.0
        %3443 = vmatpush1.xpose.msra.mxu0 %v3428
        %3444 = vmatprep.subr.mxu0 0.0
        %3445 = vmatpush1.xpose.msra.mxu0 %v3426
        %3446 = vmatprep.subr.mxu0 0.0
        %3447 = vmatpush1.xpose.msra.mxu0 %v3424
        %3448 = vmatprep.subr.mxu0 0.0
        %3449 = vmatpush1.xpose.msra.mxu0 %v3422
        %3450 = vmatprep.subr.mxu0 0.0
        %3451 = vmatpush1.xpose.msra.mxu0 %v3420
        %3452 = vmatprep.subr.mxu0 0.0
        %3453 = vmatpush1.xpose.msra.mxu0 %v3418
        %3454 = vmatprep.subr.mxu0 0.0
        %3455 = vmatpush1.xpose.msra.mxu0 %v3416
        %3456 = vmatprep.subr.mxu0 0.0
        %3457 = vmatpush1.xpose.msra.mxu0 %v3414
        %3458 = vmatprep.subr.mxu0 0.0
        %3459 = vmatpush1.xpose.msra.mxu0 %v3412
        %3460 = vmatprep.subr.mxu0 0.0
        %3461 = vmatpush1.xpose.msra.mxu0 %v3410
        %3462 = vmatprep.subr.mxu0 0.0
        %3463 = vmatpush1.xpose.msra.mxu0 %v3408
        %3464 = vmatprep.subr.mxu0 0.0
        %3465 = vmatpush1.xpose.msra.mxu0 %v3406
        %3466 = vmatprep.subr.mxu0 0.0
        %3467 = vmatpush1.xpose.msra.mxu0 %v3404
        %3468 = vmatprep.subr.mxu0 0.0
        %3469 = vmatpush2.xpose.msra.mxu0 0.0
        %3470 = vmatprep.subr.mxu0 0.0
        %3471 = vmatpush2.xpose.msra.mxu0 0.0
        %3472 = vmatprep.subr.mxu0 0.0
        %3473 = vmatpush2.xpose.msra.mxu0 0.0
        %3474 = vmatprep.subr.mxu0 0.0
        %3475 = vmatpush2.xpose.msra.mxu0 0.0
        %3476 = vmatprep.subr.mxu0 0.0
        %3477 = vmatpush2.xpose.msra.mxu0 0.0
        %3478 = vmatprep.subr.mxu0 0.0
        %3479 = vmatpush2.xpose.msra.mxu0 0.0
        %3480 = vmatprep.subr.mxu0 0.0
        %3481 = vmatpush2.xpose.msra.mxu0 0.0
        %3482 = vmatprep.subr.mxu0 0.0
        %3483 = vmatpush2.xpose.msra.mxu0 0.0
        %3484 = vmatprep.subr.mxu0 0.0
        %3485 = vmatpush2.xpose.msra.mxu0 0.0
        %3486 = vmatprep.subr.mxu0 0.0
        %3487 = vmatpush2.xpose.msra.mxu0 0.0
        %3488 = vmatprep.subr.mxu0 0.0
        %3489 = vmatpush2.xpose.msra.mxu0 0.0
        %3490 = vmatprep.subr.mxu0 0.0
        %3491 = vmatpush2.xpose.msra.mxu0 0.0
        %3492 = vmatprep.subr.mxu0 0.0
        %3493 = vmatpush2.xpose.msra.mxu0 0.0
        %3494 = vmatprep.subr.mxu0 0.0
        %3495 = vmatpush2.xpose.msra.mxu0 0.0
        %3496 = vmatprep.subr.mxu0 0.0
        %3497 = vmatpush2.xpose.msra.mxu0 0.0
        %3498 = vmatprep.subr.mxu0 0.0
        %3499 = vmatpush2.xpose.msra.mxu0 0.0
        %3500 = vmatprep.mubr.f32.mxu0 0.0
        %3501 = vmatmul.mubr.f32.gmra.mxu0 %v3402
        %v3502 = vpop.f32.mrf.mxu0
        %v3503 = vadd.f32 %v3352, %v3502
        %v3504 = vpop.f32.mrf.mxu0
        %3505 = vdwg.mxu0
        %3506 = vmax.xlane.f32.xlu0 %v3503
        %v3507 = vpop.xlane.xlu0 %3506
        %v3508 = vsub.f32 %v3503, %v3507
        %v3509 = vmul.f32 %v3508, 1.442695
        %v3510 = vpow.pop %v3509
        %3511 = vmatprep.subr.mxu0 0.0
        %3512 = vmatpush1.msra.mxu0 %v1315
        %3513 = vmatprep.subr.mxu0 0.0
        %3514 = vmatpush1.msra.mxu0 %v1314
        %3515 = vmatprep.subr.mxu0 0.0
        %3516 = vmatpush1.msra.mxu0 %v1313
        %3517 = vmatprep.subr.mxu0 0.0
        %3518 = vmatpush1.msra.mxu0 %v1312
        %3519 = vmatprep.subr.mxu0 0.0
        %3520 = vmatpush1.msra.mxu0 %v1311
        %3521 = vmatprep.subr.mxu0 0.0
        %3522 = vmatpush1.msra.mxu0 %v1310
        %3523 = vmatprep.subr.mxu0 0.0
        %3524 = vmatpush1.msra.mxu0 %v1309
        %3525 = vmatprep.subr.mxu0 0.0
        %3526 = vmatpush1.msra.mxu0 %v1308
        %3527 = vmatprep.subr.mxu0 0.0
        %3528 = vmatpush1.msra.mxu0 %v1307
        %3529 = vmatprep.subr.mxu0 0.0
        %3530 = vmatpush1.msra.mxu0 %v1306
        %3531 = vmatprep.subr.mxu0 0.0
        %3532 = vmatpush1.msra.mxu0 %v1305
        %3533 = vmatprep.subr.mxu0 0.0
        %3534 = vmatpush1.msra.mxu0 %v1304
        %3535 = vmatprep.subr.mxu0 0.0
        %3536 = vmatpush1.msra.mxu0 %v1303
        %3537 = vmatprep.subr.mxu0 0.0
        %3538 = vmatpush1.msra.mxu0 %v1302
        %3539 = vmatprep.subr.mxu0 0.0
        %3540 = vmatpush1.msra.mxu0 %v1301
        %3541 = vmatprep.subr.mxu0 0.0
        %3542 = vmatpush1.msra.mxu0 %v1300
        %3543 = vmatprep.subr.mxu0 0.0
        %3544 = vmatpush2.msra.mxu0 0.0
        %3545 = vmatprep.subr.mxu0 0.0
        %3546 = vmatpush2.msra.mxu0 0.0
        %3547 = vmatprep.subr.mxu0 0.0
        %3548 = vmatpush2.msra.mxu0 0.0
        %3549 = vmatprep.subr.mxu0 0.0
        %3550 = vmatpush2.msra.mxu0 0.0
        %3551 = vmatprep.subr.mxu0 0.0
        %3552 = vmatpush2.msra.mxu0 0.0
        %3553 = vmatprep.subr.mxu0 0.0
        %3554 = vmatpush2.msra.mxu0 0.0
        %3555 = vmatprep.subr.mxu0 0.0
        %3556 = vmatpush2.msra.mxu0 0.0
        %3557 = vmatprep.subr.mxu0 0.0
        %3558 = vmatpush2.msra.mxu0 0.0
        %3559 = vmatprep.subr.mxu0 0.0
        %3560 = vmatpush2.msra.mxu0 0.0
        %3561 = vmatprep.subr.mxu0 0.0
        %3562 = vmatpush2.msra.mxu0 0.0
        %3563 = vmatprep.subr.mxu0 0.0
        %3564 = vmatpush2.msra.mxu0 0.0
        %3565 = vmatprep.subr.mxu0 0.0
        %3566 = vmatpush2.msra.mxu0 0.0
        %3567 = vmatprep.subr.mxu0 0.0
        %3568 = vmatpush2.msra.mxu0 0.0
        %3569 = vmatprep.subr.mxu0 0.0
        %3570 = vmatpush2.msra.mxu0 0.0
        %3571 = vmatprep.subr.mxu0 0.0
        %3572 = vmatpush2.msra.mxu0 0.0
        %3573 = vmatprep.subr.mxu0 0.0
        %3574 = vmatpush2.msra.mxu0 0.0
        %3575 = vmatprep.mubr.f32.mxu0 0.0
        %3576 = vmatmul.mubr.f32.gmra.mxu0 %v3510
        %v3577 = vpop.f32.mrf.mxu0
        %v3578 = vadd.f32 0.0, %v3577
        %v3579 = vpop.f32.mrf.mxu0
        %3580 = vdwg.mxu0
        %v3581 = vrcp.pop %v3578
        %v3582 = vmul.f32 %v3510, %v3581
        %3599 = vrot.lane.b32.xlu0 %v3244, 64
        %v3600 = vpop.permute.xlu0 %3599
        %3601 = vrot.lane.b32.xlu0 %v3245, 64
        %v3602 = vpop.permute.xlu0 %3601
        %3603 = vrot.lane.b32.xlu0 %v3246, 64
        %v3604 = vpop.permute.xlu0 %3603
        %3605 = vrot.lane.b32.xlu0 %v3247, 64
        %v3606 = vpop.permute.xlu0 %3605
        %3607 = vrot.lane.b32.xlu0 %v3248, 64
        %v3608 = vpop.permute.xlu0 %3607
        %3609 = vrot.lane.b32.xlu0 %v3249, 64
        %v3610 = vpop.permute.xlu0 %3609
        %3611 = vrot.lane.b32.xlu0 %v3250, 64
        %v3612 = vpop.permute.xlu0 %3611
        %3613 = vrot.lane.b32.xlu0 %v3251, 64
        %v3614 = vpop.permute.xlu0 %3613
        %3615 = vrot.lane.b32.xlu0 %v3252, 64
        %v3616 = vpop.permute.xlu0 %3615
        %3617 = vrot.lane.b32.xlu0 %v3253, 64
        %v3618 = vpop.permute.xlu0 %3617
        %3619 = vrot.lane.b32.xlu0 %v3254, 64
        %v3620 = vpop.permute.xlu0 %3619
        %3621 = vrot.lane.b32.xlu0 %v3255, 64
        %v3622 = vpop.permute.xlu0 %3621
        %3623 = vrot.lane.b32.xlu0 %v3256, 64
        %v3624 = vpop.permute.xlu0 %3623
        %3625 = vrot.lane.b32.xlu0 %v3257, 64
        %v3626 = vpop.permute.xlu0 %3625
        %3627 = vrot.lane.b32.xlu0 %v3258, 64
        %v3628 = vpop.permute.xlu0 %3627
        %3629 = vrot.lane.b32.xlu0 %v3259, 64
        %v3630 = vpop.permute.xlu0 %3629
        %3647 = vmatprep.subr.mxu0 0.0
        %3648 = vmatpush1.msra.mxu0 %v3630
        %3649 = vmatprep.subr.mxu0 0.0
        %3650 = vmatpush1.msra.mxu0 %v3628
        %3651 = vmatprep.subr.mxu0 0.0
        %3652 = vmatpush1.msra.mxu0 %v3626
        %3653 = vmatprep.subr.mxu0 0.0
        %3654 = vmatpush1.msra.mxu0 %v3624
        %3655 = vmatprep.subr.mxu0 0.0
        %3656 = vmatpush1.msra.mxu0 %v3622
        %3657 = vmatprep.subr.mxu0 0.0
        %3658 = vmatpush1.msra.mxu0 %v3620
        %3659 = vmatprep.subr.mxu0 0.0
        %3660 = vmatpush1.msra.mxu0 %v3618
        %3661 = vmatprep.subr.mxu0 0.0
        %3662 = vmatpush1.msra.mxu0 %v3616
        %3663 = vmatprep.subr.mxu0 0.0
        %3664 = vmatpush1.msra.mxu0 %v3614
        %3665 = vmatprep.subr.mxu0 0.0
        %3666 = vmatpush1.msra.mxu0 %v3612
        %3667 = vmatprep.subr.mxu0 0.0
        %3668 = vmatpush1.msra.mxu0 %v3610
        %3669 = vmatprep.subr.mxu0 0.0
        %3670 = vmatpush1.msra.mxu0 %v3608
        %3671 = vmatprep.subr.mxu0 0.0
        %3672 = vmatpush1.msra.mxu0 %v3606
        %3673 = vmatprep.subr.mxu0 0.0
        %3674 = vmatpush1.msra.mxu0 %v3604
        %3675 = vmatprep.subr.mxu0 0.0
        %3676 = vmatpush1.msra.mxu0 %v3602
        %3677 = vmatprep.subr.mxu0 0.0
        %3678 = vmatpush1.msra.mxu0 %v3600
        %3679 = vmatprep.subr.mxu0 0.0
        %3680 = vmatpush2.msra.mxu0 0.0
        %3681 = vmatprep.subr.mxu0 0.0
        %3682 = vmatpush2.msra.mxu0 0.0
        %3683 = vmatprep.subr.mxu0 0.0
        %3684 = vmatpush2.msra.mxu0 0.0
        %3685 = vmatprep.subr.mxu0 0.0
        %3686 = vmatpush2.msra.mxu0 0.0
        %3687 = vmatprep.subr.mxu0 0.0
        %3688 = vmatpush2.msra.mxu0 0.0
        %3689 = vmatprep.subr.mxu0 0.0
        %3690 = vmatpush2.msra.mxu0 0.0
        %3691 = vmatprep.subr.mxu0 0.0
        %3692 = vmatpush2.msra.mxu0 0.0
        %3693 = vmatprep.subr.mxu0 0.0
        %3694 = vmatpush2.msra.mxu0 0.0
        %3695 = vmatprep.subr.mxu0 0.0
        %3696 = vmatpush2.msra.mxu0 0.0
        %3697 = vmatprep.subr.mxu0 0.0
        %3698 = vmatpush2.msra.mxu0 0.0
        %3699 = vmatprep.subr.mxu0 0.0
        %3700 = vmatpush2.msra.mxu0 0.0
        %3701 = vmatprep.subr.mxu0 0.0
        %3702 = vmatpush2.msra.mxu0 0.0
        %3703 = vmatprep.subr.mxu0 0.0
        %3704 = vmatpush2.msra.mxu0 0.0
        %3705 = vmatprep.subr.mxu0 0.0
        %3706 = vmatpush2.msra.mxu0 0.0
        %3707 = vmatprep.subr.mxu0 0.0
        %3708 = vmatpush2.msra.mxu0 0.0
        %3709 = vmatprep.subr.mxu0 0.0
        %3710 = vmatpush2.msra.mxu0 0.0
        %3711 = vmatprep.mubr.f32.mxu0 0.0
        %3712 = vmatmul.mubr.f32.gmra.mxu0 %v3582
        %v3713 = vpop.f32.mrf.mxu0
        %v3714 = vadd.f32 0.0, %v3713
        %v3715 = vpop.f32.mrf.mxu0
        %3716 = vdwg.mxu0
        %v3718 = vsel %vm676, %v3714, 0
        %3720 = vmatprep.subr.mxu0 0.0
        %3721 = vmatpush1.msra.mxu0 0.0
        %3722 = vmatprep.subr.mxu0 0.0
        %3723 = vmatpush1.msra.mxu0 0.0
        %3724 = vmatprep.subr.mxu0 0.0
        %3725 = vmatpush1.msra.mxu0 0.0
        %3726 = vmatprep.subr.mxu0 0.0
        %3727 = vmatpush1.msra.mxu0 0.0
        %3728 = vmatprep.subr.mxu0 0.0
        %3729 = vmatpush1.msra.mxu0 0.0
        %3730 = vmatprep.subr.mxu0 0.0
        %3731 = vmatpush1.msra.mxu0 0.0
        %3732 = vmatprep.subr.mxu0 0.0
        %3733 = vmatpush1.msra.mxu0 0.0
        %3734 = vmatprep.subr.mxu0 0.0
        %3735 = vmatpush1.msra.mxu0 0.0
        %3736 = vmatprep.subr.mxu0 0.0
        %3737 = vmatpush1.msra.mxu0 0.0
        %3738 = vmatprep.subr.mxu0 0.0
        %3739 = vmatpush1.msra.mxu0 0.0
        %3740 = vmatprep.subr.mxu0 0.0
        %3741 = vmatpush1.msra.mxu0 0.0
        %3742 = vmatprep.subr.mxu0 0.0
        %3743 = vmatpush1.msra.mxu0 0.0
        %3744 = vmatprep.subr.mxu0 0.0
        %3745 = vmatpush1.msra.mxu0 %v1525
        %3746 = vmatprep.subr.mxu0 0.0
        %3747 = vmatpush1.msra.mxu0 %v1524
        %3748 = vmatprep.subr.mxu0 0.0
        %3749 = vmatpush1.msra.mxu0 %v1523
        %3750 = vmatprep.subr.mxu0 0.0
        %3751 = vmatpush1.msra.mxu0 %v1522
        %3752 = vmatprep.subr.mxu0 0.0
        %3753 = vmatpush2.msra.mxu0 0.0
        %3754 = vmatprep.subr.mxu0 0.0
        %3755 = vmatpush2.msra.mxu0 0.0
        %3756 = vmatprep.subr.mxu0 0.0
        %3757 = vmatpush2.msra.mxu0 0.0
        %3758 = vmatprep.subr.mxu0 0.0
        %3759 = vmatpush2.msra.mxu0 0.0
        %3760 = vmatprep.subr.mxu0 0.0
        %3761 = vmatpush2.msra.mxu0 0.0
        %3762 = vmatprep.subr.mxu0 0.0
        %3763 = vmatpush2.msra.mxu0 0.0
        %3764 = vmatprep.subr.mxu0 0.0
        %3765 = vmatpush2.msra.mxu0 0.0
        %3766 = vmatprep.subr.mxu0 0.0
        %3767 = vmatpush2.msra.mxu0 0.0
        %3768 = vmatprep.subr.mxu0 0.0
        %3769 = vmatpush2.msra.mxu0 0.0
        %3770 = vmatprep.subr.mxu0 0.0
        %3771 = vmatpush2.msra.mxu0 0.0
        %3772 = vmatprep.subr.mxu0 0.0
        %3773 = vmatpush2.msra.mxu0 0.0
        %3774 = vmatprep.subr.mxu0 0.0
        %3775 = vmatpush2.msra.mxu0 0.0
        %3776 = vmatprep.subr.mxu0 0.0
        %3777 = vmatpush2.msra.mxu0 0.0
        %3778 = vmatprep.subr.mxu0 0.0
        %3779 = vmatpush2.msra.mxu0 0.0
        %3780 = vmatprep.subr.mxu0 0.0
        %3781 = vmatpush2.msra.mxu0 0.0
        %3782 = vmatprep.subr.mxu0 0.0
        %3783 = vmatpush2.msra.mxu0 0.0
        %3784 = vmatprep.mubr.f32.mxu0 0.0
        %3785 = vmatmul.mubr.f32.gmra.mxu0 %v3718
        %v3786 = vpop.f32.mrf.mxu0
        %v3787 = vadd.f32 0.0, %v3786
        %v3788 = vpop.f32.mrf.mxu0
        %3789 = vdwg.mxu0
        %v3790 = vadd.f32 %v3262, %v3787
        %v3791 = vadd.f32 %v3790, %v1605
        %s3792 = sadd.s32 %s668, 4
        %s3793 = sld [smem:[#allocation3 + %s3792]]
        %s3794 = scalar_lea.vmem %s665, 128
        %v3795 = vld [vmem:[%s3794] sm:$0xff]
        %v3796 = vld [vmem:[%s3794 + $0x8] sm:$0xff]
        %v3797 = vld [vmem:[%s3794 + $0x10] sm:$0xff]
        %v3798 = vld [vmem:[%s3794 + $0x18] sm:$0xff]
        %v3799 = vsel %vm676, %v3795, 0.0
        %3800 = vadd.xlane.f32.xlu0 %v3799
        %v3801 = vpop.xlane.xlu0 %3800
        %v3802 = vsel %vm676, %v3796, 0.0
        %3803 = vadd.xlane.f32.xlu0 %v3802
        %v3804 = vpop.xlane.xlu0 %3803
        %v3805 = vsel %vm676, %v3797, 0.0
        %3806 = vadd.xlane.f32.xlu0 %v3805
        %v3807 = vpop.xlane.xlu0 %3806
        %v3808 = vsel %vm676, %v3798, 0.0
        %3809 = vadd.xlane.f32.xlu0 %v3808
        %v3810 = vpop.xlane.xlu0 %3809
        %v3811 = vmul.f32 %v3801, %v689
        %v3812 = vmul.f32 %v3804, %v689
        %v3813 = vmul.f32 %v3807, %v689
        %v3814 = vmul.f32 %v3810, %v689
        %v3815 = vsub.f32 %v3795, %v3811
        %v3816 = vsub.f32 %v3796, %v3812
        %v3817 = vsub.f32 %v3797, %v3813
        %v3818 = vsub.f32 %v3798, %v3814
        %v3819 = vmul.f32 %v3815, %v3815
        %v3820 = vmul.f32 %v3816, %v3816
        %v3821 = vmul.f32 %v3817, %v3817
        %v3822 = vmul.f32 %v3818, %v3818
        %v3823 = vsel %vm676, %v3819, 0.0
        %3824 = vadd.xlane.f32.xlu0 %v3823
        %v3825 = vpop.xlane.xlu0 %3824
        %v3826 = vsel %vm676, %v3820, 0.0
        %3827 = vadd.xlane.f32.xlu0 %v3826
        %v3828 = vpop.xlane.xlu0 %3827
        %v3829 = vsel %vm676, %v3821, 0.0
        %3830 = vadd.xlane.f32.xlu0 %v3829
        %v3831 = vpop.xlane.xlu0 %3830
        %v3832 = vsel %vm676, %v3822, 0.0
        %3833 = vadd.xlane.f32.xlu0 %v3832
        %v3834 = vpop.xlane.xlu0 %3833
        %v3835 = vmul.f32 %v3825, %v689
        %v3836 = vmul.f32 %v3828, %v689
        %v3837 = vmul.f32 %v3831, %v689
        %v3838 = vmul.f32 %v3834, %v689
        %v3839 = vadd.f32 %v3835, 1e-05
        %v3840 = vadd.f32 %v3836, 1e-05
        %v3841 = vadd.f32 %v3837, 1e-05
        %v3842 = vadd.f32 %v3838, 1e-05
        %v3843 = vrsqrt.pop %v3839
        %v3844 = vrsqrt.pop %v3840
        %v3845 = vrsqrt.pop %v3841
        %v3846 = vrsqrt.pop %v3842
        %v3847 = vmul.f32 %v3815, %v3843
        %v3848 = vmul.f32 %v3816, %v3844
        %v3849 = vmul.f32 %v3817, %v3845
        %v3850 = vmul.f32 %v3818, %v3846
        %v3851 = vmul.f32 %v3847, %v734
        %v3852 = vmul.f32 %v3848, %v734
        %v3853 = vmul.f32 %v3849, %v734
        %v3854 = vmul.f32 %v3850, %v734
        %v3855 = vadd.f32 %v3851, %v744
        %v3856 = vadd.f32 %v3852, %v744
        %v3857 = vadd.f32 %v3853, %v744
        %v3858 = vadd.f32 %v3854, %v744
        %v3860 = vsel %vm676, %v3855, 0
        %v3863 = vsel %vm676, %v3856, 0
        %v3866 = vsel %vm676, %v3857, 0
        %v3869 = vsel %vm676, %v3858, 0
        %3871 = vmatprep.subr.mxu0 0.0
        %3872 = vmatpush1.msra.mxu0 0.0
        %3873 = vmatprep.subr.mxu0 0.0
        %3874 = vmatpush1.msra.mxu0 0.0
        %3875 = vmatprep.subr.mxu0 0.0
        %3876 = vmatpush1.msra.mxu0 0.0
        %3877 = vmatprep.subr.mxu0 0.0
        %3878 = vmatpush1.msra.mxu0 0.0
        %3879 = vmatprep.subr.mxu0 0.0
        %3880 = vmatpush1.msra.mxu0 0.0
        %3881 = vmatprep.subr.mxu0 0.0
        %3882 = vmatpush1.msra.mxu0 0.0
        %3883 = vmatprep.subr.mxu0 0.0
        %3884 = vmatpush1.msra.mxu0 0.0
        %3885 = vmatprep.subr.mxu0 0.0
        %3886 = vmatpush1.msra.mxu0 0.0
        %3887 = vmatprep.subr.mxu0 0.0
        %3888 = vmatpush1.msra.mxu0 0.0
        %3889 = vmatprep.subr.mxu0 0.0
        %3890 = vmatpush1.msra.mxu0 0.0
        %3891 = vmatprep.subr.mxu0 0.0
        %3892 = vmatpush1.msra.mxu0 0.0
        %3893 = vmatprep.subr.mxu0 0.0
        %3894 = vmatpush1.msra.mxu0 0.0
        %3895 = vmatprep.subr.mxu0 0.0
        %3896 = vmatpush1.msra.mxu0 %v753
        %3897 = vmatprep.subr.mxu0 0.0
        %3898 = vmatpush1.msra.mxu0 %v752
        %3899 = vmatprep.subr.mxu0 0.0
        %3900 = vmatpush1.msra.mxu0 %v751
        %3901 = vmatprep.subr.mxu0 0.0
        %3902 = vmatpush1.msra.mxu0 %v750
        %3903 = vmatprep.subr.mxu0 0.0
        %3904 = vmatpush2.msra.mxu0 0.0
        %3905 = vmatprep.subr.mxu0 0.0
        %3906 = vmatpush2.msra.mxu0 0.0
        %3907 = vmatprep.subr.mxu0 0.0
        %3908 = vmatpush2.msra.mxu0 0.0
        %3909 = vmatprep.subr.mxu0 0.0
        %3910 = vmatpush2.msra.mxu0 0.0
        %3911 = vmatprep.subr.mxu0 0.0
        %3912 = vmatpush2.msra.mxu0 0.0
        %3913 = vmatprep.subr.mxu0 0.0
        %3914 = vmatpush2.msra.mxu0 0.0
        %3915 = vmatprep.subr.mxu0 0.0
        %3916 = vmatpush2.msra.mxu0 0.0
        %3917 = vmatprep.subr.mxu0 0.0
        %3918 = vmatpush2.msra.mxu0 0.0
        %3919 = vmatprep.subr.mxu0 0.0
        %3920 = vmatpush2.msra.mxu0 0.0
        %3921 = vmatprep.subr.mxu0 0.0
        %3922 = vmatpush2.msra.mxu0 0.0
        %3923 = vmatprep.subr.mxu0 0.0
        %3924 = vmatpush2.msra.mxu0 0.0
        %3925 = vmatprep.subr.mxu0 0.0
        %3926 = vmatpush2.msra.mxu0 0.0
        %3927 = vmatprep.subr.mxu0 0.0
        %3928 = vmatpush2.msra.mxu0 0.0
        %3929 = vmatprep.subr.mxu0 0.0
        %3930 = vmatpush2.msra.mxu0 0.0
        %3931 = vmatprep.subr.mxu0 0.0
        %3932 = vmatpush2.msra.mxu0 0.0
        %3933 = vmatprep.subr.mxu0 0.0
        %3934 = vmatpush2.msra.mxu0 0.0
        %3935 = vmatprep.mubr.f32.mxu0 0.0
        %3936 = vmatmul.mubr.f32.gmra.mxu0 %v3860
        %v3937 = vpop.f32.mrf.mxu0
        %v3938 = vadd.f32 %v759, %v3937
        %v3939 = vpop.f32.mrf.mxu0
        %3940 = vmatprep.mubr.f32.mxu0 0.0
        %3941 = vmatmul.mubr.f32.gmra.mxu0 %v3863
        %v3942 = vpop.f32.mrf.mxu0
        %v3943 = vadd.f32 %v759, %v3942
        %v3944 = vpop.f32.mrf.mxu0
        %3945 = vmatprep.mubr.f32.mxu0 0.0
        %3946 = vmatmul.mubr.f32.gmra.mxu0 %v3866
        %v3947 = vpop.f32.mrf.mxu0
        %v3948 = vadd.f32 %v759, %v3947
        %v3949 = vpop.f32.mrf.mxu0
        %3950 = vmatprep.mubr.f32.mxu0 0.0
        %3951 = vmatmul.mubr.f32.gmra.mxu0 %v3869
        %v3952 = vpop.f32.mrf.mxu0
        %v3953 = vadd.f32 %v759, %v3952
        %v3954 = vpop.f32.mrf.mxu0
        %3955 = vdwg.mxu0
        %v3956 = vmul.f32 %v3938, %v891
        %v3957 = vmul.f32 %v3943, %v893
        %v3958 = vmul.f32 %v3948, %v895
        %v3959 = vmul.f32 %v3953, %v897
        %v3960 = vmul.f32 %v3938, %v899
        %v3961 = vmul.f32 %v3943, %v901
        %v3962 = vmul.f32 %v3948, %v903
        %v3963 = vmul.f32 %v3953, %v905
        %v3964 = vmul.f32 %v3938, %v907
        %v3965 = vmul.f32 %v3943, %v909
        %v3966 = vmul.f32 %v3948, %v911
        %v3967 = vmul.f32 %v3953, %v913
        %v3968 = vmul.f32 %v3938, %v915
        %v3969 = vmul.f32 %v3943, %v917
        %v3970 = vmul.f32 %v3948, %v919
        %v3971 = vmul.f32 %v3953, %v921
        %v3972 = vmul.f32 %v3938, %v987
        %v3973 = vmul.f32 %v3943, %v989
        %v3974 = vmul.f32 %v3948, %v991
        %v3975 = vmul.f32 %v3953, %v993
        %v3976 = vmul.f32 %v3938, %v995
        %v3977 = vmul.f32 %v3943, %v997
        %v3978 = vmul.f32 %v3948, %v999
        %v3979 = vmul.f32 %v3953, %v1001
        %v3980 = vmul.f32 %v3938, %v1003
        %v3981 = vmul.f32 %v3943, %v1005
        %v3982 = vmul.f32 %v3948, %v1007
        %v3983 = vmul.f32 %v3953, %v1009
        %v3984 = vmul.f32 %v3938, %v1011
        %v3985 = vmul.f32 %v3943, %v1013
        %v3986 = vmul.f32 %v3948, %v1015
        %v3987 = vmul.f32 %v3953, %v1017
        %s3988 = sadd.s32 %s3793, 128
        %s3989 = scalar_lea.vmem %s665, %s3988
        %v3990 = vld [vmem:[%s3989] sm:$0xff]
        %v3991 = vsel %vm676, %v3990, 0.0
        %3992 = vadd.xlane.f32.xlu0 %v3991
        %v3993 = vpop.xlane.xlu0 %3992
        %v3994 = vmul.f32 %v3993, %v689
        %v3995 = vsub.f32 %v3990, %v3994
        %v3996 = vmul.f32 %v3995, %v3995
        %v3997 = vsel %vm676, %v3996, 0.0
        %3998 = vadd.xlane.f32.xlu0 %v3997
        %v3999 = vpop.xlane.xlu0 %3998
        %v4000 = vmul.f32 %v3999, %v689
        %v4001 = vadd.f32 %v4000, 1e-05
        %v4002 = vrsqrt.pop %v4001
        %v4003 = vmul.f32 %v3995, %v4002
        %v4004 = vmul.f32 %v4003, %v734
        %v4005 = vadd.f32 %v4004, %v744
        %v4007 = vsel %vm676, %v4005, 0
        %4009 = vmatprep.subr.mxu0 0.0
        %4010 = vmatpush1.msra.mxu0 0.0
        %4011 = vmatprep.subr.mxu0 0.0
        %4012 = vmatpush1.msra.mxu0 0.0
        %4013 = vmatprep.subr.mxu0 0.0
        %4014 = vmatpush1.msra.mxu0 0.0
        %4015 = vmatprep.subr.mxu0 0.0
        %4016 = vmatpush1.msra.mxu0 0.0
        %4017 = vmatprep.subr.mxu0 0.0
        %4018 = vmatpush1.msra.mxu0 0.0
        %4019 = vmatprep.subr.mxu0 0.0
        %4020 = vmatpush1.msra.mxu0 0.0
        %4021 = vmatprep.subr.mxu0 0.0
        %4022 = vmatpush1.msra.mxu0 0.0
        %4023 = vmatprep.subr.mxu0 0.0
        %4024 = vmatpush1.msra.mxu0 0.0
        %4025 = vmatprep.subr.mxu0 0.0
        %4026 = vmatpush1.msra.mxu0 0.0
        %4027 = vmatprep.subr.mxu0 0.0
        %4028 = vmatpush1.msra.mxu0 0.0
        %4029 = vmatprep.subr.mxu0 0.0
        %4030 = vmatpush1.msra.mxu0 0.0
        %4031 = vmatprep.subr.mxu0 0.0
        %4032 = vmatpush1.msra.mxu0 0.0
        %4033 = vmatprep.subr.mxu0 0.0
        %4034 = vmatpush1.msra.mxu0 %v753
        %4035 = vmatprep.subr.mxu0 0.0
        %4036 = vmatpush1.msra.mxu0 %v752
        %4037 = vmatprep.subr.mxu0 0.0
        %4038 = vmatpush1.msra.mxu0 %v751
        %4039 = vmatprep.subr.mxu0 0.0
        %4040 = vmatpush1.msra.mxu0 %v750
        %4041 = vmatprep.subr.mxu0 0.0
        %4042 = vmatpush2.msra.mxu0 0.0
        %4043 = vmatprep.subr.mxu0 0.0
        %4044 = vmatpush2.msra.mxu0 0.0
        %4045 = vmatprep.subr.mxu0 0.0
        %4046 = vmatpush2.msra.mxu0 0.0
        %4047 = vmatprep.subr.mxu0 0.0
        %4048 = vmatpush2.msra.mxu0 0.0
        %4049 = vmatprep.subr.mxu0 0.0
        %4050 = vmatpush2.msra.mxu0 0.0
        %4051 = vmatprep.subr.mxu0 0.0
        %4052 = vmatpush2.msra.mxu0 0.0
        %4053 = vmatprep.subr.mxu0 0.0
        %4054 = vmatpush2.msra.mxu0 0.0
        %4055 = vmatprep.subr.mxu0 0.0
        %4056 = vmatpush2.msra.mxu0 0.0
        %4057 = vmatprep.subr.mxu0 0.0
        %4058 = vmatpush2.msra.mxu0 0.0
        %4059 = vmatprep.subr.mxu0 0.0
        %4060 = vmatpush2.msra.mxu0 0.0
        %4061 = vmatprep.subr.mxu0 0.0
        %4062 = vmatpush2.msra.mxu0 0.0
        %4063 = vmatprep.subr.mxu0 0.0
        %4064 = vmatpush2.msra.mxu0 0.0
        %4065 = vmatprep.subr.mxu0 0.0
        %4066 = vmatpush2.msra.mxu0 0.0
        %4067 = vmatprep.subr.mxu0 0.0
        %4068 = vmatpush2.msra.mxu0 0.0
        %4069 = vmatprep.subr.mxu0 0.0
        %4070 = vmatpush2.msra.mxu0 0.0
        %4071 = vmatprep.subr.mxu0 0.0
        %4072 = vmatpush2.msra.mxu0 0.0
        %4073 = vmatprep.mubr.f32.mxu0 0.0
        %4074 = vmatmul.mubr.f32.gmra.mxu0 %v4007
        %v4075 = vpop.f32.mrf.mxu0
        %v4076 = vadd.f32 %v759, %v4075
        %v4077 = vpop.f32.mrf.mxu0
        %4078 = vdwg.mxu0
        %s4079 = scalar_lea.vmem %s19, %s3793
        %v4080 = vld [vmem:[%s4079] sm:$0xff]
        %4097 = vrot.lane.b32.xlu0 %v3956, 96
        %v4098 = vpop.permute.xlu0 %4097
        %4099 = vrot.lane.b32.xlu0 %v3957, 96
        %v4100 = vpop.permute.xlu0 %4099
        %4101 = vrot.lane.b32.xlu0 %v3958, 96
        %v4102 = vpop.permute.xlu0 %4101
        %4103 = vrot.lane.b32.xlu0 %v3959, 96
        %v4104 = vpop.permute.xlu0 %4103
        %4105 = vrot.lane.b32.xlu0 %v3960, 96
        %v4106 = vpop.permute.xlu0 %4105
        %4107 = vrot.lane.b32.xlu0 %v3961, 96
        %v4108 = vpop.permute.xlu0 %4107
        %4109 = vrot.lane.b32.xlu0 %v3962, 96
        %v4110 = vpop.permute.xlu0 %4109
        %4111 = vrot.lane.b32.xlu0 %v3963, 96
        %v4112 = vpop.permute.xlu0 %4111
        %4113 = vrot.lane.b32.xlu0 %v3964, 96
        %v4114 = vpop.permute.xlu0 %4113
        %4115 = vrot.lane.b32.xlu0 %v3965, 96
        %v4116 = vpop.permute.xlu0 %4115
        %4117 = vrot.lane.b32.xlu0 %v3966, 96
        %v4118 = vpop.permute.xlu0 %4117
        %4119 = vrot.lane.b32.xlu0 %v3967, 96
        %v4120 = vpop.permute.xlu0 %4119
        %4121 = vrot.lane.b32.xlu0 %v3968, 96
        %v4122 = vpop.permute.xlu0 %4121
        %4123 = vrot.lane.b32.xlu0 %v3969, 96
        %v4124 = vpop.permute.xlu0 %4123
        %4125 = vrot.lane.b32.xlu0 %v3970, 96
        %v4126 = vpop.permute.xlu0 %4125
        %4127 = vrot.lane.b32.xlu0 %v3971, 96
        %v4128 = vpop.permute.xlu0 %4127
        %v4130 = vsel %vm676, %v4076, 0
        %v4132 = vsel %vm676, %v4098, 0
        %v4134 = vsel %vm676, %v4100, 0
        %v4136 = vsel %vm676, %v4102, 0
        %v4138 = vsel %vm676, %v4104, 0
        %v4140 = vsel %vm676, %v4106, 0
        %v4142 = vsel %vm676, %v4108, 0
        %v4144 = vsel %vm676, %v4110, 0
        %v4146 = vsel %vm676, %v4112, 0
        %v4148 = vsel %vm676, %v4114, 0
        %v4150 = vsel %vm676, %v4116, 0
        %v4152 = vsel %vm676, %v4118, 0
        %v4154 = vsel %vm676, %v4120, 0
        %v4156 = vsel %vm676, %v4122, 0
        %v4158 = vsel %vm676, %v4124, 0
        %v4160 = vsel %vm676, %v4126, 0
        %v4162 = vsel %vm676, %v4128, 0
        %4164 = vmatprep.subr.mxu0 0.0
        %4165 = vmatpush1.xpose.msra.mxu0 %v4162
        %4166 = vmatprep.subr.mxu0 0.0
        %4167 = vmatpush1.xpose.msra.mxu0 %v4160
        %4168 = vmatprep.subr.mxu0 0.0
        %4169 = vmatpush1.xpose.msra.mxu0 %v4158
        %4170 = vmatprep.subr.mxu0 0.0
        %4171 = vmatpush1.xpose.msra.mxu0 %v4156
        %4172 = vmatprep.subr.mxu0 0.0
        %4173 = vmatpush1.xpose.msra.mxu0 %v4154
        %4174 = vmatprep.subr.mxu0 0.0
        %4175 = vmatpush1.xpose.msra.mxu0 %v4152
        %4176 = vmatprep.subr.mxu0 0.0
        %4177 = vmatpush1.xpose.msra.mxu0 %v4150
        %4178 = vmatprep.subr.mxu0 0.0
        %4179 = vmatpush1.xpose.msra.mxu0 %v4148
        %4180 = vmatprep.subr.mxu0 0.0
        %4181 = vmatpush1.xpose.msra.mxu0 %v4146
        %4182 = vmatprep.subr.mxu0 0.0
        %4183 = vmatpush1.xpose.msra.mxu0 %v4144
        %4184 = vmatprep.subr.mxu0 0.0
        %4185 = vmatpush1.xpose.msra.mxu0 %v4142
        %4186 = vmatprep.subr.mxu0 0.0
        %4187 = vmatpush1.xpose.msra.mxu0 %v4140
        %4188 = vmatprep.subr.mxu0 0.0
        %4189 = vmatpush1.xpose.msra.mxu0 %v4138
        %4190 = vmatprep.subr.mxu0 0.0
        %4191 = vmatpush1.xpose.msra.mxu0 %v4136
        %4192 = vmatprep.subr.mxu0 0.0
        %4193 = vmatpush1.xpose.msra.mxu0 %v4134
        %4194 = vmatprep.subr.mxu0 0.0
        %4195 = vmatpush1.xpose.msra.mxu0 %v4132
        %4196 = vmatprep.subr.mxu0 0.0
        %4197 = vmatpush2.xpose.msra.mxu0 0.0
        %4198 = vmatprep.subr.mxu0 0.0
        %4199 = vmatpush2.xpose.msra.mxu0 0.0
        %4200 = vmatprep.subr.mxu0 0.0
        %4201 = vmatpush2.xpose.msra.mxu0 0.0
        %4202 = vmatprep.subr.mxu0 0.0
        %4203 = vmatpush2.xpose.msra.mxu0 0.0
        %4204 = vmatprep.subr.mxu0 0.0
        %4205 = vmatpush2.xpose.msra.mxu0 0.0
        %4206 = vmatprep.subr.mxu0 0.0
        %4207 = vmatpush2.xpose.msra.mxu0 0.0
        %4208 = vmatprep.subr.mxu0 0.0
        %4209 = vmatpush2.xpose.msra.mxu0 0.0
        %4210 = vmatprep.subr.mxu0 0.0
        %4211 = vmatpush2.xpose.msra.mxu0 0.0
        %4212 = vmatprep.subr.mxu0 0.0
        %4213 = vmatpush2.xpose.msra.mxu0 0.0
        %4214 = vmatprep.subr.mxu0 0.0
        %4215 = vmatpush2.xpose.msra.mxu0 0.0
        %4216 = vmatprep.subr.mxu0 0.0
        %4217 = vmatpush2.xpose.msra.mxu0 0.0
        %4218 = vmatprep.subr.mxu0 0.0
        %4219 = vmatpush2.xpose.msra.mxu0 0.0
        %4220 = vmatprep.subr.mxu0 0.0
        %4221 = vmatpush2.xpose.msra.mxu0 0.0
        %4222 = vmatprep.subr.mxu0 0.0
        %4223 = vmatpush2.xpose.msra.mxu0 0.0
        %4224 = vmatprep.subr.mxu0 0.0
        %4225 = vmatpush2.xpose.msra.mxu0 0.0
        %4226 = vmatprep.subr.mxu0 0.0
        %4227 = vmatpush2.xpose.msra.mxu0 0.0
        %4228 = vmatprep.mubr.f32.mxu0 0.0
        %4229 = vmatmul.mubr.f32.gmra.mxu0 %v4130
        %v4230 = vpop.f32.mrf.mxu0
        %v4231 = vadd.f32 %v4080, %v4230
        %v4232 = vpop.f32.mrf.mxu0
        %4233 = vdwg.mxu0
        %4234 = vmax.xlane.f32.xlu0 %v4231
        %v4235 = vpop.xlane.xlu0 %4234
        %v4236 = vsub.f32 %v4231, %v4235
        %v4237 = vmul.f32 %v4236, 1.442695
        %v4238 = vpow.pop %v4237
        %4239 = vmatprep.subr.mxu0 0.0
        %4240 = vmatpush1.msra.mxu0 %v1315
        %4241 = vmatprep.subr.mxu0 0.0
        %4242 = vmatpush1.msra.mxu0 %v1314
        %4243 = vmatprep.subr.mxu0 0.0
        %4244 = vmatpush1.msra.mxu0 %v1313
        %4245 = vmatprep.subr.mxu0 0.0
        %4246 = vmatpush1.msra.mxu0 %v1312
        %4247 = vmatprep.subr.mxu0 0.0
        %4248 = vmatpush1.msra.mxu0 %v1311
        %4249 = vmatprep.subr.mxu0 0.0
        %4250 = vmatpush1.msra.mxu0 %v1310
        %4251 = vmatprep.subr.mxu0 0.0
        %4252 = vmatpush1.msra.mxu0 %v1309
        %4253 = vmatprep.subr.mxu0 0.0
        %4254 = vmatpush1.msra.mxu0 %v1308
        %4255 = vmatprep.subr.mxu0 0.0
        %4256 = vmatpush1.msra.mxu0 %v1307
        %4257 = vmatprep.subr.mxu0 0.0
        %4258 = vmatpush1.msra.mxu0 %v1306
        %4259 = vmatprep.subr.mxu0 0.0
        %4260 = vmatpush1.msra.mxu0 %v1305
        %4261 = vmatprep.subr.mxu0 0.0
        %4262 = vmatpush1.msra.mxu0 %v1304
        %4263 = vmatprep.subr.mxu0 0.0
        %4264 = vmatpush1.msra.mxu0 %v1303
        %4265 = vmatprep.subr.mxu0 0.0
        %4266 = vmatpush1.msra.mxu0 %v1302
        %4267 = vmatprep.subr.mxu0 0.0
        %4268 = vmatpush1.msra.mxu0 %v1301
        %4269 = vmatprep.subr.mxu0 0.0
        %4270 = vmatpush1.msra.mxu0 %v1300
        %4271 = vmatprep.subr.mxu0 0.0
        %4272 = vmatpush2.msra.mxu0 0.0
        %4273 = vmatprep.subr.mxu0 0.0
        %4274 = vmatpush2.msra.mxu0 0.0
        %4275 = vmatprep.subr.mxu0 0.0
        %4276 = vmatpush2.msra.mxu0 0.0
        %4277 = vmatprep.subr.mxu0 0.0
        %4278 = vmatpush2.msra.mxu0 0.0
        %4279 = vmatprep.subr.mxu0 0.0
        %4280 = vmatpush2.msra.mxu0 0.0
        %4281 = vmatprep.subr.mxu0 0.0
        %4282 = vmatpush2.msra.mxu0 0.0
        %4283 = vmatprep.subr.mxu0 0.0
        %4284 = vmatpush2.msra.mxu0 0.0
        %4285 = vmatprep.subr.mxu0 0.0
        %4286 = vmatpush2.msra.mxu0 0.0
        %4287 = vmatprep.subr.mxu0 0.0
        %4288 = vmatpush2.msra.mxu0 0.0
        %4289 = vmatprep.subr.mxu0 0.0
        %4290 = vmatpush2.msra.mxu0 0.0
        %4291 = vmatprep.subr.mxu0 0.0
        %4292 = vmatpush2.msra.mxu0 0.0
        %4293 = vmatprep.subr.mxu0 0.0
        %4294 = vmatpush2.msra.mxu0 0.0
        %4295 = vmatprep.subr.mxu0 0.0
        %4296 = vmatpush2.msra.mxu0 0.0
        %4297 = vmatprep.subr.mxu0 0.0
        %4298 = vmatpush2.msra.mxu0 0.0
        %4299 = vmatprep.subr.mxu0 0.0
        %4300 = vmatpush2.msra.mxu0 0.0
        %4301 = vmatprep.subr.mxu0 0.0
        %4302 = vmatpush2.msra.mxu0 0.0
        %4303 = vmatprep.mubr.f32.mxu0 0.0
        %4304 = vmatmul.mubr.f32.gmra.mxu0 %v4238
        %v4305 = vpop.f32.mrf.mxu0
        %v4306 = vadd.f32 0.0, %v4305
        %v4307 = vpop.f32.mrf.mxu0
        %4308 = vdwg.mxu0
        %v4309 = vrcp.pop %v4306
        %v4310 = vmul.f32 %v4238, %v4309
        %4327 = vrot.lane.b32.xlu0 %v3972, 64
        %v4328 = vpop.permute.xlu0 %4327
        %4329 = vrot.lane.b32.xlu0 %v3973, 64
        %v4330 = vpop.permute.xlu0 %4329
        %4331 = vrot.lane.b32.xlu0 %v3974, 64
        %v4332 = vpop.permute.xlu0 %4331
        %4333 = vrot.lane.b32.xlu0 %v3975, 64
        %v4334 = vpop.permute.xlu0 %4333
        %4335 = vrot.lane.b32.xlu0 %v3976, 64
        %v4336 = vpop.permute.xlu0 %4335
        %4337 = vrot.lane.b32.xlu0 %v3977, 64
        %v4338 = vpop.permute.xlu0 %4337
        %4339 = vrot.lane.b32.xlu0 %v3978, 64
        %v4340 = vpop.permute.xlu0 %4339
        %4341 = vrot.lane.b32.xlu0 %v3979, 64
        %v4342 = vpop.permute.xlu0 %4341
        %4343 = vrot.lane.b32.xlu0 %v3980, 64
        %v4344 = vpop.permute.xlu0 %4343
        %4345 = vrot.lane.b32.xlu0 %v3981, 64
        %v4346 = vpop.permute.xlu0 %4345
        %4347 = vrot.lane.b32.xlu0 %v3982, 64
        %v4348 = vpop.permute.xlu0 %4347
        %4349 = vrot.lane.b32.xlu0 %v3983, 64
        %v4350 = vpop.permute.xlu0 %4349
        %4351 = vrot.lane.b32.xlu0 %v3984, 64
        %v4352 = vpop.permute.xlu0 %4351
        %4353 = vrot.lane.b32.xlu0 %v3985, 64
        %v4354 = vpop.permute.xlu0 %4353
        %4355 = vrot.lane.b32.xlu0 %v3986, 64
        %v4356 = vpop.permute.xlu0 %4355
        %4357 = vrot.lane.b32.xlu0 %v3987, 64
        %v4358 = vpop.permute.xlu0 %4357
        %4375 = vmatprep.subr.mxu0 0.0
        %4376 = vmatpush1.msra.mxu0 %v4358
        %4377 = vmatprep.subr.mxu0 0.0
        %4378 = vmatpush1.msra.mxu0 %v4356
        %4379 = vmatprep.subr.mxu0 0.0
        %4380 = vmatpush1.msra.mxu0 %v4354
        %4381 = vmatprep.subr.mxu0 0.0
        %4382 = vmatpush1.msra.mxu0 %v4352
        %4383 = vmatprep.subr.mxu0 0.0
        %4384 = vmatpush1.msra.mxu0 %v4350
        %4385 = vmatprep.subr.mxu0 0.0
        %4386 = vmatpush1.msra.mxu0 %v4348
        %4387 = vmatprep.subr.mxu0 0.0
        %4388 = vmatpush1.msra.mxu0 %v4346
        %4389 = vmatprep.subr.mxu0 0.0
        %4390 = vmatpush1.msra.mxu0 %v4344
        %4391 = vmatprep.subr.mxu0 0.0
        %4392 = vmatpush1.msra.mxu0 %v4342
        %4393 = vmatprep.subr.mxu0 0.0
        %4394 = vmatpush1.msra.mxu0 %v4340
        %4395 = vmatprep.subr.mxu0 0.0
        %4396 = vmatpush1.msra.mxu0 %v4338
        %4397 = vmatprep.subr.mxu0 0.0
        %4398 = vmatpush1.msra.mxu0 %v4336
        %4399 = vmatprep.subr.mxu0 0.0
        %4400 = vmatpush1.msra.mxu0 %v4334
        %4401 = vmatprep.subr.mxu0 0.0
        %4402 = vmatpush1.msra.mxu0 %v4332
        %4403 = vmatprep.subr.mxu0 0.0
        %4404 = vmatpush1.msra.mxu0 %v4330
        %4405 = vmatprep.subr.mxu0 0.0
        %4406 = vmatpush1.msra.mxu0 %v4328
        %4407 = vmatprep.subr.mxu0 0.0
        %4408 = vmatpush2.msra.mxu0 0.0
        %4409 = vmatprep.subr.mxu0 0.0
        %4410 = vmatpush2.msra.mxu0 0.0
        %4411 = vmatprep.subr.mxu0 0.0
        %4412 = vmatpush2.msra.mxu0 0.0
        %4413 = vmatprep.subr.mxu0 0.0
        %4414 = vmatpush2.msra.mxu0 0.0
        %4415 = vmatprep.subr.mxu0 0.0
        %4416 = vmatpush2.msra.mxu0 0.0
        %4417 = vmatprep.subr.mxu0 0.0
        %4418 = vmatpush2.msra.mxu0 0.0
        %4419 = vmatprep.subr.mxu0 0.0
        %4420 = vmatpush2.msra.mxu0 0.0
        %4421 = vmatprep.subr.mxu0 0.0
        %4422 = vmatpush2.msra.mxu0 0.0
        %4423 = vmatprep.subr.mxu0 0.0
        %4424 = vmatpush2.msra.mxu0 0.0
        %4425 = vmatprep.subr.mxu0 0.0
        %4426 = vmatpush2.msra.mxu0 0.0
        %4427 = vmatprep.subr.mxu0 0.0
        %4428 = vmatpush2.msra.mxu0 0.0
        %4429 = vmatprep.subr.mxu0 0.0
        %4430 = vmatpush2.msra.mxu0 0.0
        %4431 = vmatprep.subr.mxu0 0.0
        %4432 = vmatpush2.msra.mxu0 0.0
        %4433 = vmatprep.subr.mxu0 0.0
        %4434 = vmatpush2.msra.mxu0 0.0
        %4435 = vmatprep.subr.mxu0 0.0
        %4436 = vmatpush2.msra.mxu0 0.0
        %4437 = vmatprep.subr.mxu0 0.0
        %4438 = vmatpush2.msra.mxu0 0.0
        %4439 = vmatprep.mubr.f32.mxu0 0.0
        %4440 = vmatmul.mubr.f32.gmra.mxu0 %v4310
        %v4441 = vpop.f32.mrf.mxu0
        %v4442 = vadd.f32 0.0, %v4441
        %v4443 = vpop.f32.mrf.mxu0
        %4444 = vdwg.mxu0
        %v4446 = vsel %vm676, %v4442, 0
        %4448 = vmatprep.subr.mxu0 0.0
        %4449 = vmatpush1.msra.mxu0 0.0
        %4450 = vmatprep.subr.mxu0 0.0
        %4451 = vmatpush1.msra.mxu0 0.0
        %4452 = vmatprep.subr.mxu0 0.0
        %4453 = vmatpush1.msra.mxu0 0.0
        %4454 = vmatprep.subr.mxu0 0.0
        %4455 = vmatpush1.msra.mxu0 0.0
        %4456 = vmatprep.subr.mxu0 0.0
        %4457 = vmatpush1.msra.mxu0 0.0
        %4458 = vmatprep.subr.mxu0 0.0
        %4459 = vmatpush1.msra.mxu0 0.0
        %4460 = vmatprep.subr.mxu0 0.0
        %4461 = vmatpush1.msra.mxu0 0.0
        %4462 = vmatprep.subr.mxu0 0.0
        %4463 = vmatpush1.msra.mxu0 0.0
        %4464 = vmatprep.subr.mxu0 0.0
        %4465 = vmatpush1.msra.mxu0 0.0
        %4466 = vmatprep.subr.mxu0 0.0
        %4467 = vmatpush1.msra.mxu0 0.0
        %4468 = vmatprep.subr.mxu0 0.0
        %4469 = vmatpush1.msra.mxu0 0.0
        %4470 = vmatprep.subr.mxu0 0.0
        %4471 = vmatpush1.msra.mxu0 0.0
        %4472 = vmatprep.subr.mxu0 0.0
        %4473 = vmatpush1.msra.mxu0 %v1525
        %4474 = vmatprep.subr.mxu0 0.0
        %4475 = vmatpush1.msra.mxu0 %v1524
        %4476 = vmatprep.subr.mxu0 0.0
        %4477 = vmatpush1.msra.mxu0 %v1523
        %4478 = vmatprep.subr.mxu0 0.0
        %4479 = vmatpush1.msra.mxu0 %v1522
        %4480 = vmatprep.subr.mxu0 0.0
        %4481 = vmatpush2.msra.mxu0 0.0
        %4482 = vmatprep.subr.mxu0 0.0
        %4483 = vmatpush2.msra.mxu0 0.0
        %4484 = vmatprep.subr.mxu0 0.0
        %4485 = vmatpush2.msra.mxu0 0.0
        %4486 = vmatprep.subr.mxu0 0.0
        %4487 = vmatpush2.msra.mxu0 0.0
        %4488 = vmatprep.subr.mxu0 0.0
        %4489 = vmatpush2.msra.mxu0 0.0
        %4490 = vmatprep.subr.mxu0 0.0
        %4491 = vmatpush2.msra.mxu0 0.0
        %4492 = vmatprep.subr.mxu0 0.0
        %4493 = vmatpush2.msra.mxu0 0.0
        %4494 = vmatprep.subr.mxu0 0.0
        %4495 = vmatpush2.msra.mxu0 0.0
        %4496 = vmatprep.subr.mxu0 0.0
        %4497 = vmatpush2.msra.mxu0 0.0
        %4498 = vmatprep.subr.mxu0 0.0
        %4499 = vmatpush2.msra.mxu0 0.0
        %4500 = vmatprep.subr.mxu0 0.0
        %4501 = vmatpush2.msra.mxu0 0.0
        %4502 = vmatprep.subr.mxu0 0.0
        %4503 = vmatpush2.msra.mxu0 0.0
        %4504 = vmatprep.subr.mxu0 0.0
        %4505 = vmatpush2.msra.mxu0 0.0
        %4506 = vmatprep.subr.mxu0 0.0
        %4507 = vmatpush2.msra.mxu0 0.0
        %4508 = vmatprep.subr.mxu0 0.0
        %4509 = vmatpush2.msra.mxu0 0.0
        %4510 = vmatprep.subr.mxu0 0.0
        %4511 = vmatpush2.msra.mxu0 0.0
        %4512 = vmatprep.mubr.f32.mxu0 0.0
        %4513 = vmatmul.mubr.f32.gmra.mxu0 %v4446
        %v4514 = vpop.f32.mrf.mxu0
        %v4515 = vadd.f32 0.0, %v4514
        %v4516 = vpop.f32.mrf.mxu0
        %4517 = vdwg.mxu0
        %v4518 = vadd.f32 %v3990, %v4515
        %v4519 = vadd.f32 %v4518, %v1605
        %s4520 = sadd.s32 %s668, 5
        %s4521 = sld [smem:[#allocation3 + %s4520]]
        %s4522 = scalar_lea.vmem %s665, 160
        %v4523 = vld [vmem:[%s4522] sm:$0xff]
        %v4524 = vld [vmem:[%s4522 + $0x8] sm:$0xff]
        %v4525 = vld [vmem:[%s4522 + $0x10] sm:$0xff]
        %v4526 = vld [vmem:[%s4522 + $0x18] sm:$0xff]
        %v4527 = vsel %vm676, %v4523, 0.0
        %4528 = vadd.xlane.f32.xlu0 %v4527
        %v4529 = vpop.xlane.xlu0 %4528
        %v4530 = vsel %vm676, %v4524, 0.0
        %4531 = vadd.xlane.f32.xlu0 %v4530
        %v4532 = vpop.xlane.xlu0 %4531
        %v4533 = vsel %vm676, %v4525, 0.0
        %4534 = vadd.xlane.f32.xlu0 %v4533
        %v4535 = vpop.xlane.xlu0 %4534
        %v4536 = vsel %vm676, %v4526, 0.0
        %4537 = vadd.xlane.f32.xlu0 %v4536
        %v4538 = vpop.xlane.xlu0 %4537
        %v4539 = vmul.f32 %v4529, %v689
        %v4540 = vmul.f32 %v4532, %v689
        %v4541 = vmul.f32 %v4535, %v689
        %v4542 = vmul.f32 %v4538, %v689
        %v4543 = vsub.f32 %v4523, %v4539
        %v4544 = vsub.f32 %v4524, %v4540
        %v4545 = vsub.f32 %v4525, %v4541
        %v4546 = vsub.f32 %v4526, %v4542
        %v4547 = vmul.f32 %v4543, %v4543
        %v4548 = vmul.f32 %v4544, %v4544
        %v4549 = vmul.f32 %v4545, %v4545
        %v4550 = vmul.f32 %v4546, %v4546
        %v4551 = vsel %vm676, %v4547, 0.0
        %4552 = vadd.xlane.f32.xlu0 %v4551
        %v4553 = vpop.xlane.xlu0 %4552
        %v4554 = vsel %vm676, %v4548, 0.0
        %4555 = vadd.xlane.f32.xlu0 %v4554
        %v4556 = vpop.xlane.xlu0 %4555
        %v4557 = vsel %vm676, %v4549, 0.0
        %4558 = vadd.xlane.f32.xlu0 %v4557
        %v4559 = vpop.xlane.xlu0 %4558
        %v4560 = vsel %vm676, %v4550, 0.0
        %4561 = vadd.xlane.f32.xlu0 %v4560
        %v4562 = vpop.xlane.xlu0 %4561
        %v4563 = vmul.f32 %v4553, %v689
        %v4564 = vmul.f32 %v4556, %v689
        %v4565 = vmul.f32 %v4559, %v689
        %v4566 = vmul.f32 %v4562, %v689
        %v4567 = vadd.f32 %v4563, 1e-05
        %v4568 = vadd.f32 %v4564, 1e-05
        %v4569 = vadd.f32 %v4565, 1e-05
        %v4570 = vadd.f32 %v4566, 1e-05
        %v4571 = vrsqrt.pop %v4567
        %v4572 = vrsqrt.pop %v4568
        %v4573 = vrsqrt.pop %v4569
        %v4574 = vrsqrt.pop %v4570
        %v4575 = vmul.f32 %v4543, %v4571
        %v4576 = vmul.f32 %v4544, %v4572
        %v4577 = vmul.f32 %v4545, %v4573
        %v4578 = vmul.f32 %v4546, %v4574
        %v4579 = vmul.f32 %v4575, %v734
        %v4580 = vmul.f32 %v4576, %v734
        %v4581 = vmul.f32 %v4577, %v734
        %v4582 = vmul.f32 %v4578, %v734
        %v4583 = vadd.f32 %v4579, %v744
        %v4584 = vadd.f32 %v4580, %v744
        %v4585 = vadd.f32 %v4581, %v744
        %v4586 = vadd.f32 %v4582, %v744
        %v4588 = vsel %vm676, %v4583, 0
        %v4591 = vsel %vm676, %v4584, 0
        %v4594 = vsel %vm676, %v4585, 0
        %v4597 = vsel %vm676, %v4586, 0
        %4599 = vmatprep.subr.mxu0 0.0
        %4600 = vmatpush1.msra.mxu0 0.0
        %4601 = vmatprep.subr.mxu0 0.0
        %4602 = vmatpush1.msra.mxu0 0.0
        %4603 = vmatprep.subr.mxu0 0.0
        %4604 = vmatpush1.msra.mxu0 0.0
        %4605 = vmatprep.subr.mxu0 0.0
        %4606 = vmatpush1.msra.mxu0 0.0
        %4607 = vmatprep.subr.mxu0 0.0
        %4608 = vmatpush1.msra.mxu0 0.0
        %4609 = vmatprep.subr.mxu0 0.0
        %4610 = vmatpush1.msra.mxu0 0.0
        %4611 = vmatprep.subr.mxu0 0.0
        %4612 = vmatpush1.msra.mxu0 0.0
        %4613 = vmatprep.subr.mxu0 0.0
        %4614 = vmatpush1.msra.mxu0 0.0
        %4615 = vmatprep.subr.mxu0 0.0
        %4616 = vmatpush1.msra.mxu0 0.0
        %4617 = vmatprep.subr.mxu0 0.0
        %4618 = vmatpush1.msra.mxu0 0.0
        %4619 = vmatprep.subr.mxu0 0.0
        %4620 = vmatpush1.msra.mxu0 0.0
        %4621 = vmatprep.subr.mxu0 0.0
        %4622 = vmatpush1.msra.mxu0 0.0
        %4623 = vmatprep.subr.mxu0 0.0
        %4624 = vmatpush1.msra.mxu0 %v753
        %4625 = vmatprep.subr.mxu0 0.0
        %4626 = vmatpush1.msra.mxu0 %v752
        %4627 = vmatprep.subr.mxu0 0.0
        %4628 = vmatpush1.msra.mxu0 %v751
        %4629 = vmatprep.subr.mxu0 0.0
        %4630 = vmatpush1.msra.mxu0 %v750
        %4631 = vmatprep.subr.mxu0 0.0
        %4632 = vmatpush2.msra.mxu0 0.0
        %4633 = vmatprep.subr.mxu0 0.0
        %4634 = vmatpush2.msra.mxu0 0.0
        %4635 = vmatprep.subr.mxu0 0.0
        %4636 = vmatpush2.msra.mxu0 0.0
        %4637 = vmatprep.subr.mxu0 0.0
        %4638 = vmatpush2.msra.mxu0 0.0
        %4639 = vmatprep.subr.mxu0 0.0
        %4640 = vmatpush2.msra.mxu0 0.0
        %4641 = vmatprep.subr.mxu0 0.0
        %4642 = vmatpush2.msra.mxu0 0.0
        %4643 = vmatprep.subr.mxu0 0.0
        %4644 = vmatpush2.msra.mxu0 0.0
        %4645 = vmatprep.subr.mxu0 0.0
        %4646 = vmatpush2.msra.mxu0 0.0
        %4647 = vmatprep.subr.mxu0 0.0
        %4648 = vmatpush2.msra.mxu0 0.0
        %4649 = vmatprep.subr.mxu0 0.0
        %4650 = vmatpush2.msra.mxu0 0.0
        %4651 = vmatprep.subr.mxu0 0.0
        %4652 = vmatpush2.msra.mxu0 0.0
        %4653 = vmatprep.subr.mxu0 0.0
        %4654 = vmatpush2.msra.mxu0 0.0
        %4655 = vmatprep.subr.mxu0 0.0
        %4656 = vmatpush2.msra.mxu0 0.0
        %4657 = vmatprep.subr.mxu0 0.0
        %4658 = vmatpush2.msra.mxu0 0.0
        %4659 = vmatprep.subr.mxu0 0.0
        %4660 = vmatpush2.msra.mxu0 0.0
        %4661 = vmatprep.subr.mxu0 0.0
        %4662 = vmatpush2.msra.mxu0 0.0
        %4663 = vmatprep.mubr.f32.mxu0 0.0
        %4664 = vmatmul.mubr.f32.gmra.mxu0 %v4588
        %v4665 = vpop.f32.mrf.mxu0
        %v4666 = vadd.f32 %v759, %v4665
        %v4667 = vpop.f32.mrf.mxu0
        %4668 = vmatprep.mubr.f32.mxu0 0.0
        %4669 = vmatmul.mubr.f32.gmra.mxu0 %v4591
        %v4670 = vpop.f32.mrf.mxu0
        %v4671 = vadd.f32 %v759, %v4670
        %v4672 = vpop.f32.mrf.mxu0
        %4673 = vmatprep.mubr.f32.mxu0 0.0
        %4674 = vmatmul.mubr.f32.gmra.mxu0 %v4594
        %v4675 = vpop.f32.mrf.mxu0
        %v4676 = vadd.f32 %v759, %v4675
        %v4677 = vpop.f32.mrf.mxu0
        %4678 = vmatprep.mubr.f32.mxu0 0.0
        %4679 = vmatmul.mubr.f32.gmra.mxu0 %v4597
        %v4680 = vpop.f32.mrf.mxu0
        %v4681 = vadd.f32 %v759, %v4680
        %v4682 = vpop.f32.mrf.mxu0
        %4683 = vdwg.mxu0
        %v4684 = vmul.f32 %v4666, %v891
        %v4685 = vmul.f32 %v4671, %v893
        %v4686 = vmul.f32 %v4676, %v895
        %v4687 = vmul.f32 %v4681, %v897
        %v4688 = vmul.f32 %v4666, %v899
        %v4689 = vmul.f32 %v4671, %v901
        %v4690 = vmul.f32 %v4676, %v903
        %v4691 = vmul.f32 %v4681, %v905
        %v4692 = vmul.f32 %v4666, %v907
        %v4693 = vmul.f32 %v4671, %v909
        %v4694 = vmul.f32 %v4676, %v911
        %v4695 = vmul.f32 %v4681, %v913
        %v4696 = vmul.f32 %v4666, %v915
        %v4697 = vmul.f32 %v4671, %v917
        %v4698 = vmul.f32 %v4676, %v919
        %v4699 = vmul.f32 %v4681, %v921
        %v4700 = vmul.f32 %v4666, %v987
        %v4701 = vmul.f32 %v4671, %v989
        %v4702 = vmul.f32 %v4676, %v991
        %v4703 = vmul.f32 %v4681, %v993
        %v4704 = vmul.f32 %v4666, %v995
        %v4705 = vmul.f32 %v4671, %v997
        %v4706 = vmul.f32 %v4676, %v999
        %v4707 = vmul.f32 %v4681, %v1001
        %v4708 = vmul.f32 %v4666, %v1003
        %v4709 = vmul.f32 %v4671, %v1005
        %v4710 = vmul.f32 %v4676, %v1007
        %v4711 = vmul.f32 %v4681, %v1009
        %v4712 = vmul.f32 %v4666, %v1011
        %v4713 = vmul.f32 %v4671, %v1013
        %v4714 = vmul.f32 %v4676, %v1015
        %v4715 = vmul.f32 %v4681, %v1017
        %s4716 = sadd.s32 %s4521, 160
        %s4717 = scalar_lea.vmem %s665, %s4716
        %v4718 = vld [vmem:[%s4717] sm:$0xff]
        %v4719 = vsel %vm676, %v4718, 0.0
        %4720 = vadd.xlane.f32.xlu0 %v4719
        %v4721 = vpop.xlane.xlu0 %4720
        %v4722 = vmul.f32 %v4721, %v689
        %v4723 = vsub.f32 %v4718, %v4722
        %v4724 = vmul.f32 %v4723, %v4723
        %v4725 = vsel %vm676, %v4724, 0.0
        %4726 = vadd.xlane.f32.xlu0 %v4725
        %v4727 = vpop.xlane.xlu0 %4726
        %v4728 = vmul.f32 %v4727, %v689
        %v4729 = vadd.f32 %v4728, 1e-05
        %v4730 = vrsqrt.pop %v4729
        %v4731 = vmul.f32 %v4723, %v4730
        %v4732 = vmul.f32 %v4731, %v734
        %v4733 = vadd.f32 %v4732, %v744
        %v4735 = vsel %vm676, %v4733, 0
        %4737 = vmatprep.subr.mxu0 0.0
        %4738 = vmatpush1.msra.mxu0 0.0
        %4739 = vmatprep.subr.mxu0 0.0
        %4740 = vmatpush1.msra.mxu0 0.0
        %4741 = vmatprep.subr.mxu0 0.0
        %4742 = vmatpush1.msra.mxu0 0.0
        %4743 = vmatprep.subr.mxu0 0.0
        %4744 = vmatpush1.msra.mxu0 0.0
        %4745 = vmatprep.subr.mxu0 0.0
        %4746 = vmatpush1.msra.mxu0 0.0
        %4747 = vmatprep.subr.mxu0 0.0
        %4748 = vmatpush1.msra.mxu0 0.0
        %4749 = vmatprep.subr.mxu0 0.0
        %4750 = vmatpush1.msra.mxu0 0.0
        %4751 = vmatprep.subr.mxu0 0.0
        %4752 = vmatpush1.msra.mxu0 0.0
        %4753 = vmatprep.subr.mxu0 0.0
        %4754 = vmatpush1.msra.mxu0 0.0
        %4755 = vmatprep.subr.mxu0 0.0
        %4756 = vmatpush1.msra.mxu0 0.0
        %4757 = vmatprep.subr.mxu0 0.0
        %4758 = vmatpush1.msra.mxu0 0.0
        %4759 = vmatprep.subr.mxu0 0.0
        %4760 = vmatpush1.msra.mxu0 0.0
        %4761 = vmatprep.subr.mxu0 0.0
        %4762 = vmatpush1.msra.mxu0 %v753
        %4763 = vmatprep.subr.mxu0 0.0
        %4764 = vmatpush1.msra.mxu0 %v752
        %4765 = vmatprep.subr.mxu0 0.0
        %4766 = vmatpush1.msra.mxu0 %v751
        %4767 = vmatprep.subr.mxu0 0.0
        %4768 = vmatpush1.msra.mxu0 %v750
        %4769 = vmatprep.subr.mxu0 0.0
        %4770 = vmatpush2.msra.mxu0 0.0
        %4771 = vmatprep.subr.mxu0 0.0
        %4772 = vmatpush2.msra.mxu0 0.0
        %4773 = vmatprep.subr.mxu0 0.0
        %4774 = vmatpush2.msra.mxu0 0.0
        %4775 = vmatprep.subr.mxu0 0.0
        %4776 = vmatpush2.msra.mxu0 0.0
        %4777 = vmatprep.subr.mxu0 0.0
        %4778 = vmatpush2.msra.mxu0 0.0
        %4779 = vmatprep.subr.mxu0 0.0
        %4780 = vmatpush2.msra.mxu0 0.0
        %4781 = vmatprep.subr.mxu0 0.0
        %4782 = vmatpush2.msra.mxu0 0.0
        %4783 = vmatprep.subr.mxu0 0.0
        %4784 = vmatpush2.msra.mxu0 0.0
        %4785 = vmatprep.subr.mxu0 0.0
        %4786 = vmatpush2.msra.mxu0 0.0
        %4787 = vmatprep.subr.mxu0 0.0
        %4788 = vmatpush2.msra.mxu0 0.0
        %4789 = vmatprep.subr.mxu0 0.0
        %4790 = vmatpush2.msra.mxu0 0.0
        %4791 = vmatprep.subr.mxu0 0.0
        %4792 = vmatpush2.msra.mxu0 0.0
        %4793 = vmatprep.subr.mxu0 0.0
        %4794 = vmatpush2.msra.mxu0 0.0
        %4795 = vmatprep.subr.mxu0 0.0
        %4796 = vmatpush2.msra.mxu0 0.0
        %4797 = vmatprep.subr.mxu0 0.0
        %4798 = vmatpush2.msra.mxu0 0.0
        %4799 = vmatprep.subr.mxu0 0.0
        %4800 = vmatpush2.msra.mxu0 0.0
        %4801 = vmatprep.mubr.f32.mxu0 0.0
        %4802 = vmatmul.mubr.f32.gmra.mxu0 %v4735
        %v4803 = vpop.f32.mrf.mxu0
        %v4804 = vadd.f32 %v759, %v4803
        %v4805 = vpop.f32.mrf.mxu0
        %4806 = vdwg.mxu0
        %s4807 = scalar_lea.vmem %s19, %s4521
        %v4808 = vld [vmem:[%s4807] sm:$0xff]
        %4825 = vrot.lane.b32.xlu0 %v4684, 96
        %v4826 = vpop.permute.xlu0 %4825
        %4827 = vrot.lane.b32.xlu0 %v4685, 96
        %v4828 = vpop.permute.xlu0 %4827
        %4829 = vrot.lane.b32.xlu0 %v4686, 96
        %v4830 = vpop.permute.xlu0 %4829
        %4831 = vrot.lane.b32.xlu0 %v4687, 96
        %v4832 = vpop.permute.xlu0 %4831
        %4833 = vrot.lane.b32.xlu0 %v4688, 96
        %v4834 = vpop.permute.xlu0 %4833
        %4835 = vrot.lane.b32.xlu0 %v4689, 96
        %v4836 = vpop.permute.xlu0 %4835
        %4837 = vrot.lane.b32.xlu0 %v4690, 96
        %v4838 = vpop.permute.xlu0 %4837
        %4839 = vrot.lane.b32.xlu0 %v4691, 96
        %v4840 = vpop.permute.xlu0 %4839
        %4841 = vrot.lane.b32.xlu0 %v4692, 96
        %v4842 = vpop.permute.xlu0 %4841
        %4843 = vrot.lane.b32.xlu0 %v4693, 96
        %v4844 = vpop.permute.xlu0 %4843
        %4845 = vrot.lane.b32.xlu0 %v4694, 96
        %v4846 = vpop.permute.xlu0 %4845
        %4847 = vrot.lane.b32.xlu0 %v4695, 96
        %v4848 = vpop.permute.xlu0 %4847
        %4849 = vrot.lane.b32.xlu0 %v4696, 96
        %v4850 = vpop.permute.xlu0 %4849
        %4851 = vrot.lane.b32.xlu0 %v4697, 96
        %v4852 = vpop.permute.xlu0 %4851
        %4853 = vrot.lane.b32.xlu0 %v4698, 96
        %v4854 = vpop.permute.xlu0 %4853
        %4855 = vrot.lane.b32.xlu0 %v4699, 96
        %v4856 = vpop.permute.xlu0 %4855
        %v4858 = vsel %vm676, %v4804, 0
        %v4860 = vsel %vm676, %v4826, 0
        %v4862 = vsel %vm676, %v4828, 0
        %v4864 = vsel %vm676, %v4830, 0
        %v4866 = vsel %vm676, %v4832, 0
        %v4868 = vsel %vm676, %v4834, 0
        %v4870 = vsel %vm676, %v4836, 0
        %v4872 = vsel %vm676, %v4838, 0
        %v4874 = vsel %vm676, %v4840, 0
        %v4876 = vsel %vm676, %v4842, 0
        %v4878 = vsel %vm676, %v4844, 0
        %v4880 = vsel %vm676, %v4846, 0
        %v4882 = vsel %vm676, %v4848, 0
        %v4884 = vsel %vm676, %v4850, 0
        %v4886 = vsel %vm676, %v4852, 0
        %v4888 = vsel %vm676, %v4854, 0
        %v4890 = vsel %vm676, %v4856, 0
        %4892 = vmatprep.subr.mxu0 0.0
        %4893 = vmatpush1.xpose.msra.mxu0 %v4890
        %4894 = vmatprep.subr.mxu0 0.0
        %4895 = vmatpush1.xpose.msra.mxu0 %v4888
        %4896 = vmatprep.subr.mxu0 0.0
        %4897 = vmatpush1.xpose.msra.mxu0 %v4886
        %4898 = vmatprep.subr.mxu0 0.0
        %4899 = vmatpush1.xpose.msra.mxu0 %v4884
        %4900 = vmatprep.subr.mxu0 0.0
        %4901 = vmatpush1.xpose.msra.mxu0 %v4882
        %4902 = vmatprep.subr.mxu0 0.0
        %4903 = vmatpush1.xpose.msra.mxu0 %v4880
        %4904 = vmatprep.subr.mxu0 0.0
        %4905 = vmatpush1.xpose.msra.mxu0 %v4878
        %4906 = vmatprep.subr.mxu0 0.0
        %4907 = vmatpush1.xpose.msra.mxu0 %v4876
        %4908 = vmatprep.subr.mxu0 0.0
        %4909 = vmatpush1.xpose.msra.mxu0 %v4874
        %4910 = vmatprep.subr.mxu0 0.0
        %4911 = vmatpush1.xpose.msra.mxu0 %v4872
        %4912 = vmatprep.subr.mxu0 0.0
        %4913 = vmatpush1.xpose.msra.mxu0 %v4870
        %4914 = vmatprep.subr.mxu0 0.0
        %4915 = vmatpush1.xpose.msra.mxu0 %v4868
        %4916 = vmatprep.subr.mxu0 0.0
        %4917 = vmatpush1.xpose.msra.mxu0 %v4866
        %4918 = vmatprep.subr.mxu0 0.0
        %4919 = vmatpush1.xpose.msra.mxu0 %v4864
        %4920 = vmatprep.subr.mxu0 0.0
        %4921 = vmatpush1.xpose.msra.mxu0 %v4862
        %4922 = vmatprep.subr.mxu0 0.0
        %4923 = vmatpush1.xpose.msra.mxu0 %v4860
        %4924 = vmatprep.subr.mxu0 0.0
        %4925 = vmatpush2.xpose.msra.mxu0 0.0
        %4926 = vmatprep.subr.mxu0 0.0
        %4927 = vmatpush2.xpose.msra.mxu0 0.0
        %4928 = vmatprep.subr.mxu0 0.0
        %4929 = vmatpush2.xpose.msra.mxu0 0.0
        %4930 = vmatprep.subr.mxu0 0.0
        %4931 = vmatpush2.xpose.msra.mxu0 0.0
        %4932 = vmatprep.subr.mxu0 0.0
        %4933 = vmatpush2.xpose.msra.mxu0 0.0
        %4934 = vmatprep.subr.mxu0 0.0
        %4935 = vmatpush2.xpose.msra.mxu0 0.0
        %4936 = vmatprep.subr.mxu0 0.0
        %4937 = vmatpush2.xpose.msra.mxu0 0.0
        %4938 = vmatprep.subr.mxu0 0.0
        %4939 = vmatpush2.xpose.msra.mxu0 0.0
        %4940 = vmatprep.subr.mxu0 0.0
        %4941 = vmatpush2.xpose.msra.mxu0 0.0
        %4942 = vmatprep.subr.mxu0 0.0
        %4943 = vmatpush2.xpose.msra.mxu0 0.0
        %4944 = vmatprep.subr.mxu0 0.0
        %4945 = vmatpush2.xpose.msra.mxu0 0.0
        %4946 = vmatprep.subr.mxu0 0.0
        %4947 = vmatpush2.xpose.msra.mxu0 0.0
        %4948 = vmatprep.subr.mxu0 0.0
        %4949 = vmatpush2.xpose.msra.mxu0 0.0
        %4950 = vmatprep.subr.mxu0 0.0
        %4951 = vmatpush2.xpose.msra.mxu0 0.0
        %4952 = vmatprep.subr.mxu0 0.0
        %4953 = vmatpush2.xpose.msra.mxu0 0.0
        %4954 = vmatprep.subr.mxu0 0.0
        %4955 = vmatpush2.xpose.msra.mxu0 0.0
        %4956 = vmatprep.mubr.f32.mxu0 0.0
        %4957 = vmatmul.mubr.f32.gmra.mxu0 %v4858
        %v4958 = vpop.f32.mrf.mxu0
        %v4959 = vadd.f32 %v4808, %v4958
        %v4960 = vpop.f32.mrf.mxu0
        %4961 = vdwg.mxu0
        %4962 = vmax.xlane.f32.xlu0 %v4959
        %v4963 = vpop.xlane.xlu0 %4962
        %v4964 = vsub.f32 %v4959, %v4963
        %v4965 = vmul.f32 %v4964, 1.442695
        %v4966 = vpow.pop %v4965
        %4967 = vmatprep.subr.mxu0 0.0
        %4968 = vmatpush1.msra.mxu0 %v1315
        %4969 = vmatprep.subr.mxu0 0.0
        %4970 = vmatpush1.msra.mxu0 %v1314
        %4971 = vmatprep.subr.mxu0 0.0
        %4972 = vmatpush1.msra.mxu0 %v1313
        %4973 = vmatprep.subr.mxu0 0.0
        %4974 = vmatpush1.msra.mxu0 %v1312
        %4975 = vmatprep.subr.mxu0 0.0
        %4976 = vmatpush1.msra.mxu0 %v1311
        %4977 = vmatprep.subr.mxu0 0.0
        %4978 = vmatpush1.msra.mxu0 %v1310
        %4979 = vmatprep.subr.mxu0 0.0
        %4980 = vmatpush1.msra.mxu0 %v1309
        %4981 = vmatprep.subr.mxu0 0.0
        %4982 = vmatpush1.msra.mxu0 %v1308
        %4983 = vmatprep.subr.mxu0 0.0
        %4984 = vmatpush1.msra.mxu0 %v1307
        %4985 = vmatprep.subr.mxu0 0.0
        %4986 = vmatpush1.msra.mxu0 %v1306
        %4987 = vmatprep.subr.mxu0 0.0
        %4988 = vmatpush1.msra.mxu0 %v1305
        %4989 = vmatprep.subr.mxu0 0.0
        %4990 = vmatpush1.msra.mxu0 %v1304
        %4991 = vmatprep.subr.mxu0 0.0
        %4992 = vmatpush1.msra.mxu0 %v1303
        %4993 = vmatprep.subr.mxu0 0.0
        %4994 = vmatpush1.msra.mxu0 %v1302
        %4995 = vmatprep.subr.mxu0 0.0
        %4996 = vmatpush1.msra.mxu0 %v1301
        %4997 = vmatprep.subr.mxu0 0.0
        %4998 = vmatpush1.msra.mxu0 %v1300
        %4999 = vmatprep.subr.mxu0 0.0
        %5000 = vmatpush2.msra.mxu0 0.0
        %5001 = vmatprep.subr.mxu0 0.0
        %5002 = vmatpush2.msra.mxu0 0.0
        %5003 = vmatprep.subr.mxu0 0.0
        %5004 = vmatpush2.msra.mxu0 0.0
        %5005 = vmatprep.subr.mxu0 0.0
        %5006 = vmatpush2.msra.mxu0 0.0
        %5007 = vmatprep.subr.mxu0 0.0
        %5008 = vmatpush2.msra.mxu0 0.0
        %5009 = vmatprep.subr.mxu0 0.0
        %5010 = vmatpush2.msra.mxu0 0.0
        %5011 = vmatprep.subr.mxu0 0.0
        %5012 = vmatpush2.msra.mxu0 0.0
        %5013 = vmatprep.subr.mxu0 0.0
        %5014 = vmatpush2.msra.mxu0 0.0
        %5015 = vmatprep.subr.mxu0 0.0
        %5016 = vmatpush2.msra.mxu0 0.0
        %5017 = vmatprep.subr.mxu0 0.0
        %5018 = vmatpush2.msra.mxu0 0.0
        %5019 = vmatprep.subr.mxu0 0.0
        %5020 = vmatpush2.msra.mxu0 0.0
        %5021 = vmatprep.subr.mxu0 0.0
        %5022 = vmatpush2.msra.mxu0 0.0
        %5023 = vmatprep.subr.mxu0 0.0
        %5024 = vmatpush2.msra.mxu0 0.0
        %5025 = vmatprep.subr.mxu0 0.0
        %5026 = vmatpush2.msra.mxu0 0.0
        %5027 = vmatprep.subr.mxu0 0.0
        %5028 = vmatpush2.msra.mxu0 0.0
        %5029 = vmatprep.subr.mxu0 0.0
        %5030 = vmatpush2.msra.mxu0 0.0
        %5031 = vmatprep.mubr.f32.mxu0 0.0
        %5032 = vmatmul.mubr.f32.gmra.mxu0 %v4966
        %v5033 = vpop.f32.mrf.mxu0
        %v5034 = vadd.f32 0.0, %v5033
        %v5035 = vpop.f32.mrf.mxu0
        %5036 = vdwg.mxu0
        %v5037 = vrcp.pop %v5034
        %v5038 = vmul.f32 %v4966, %v5037
        %5055 = vrot.lane.b32.xlu0 %v4700, 64
        %v5056 = vpop.permute.xlu0 %5055
        %5057 = vrot.lane.b32.xlu0 %v4701, 64
        %v5058 = vpop.permute.xlu0 %5057
        %5059 = vrot.lane.b32.xlu0 %v4702, 64
        %v5060 = vpop.permute.xlu0 %5059
        %5061 = vrot.lane.b32.xlu0 %v4703, 64
        %v5062 = vpop.permute.xlu0 %5061
        %5063 = vrot.lane.b32.xlu0 %v4704, 64
        %v5064 = vpop.permute.xlu0 %5063
        %5065 = vrot.lane.b32.xlu0 %v4705, 64
        %v5066 = vpop.permute.xlu0 %5065
        %5067 = vrot.lane.b32.xlu0 %v4706, 64
        %v5068 = vpop.permute.xlu0 %5067
        %5069 = vrot.lane.b32.xlu0 %v4707, 64
        %v5070 = vpop.permute.xlu0 %5069
        %5071 = vrot.lane.b32.xlu0 %v4708, 64
        %v5072 = vpop.permute.xlu0 %5071
        %5073 = vrot.lane.b32.xlu0 %v4709, 64
        %v5074 = vpop.permute.xlu0 %5073
        %5075 = vrot.lane.b32.xlu0 %v4710, 64
        %v5076 = vpop.permute.xlu0 %5075
        %5077 = vrot.lane.b32.xlu0 %v4711, 64
        %v5078 = vpop.permute.xlu0 %5077
        %5079 = vrot.lane.b32.xlu0 %v4712, 64
        %v5080 = vpop.permute.xlu0 %5079
        %5081 = vrot.lane.b32.xlu0 %v4713, 64
        %v5082 = vpop.permute.xlu0 %5081
        %5083 = vrot.lane.b32.xlu0 %v4714, 64
        %v5084 = vpop.permute.xlu0 %5083
        %5085 = vrot.lane.b32.xlu0 %v4715, 64
        %v5086 = vpop.permute.xlu0 %5085
        %5103 = vmatprep.subr.mxu0 0.0
        %5104 = vmatpush1.msra.mxu0 %v5086
        %5105 = vmatprep.subr.mxu0 0.0
        %5106 = vmatpush1.msra.mxu0 %v5084
        %5107 = vmatprep.subr.mxu0 0.0
        %5108 = vmatpush1.msra.mxu0 %v5082
        %5109 = vmatprep.subr.mxu0 0.0
        %5110 = vmatpush1.msra.mxu0 %v5080
        %5111 = vmatprep.subr.mxu0 0.0
        %5112 = vmatpush1.msra.mxu0 %v5078
        %5113 = vmatprep.subr.mxu0 0.0
        %5114 = vmatpush1.msra.mxu0 %v5076
        %5115 = vmatprep.subr.mxu0 0.0
        %5116 = vmatpush1.msra.mxu0 %v5074
        %5117 = vmatprep.subr.mxu0 0.0
        %5118 = vmatpush1.msra.mxu0 %v5072
        %5119 = vmatprep.subr.mxu0 0.0
        %5120 = vmatpush1.msra.mxu0 %v5070
        %5121 = vmatprep.subr.mxu0 0.0
        %5122 = vmatpush1.msra.mxu0 %v5068
        %5123 = vmatprep.subr.mxu0 0.0
        %5124 = vmatpush1.msra.mxu0 %v5066
        %5125 = vmatprep.subr.mxu0 0.0
        %5126 = vmatpush1.msra.mxu0 %v5064
        %5127 = vmatprep.subr.mxu0 0.0
        %5128 = vmatpush1.msra.mxu0 %v5062
        %5129 = vmatprep.subr.mxu0 0.0
        %5130 = vmatpush1.msra.mxu0 %v5060
        %5131 = vmatprep.subr.mxu0 0.0
        %5132 = vmatpush1.msra.mxu0 %v5058
        %5133 = vmatprep.subr.mxu0 0.0
        %5134 = vmatpush1.msra.mxu0 %v5056
        %5135 = vmatprep.subr.mxu0 0.0
        %5136 = vmatpush2.msra.mxu0 0.0
        %5137 = vmatprep.subr.mxu0 0.0
        %5138 = vmatpush2.msra.mxu0 0.0
        %5139 = vmatprep.subr.mxu0 0.0
        %5140 = vmatpush2.msra.mxu0 0.0
        %5141 = vmatprep.subr.mxu0 0.0
        %5142 = vmatpush2.msra.mxu0 0.0
        %5143 = vmatprep.subr.mxu0 0.0
        %5144 = vmatpush2.msra.mxu0 0.0
        %5145 = vmatprep.subr.mxu0 0.0
        %5146 = vmatpush2.msra.mxu0 0.0
        %5147 = vmatprep.subr.mxu0 0.0
        %5148 = vmatpush2.msra.mxu0 0.0
        %5149 = vmatprep.subr.mxu0 0.0
        %5150 = vmatpush2.msra.mxu0 0.0
        %5151 = vmatprep.subr.mxu0 0.0
        %5152 = vmatpush2.msra.mxu0 0.0
        %5153 = vmatprep.subr.mxu0 0.0
        %5154 = vmatpush2.msra.mxu0 0.0
        %5155 = vmatprep.subr.mxu0 0.0
        %5156 = vmatpush2.msra.mxu0 0.0
        %5157 = vmatprep.subr.mxu0 0.0
        %5158 = vmatpush2.msra.mxu0 0.0
        %5159 = vmatprep.subr.mxu0 0.0
        %5160 = vmatpush2.msra.mxu0 0.0
        %5161 = vmatprep.subr.mxu0 0.0
        %5162 = vmatpush2.msra.mxu0 0.0
        %5163 = vmatprep.subr.mxu0 0.0
        %5164 = vmatpush2.msra.mxu0 0.0
        %5165 = vmatprep.subr.mxu0 0.0
        %5166 = vmatpush2.msra.mxu0 0.0
        %5167 = vmatprep.mubr.f32.mxu0 0.0
        %5168 = vmatmul.mubr.f32.gmra.mxu0 %v5038
        %v5169 = vpop.f32.mrf.mxu0
        %v5170 = vadd.f32 0.0, %v5169
        %v5171 = vpop.f32.mrf.mxu0
        %5172 = vdwg.mxu0
        %v5174 = vsel %vm676, %v5170, 0
        %5176 = vmatprep.subr.mxu0 0.0
        %5177 = vmatpush1.msra.mxu0 0.0
        %5178 = vmatprep.subr.mxu0 0.0
        %5179 = vmatpush1.msra.mxu0 0.0
        %5180 = vmatprep.subr.mxu0 0.0
        %5181 = vmatpush1.msra.mxu0 0.0
        %5182 = vmatprep.subr.mxu0 0.0
        %5183 = vmatpush1.msra.mxu0 0.0
        %5184 = vmatprep.subr.mxu0 0.0
        %5185 = vmatpush1.msra.mxu0 0.0
        %5186 = vmatprep.subr.mxu0 0.0
        %5187 = vmatpush1.msra.mxu0 0.0
        %5188 = vmatprep.subr.mxu0 0.0
        %5189 = vmatpush1.msra.mxu0 0.0
        %5190 = vmatprep.subr.mxu0 0.0
        %5191 = vmatpush1.msra.mxu0 0.0
        %5192 = vmatprep.subr.mxu0 0.0
        %5193 = vmatpush1.msra.mxu0 0.0
        %5194 = vmatprep.subr.mxu0 0.0
        %5195 = vmatpush1.msra.mxu0 0.0
        %5196 = vmatprep.subr.mxu0 0.0
        %5197 = vmatpush1.msra.mxu0 0.0
        %5198 = vmatprep.subr.mxu0 0.0
        %5199 = vmatpush1.msra.mxu0 0.0
        %5200 = vmatprep.subr.mxu0 0.0
        %5201 = vmatpush1.msra.mxu0 %v1525
        %5202 = vmatprep.subr.mxu0 0.0
        %5203 = vmatpush1.msra.mxu0 %v1524
        %5204 = vmatprep.subr.mxu0 0.0
        %5205 = vmatpush1.msra.mxu0 %v1523
        %5206 = vmatprep.subr.mxu0 0.0
        %5207 = vmatpush1.msra.mxu0 %v1522
        %5208 = vmatprep.subr.mxu0 0.0
        %5209 = vmatpush2.msra.mxu0 0.0
        %5210 = vmatprep.subr.mxu0 0.0
        %5211 = vmatpush2.msra.mxu0 0.0
        %5212 = vmatprep.subr.mxu0 0.0
        %5213 = vmatpush2.msra.mxu0 0.0
        %5214 = vmatprep.subr.mxu0 0.0
        %5215 = vmatpush2.msra.mxu0 0.0
        %5216 = vmatprep.subr.mxu0 0.0
        %5217 = vmatpush2.msra.mxu0 0.0
        %5218 = vmatprep.subr.mxu0 0.0
        %5219 = vmatpush2.msra.mxu0 0.0
        %5220 = vmatprep.subr.mxu0 0.0
        %5221 = vmatpush2.msra.mxu0 0.0
        %5222 = vmatprep.subr.mxu0 0.0
        %5223 = vmatpush2.msra.mxu0 0.0
        %5224 = vmatprep.subr.mxu0 0.0
        %5225 = vmatpush2.msra.mxu0 0.0
        %5226 = vmatprep.subr.mxu0 0.0
        %5227 = vmatpush2.msra.mxu0 0.0
        %5228 = vmatprep.subr.mxu0 0.0
        %5229 = vmatpush2.msra.mxu0 0.0
        %5230 = vmatprep.subr.mxu0 0.0
        %5231 = vmatpush2.msra.mxu0 0.0
        %5232 = vmatprep.subr.mxu0 0.0
        %5233 = vmatpush2.msra.mxu0 0.0
        %5234 = vmatprep.subr.mxu0 0.0
        %5235 = vmatpush2.msra.mxu0 0.0
        %5236 = vmatprep.subr.mxu0 0.0
        %5237 = vmatpush2.msra.mxu0 0.0
        %5238 = vmatprep.subr.mxu0 0.0
        %5239 = vmatpush2.msra.mxu0 0.0
        %5240 = vmatprep.mubr.f32.mxu0 0.0
        %5241 = vmatmul.mubr.f32.gmra.mxu0 %v5174
        %v5242 = vpop.f32.mrf.mxu0
        %v5243 = vadd.f32 0.0, %v5242
        %v5244 = vpop.f32.mrf.mxu0
        %5245 = vdwg.mxu0
        %v5246 = vadd.f32 %v4718, %v5243
        %v5247 = vadd.f32 %v5246, %v1605
        %s5248 = sadd.s32 %s668, 6
        %s5249 = sld [smem:[#allocation3 + %s5248]]
        %s5250 = scalar_lea.vmem %s665, 192
        %v5251 = vld [vmem:[%s5250] sm:$0xff]
        %v5252 = vld [vmem:[%s5250 + $0x8] sm:$0xff]
        %v5253 = vld [vmem:[%s5250 + $0x10] sm:$0xff]
        %v5254 = vld [vmem:[%s5250 + $0x18] sm:$0xff]
        %v5255 = vsel %vm676, %v5251, 0.0
        %5256 = vadd.xlane.f32.xlu0 %v5255
        %v5257 = vpop.xlane.xlu0 %5256
        %v5258 = vsel %vm676, %v5252, 0.0
        %5259 = vadd.xlane.f32.xlu0 %v5258
        %v5260 = vpop.xlane.xlu0 %5259
        %v5261 = vsel %vm676, %v5253, 0.0
        %5262 = vadd.xlane.f32.xlu0 %v5261
        %v5263 = vpop.xlane.xlu0 %5262
        %v5264 = vsel %vm676, %v5254, 0.0
        %5265 = vadd.xlane.f32.xlu0 %v5264
        %v5266 = vpop.xlane.xlu0 %5265
        %v5267 = vmul.f32 %v5257, %v689
        %v5268 = vmul.f32 %v5260, %v689
        %v5269 = vmul.f32 %v5263, %v689
        %v5270 = vmul.f32 %v5266, %v689
        %v5271 = vsub.f32 %v5251, %v5267
        %v5272 = vsub.f32 %v5252, %v5268
        %v5273 = vsub.f32 %v5253, %v5269
        %v5274 = vsub.f32 %v5254, %v5270
        %v5275 = vmul.f32 %v5271, %v5271
        %v5276 = vmul.f32 %v5272, %v5272
        %v5277 = vmul.f32 %v5273, %v5273
        %v5278 = vmul.f32 %v5274, %v5274
        %v5279 = vsel %vm676, %v5275, 0.0
        %5280 = vadd.xlane.f32.xlu0 %v5279
        %v5281 = vpop.xlane.xlu0 %5280
        %v5282 = vsel %vm676, %v5276, 0.0
        %5283 = vadd.xlane.f32.xlu0 %v5282
        %v5284 = vpop.xlane.xlu0 %5283
        %v5285 = vsel %vm676, %v5277, 0.0
        %5286 = vadd.xlane.f32.xlu0 %v5285
        %v5287 = vpop.xlane.xlu0 %5286
        %v5288 = vsel %vm676, %v5278, 0.0
        %5289 = vadd.xlane.f32.xlu0 %v5288
        %v5290 = vpop.xlane.xlu0 %5289
        %v5291 = vmul.f32 %v5281, %v689
        %v5292 = vmul.f32 %v5284, %v689
        %v5293 = vmul.f32 %v5287, %v689
        %v5294 = vmul.f32 %v5290, %v689
        %v5295 = vadd.f32 %v5291, 1e-05
        %v5296 = vadd.f32 %v5292, 1e-05
        %v5297 = vadd.f32 %v5293, 1e-05
        %v5298 = vadd.f32 %v5294, 1e-05
        %v5299 = vrsqrt.pop %v5295
        %v5300 = vrsqrt.pop %v5296
        %v5301 = vrsqrt.pop %v5297
        %v5302 = vrsqrt.pop %v5298
        %v5303 = vmul.f32 %v5271, %v5299
        %v5304 = vmul.f32 %v5272, %v5300
        %v5305 = vmul.f32 %v5273, %v5301
        %v5306 = vmul.f32 %v5274, %v5302
        %v5307 = vmul.f32 %v5303, %v734
        %v5308 = vmul.f32 %v5304, %v734
        %v5309 = vmul.f32 %v5305, %v734
        %v5310 = vmul.f32 %v5306, %v734
        %v5311 = vadd.f32 %v5307, %v744
        %v5312 = vadd.f32 %v5308, %v744
        %v5313 = vadd.f32 %v5309, %v744
        %v5314 = vadd.f32 %v5310, %v744
        %v5316 = vsel %vm676, %v5311, 0
        %v5319 = vsel %vm676, %v5312, 0
        %v5322 = vsel %vm676, %v5313, 0
        %v5325 = vsel %vm676, %v5314, 0
        %5327 = vmatprep.subr.mxu0 0.0
        %5328 = vmatpush1.msra.mxu0 0.0
        %5329 = vmatprep.subr.mxu0 0.0
        %5330 = vmatpush1.msra.mxu0 0.0
        %5331 = vmatprep.subr.mxu0 0.0
        %5332 = vmatpush1.msra.mxu0 0.0
        %5333 = vmatprep.subr.mxu0 0.0
        %5334 = vmatpush1.msra.mxu0 0.0
        %5335 = vmatprep.subr.mxu0 0.0
        %5336 = vmatpush1.msra.mxu0 0.0
        %5337 = vmatprep.subr.mxu0 0.0
        %5338 = vmatpush1.msra.mxu0 0.0
        %5339 = vmatprep.subr.mxu0 0.0
        %5340 = vmatpush1.msra.mxu0 0.0
        %5341 = vmatprep.subr.mxu0 0.0
        %5342 = vmatpush1.msra.mxu0 0.0
        %5343 = vmatprep.subr.mxu0 0.0
        %5344 = vmatpush1.msra.mxu0 0.0
        %5345 = vmatprep.subr.mxu0 0.0
        %5346 = vmatpush1.msra.mxu0 0.0
        %5347 = vmatprep.subr.mxu0 0.0
        %5348 = vmatpush1.msra.mxu0 0.0
        %5349 = vmatprep.subr.mxu0 0.0
        %5350 = vmatpush1.msra.mxu0 0.0
        %5351 = vmatprep.subr.mxu0 0.0
        %5352 = vmatpush1.msra.mxu0 %v753
        %5353 = vmatprep.subr.mxu0 0.0
        %5354 = vmatpush1.msra.mxu0 %v752
        %5355 = vmatprep.subr.mxu0 0.0
        %5356 = vmatpush1.msra.mxu0 %v751
        %5357 = vmatprep.subr.mxu0 0.0
        %5358 = vmatpush1.msra.mxu0 %v750
        %5359 = vmatprep.subr.mxu0 0.0
        %5360 = vmatpush2.msra.mxu0 0.0
        %5361 = vmatprep.subr.mxu0 0.0
        %5362 = vmatpush2.msra.mxu0 0.0
        %5363 = vmatprep.subr.mxu0 0.0
        %5364 = vmatpush2.msra.mxu0 0.0
        %5365 = vmatprep.subr.mxu0 0.0
        %5366 = vmatpush2.msra.mxu0 0.0
        %5367 = vmatprep.subr.mxu0 0.0
        %5368 = vmatpush2.msra.mxu0 0.0
        %5369 = vmatprep.subr.mxu0 0.0
        %5370 = vmatpush2.msra.mxu0 0.0
        %5371 = vmatprep.subr.mxu0 0.0
        %5372 = vmatpush2.msra.mxu0 0.0
        %5373 = vmatprep.subr.mxu0 0.0
        %5374 = vmatpush2.msra.mxu0 0.0
        %5375 = vmatprep.subr.mxu0 0.0
        %5376 = vmatpush2.msra.mxu0 0.0
        %5377 = vmatprep.subr.mxu0 0.0
        %5378 = vmatpush2.msra.mxu0 0.0
        %5379 = vmatprep.subr.mxu0 0.0
        %5380 = vmatpush2.msra.mxu0 0.0
        %5381 = vmatprep.subr.mxu0 0.0
        %5382 = vmatpush2.msra.mxu0 0.0
        %5383 = vmatprep.subr.mxu0 0.0
        %5384 = vmatpush2.msra.mxu0 0.0
        %5385 = vmatprep.subr.mxu0 0.0
        %5386 = vmatpush2.msra.mxu0 0.0
        %5387 = vmatprep.subr.mxu0 0.0
        %5388 = vmatpush2.msra.mxu0 0.0
        %5389 = vmatprep.subr.mxu0 0.0
        %5390 = vmatpush2.msra.mxu0 0.0
        %5391 = vmatprep.mubr.f32.mxu0 0.0
        %5392 = vmatmul.mubr.f32.gmra.mxu0 %v5316
        %v5393 = vpop.f32.mrf.mxu0
        %v5394 = vadd.f32 %v759, %v5393
        %v5395 = vpop.f32.mrf.mxu0
        %5396 = vmatprep.mubr.f32.mxu0 0.0
        %5397 = vmatmul.mubr.f32.gmra.mxu0 %v5319
        %v5398 = vpop.f32.mrf.mxu0
        %v5399 = vadd.f32 %v759, %v5398
        %v5400 = vpop.f32.mrf.mxu0
        %5401 = vmatprep.mubr.f32.mxu0 0.0
        %5402 = vmatmul.mubr.f32.gmra.mxu0 %v5322
        %v5403 = vpop.f32.mrf.mxu0
        %v5404 = vadd.f32 %v759, %v5403
        %v5405 = vpop.f32.mrf.mxu0
        %5406 = vmatprep.mubr.f32.mxu0 0.0
        %5407 = vmatmul.mubr.f32.gmra.mxu0 %v5325
        %v5408 = vpop.f32.mrf.mxu0
        %v5409 = vadd.f32 %v759, %v5408
        %v5410 = vpop.f32.mrf.mxu0
        %5411 = vdwg.mxu0
        %v5412 = vmul.f32 %v5394, %v891
        %v5413 = vmul.f32 %v5399, %v893
        %v5414 = vmul.f32 %v5404, %v895
        %v5415 = vmul.f32 %v5409, %v897
        %v5416 = vmul.f32 %v5394, %v899
        %v5417 = vmul.f32 %v5399, %v901
        %v5418 = vmul.f32 %v5404, %v903
        %v5419 = vmul.f32 %v5409, %v905
        %v5420 = vmul.f32 %v5394, %v907
        %v5421 = vmul.f32 %v5399, %v909
        %v5422 = vmul.f32 %v5404, %v911
        %v5423 = vmul.f32 %v5409, %v913
        %v5424 = vmul.f32 %v5394, %v915
        %v5425 = vmul.f32 %v5399, %v917
        %v5426 = vmul.f32 %v5404, %v919
        %v5427 = vmul.f32 %v5409, %v921
        %v5428 = vmul.f32 %v5394, %v987
        %v5429 = vmul.f32 %v5399, %v989
        %v5430 = vmul.f32 %v5404, %v991
        %v5431 = vmul.f32 %v5409, %v993
        %v5432 = vmul.f32 %v5394, %v995
        %v5433 = vmul.f32 %v5399, %v997
        %v5434 = vmul.f32 %v5404, %v999
        %v5435 = vmul.f32 %v5409, %v1001
        %v5436 = vmul.f32 %v5394, %v1003
        %v5437 = vmul.f32 %v5399, %v1005
        %v5438 = vmul.f32 %v5404, %v1007
        %v5439 = vmul.f32 %v5409, %v1009
        %v5440 = vmul.f32 %v5394, %v1011
        %v5441 = vmul.f32 %v5399, %v1013
        %v5442 = vmul.f32 %v5404, %v1015
        %v5443 = vmul.f32 %v5409, %v1017
        %s5444 = sadd.s32 %s5249, 192
        %s5445 = scalar_lea.vmem %s665, %s5444
        %v5446 = vld [vmem:[%s5445] sm:$0xff]
        %v5447 = vsel %vm676, %v5446, 0.0
        %5448 = vadd.xlane.f32.xlu0 %v5447
        %v5449 = vpop.xlane.xlu0 %5448
        %v5450 = vmul.f32 %v5449, %v689
        %v5451 = vsub.f32 %v5446, %v5450
        %v5452 = vmul.f32 %v5451, %v5451
        %v5453 = vsel %vm676, %v5452, 0.0
        %5454 = vadd.xlane.f32.xlu0 %v5453
        %v5455 = vpop.xlane.xlu0 %5454
        %v5456 = vmul.f32 %v5455, %v689
        %v5457 = vadd.f32 %v5456, 1e-05
        %v5458 = vrsqrt.pop %v5457
        %v5459 = vmul.f32 %v5451, %v5458
        %v5460 = vmul.f32 %v5459, %v734
        %v5461 = vadd.f32 %v5460, %v744
        %v5463 = vsel %vm676, %v5461, 0
        %5465 = vmatprep.subr.mxu0 0.0
        %5466 = vmatpush1.msra.mxu0 0.0
        %5467 = vmatprep.subr.mxu0 0.0
        %5468 = vmatpush1.msra.mxu0 0.0
        %5469 = vmatprep.subr.mxu0 0.0
        %5470 = vmatpush1.msra.mxu0 0.0
        %5471 = vmatprep.subr.mxu0 0.0
        %5472 = vmatpush1.msra.mxu0 0.0
        %5473 = vmatprep.subr.mxu0 0.0
        %5474 = vmatpush1.msra.mxu0 0.0
        %5475 = vmatprep.subr.mxu0 0.0
        %5476 = vmatpush1.msra.mxu0 0.0
        %5477 = vmatprep.subr.mxu0 0.0
        %5478 = vmatpush1.msra.mxu0 0.0
        %5479 = vmatprep.subr.mxu0 0.0
        %5480 = vmatpush1.msra.mxu0 0.0
        %5481 = vmatprep.subr.mxu0 0.0
        %5482 = vmatpush1.msra.mxu0 0.0
        %5483 = vmatprep.subr.mxu0 0.0
        %5484 = vmatpush1.msra.mxu0 0.0
        %5485 = vmatprep.subr.mxu0 0.0
        %5486 = vmatpush1.msra.mxu0 0.0
        %5487 = vmatprep.subr.mxu0 0.0
        %5488 = vmatpush1.msra.mxu0 0.0
        %5489 = vmatprep.subr.mxu0 0.0
        %5490 = vmatpush1.msra.mxu0 %v753
        %5491 = vmatprep.subr.mxu0 0.0
        %5492 = vmatpush1.msra.mxu0 %v752
        %5493 = vmatprep.subr.mxu0 0.0
        %5494 = vmatpush1.msra.mxu0 %v751
        %5495 = vmatprep.subr.mxu0 0.0
        %5496 = vmatpush1.msra.mxu0 %v750
        %5497 = vmatprep.subr.mxu0 0.0
        %5498 = vmatpush2.msra.mxu0 0.0
        %5499 = vmatprep.subr.mxu0 0.0
        %5500 = vmatpush2.msra.mxu0 0.0
        %5501 = vmatprep.subr.mxu0 0.0
        %5502 = vmatpush2.msra.mxu0 0.0
        %5503 = vmatprep.subr.mxu0 0.0
        %5504 = vmatpush2.msra.mxu0 0.0
        %5505 = vmatprep.subr.mxu0 0.0
        %5506 = vmatpush2.msra.mxu0 0.0
        %5507 = vmatprep.subr.mxu0 0.0
        %5508 = vmatpush2.msra.mxu0 0.0
        %5509 = vmatprep.subr.mxu0 0.0
        %5510 = vmatpush2.msra.mxu0 0.0
        %5511 = vmatprep.subr.mxu0 0.0
        %5512 = vmatpush2.msra.mxu0 0.0
        %5513 = vmatprep.subr.mxu0 0.0
        %5514 = vmatpush2.msra.mxu0 0.0
        %5515 = vmatprep.subr.mxu0 0.0
        %5516 = vmatpush2.msra.mxu0 0.0
        %5517 = vmatprep.subr.mxu0 0.0
        %5518 = vmatpush2.msra.mxu0 0.0
        %5519 = vmatprep.subr.mxu0 0.0
        %5520 = vmatpush2.msra.mxu0 0.0
        %5521 = vmatprep.subr.mxu0 0.0
        %5522 = vmatpush2.msra.mxu0 0.0
        %5523 = vmatprep.subr.mxu0 0.0
        %5524 = vmatpush2.msra.mxu0 0.0
        %5525 = vmatprep.subr.mxu0 0.0
        %5526 = vmatpush2.msra.mxu0 0.0
        %5527 = vmatprep.subr.mxu0 0.0
        %5528 = vmatpush2.msra.mxu0 0.0
        %5529 = vmatprep.mubr.f32.mxu0 0.0
        %5530 = vmatmul.mubr.f32.gmra.mxu0 %v5463
        %v5531 = vpop.f32.mrf.mxu0
        %v5532 = vadd.f32 %v759, %v5531
        %v5533 = vpop.f32.mrf.mxu0
        %5534 = vdwg.mxu0
        %s5535 = scalar_lea.vmem %s19, %s5249
        %v5536 = vld [vmem:[%s5535] sm:$0xff]
        %5553 = vrot.lane.b32.xlu0 %v5412, 96
        %v5554 = vpop.permute.xlu0 %5553
        %5555 = vrot.lane.b32.xlu0 %v5413, 96
        %v5556 = vpop.permute.xlu0 %5555
        %5557 = vrot.lane.b32.xlu0 %v5414, 96
        %v5558 = vpop.permute.xlu0 %5557
        %5559 = vrot.lane.b32.xlu0 %v5415, 96
        %v5560 = vpop.permute.xlu0 %5559
        %5561 = vrot.lane.b32.xlu0 %v5416, 96
        %v5562 = vpop.permute.xlu0 %5561
        %5563 = vrot.lane.b32.xlu0 %v5417, 96
        %v5564 = vpop.permute.xlu0 %5563
        %5565 = vrot.lane.b32.xlu0 %v5418, 96
        %v5566 = vpop.permute.xlu0 %5565
        %5567 = vrot.lane.b32.xlu0 %v5419, 96
        %v5568 = vpop.permute.xlu0 %5567
        %5569 = vrot.lane.b32.xlu0 %v5420, 96
        %v5570 = vpop.permute.xlu0 %5569
        %5571 = vrot.lane.b32.xlu0 %v5421, 96
        %v5572 = vpop.permute.xlu0 %5571
        %5573 = vrot.lane.b32.xlu0 %v5422, 96
        %v5574 = vpop.permute.xlu0 %5573
        %5575 = vrot.lane.b32.xlu0 %v5423, 96
        %v5576 = vpop.permute.xlu0 %5575
        %5577 = vrot.lane.b32.xlu0 %v5424, 96
        %v5578 = vpop.permute.xlu0 %5577
        %5579 = vrot.lane.b32.xlu0 %v5425, 96
        %v5580 = vpop.permute.xlu0 %5579
        %5581 = vrot.lane.b32.xlu0 %v5426, 96
        %v5582 = vpop.permute.xlu0 %5581
        %5583 = vrot.lane.b32.xlu0 %v5427, 96
        %v5584 = vpop.permute.xlu0 %5583
        %v5586 = vsel %vm676, %v5532, 0
        %v5588 = vsel %vm676, %v5554, 0
        %v5590 = vsel %vm676, %v5556, 0
        %v5592 = vsel %vm676, %v5558, 0
        %v5594 = vsel %vm676, %v5560, 0
        %v5596 = vsel %vm676, %v5562, 0
        %v5598 = vsel %vm676, %v5564, 0
        %v5600 = vsel %vm676, %v5566, 0
        %v5602 = vsel %vm676, %v5568, 0
        %v5604 = vsel %vm676, %v5570, 0
        %v5606 = vsel %vm676, %v5572, 0
        %v5608 = vsel %vm676, %v5574, 0
        %v5610 = vsel %vm676, %v5576, 0
        %v5612 = vsel %vm676, %v5578, 0
        %v5614 = vsel %vm676, %v5580, 0
        %v5616 = vsel %vm676, %v5582, 0
        %v5618 = vsel %vm676, %v5584, 0
        %5620 = vmatprep.subr.mxu0 0.0
        %5621 = vmatpush1.xpose.msra.mxu0 %v5618
        %5622 = vmatprep.subr.mxu0 0.0
        %5623 = vmatpush1.xpose.msra.mxu0 %v5616
        %5624 = vmatprep.subr.mxu0 0.0
        %5625 = vmatpush1.xpose.msra.mxu0 %v5614
        %5626 = vmatprep.subr.mxu0 0.0
        %5627 = vmatpush1.xpose.msra.mxu0 %v5612
        %5628 = vmatprep.subr.mxu0 0.0
        %5629 = vmatpush1.xpose.msra.mxu0 %v5610
        %5630 = vmatprep.subr.mxu0 0.0
        %5631 = vmatpush1.xpose.msra.mxu0 %v5608
        %5632 = vmatprep.subr.mxu0 0.0
        %5633 = vmatpush1.xpose.msra.mxu0 %v5606
        %5634 = vmatprep.subr.mxu0 0.0
        %5635 = vmatpush1.xpose.msra.mxu0 %v5604
        %5636 = vmatprep.subr.mxu0 0.0
        %5637 = vmatpush1.xpose.msra.mxu0 %v5602
        %5638 = vmatprep.subr.mxu0 0.0
        %5639 = vmatpush1.xpose.msra.mxu0 %v5600
        %5640 = vmatprep.subr.mxu0 0.0
        %5641 = vmatpush1.xpose.msra.mxu0 %v5598
        %5642 = vmatprep.subr.mxu0 0.0
        %5643 = vmatpush1.xpose.msra.mxu0 %v5596
        %5644 = vmatprep.subr.mxu0 0.0
        %5645 = vmatpush1.xpose.msra.mxu0 %v5594
        %5646 = vmatprep.subr.mxu0 0.0
        %5647 = vmatpush1.xpose.msra.mxu0 %v5592
        %5648 = vmatprep.subr.mxu0 0.0
        %5649 = vmatpush1.xpose.msra.mxu0 %v5590
        %5650 = vmatprep.subr.mxu0 0.0
        %5651 = vmatpush1.xpose.msra.mxu0 %v5588
        %5652 = vmatprep.subr.mxu0 0.0
        %5653 = vmatpush2.xpose.msra.mxu0 0.0
        %5654 = vmatprep.subr.mxu0 0.0
        %5655 = vmatpush2.xpose.msra.mxu0 0.0
        %5656 = vmatprep.subr.mxu0 0.0
        %5657 = vmatpush2.xpose.msra.mxu0 0.0
        %5658 = vmatprep.subr.mxu0 0.0
        %5659 = vmatpush2.xpose.msra.mxu0 0.0
        %5660 = vmatprep.subr.mxu0 0.0
        %5661 = vmatpush2.xpose.msra.mxu0 0.0
        %5662 = vmatprep.subr.mxu0 0.0
        %5663 = vmatpush2.xpose.msra.mxu0 0.0
        %5664 = vmatprep.subr.mxu0 0.0
        %5665 = vmatpush2.xpose.msra.mxu0 0.0
        %5666 = vmatprep.subr.mxu0 0.0
        %5667 = vmatpush2.xpose.msra.mxu0 0.0
        %5668 = vmatprep.subr.mxu0 0.0
        %5669 = vmatpush2.xpose.msra.mxu0 0.0
        %5670 = vmatprep.subr.mxu0 0.0
        %5671 = vmatpush2.xpose.msra.mxu0 0.0
        %5672 = vmatprep.subr.mxu0 0.0
        %5673 = vmatpush2.xpose.msra.mxu0 0.0
        %5674 = vmatprep.subr.mxu0 0.0
        %5675 = vmatpush2.xpose.msra.mxu0 0.0
        %5676 = vmatprep.subr.mxu0 0.0
        %5677 = vmatpush2.xpose.msra.mxu0 0.0
        %5678 = vmatprep.subr.mxu0 0.0
        %5679 = vmatpush2.xpose.msra.mxu0 0.0
        %5680 = vmatprep.subr.mxu0 0.0
        %5681 = vmatpush2.xpose.msra.mxu0 0.0
        %5682 = vmatprep.subr.mxu0 0.0
        %5683 = vmatpush2.xpose.msra.mxu0 0.0
        %5684 = vmatprep.mubr.f32.mxu0 0.0
        %5685 = vmatmul.mubr.f32.gmra.mxu0 %v5586
        %v5686 = vpop.f32.mrf.mxu0
        %v5687 = vadd.f32 %v5536, %v5686
        %v5688 = vpop.f32.mrf.mxu0
        %5689 = vdwg.mxu0
        %5690 = vmax.xlane.f32.xlu0 %v5687
        %v5691 = vpop.xlane.xlu0 %5690
        %v5692 = vsub.f32 %v5687, %v5691
        %v5693 = vmul.f32 %v5692, 1.442695
        %v5694 = vpow.pop %v5693
        %5695 = vmatprep.subr.mxu0 0.0
        %5696 = vmatpush1.msra.mxu0 %v1315
        %5697 = vmatprep.subr.mxu0 0.0
        %5698 = vmatpush1.msra.mxu0 %v1314
        %5699 = vmatprep.subr.mxu0 0.0
        %5700 = vmatpush1.msra.mxu0 %v1313
        %5701 = vmatprep.subr.mxu0 0.0
        %5702 = vmatpush1.msra.mxu0 %v1312
        %5703 = vmatprep.subr.mxu0 0.0
        %5704 = vmatpush1.msra.mxu0 %v1311
        %5705 = vmatprep.subr.mxu0 0.0
        %5706 = vmatpush1.msra.mxu0 %v1310
        %5707 = vmatprep.subr.mxu0 0.0
        %5708 = vmatpush1.msra.mxu0 %v1309
        %5709 = vmatprep.subr.mxu0 0.0
        %5710 = vmatpush1.msra.mxu0 %v1308
        %5711 = vmatprep.subr.mxu0 0.0
        %5712 = vmatpush1.msra.mxu0 %v1307
        %5713 = vmatprep.subr.mxu0 0.0
        %5714 = vmatpush1.msra.mxu0 %v1306
        %5715 = vmatprep.subr.mxu0 0.0
        %5716 = vmatpush1.msra.mxu0 %v1305
        %5717 = vmatprep.subr.mxu0 0.0
        %5718 = vmatpush1.msra.mxu0 %v1304
        %5719 = vmatprep.subr.mxu0 0.0
        %5720 = vmatpush1.msra.mxu0 %v1303
        %5721 = vmatprep.subr.mxu0 0.0
        %5722 = vmatpush1.msra.mxu0 %v1302
        %5723 = vmatprep.subr.mxu0 0.0
        %5724 = vmatpush1.msra.mxu0 %v1301
        %5725 = vmatprep.subr.mxu0 0.0
        %5726 = vmatpush1.msra.mxu0 %v1300
        %5727 = vmatprep.subr.mxu0 0.0
        %5728 = vmatpush2.msra.mxu0 0.0
        %5729 = vmatprep.subr.mxu0 0.0
        %5730 = vmatpush2.msra.mxu0 0.0
        %5731 = vmatprep.subr.mxu0 0.0
        %5732 = vmatpush2.msra.mxu0 0.0
        %5733 = vmatprep.subr.mxu0 0.0
        %5734 = vmatpush2.msra.mxu0 0.0
        %5735 = vmatprep.subr.mxu0 0.0
        %5736 = vmatpush2.msra.mxu0 0.0
        %5737 = vmatprep.subr.mxu0 0.0
        %5738 = vmatpush2.msra.mxu0 0.0
        %5739 = vmatprep.subr.mxu0 0.0
        %5740 = vmatpush2.msra.mxu0 0.0
        %5741 = vmatprep.subr.mxu0 0.0
        %5742 = vmatpush2.msra.mxu0 0.0
        %5743 = vmatprep.subr.mxu0 0.0
        %5744 = vmatpush2.msra.mxu0 0.0
        %5745 = vmatprep.subr.mxu0 0.0
        %5746 = vmatpush2.msra.mxu0 0.0
        %5747 = vmatprep.subr.mxu0 0.0
        %5748 = vmatpush2.msra.mxu0 0.0
        %5749 = vmatprep.subr.mxu0 0.0
        %5750 = vmatpush2.msra.mxu0 0.0
        %5751 = vmatprep.subr.mxu0 0.0
        %5752 = vmatpush2.msra.mxu0 0.0
        %5753 = vmatprep.subr.mxu0 0.0
        %5754 = vmatpush2.msra.mxu0 0.0
        %5755 = vmatprep.subr.mxu0 0.0
        %5756 = vmatpush2.msra.mxu0 0.0
        %5757 = vmatprep.subr.mxu0 0.0
        %5758 = vmatpush2.msra.mxu0 0.0
        %5759 = vmatprep.mubr.f32.mxu0 0.0
        %5760 = vmatmul.mubr.f32.gmra.mxu0 %v5694
        %v5761 = vpop.f32.mrf.mxu0
        %v5762 = vadd.f32 0.0, %v5761
        %v5763 = vpop.f32.mrf.mxu0
        %5764 = vdwg.mxu0
        %v5765 = vrcp.pop %v5762
        %v5766 = vmul.f32 %v5694, %v5765
        %5783 = vrot.lane.b32.xlu0 %v5428, 64
        %v5784 = vpop.permute.xlu0 %5783
        %5785 = vrot.lane.b32.xlu0 %v5429, 64
        %v5786 = vpop.permute.xlu0 %5785
        %5787 = vrot.lane.b32.xlu0 %v5430, 64
        %v5788 = vpop.permute.xlu0 %5787
        %5789 = vrot.lane.b32.xlu0 %v5431, 64
        %v5790 = vpop.permute.xlu0 %5789
        %5791 = vrot.lane.b32.xlu0 %v5432, 64
        %v5792 = vpop.permute.xlu0 %5791
        %5793 = vrot.lane.b32.xlu0 %v5433, 64
        %v5794 = vpop.permute.xlu0 %5793
        %5795 = vrot.lane.b32.xlu0 %v5434, 64
        %v5796 = vpop.permute.xlu0 %5795
        %5797 = vrot.lane.b32.xlu0 %v5435, 64
        %v5798 = vpop.permute.xlu0 %5797
        %5799 = vrot.lane.b32.xlu0 %v5436, 64
        %v5800 = vpop.permute.xlu0 %5799
        %5801 = vrot.lane.b32.xlu0 %v5437, 64
        %v5802 = vpop.permute.xlu0 %5801
        %5803 = vrot.lane.b32.xlu0 %v5438, 64
        %v5804 = vpop.permute.xlu0 %5803
        %5805 = vrot.lane.b32.xlu0 %v5439, 64
        %v5806 = vpop.permute.xlu0 %5805
        %5807 = vrot.lane.b32.xlu0 %v5440, 64
        %v5808 = vpop.permute.xlu0 %5807
        %5809 = vrot.lane.b32.xlu0 %v5441, 64
        %v5810 = vpop.permute.xlu0 %5809
        %5811 = vrot.lane.b32.xlu0 %v5442, 64
        %v5812 = vpop.permute.xlu0 %5811
        %5813 = vrot.lane.b32.xlu0 %v5443, 64
        %v5814 = vpop.permute.xlu0 %5813
        %5831 = vmatprep.subr.mxu0 0.0
        %5832 = vmatpush1.msra.mxu0 %v5814
        %5833 = vmatprep.subr.mxu0 0.0
        %5834 = vmatpush1.msra.mxu0 %v5812
        %5835 = vmatprep.subr.mxu0 0.0
        %5836 = vmatpush1.msra.mxu0 %v5810
        %5837 = vmatprep.subr.mxu0 0.0
        %5838 = vmatpush1.msra.mxu0 %v5808
        %5839 = vmatprep.subr.mxu0 0.0
        %5840 = vmatpush1.msra.mxu0 %v5806
        %5841 = vmatprep.subr.mxu0 0.0
        %5842 = vmatpush1.msra.mxu0 %v5804
        %5843 = vmatprep.subr.mxu0 0.0
        %5844 = vmatpush1.msra.mxu0 %v5802
        %5845 = vmatprep.subr.mxu0 0.0
        %5846 = vmatpush1.msra.mxu0 %v5800
        %5847 = vmatprep.subr.mxu0 0.0
        %5848 = vmatpush1.msra.mxu0 %v5798
        %5849 = vmatprep.subr.mxu0 0.0
        %5850 = vmatpush1.msra.mxu0 %v5796
        %5851 = vmatprep.subr.mxu0 0.0
        %5852 = vmatpush1.msra.mxu0 %v5794
        %5853 = vmatprep.subr.mxu0 0.0
        %5854 = vmatpush1.msra.mxu0 %v5792
        %5855 = vmatprep.subr.mxu0 0.0
        %5856 = vmatpush1.msra.mxu0 %v5790
        %5857 = vmatprep.subr.mxu0 0.0
        %5858 = vmatpush1.msra.mxu0 %v5788
        %5859 = vmatprep.subr.mxu0 0.0
        %5860 = vmatpush1.msra.mxu0 %v5786
        %5861 = vmatprep.subr.mxu0 0.0
        %5862 = vmatpush1.msra.mxu0 %v5784
        %5863 = vmatprep.subr.mxu0 0.0
        %5864 = vmatpush2.msra.mxu0 0.0
        %5865 = vmatprep.subr.mxu0 0.0
        %5866 = vmatpush2.msra.mxu0 0.0
        %5867 = vmatprep.subr.mxu0 0.0
        %5868 = vmatpush2.msra.mxu0 0.0
        %5869 = vmatprep.subr.mxu0 0.0
        %5870 = vmatpush2.msra.mxu0 0.0
        %5871 = vmatprep.subr.mxu0 0.0
        %5872 = vmatpush2.msra.mxu0 0.0
        %5873 = vmatprep.subr.mxu0 0.0
        %5874 = vmatpush2.msra.mxu0 0.0
        %5875 = vmatprep.subr.mxu0 0.0
        %5876 = vmatpush2.msra.mxu0 0.0
        %5877 = vmatprep.subr.mxu0 0.0
        %5878 = vmatpush2.msra.mxu0 0.0
        %5879 = vmatprep.subr.mxu0 0.0
        %5880 = vmatpush2.msra.mxu0 0.0
        %5881 = vmatprep.subr.mxu0 0.0
        %5882 = vmatpush2.msra.mxu0 0.0
        %5883 = vmatprep.subr.mxu0 0.0
        %5884 = vmatpush2.msra.mxu0 0.0
        %5885 = vmatprep.subr.mxu0 0.0
        %5886 = vmatpush2.msra.mxu0 0.0
        %5887 = vmatprep.subr.mxu0 0.0
        %5888 = vmatpush2.msra.mxu0 0.0
        %5889 = vmatprep.subr.mxu0 0.0
        %5890 = vmatpush2.msra.mxu0 0.0
        %5891 = vmatprep.subr.mxu0 0.0
        %5892 = vmatpush2.msra.mxu0 0.0
        %5893 = vmatprep.subr.mxu0 0.0
        %5894 = vmatpush2.msra.mxu0 0.0
        %5895 = vmatprep.mubr.f32.mxu0 0.0
        %5896 = vmatmul.mubr.f32.gmra.mxu0 %v5766
        %v5897 = vpop.f32.mrf.mxu0
        %v5898 = vadd.f32 0.0, %v5897
        %v5899 = vpop.f32.mrf.mxu0
        %5900 = vdwg.mxu0
        %v5902 = vsel %vm676, %v5898, 0
        %5904 = vmatprep.subr.mxu0 0.0
        %5905 = vmatpush1.msra.mxu0 0.0
        %5906 = vmatprep.subr.mxu0 0.0
        %5907 = vmatpush1.msra.mxu0 0.0
        %5908 = vmatprep.subr.mxu0 0.0
        %5909 = vmatpush1.msra.mxu0 0.0
        %5910 = vmatprep.subr.mxu0 0.0
        %5911 = vmatpush1.msra.mxu0 0.0
        %5912 = vmatprep.subr.mxu0 0.0
        %5913 = vmatpush1.msra.mxu0 0.0
        %5914 = vmatprep.subr.mxu0 0.0
        %5915 = vmatpush1.msra.mxu0 0.0
        %5916 = vmatprep.subr.mxu0 0.0
        %5917 = vmatpush1.msra.mxu0 0.0
        %5918 = vmatprep.subr.mxu0 0.0
        %5919 = vmatpush1.msra.mxu0 0.0
        %5920 = vmatprep.subr.mxu0 0.0
        %5921 = vmatpush1.msra.mxu0 0.0
        %5922 = vmatprep.subr.mxu0 0.0
        %5923 = vmatpush1.msra.mxu0 0.0
        %5924 = vmatprep.subr.mxu0 0.0
        %5925 = vmatpush1.msra.mxu0 0.0
        %5926 = vmatprep.subr.mxu0 0.0
        %5927 = vmatpush1.msra.mxu0 0.0
        %5928 = vmatprep.subr.mxu0 0.0
        %5929 = vmatpush1.msra.mxu0 %v1525
        %5930 = vmatprep.subr.mxu0 0.0
        %5931 = vmatpush1.msra.mxu0 %v1524
        %5932 = vmatprep.subr.mxu0 0.0
        %5933 = vmatpush1.msra.mxu0 %v1523
        %5934 = vmatprep.subr.mxu0 0.0
        %5935 = vmatpush1.msra.mxu0 %v1522
        %5936 = vmatprep.subr.mxu0 0.0
        %5937 = vmatpush2.msra.mxu0 0.0
        %5938 = vmatprep.subr.mxu0 0.0
        %5939 = vmatpush2.msra.mxu0 0.0
        %5940 = vmatprep.subr.mxu0 0.0
        %5941 = vmatpush2.msra.mxu0 0.0
        %5942 = vmatprep.subr.mxu0 0.0
        %5943 = vmatpush2.msra.mxu0 0.0
        %5944 = vmatprep.subr.mxu0 0.0
        %5945 = vmatpush2.msra.mxu0 0.0
        %5946 = vmatprep.subr.mxu0 0.0
        %5947 = vmatpush2.msra.mxu0 0.0
        %5948 = vmatprep.subr.mxu0 0.0
        %5949 = vmatpush2.msra.mxu0 0.0
        %5950 = vmatprep.subr.mxu0 0.0
        %5951 = vmatpush2.msra.mxu0 0.0
        %5952 = vmatprep.subr.mxu0 0.0
        %5953 = vmatpush2.msra.mxu0 0.0
        %5954 = vmatprep.subr.mxu0 0.0
        %5955 = vmatpush2.msra.mxu0 0.0
        %5956 = vmatprep.subr.mxu0 0.0
        %5957 = vmatpush2.msra.mxu0 0.0
        %5958 = vmatprep.subr.mxu0 0.0
        %5959 = vmatpush2.msra.mxu0 0.0
        %5960 = vmatprep.subr.mxu0 0.0
        %5961 = vmatpush2.msra.mxu0 0.0
        %5962 = vmatprep.subr.mxu0 0.0
        %5963 = vmatpush2.msra.mxu0 0.0
        %5964 = vmatprep.subr.mxu0 0.0
        %5965 = vmatpush2.msra.mxu0 0.0
        %5966 = vmatprep.subr.mxu0 0.0
        %5967 = vmatpush2.msra.mxu0 0.0
        %5968 = vmatprep.mubr.f32.mxu0 0.0
        %5969 = vmatmul.mubr.f32.gmra.mxu0 %v5902
        %v5970 = vpop.f32.mrf.mxu0
        %v5971 = vadd.f32 0.0, %v5970
        %v5972 = vpop.f32.mrf.mxu0
        %5973 = vdwg.mxu0
        %v5974 = vadd.f32 %v5446, %v5971
        %v5975 = vadd.f32 %v5974, %v1605
        %s5976 = sadd.s32 %s668, 7
        %s5977 = sld [smem:[#allocation3 + %s5976]]
        %s5978 = scalar_lea.vmem %s665, 224
        %v5979 = vld [vmem:[%s5978] sm:$0xff]
        %v5980 = vld [vmem:[%s5978 + $0x8] sm:$0xff]
        %v5981 = vld [vmem:[%s5978 + $0x10] sm:$0xff]
        %v5982 = vld [vmem:[%s5978 + $0x18] sm:$0xff]
        %v5983 = vsel %vm676, %v5979, 0.0
        %5984 = vadd.xlane.f32.xlu0 %v5983
        %v5985 = vpop.xlane.xlu0 %5984
        %v5986 = vsel %vm676, %v5980, 0.0
        %5987 = vadd.xlane.f32.xlu0 %v5986
        %v5988 = vpop.xlane.xlu0 %5987
        %v5989 = vsel %vm676, %v5981, 0.0
        %5990 = vadd.xlane.f32.xlu0 %v5989
        %v5991 = vpop.xlane.xlu0 %5990
        %v5992 = vsel %vm676, %v5982, 0.0
        %5993 = vadd.xlane.f32.xlu0 %v5992
        %v5994 = vpop.xlane.xlu0 %5993
        %v5995 = vmul.f32 %v5985, %v689
        %v5996 = vmul.f32 %v5988, %v689
        %v5997 = vmul.f32 %v5991, %v689
        %v5998 = vmul.f32 %v5994, %v689
        %v5999 = vsub.f32 %v5979, %v5995
        %v6000 = vsub.f32 %v5980, %v5996
        %v6001 = vsub.f32 %v5981, %v5997
        %v6002 = vsub.f32 %v5982, %v5998
        %v6003 = vmul.f32 %v5999, %v5999
        %v6004 = vmul.f32 %v6000, %v6000
        %v6005 = vmul.f32 %v6001, %v6001
        %v6006 = vmul.f32 %v6002, %v6002
        %v6007 = vsel %vm676, %v6003, 0.0
        %6008 = vadd.xlane.f32.xlu0 %v6007
        %v6009 = vpop.xlane.xlu0 %6008
        %v6010 = vsel %vm676, %v6004, 0.0
        %6011 = vadd.xlane.f32.xlu0 %v6010
        %v6012 = vpop.xlane.xlu0 %6011
        %v6013 = vsel %vm676, %v6005, 0.0
        %6014 = vadd.xlane.f32.xlu0 %v6013
        %v6015 = vpop.xlane.xlu0 %6014
        %v6016 = vsel %vm676, %v6006, 0.0
        %6017 = vadd.xlane.f32.xlu0 %v6016
        %v6018 = vpop.xlane.xlu0 %6017
        %v6019 = vmul.f32 %v6009, %v689
        %v6020 = vmul.f32 %v6012, %v689
        %v6021 = vmul.f32 %v6015, %v689
        %v6022 = vmul.f32 %v6018, %v689
        %v6023 = vadd.f32 %v6019, 1e-05
        %v6024 = vadd.f32 %v6020, 1e-05
        %v6025 = vadd.f32 %v6021, 1e-05
        %v6026 = vadd.f32 %v6022, 1e-05
        %v6027 = vrsqrt.pop %v6023
        %v6028 = vrsqrt.pop %v6024
        %v6029 = vrsqrt.pop %v6025
        %v6030 = vrsqrt.pop %v6026
        %v6031 = vmul.f32 %v5999, %v6027
        %v6032 = vmul.f32 %v6000, %v6028
        %v6033 = vmul.f32 %v6001, %v6029
        %v6034 = vmul.f32 %v6002, %v6030
        %v6035 = vmul.f32 %v6031, %v734
        %v6036 = vmul.f32 %v6032, %v734
        %v6037 = vmul.f32 %v6033, %v734
        %v6038 = vmul.f32 %v6034, %v734
        %v6039 = vadd.f32 %v6035, %v744
        %v6040 = vadd.f32 %v6036, %v744
        %v6041 = vadd.f32 %v6037, %v744
        %v6042 = vadd.f32 %v6038, %v744
        %v6044 = vsel %vm676, %v6039, 0
        %v6047 = vsel %vm676, %v6040, 0
        %v6050 = vsel %vm676, %v6041, 0
        %v6053 = vsel %vm676, %v6042, 0
        %6055 = vmatprep.subr.mxu0 0.0
        %6056 = vmatpush1.msra.mxu0 0.0
        %6057 = vmatprep.subr.mxu0 0.0
        %6058 = vmatpush1.msra.mxu0 0.0
        %6059 = vmatprep.subr.mxu0 0.0
        %6060 = vmatpush1.msra.mxu0 0.0
        %6061 = vmatprep.subr.mxu0 0.0
        %6062 = vmatpush1.msra.mxu0 0.0
        %6063 = vmatprep.subr.mxu0 0.0
        %6064 = vmatpush1.msra.mxu0 0.0
        %6065 = vmatprep.subr.mxu0 0.0
        %6066 = vmatpush1.msra.mxu0 0.0
        %6067 = vmatprep.subr.mxu0 0.0
        %6068 = vmatpush1.msra.mxu0 0.0
        %6069 = vmatprep.subr.mxu0 0.0
        %6070 = vmatpush1.msra.mxu0 0.0
        %6071 = vmatprep.subr.mxu0 0.0
        %6072 = vmatpush1.msra.mxu0 0.0
        %6073 = vmatprep.subr.mxu0 0.0
        %6074 = vmatpush1.msra.mxu0 0.0
        %6075 = vmatprep.subr.mxu0 0.0
        %6076 = vmatpush1.msra.mxu0 0.0
        %6077 = vmatprep.subr.mxu0 0.0
        %6078 = vmatpush1.msra.mxu0 0.0
        %6079 = vmatprep.subr.mxu0 0.0
        %6080 = vmatpush1.msra.mxu0 %v753
        %6081 = vmatprep.subr.mxu0 0.0
        %6082 = vmatpush1.msra.mxu0 %v752
        %6083 = vmatprep.subr.mxu0 0.0
        %6084 = vmatpush1.msra.mxu0 %v751
        %6085 = vmatprep.subr.mxu0 0.0
        %6086 = vmatpush1.msra.mxu0 %v750
        %6087 = vmatprep.subr.mxu0 0.0
        %6088 = vmatpush2.msra.mxu0 0.0
        %6089 = vmatprep.subr.mxu0 0.0
        %6090 = vmatpush2.msra.mxu0 0.0
        %6091 = vmatprep.subr.mxu0 0.0
        %6092 = vmatpush2.msra.mxu0 0.0
        %6093 = vmatprep.subr.mxu0 0.0
        %6094 = vmatpush2.msra.mxu0 0.0
        %6095 = vmatprep.subr.mxu0 0.0
        %6096 = vmatpush2.msra.mxu0 0.0
        %6097 = vmatprep.subr.mxu0 0.0
        %6098 = vmatpush2.msra.mxu0 0.0
        %6099 = vmatprep.subr.mxu0 0.0
        %6100 = vmatpush2.msra.mxu0 0.0
        %6101 = vmatprep.subr.mxu0 0.0
        %6102 = vmatpush2.msra.mxu0 0.0
        %6103 = vmatprep.subr.mxu0 0.0
        %6104 = vmatpush2.msra.mxu0 0.0
        %6105 = vmatprep.subr.mxu0 0.0
        %6106 = vmatpush2.msra.mxu0 0.0
        %6107 = vmatprep.subr.mxu0 0.0
        %6108 = vmatpush2.msra.mxu0 0.0
        %6109 = vmatprep.subr.mxu0 0.0
        %6110 = vmatpush2.msra.mxu0 0.0
        %6111 = vmatprep.subr.mxu0 0.0
        %6112 = vmatpush2.msra.mxu0 0.0
        %6113 = vmatprep.subr.mxu0 0.0
        %6114 = vmatpush2.msra.mxu0 0.0
        %6115 = vmatprep.subr.mxu0 0.0
        %6116 = vmatpush2.msra.mxu0 0.0
        %6117 = vmatprep.subr.mxu0 0.0
        %6118 = vmatpush2.msra.mxu0 0.0
        %6119 = vmatprep.mubr.f32.mxu0 0.0
        %6120 = vmatmul.mubr.f32.gmra.mxu0 %v6044
        %v6121 = vpop.f32.mrf.mxu0
        %v6122 = vadd.f32 %v759, %v6121
        %v6123 = vpop.f32.mrf.mxu0
        %6124 = vmatprep.mubr.f32.mxu0 0.0
        %6125 = vmatmul.mubr.f32.gmra.mxu0 %v6047
        %v6126 = vpop.f32.mrf.mxu0
        %v6127 = vadd.f32 %v759, %v6126
        %v6128 = vpop.f32.mrf.mxu0
        %6129 = vmatprep.mubr.f32.mxu0 0.0
        %6130 = vmatmul.mubr.f32.gmra.mxu0 %v6050
        %v6131 = vpop.f32.mrf.mxu0
        %v6132 = vadd.f32 %v759, %v6131
        %v6133 = vpop.f32.mrf.mxu0
        %6134 = vmatprep.mubr.f32.mxu0 0.0
        %6135 = vmatmul.mubr.f32.gmra.mxu0 %v6053
        %v6136 = vpop.f32.mrf.mxu0
        %v6137 = vadd.f32 %v759, %v6136
        %v6138 = vpop.f32.mrf.mxu0
        %6139 = vdwg.mxu0
        %v6140 = vmul.f32 %v6122, %v891
        %v6141 = vmul.f32 %v6127, %v893
        %v6142 = vmul.f32 %v6132, %v895
        %v6143 = vmul.f32 %v6137, %v897
        %v6144 = vmul.f32 %v6122, %v899
        %v6145 = vmul.f32 %v6127, %v901
        %v6146 = vmul.f32 %v6132, %v903
        %v6147 = vmul.f32 %v6137, %v905
        %v6148 = vmul.f32 %v6122, %v907
        %v6149 = vmul.f32 %v6127, %v909
        %v6150 = vmul.f32 %v6132, %v911
        %v6151 = vmul.f32 %v6137, %v913
        %v6152 = vmul.f32 %v6122, %v915
        %v6153 = vmul.f32 %v6127, %v917
        %v6154 = vmul.f32 %v6132, %v919
        %v6155 = vmul.f32 %v6137, %v921
        %v6156 = vmul.f32 %v6122, %v987
        %v6157 = vmul.f32 %v6127, %v989
        %v6158 = vmul.f32 %v6132, %v991
        %v6159 = vmul.f32 %v6137, %v993
        %v6160 = vmul.f32 %v6122, %v995
        %v6161 = vmul.f32 %v6127, %v997
        %v6162 = vmul.f32 %v6132, %v999
        %v6163 = vmul.f32 %v6137, %v1001
        %v6164 = vmul.f32 %v6122, %v1003
        %v6165 = vmul.f32 %v6127, %v1005
        %v6166 = vmul.f32 %v6132, %v1007
        %v6167 = vmul.f32 %v6137, %v1009
        %v6168 = vmul.f32 %v6122, %v1011
        %v6169 = vmul.f32 %v6127, %v1013
        %v6170 = vmul.f32 %v6132, %v1015
        %v6171 = vmul.f32 %v6137, %v1017
        %s6172 = sadd.s32 %s5977, 224
        %s6173 = scalar_lea.vmem %s665, %s6172
        %v6174 = vld [vmem:[%s6173] sm:$0xff]
        %v6175 = vsel %vm676, %v6174, 0.0
        %6176 = vadd.xlane.f32.xlu0 %v6175
        %v6177 = vpop.xlane.xlu0 %6176
        %v6178 = vmul.f32 %v6177, %v689
        %v6179 = vsub.f32 %v6174, %v6178
        %v6180 = vmul.f32 %v6179, %v6179
        %v6181 = vsel %vm676, %v6180, 0.0
        %6182 = vadd.xlane.f32.xlu0 %v6181
        %v6183 = vpop.xlane.xlu0 %6182
        %v6184 = vmul.f32 %v6183, %v689
        %v6185 = vadd.f32 %v6184, 1e-05
        %v6186 = vrsqrt.pop %v6185
        %v6187 = vmul.f32 %v6179, %v6186
        %v6188 = vmul.f32 %v6187, %v734
        %v6189 = vadd.f32 %v6188, %v744
        %v6191 = vsel %vm676, %v6189, 0
        %6193 = vmatprep.subr.mxu0 0.0
        %6194 = vmatpush1.msra.mxu0 0.0
        %6195 = vmatprep.subr.mxu0 0.0
        %6196 = vmatpush1.msra.mxu0 0.0
        %6197 = vmatprep.subr.mxu0 0.0
        %6198 = vmatpush1.msra.mxu0 0.0
        %6199 = vmatprep.subr.mxu0 0.0
        %6200 = vmatpush1.msra.mxu0 0.0
        %6201 = vmatprep.subr.mxu0 0.0
        %6202 = vmatpush1.msra.mxu0 0.0
        %6203 = vmatprep.subr.mxu0 0.0
        %6204 = vmatpush1.msra.mxu0 0.0
        %6205 = vmatprep.subr.mxu0 0.0
        %6206 = vmatpush1.msra.mxu0 0.0
        %6207 = vmatprep.subr.mxu0 0.0
        %6208 = vmatpush1.msra.mxu0 0.0
        %6209 = vmatprep.subr.mxu0 0.0
        %6210 = vmatpush1.msra.mxu0 0.0
        %6211 = vmatprep.subr.mxu0 0.0
        %6212 = vmatpush1.msra.mxu0 0.0
        %6213 = vmatprep.subr.mxu0 0.0
        %6214 = vmatpush1.msra.mxu0 0.0
        %6215 = vmatprep.subr.mxu0 0.0
        %6216 = vmatpush1.msra.mxu0 0.0
        %6217 = vmatprep.subr.mxu0 0.0
        %6218 = vmatpush1.msra.mxu0 %v753
        %6219 = vmatprep.subr.mxu0 0.0
        %6220 = vmatpush1.msra.mxu0 %v752
        %6221 = vmatprep.subr.mxu0 0.0
        %6222 = vmatpush1.msra.mxu0 %v751
        %6223 = vmatprep.subr.mxu0 0.0
        %6224 = vmatpush1.msra.mxu0 %v750
        %6225 = vmatprep.subr.mxu0 0.0
        %6226 = vmatpush2.msra.mxu0 0.0
        %6227 = vmatprep.subr.mxu0 0.0
        %6228 = vmatpush2.msra.mxu0 0.0
        %6229 = vmatprep.subr.mxu0 0.0
        %6230 = vmatpush2.msra.mxu0 0.0
        %6231 = vmatprep.subr.mxu0 0.0
        %6232 = vmatpush2.msra.mxu0 0.0
        %6233 = vmatprep.subr.mxu0 0.0
        %6234 = vmatpush2.msra.mxu0 0.0
        %6235 = vmatprep.subr.mxu0 0.0
        %6236 = vmatpush2.msra.mxu0 0.0
        %6237 = vmatprep.subr.mxu0 0.0
        %6238 = vmatpush2.msra.mxu0 0.0
        %6239 = vmatprep.subr.mxu0 0.0
        %6240 = vmatpush2.msra.mxu0 0.0
        %6241 = vmatprep.subr.mxu0 0.0
        %6242 = vmatpush2.msra.mxu0 0.0
        %6243 = vmatprep.subr.mxu0 0.0
        %6244 = vmatpush2.msra.mxu0 0.0
        %6245 = vmatprep.subr.mxu0 0.0
        %6246 = vmatpush2.msra.mxu0 0.0
        %6247 = vmatprep.subr.mxu0 0.0
        %6248 = vmatpush2.msra.mxu0 0.0
        %6249 = vmatprep.subr.mxu0 0.0
        %6250 = vmatpush2.msra.mxu0 0.0
        %6251 = vmatprep.subr.mxu0 0.0
        %6252 = vmatpush2.msra.mxu0 0.0
        %6253 = vmatprep.subr.mxu0 0.0
        %6254 = vmatpush2.msra.mxu0 0.0
        %6255 = vmatprep.subr.mxu0 0.0
        %6256 = vmatpush2.msra.mxu0 0.0
        %6257 = vmatprep.mubr.f32.mxu0 0.0
        %6258 = vmatmul.mubr.f32.gmra.mxu0 %v6191
        %v6259 = vpop.f32.mrf.mxu0
        %v6260 = vadd.f32 %v759, %v6259
        %v6261 = vpop.f32.mrf.mxu0
        %6262 = vdwg.mxu0
        %s6263 = scalar_lea.vmem %s19, %s5977
        %v6264 = vld [vmem:[%s6263] sm:$0xff]
        %6281 = vrot.lane.b32.xlu0 %v6140, 96
        %v6282 = vpop.permute.xlu0 %6281
        %6283 = vrot.lane.b32.xlu0 %v6141, 96
        %v6284 = vpop.permute.xlu0 %6283
        %6285 = vrot.lane.b32.xlu0 %v6142, 96
        %v6286 = vpop.permute.xlu0 %6285
        %6287 = vrot.lane.b32.xlu0 %v6143, 96
        %v6288 = vpop.permute.xlu0 %6287
        %6289 = vrot.lane.b32.xlu0 %v6144, 96
        %v6290 = vpop.permute.xlu0 %6289
        %6291 = vrot.lane.b32.xlu0 %v6145, 96
        %v6292 = vpop.permute.xlu0 %6291
        %6293 = vrot.lane.b32.xlu0 %v6146, 96
        %v6294 = vpop.permute.xlu0 %6293
        %6295 = vrot.lane.b32.xlu0 %v6147, 96
        %v6296 = vpop.permute.xlu0 %6295
        %6297 = vrot.lane.b32.xlu0 %v6148, 96
        %v6298 = vpop.permute.xlu0 %6297
        %6299 = vrot.lane.b32.xlu0 %v6149, 96
        %v6300 = vpop.permute.xlu0 %6299
        %6301 = vrot.lane.b32.xlu0 %v6150, 96
        %v6302 = vpop.permute.xlu0 %6301
        %6303 = vrot.lane.b32.xlu0 %v6151, 96
        %v6304 = vpop.permute.xlu0 %6303
        %6305 = vrot.lane.b32.xlu0 %v6152, 96
        %v6306 = vpop.permute.xlu0 %6305
        %6307 = vrot.lane.b32.xlu0 %v6153, 96
        %v6308 = vpop.permute.xlu0 %6307
        %6309 = vrot.lane.b32.xlu0 %v6154, 96
        %v6310 = vpop.permute.xlu0 %6309
        %6311 = vrot.lane.b32.xlu0 %v6155, 96
        %v6312 = vpop.permute.xlu0 %6311
        %v6314 = vsel %vm676, %v6260, 0
        %v6316 = vsel %vm676, %v6282, 0
        %v6318 = vsel %vm676, %v6284, 0
        %v6320 = vsel %vm676, %v6286, 0
        %v6322 = vsel %vm676, %v6288, 0
        %v6324 = vsel %vm676, %v6290, 0
        %v6326 = vsel %vm676, %v6292, 0
        %v6328 = vsel %vm676, %v6294, 0
        %v6330 = vsel %vm676, %v6296, 0
        %v6332 = vsel %vm676, %v6298, 0
        %v6334 = vsel %vm676, %v6300, 0
        %v6336 = vsel %vm676, %v6302, 0
        %v6338 = vsel %vm676, %v6304, 0
        %v6340 = vsel %vm676, %v6306, 0
        %v6342 = vsel %vm676, %v6308, 0
        %v6344 = vsel %vm676, %v6310, 0
        %v6346 = vsel %vm676, %v6312, 0
        %6348 = vmatprep.subr.mxu0 0.0
        %6349 = vmatpush1.xpose.msra.mxu0 %v6346
        %6350 = vmatprep.subr.mxu0 0.0
        %6351 = vmatpush1.xpose.msra.mxu0 %v6344
        %6352 = vmatprep.subr.mxu0 0.0
        %6353 = vmatpush1.xpose.msra.mxu0 %v6342
        %6354 = vmatprep.subr.mxu0 0.0
        %6355 = vmatpush1.xpose.msra.mxu0 %v6340
        %6356 = vmatprep.subr.mxu0 0.0
        %6357 = vmatpush1.xpose.msra.mxu0 %v6338
        %6358 = vmatprep.subr.mxu0 0.0
        %6359 = vmatpush1.xpose.msra.mxu0 %v6336
        %6360 = vmatprep.subr.mxu0 0.0
        %6361 = vmatpush1.xpose.msra.mxu0 %v6334
        %6362 = vmatprep.subr.mxu0 0.0
        %6363 = vmatpush1.xpose.msra.mxu0 %v6332
        %6364 = vmatprep.subr.mxu0 0.0
        %6365 = vmatpush1.xpose.msra.mxu0 %v6330
        %6366 = vmatprep.subr.mxu0 0.0
        %6367 = vmatpush1.xpose.msra.mxu0 %v6328
        %6368 = vmatprep.subr.mxu0 0.0
        %6369 = vmatpush1.xpose.msra.mxu0 %v6326
        %6370 = vmatprep.subr.mxu0 0.0
        %6371 = vmatpush1.xpose.msra.mxu0 %v6324
        %6372 = vmatprep.subr.mxu0 0.0
        %6373 = vmatpush1.xpose.msra.mxu0 %v6322
        %6374 = vmatprep.subr.mxu0 0.0
        %6375 = vmatpush1.xpose.msra.mxu0 %v6320
        %6376 = vmatprep.subr.mxu0 0.0
        %6377 = vmatpush1.xpose.msra.mxu0 %v6318
        %6378 = vmatprep.subr.mxu0 0.0
        %6379 = vmatpush1.xpose.msra.mxu0 %v6316
        %6380 = vmatprep.subr.mxu0 0.0
        %6381 = vmatpush2.xpose.msra.mxu0 0.0
        %6382 = vmatprep.subr.mxu0 0.0
        %6383 = vmatpush2.xpose.msra.mxu0 0.0
        %6384 = vmatprep.subr.mxu0 0.0
        %6385 = vmatpush2.xpose.msra.mxu0 0.0
        %6386 = vmatprep.subr.mxu0 0.0
        %6387 = vmatpush2.xpose.msra.mxu0 0.0
        %6388 = vmatprep.subr.mxu0 0.0
        %6389 = vmatpush2.xpose.msra.mxu0 0.0
        %6390 = vmatprep.subr.mxu0 0.0
        %6391 = vmatpush2.xpose.msra.mxu0 0.0
        %6392 = vmatprep.subr.mxu0 0.0
        %6393 = vmatpush2.xpose.msra.mxu0 0.0
        %6394 = vmatprep.subr.mxu0 0.0
        %6395 = vmatpush2.xpose.msra.mxu0 0.0
        %6396 = vmatprep.subr.mxu0 0.0
        %6397 = vmatpush2.xpose.msra.mxu0 0.0
        %6398 = vmatprep.subr.mxu0 0.0
        %6399 = vmatpush2.xpose.msra.mxu0 0.0
        %6400 = vmatprep.subr.mxu0 0.0
        %6401 = vmatpush2.xpose.msra.mxu0 0.0
        %6402 = vmatprep.subr.mxu0 0.0
        %6403 = vmatpush2.xpose.msra.mxu0 0.0
        %6404 = vmatprep.subr.mxu0 0.0
        %6405 = vmatpush2.xpose.msra.mxu0 0.0
        %6406 = vmatprep.subr.mxu0 0.0
        %6407 = vmatpush2.xpose.msra.mxu0 0.0
        %6408 = vmatprep.subr.mxu0 0.0
        %6409 = vmatpush2.xpose.msra.mxu0 0.0
        %6410 = vmatprep.subr.mxu0 0.0
        %6411 = vmatpush2.xpose.msra.mxu0 0.0
        %6412 = vmatprep.mubr.f32.mxu0 0.0
        %6413 = vmatmul.mubr.f32.gmra.mxu0 %v6314
        %v6414 = vpop.f32.mrf.mxu0
        %v6415 = vadd.f32 %v6264, %v6414
        %v6416 = vpop.f32.mrf.mxu0
        %6417 = vdwg.mxu0
        %6418 = vmax.xlane.f32.xlu0 %v6415
        %v6419 = vpop.xlane.xlu0 %6418
        %v6420 = vsub.f32 %v6415, %v6419
        %v6421 = vmul.f32 %v6420, 1.442695
        %v6422 = vpow.pop %v6421
        %6423 = vmatprep.subr.mxu0 0.0
        %6424 = vmatpush1.msra.mxu0 %v1315
        %6425 = vmatprep.subr.mxu0 0.0
        %6426 = vmatpush1.msra.mxu0 %v1314
        %6427 = vmatprep.subr.mxu0 0.0
        %6428 = vmatpush1.msra.mxu0 %v1313
        %6429 = vmatprep.subr.mxu0 0.0
        %6430 = vmatpush1.msra.mxu0 %v1312
        %6431 = vmatprep.subr.mxu0 0.0
        %6432 = vmatpush1.msra.mxu0 %v1311
        %6433 = vmatprep.subr.mxu0 0.0
        %6434 = vmatpush1.msra.mxu0 %v1310
        %6435 = vmatprep.subr.mxu0 0.0
        %6436 = vmatpush1.msra.mxu0 %v1309
        %6437 = vmatprep.subr.mxu0 0.0
        %6438 = vmatpush1.msra.mxu0 %v1308
        %6439 = vmatprep.subr.mxu0 0.0
        %6440 = vmatpush1.msra.mxu0 %v1307
        %6441 = vmatprep.subr.mxu0 0.0
        %6442 = vmatpush1.msra.mxu0 %v1306
        %6443 = vmatprep.subr.mxu0 0.0
        %6444 = vmatpush1.msra.mxu0 %v1305
        %6445 = vmatprep.subr.mxu0 0.0
        %6446 = vmatpush1.msra.mxu0 %v1304
        %6447 = vmatprep.subr.mxu0 0.0
        %6448 = vmatpush1.msra.mxu0 %v1303
        %6449 = vmatprep.subr.mxu0 0.0
        %6450 = vmatpush1.msra.mxu0 %v1302
        %6451 = vmatprep.subr.mxu0 0.0
        %6452 = vmatpush1.msra.mxu0 %v1301
        %6453 = vmatprep.subr.mxu0 0.0
        %6454 = vmatpush1.msra.mxu0 %v1300
        %6455 = vmatprep.subr.mxu0 0.0
        %6456 = vmatpush2.msra.mxu0 0.0
        %6457 = vmatprep.subr.mxu0 0.0
        %6458 = vmatpush2.msra.mxu0 0.0
        %6459 = vmatprep.subr.mxu0 0.0
        %6460 = vmatpush2.msra.mxu0 0.0
        %6461 = vmatprep.subr.mxu0 0.0
        %6462 = vmatpush2.msra.mxu0 0.0
        %6463 = vmatprep.subr.mxu0 0.0
        %6464 = vmatpush2.msra.mxu0 0.0
        %6465 = vmatprep.subr.mxu0 0.0
        %6466 = vmatpush2.msra.mxu0 0.0
        %6467 = vmatprep.subr.mxu0 0.0
        %6468 = vmatpush2.msra.mxu0 0.0
        %6469 = vmatprep.subr.mxu0 0.0
        %6470 = vmatpush2.msra.mxu0 0.0
        %6471 = vmatprep.subr.mxu0 0.0
        %6472 = vmatpush2.msra.mxu0 0.0
        %6473 = vmatprep.subr.mxu0 0.0
        %6474 = vmatpush2.msra.mxu0 0.0
        %6475 = vmatprep.subr.mxu0 0.0
        %6476 = vmatpush2.msra.mxu0 0.0
        %6477 = vmatprep.subr.mxu0 0.0
        %6478 = vmatpush2.msra.mxu0 0.0
        %6479 = vmatprep.subr.mxu0 0.0
        %6480 = vmatpush2.msra.mxu0 0.0
        %6481 = vmatprep.subr.mxu0 0.0
        %6482 = vmatpush2.msra.mxu0 0.0
        %6483 = vmatprep.subr.mxu0 0.0
        %6484 = vmatpush2.msra.mxu0 0.0
        %6485 = vmatprep.subr.mxu0 0.0
        %6486 = vmatpush2.msra.mxu0 0.0
        %6487 = vmatprep.mubr.f32.mxu0 0.0
        %6488 = vmatmul.mubr.f32.gmra.mxu0 %v6422
        %v6489 = vpop.f32.mrf.mxu0
        %v6490 = vadd.f32 0.0, %v6489
        %v6491 = vpop.f32.mrf.mxu0
        %6492 = vdwg.mxu0
        %v6493 = vrcp.pop %v6490
        %v6494 = vmul.f32 %v6422, %v6493
        %6511 = vrot.lane.b32.xlu0 %v6156, 64
        %v6512 = vpop.permute.xlu0 %6511
        %6513 = vrot.lane.b32.xlu0 %v6157, 64
        %v6514 = vpop.permute.xlu0 %6513
        %6515 = vrot.lane.b32.xlu0 %v6158, 64
        %v6516 = vpop.permute.xlu0 %6515
        %6517 = vrot.lane.b32.xlu0 %v6159, 64
        %v6518 = vpop.permute.xlu0 %6517
        %6519 = vrot.lane.b32.xlu0 %v6160, 64
        %v6520 = vpop.permute.xlu0 %6519
        %6521 = vrot.lane.b32.xlu0 %v6161, 64
        %v6522 = vpop.permute.xlu0 %6521
        %6523 = vrot.lane.b32.xlu0 %v6162, 64
        %v6524 = vpop.permute.xlu0 %6523
        %6525 = vrot.lane.b32.xlu0 %v6163, 64
        %v6526 = vpop.permute.xlu0 %6525
        %6527 = vrot.lane.b32.xlu0 %v6164, 64
        %v6528 = vpop.permute.xlu0 %6527
        %6529 = vrot.lane.b32.xlu0 %v6165, 64
        %v6530 = vpop.permute.xlu0 %6529
        %6531 = vrot.lane.b32.xlu0 %v6166, 64
        %v6532 = vpop.permute.xlu0 %6531
        %6533 = vrot.lane.b32.xlu0 %v6167, 64
        %v6534 = vpop.permute.xlu0 %6533
        %6535 = vrot.lane.b32.xlu0 %v6168, 64
        %v6536 = vpop.permute.xlu0 %6535
        %6537 = vrot.lane.b32.xlu0 %v6169, 64
        %v6538 = vpop.permute.xlu0 %6537
        %6539 = vrot.lane.b32.xlu0 %v6170, 64
        %v6540 = vpop.permute.xlu0 %6539
        %6541 = vrot.lane.b32.xlu0 %v6171, 64
        %v6542 = vpop.permute.xlu0 %6541
        %6559 = vmatprep.subr.mxu0 0.0
        %6560 = vmatpush1.msra.mxu0 %v6542
        %6561 = vmatprep.subr.mxu0 0.0
        %6562 = vmatpush1.msra.mxu0 %v6540
        %6563 = vmatprep.subr.mxu0 0.0
        %6564 = vmatpush1.msra.mxu0 %v6538
        %6565 = vmatprep.subr.mxu0 0.0
        %6566 = vmatpush1.msra.mxu0 %v6536
        %6567 = vmatprep.subr.mxu0 0.0
        %6568 = vmatpush1.msra.mxu0 %v6534
        %6569 = vmatprep.subr.mxu0 0.0
        %6570 = vmatpush1.msra.mxu0 %v6532
        %6571 = vmatprep.subr.mxu0 0.0
        %6572 = vmatpush1.msra.mxu0 %v6530
        %6573 = vmatprep.subr.mxu0 0.0
        %6574 = vmatpush1.msra.mxu0 %v6528
        %6575 = vmatprep.subr.mxu0 0.0
        %6576 = vmatpush1.msra.mxu0 %v6526
        %6577 = vmatprep.subr.mxu0 0.0
        %6578 = vmatpush1.msra.mxu0 %v6524
        %6579 = vmatprep.subr.mxu0 0.0
        %6580 = vmatpush1.msra.mxu0 %v6522
        %6581 = vmatprep.subr.mxu0 0.0
        %6582 = vmatpush1.msra.mxu0 %v6520
        %6583 = vmatprep.subr.mxu0 0.0
        %6584 = vmatpush1.msra.mxu0 %v6518
        %6585 = vmatprep.subr.mxu0 0.0
        %6586 = vmatpush1.msra.mxu0 %v6516
        %6587 = vmatprep.subr.mxu0 0.0
        %6588 = vmatpush1.msra.mxu0 %v6514
        %6589 = vmatprep.subr.mxu0 0.0
        %6590 = vmatpush1.msra.mxu0 %v6512
        %6591 = vmatprep.subr.mxu0 0.0
        %6592 = vmatpush2.msra.mxu0 0.0
        %6593 = vmatprep.subr.mxu0 0.0
        %6594 = vmatpush2.msra.mxu0 0.0
        %6595 = vmatprep.subr.mxu0 0.0
        %6596 = vmatpush2.msra.mxu0 0.0
        %6597 = vmatprep.subr.mxu0 0.0
        %6598 = vmatpush2.msra.mxu0 0.0
        %6599 = vmatprep.subr.mxu0 0.0
        %6600 = vmatpush2.msra.mxu0 0.0
        %6601 = vmatprep.subr.mxu0 0.0
        %6602 = vmatpush2.msra.mxu0 0.0
        %6603 = vmatprep.subr.mxu0 0.0
        %6604 = vmatpush2.msra.mxu0 0.0
        %6605 = vmatprep.subr.mxu0 0.0
        %6606 = vmatpush2.msra.mxu0 0.0
        %6607 = vmatprep.subr.mxu0 0.0
        %6608 = vmatpush2.msra.mxu0 0.0
        %6609 = vmatprep.subr.mxu0 0.0
        %6610 = vmatpush2.msra.mxu0 0.0
        %6611 = vmatprep.subr.mxu0 0.0
        %6612 = vmatpush2.msra.mxu0 0.0
        %6613 = vmatprep.subr.mxu0 0.0
        %6614 = vmatpush2.msra.mxu0 0.0
        %6615 = vmatprep.subr.mxu0 0.0
        %6616 = vmatpush2.msra.mxu0 0.0
        %6617 = vmatprep.subr.mxu0 0.0
        %6618 = vmatpush2.msra.mxu0 0.0
        %6619 = vmatprep.subr.mxu0 0.0
        %6620 = vmatpush2.msra.mxu0 0.0
        %6621 = vmatprep.subr.mxu0 0.0
        %6622 = vmatpush2.msra.mxu0 0.0
        %6623 = vmatprep.mubr.f32.mxu0 0.0
        %6624 = vmatmul.mubr.f32.gmra.mxu0 %v6494
        %v6625 = vpop.f32.mrf.mxu0
        %v6626 = vadd.f32 0.0, %v6625
        %v6627 = vpop.f32.mrf.mxu0
        %6628 = vdwg.mxu0
        %v6630 = vsel %vm676, %v6626, 0
        %6632 = vmatprep.subr.mxu0 0.0
        %6633 = vmatpush1.msra.mxu0 0.0
        %6634 = vmatprep.subr.mxu0 0.0
        %6635 = vmatpush1.msra.mxu0 0.0
        %6636 = vmatprep.subr.mxu0 0.0
        %6637 = vmatpush1.msra.mxu0 0.0
        %6638 = vmatprep.subr.mxu0 0.0
        %6639 = vmatpush1.msra.mxu0 0.0
        %6640 = vmatprep.subr.mxu0 0.0
        %6641 = vmatpush1.msra.mxu0 0.0
        %6642 = vmatprep.subr.mxu0 0.0
        %6643 = vmatpush1.msra.mxu0 0.0
        %6644 = vmatprep.subr.mxu0 0.0
        %6645 = vmatpush1.msra.mxu0 0.0
        %6646 = vmatprep.subr.mxu0 0.0
        %6647 = vmatpush1.msra.mxu0 0.0
        %6648 = vmatprep.subr.mxu0 0.0
        %6649 = vmatpush1.msra.mxu0 0.0
        %6650 = vmatprep.subr.mxu0 0.0
        %6651 = vmatpush1.msra.mxu0 0.0
        %6652 = vmatprep.subr.mxu0 0.0
        %6653 = vmatpush1.msra.mxu0 0.0
        %6654 = vmatprep.subr.mxu0 0.0
        %6655 = vmatpush1.msra.mxu0 0.0
        %6656 = vmatprep.subr.mxu0 0.0
        %6657 = vmatpush1.msra.mxu0 %v1525
        %6658 = vmatprep.subr.mxu0 0.0
        %6659 = vmatpush1.msra.mxu0 %v1524
        %6660 = vmatprep.subr.mxu0 0.0
        %6661 = vmatpush1.msra.mxu0 %v1523
        %6662 = vmatprep.subr.mxu0 0.0
        %6663 = vmatpush1.msra.mxu0 %v1522
        %6664 = vmatprep.subr.mxu0 0.0
        %6665 = vmatpush2.msra.mxu0 0.0
        %6666 = vmatprep.subr.mxu0 0.0
        %6667 = vmatpush2.msra.mxu0 0.0
        %6668 = vmatprep.subr.mxu0 0.0
        %6669 = vmatpush2.msra.mxu0 0.0
        %6670 = vmatprep.subr.mxu0 0.0
        %6671 = vmatpush2.msra.mxu0 0.0
        %6672 = vmatprep.subr.mxu0 0.0
        %6673 = vmatpush2.msra.mxu0 0.0
        %6674 = vmatprep.subr.mxu0 0.0
        %6675 = vmatpush2.msra.mxu0 0.0
        %6676 = vmatprep.subr.mxu0 0.0
        %6677 = vmatpush2.msra.mxu0 0.0
        %6678 = vmatprep.subr.mxu0 0.0
        %6679 = vmatpush2.msra.mxu0 0.0
        %6680 = vmatprep.subr.mxu0 0.0
        %6681 = vmatpush2.msra.mxu0 0.0
        %6682 = vmatprep.subr.mxu0 0.0
        %6683 = vmatpush2.msra.mxu0 0.0
        %6684 = vmatprep.subr.mxu0 0.0
        %6685 = vmatpush2.msra.mxu0 0.0
        %6686 = vmatprep.subr.mxu0 0.0
        %6687 = vmatpush2.msra.mxu0 0.0
        %6688 = vmatprep.subr.mxu0 0.0
        %6689 = vmatpush2.msra.mxu0 0.0
        %6690 = vmatprep.subr.mxu0 0.0
        %6691 = vmatpush2.msra.mxu0 0.0
        %6692 = vmatprep.subr.mxu0 0.0
        %6693 = vmatpush2.msra.mxu0 0.0
        %6694 = vmatprep.subr.mxu0 0.0
        %6695 = vmatpush2.msra.mxu0 0.0
        %6696 = vmatprep.mubr.f32.mxu0 0.0
        %6697 = vmatmul.mubr.f32.gmra.mxu0 %v6630
        %v6698 = vpop.f32.mrf.mxu0
        %v6699 = vadd.f32 0.0, %v6698
        %v6700 = vpop.f32.mrf.mxu0
        %6701 = vdwg.mxu0
        %v6702 = vadd.f32 %v6174, %v6699
        %v6703 = vadd.f32 %v6702, %v1605
        %v6704 = vld [vmem:[%s8] sm:$0x1]
        %v6705 = vld [vmem:[%s9] sm:$0x1]
        %v6706 = vsel %vm676, %v1607, 0.0
        %6707 = vadd.xlane.f32.xlu0 %v6706
        %v6708 = vpop.xlane.xlu0 %6707
        %v6709 = vsel %vm676, %v2335, 0.0
        %6710 = vadd.xlane.f32.xlu0 %v6709
        %v6711 = vpop.xlane.xlu0 %6710
        %v6712 = vsel %vm676, %v3063, 0.0
        %6713 = vadd.xlane.f32.xlu0 %v6712
        %v6714 = vpop.xlane.xlu0 %6713
        %v6715 = vsel %vm676, %v3791, 0.0
        %6716 = vadd.xlane.f32.xlu0 %v6715
        %v6717 = vpop.xlane.xlu0 %6716
        %v6718 = vsel %vm676, %v4519, 0.0
        %6719 = vadd.xlane.f32.xlu0 %v6718
        %v6720 = vpop.xlane.xlu0 %6719
        %v6721 = vsel %vm676, %v5247, 0.0
        %6722 = vadd.xlane.f32.xlu0 %v6721
        %v6723 = vpop.xlane.xlu0 %6722
        %v6724 = vsel %vm676, %v5975, 0.0
        %6725 = vadd.xlane.f32.xlu0 %v6724
        %v6726 = vpop.xlane.xlu0 %6725
        %v6727 = vsel %vm676, %v6703, 0.0
        %6728 = vadd.xlane.f32.xlu0 %v6727
        %v6729 = vpop.xlane.xlu0 %6728
        %v6730 = vmul.f32 %v6708, %v689
        %v6731 = vmul.f32 %v6711, %v689
        %v6732 = vmul.f32 %v6714, %v689
        %v6733 = vmul.f32 %v6717, %v689
        %v6734 = vmul.f32 %v6720, %v689
        %v6735 = vmul.f32 %v6723, %v689
        %v6736 = vmul.f32 %v6726, %v689
        %v6737 = vmul.f32 %v6729, %v689
        %v6738 = vsub.f32 %v1607, %v6730
        %v6739 = vsub.f32 %v2335, %v6731
        %v6740 = vsub.f32 %v3063, %v6732
        %v6741 = vsub.f32 %v3791, %v6733
        %v6742 = vsub.f32 %v4519, %v6734
        %v6743 = vsub.f32 %v5247, %v6735
        %v6744 = vsub.f32 %v5975, %v6736
        %v6745 = vsub.f32 %v6703, %v6737
        %v6746 = vmul.f32 %v6738, %v6738
        %v6747 = vmul.f32 %v6739, %v6739
        %v6748 = vmul.f32 %v6740, %v6740
        %v6749 = vmul.f32 %v6741, %v6741
        %v6750 = vmul.f32 %v6742, %v6742
        %v6751 = vmul.f32 %v6743, %v6743
        %v6752 = vmul.f32 %v6744, %v6744
        %v6753 = vmul.f32 %v6745, %v6745
        %v6754 = vsel %vm676, %v6746, 0.0
        %6755 = vadd.xlane.f32.xlu0 %v6754
        %v6756 = vpop.xlane.xlu0 %6755
        %v6757 = vsel %vm676, %v6747, 0.0
        %6758 = vadd.xlane.f32.xlu0 %v6757
        %v6759 = vpop.xlane.xlu0 %6758
        %v6760 = vsel %vm676, %v6748, 0.0
        %6761 = vadd.xlane.f32.xlu0 %v6760
        %v6762 = vpop.xlane.xlu0 %6761
        %v6763 = vsel %vm676, %v6749, 0.0
        %6764 = vadd.xlane.f32.xlu0 %v6763
        %v6765 = vpop.xlane.xlu0 %6764
        %v6766 = vsel %vm676, %v6750, 0.0
        %6767 = vadd.xlane.f32.xlu0 %v6766
        %v6768 = vpop.xlane.xlu0 %6767
        %v6769 = vsel %vm676, %v6751, 0.0
        %6770 = vadd.xlane.f32.xlu0 %v6769
        %v6771 = vpop.xlane.xlu0 %6770
        %v6772 = vsel %vm676, %v6752, 0.0
        %6773 = vadd.xlane.f32.xlu0 %v6772
        %v6774 = vpop.xlane.xlu0 %6773
        %v6775 = vsel %vm676, %v6753, 0.0
        %6776 = vadd.xlane.f32.xlu0 %v6775
        %v6777 = vpop.xlane.xlu0 %6776
        %v6778 = vmul.f32 %v6756, %v689
        %v6779 = vmul.f32 %v6759, %v689
        %v6780 = vmul.f32 %v6762, %v689
        %v6781 = vmul.f32 %v6765, %v689
        %v6782 = vmul.f32 %v6768, %v689
        %v6783 = vmul.f32 %v6771, %v689
        %v6784 = vmul.f32 %v6774, %v689
        %v6785 = vmul.f32 %v6777, %v689
        %v6786 = vadd.f32 %v6778, 1e-05
        %v6787 = vadd.f32 %v6779, 1e-05
        %v6788 = vadd.f32 %v6780, 1e-05
        %v6789 = vadd.f32 %v6781, 1e-05
        %v6790 = vadd.f32 %v6782, 1e-05
        %v6791 = vadd.f32 %v6783, 1e-05
        %v6792 = vadd.f32 %v6784, 1e-05
        %v6793 = vadd.f32 %v6785, 1e-05
        %v6794 = vrsqrt.pop %v6786
        %v6795 = vrsqrt.pop %v6787
        %v6796 = vrsqrt.pop %v6788
        %v6797 = vrsqrt.pop %v6789
        %v6798 = vrsqrt.pop %v6790
        %v6799 = vrsqrt.pop %v6791
        %v6800 = vrsqrt.pop %v6792
        %v6801 = vrsqrt.pop %v6793
        %v6802 = vmul.f32 %v6738, %v6794
        %v6803 = vmul.f32 %v6739, %v6795
        %v6804 = vmul.f32 %v6740, %v6796
        %v6805 = vmul.f32 %v6741, %v6797
        %v6806 = vmul.f32 %v6742, %v6798
        %v6807 = vmul.f32 %v6743, %v6799
        %v6808 = vmul.f32 %v6744, %v6800
        %v6809 = vmul.f32 %v6745, %v6801
        %v6811 = vlaneseq
        %v6812 = vshrl.u32 %v6811, 7
        %v6813 = vsub.s32 0, %v6812
        %v6814 = vrot.slane %v6704, %v6813
        %v6816 = vmul.f32 %v6802, %v6814
        %v6817 = vmul.f32 %v6803, %v6814
        %v6818 = vmul.f32 %v6804, %v6814
        %v6819 = vmul.f32 %v6805, %v6814
        %v6820 = vmul.f32 %v6806, %v6814
        %v6821 = vmul.f32 %v6807, %v6814
        %v6822 = vmul.f32 %v6808, %v6814
        %v6823 = vmul.f32 %v6809, %v6814
        %v6825 = vlaneseq
        %v6826 = vshrl.u32 %v6825, 7
        %v6827 = vsub.s32 0, %v6826
        %v6828 = vrot.slane %v6705, %v6827
        %v6830 = vadd.f32 %v6816, %v6828
        %v6831 = vadd.f32 %v6817, %v6828
        %v6832 = vadd.f32 %v6818, %v6828
        %v6833 = vadd.f32 %v6819, %v6828
        %v6834 = vadd.f32 %v6820, %v6828
        %v6835 = vadd.f32 %v6821, %v6828
        %v6836 = vadd.f32 %v6822, %v6828
        %v6837 = vadd.f32 %v6823, %v6828
        %v6838 = vld [vmem:[%s10] sm:$0xff]
        %v6839 = vld [vmem:[%s10 + $0x8] sm:$0xff]
        %v6840 = vld [vmem:[%s10 + $0x10] sm:$0xff]
        %v6841 = vld [vmem:[%s10 + $0x18] sm:$0xff]
        %v6842 = vld [vmem:[%s11] sm:$0x1]
        %v6844 = vlaneseq
        %v6845 = vshrl.u32 %v6844, 7
        %v6846 = vsub.s32 0, %v6845
        %v6847 = vrot.slane %v6842, %v6846
        %v6850 = vsel %vm676, %v6830, 0
        %v6853 = vsel %vm676, %v6831, 0
        %v6856 = vsel %vm676, %v6832, 0
        %v6859 = vsel %vm676, %v6833, 0
        %v6862 = vsel %vm676, %v6834, 0
        %v6865 = vsel %vm676, %v6835, 0
        %v6868 = vsel %vm676, %v6836, 0
        %v6871 = vsel %vm676, %v6837, 0
        %6873 = vmatprep.subr.mxu0 0.0
        %6874 = vmatpush1.msra.mxu0 0.0
        %6875 = vmatprep.subr.mxu0 0.0
        %6876 = vmatpush1.msra.mxu0 0.0
        %6877 = vmatprep.subr.mxu0 0.0
        %6878 = vmatpush1.msra.mxu0 0.0
        %6879 = vmatprep.subr.mxu0 0.0
        %6880 = vmatpush1.msra.mxu0 0.0
        %6881 = vmatprep.subr.mxu0 0.0
        %6882 = vmatpush1.msra.mxu0 0.0
        %6883 = vmatprep.subr.mxu0 0.0
        %6884 = vmatpush1.msra.mxu0 0.0
        %6885 = vmatprep.subr.mxu0 0.0
        %6886 = vmatpush1.msra.mxu0 0.0
        %6887 = vmatprep.subr.mxu0 0.0
        %6888 = vmatpush1.msra.mxu0 0.0
        %6889 = vmatprep.subr.mxu0 0.0
        %6890 = vmatpush1.msra.mxu0 0.0
        %6891 = vmatprep.subr.mxu0 0.0
        %6892 = vmatpush1.msra.mxu0 0.0
        %6893 = vmatprep.subr.mxu0 0.0
        %6894 = vmatpush1.msra.mxu0 0.0
        %6895 = vmatprep.subr.mxu0 0.0
        %6896 = vmatpush1.msra.mxu0 0.0
        %6897 = vmatprep.subr.mxu0 0.0
        %6898 = vmatpush1.msra.mxu0 %v6841
        %6899 = vmatprep.subr.mxu0 0.0
        %6900 = vmatpush1.msra.mxu0 %v6840
        %6901 = vmatprep.subr.mxu0 0.0
        %6902 = vmatpush1.msra.mxu0 %v6839
        %6903 = vmatprep.subr.mxu0 0.0
        %6904 = vmatpush1.msra.mxu0 %v6838
        %6905 = vmatprep.subr.mxu0 0.0
        %6906 = vmatpush2.msra.mxu0 0.0
        %6907 = vmatprep.subr.mxu0 0.0
        %6908 = vmatpush2.msra.mxu0 0.0
        %6909 = vmatprep.subr.mxu0 0.0
        %6910 = vmatpush2.msra.mxu0 0.0
        %6911 = vmatprep.subr.mxu0 0.0
        %6912 = vmatpush2.msra.mxu0 0.0
        %6913 = vmatprep.subr.mxu0 0.0
        %6914 = vmatpush2.msra.mxu0 0.0
        %6915 = vmatprep.subr.mxu0 0.0
        %6916 = vmatpush2.msra.mxu0 0.0
        %6917 = vmatprep.subr.mxu0 0.0
        %6918 = vmatpush2.msra.mxu0 0.0
        %6919 = vmatprep.subr.mxu0 0.0
        %6920 = vmatpush2.msra.mxu0 0.0
        %6921 = vmatprep.subr.mxu0 0.0
        %6922 = vmatpush2.msra.mxu0 0.0
        %6923 = vmatprep.subr.mxu0 0.0
        %6924 = vmatpush2.msra.mxu0 0.0
        %6925 = vmatprep.subr.mxu0 0.0
        %6926 = vmatpush2.msra.mxu0 0.0
        %6927 = vmatprep.subr.mxu0 0.0
        %6928 = vmatpush2.msra.mxu0 0.0
        %6929 = vmatprep.subr.mxu0 0.0
        %6930 = vmatpush2.msra.mxu0 0.0
        %6931 = vmatprep.subr.mxu0 0.0
        %6932 = vmatpush2.msra.mxu0 0.0
        %6933 = vmatprep.subr.mxu0 0.0
        %6934 = vmatpush2.msra.mxu0 0.0
        %6935 = vmatprep.subr.mxu0 0.0
        %6936 = vmatpush2.msra.mxu0 0.0
        %6937 = vmatprep.mubr.f32.mxu0 0.0
        %6938 = vmatmul.mubr.f32.gmra.mxu0 %v6850
        %v6939 = vpop.f32.mrf.mxu0
        %v6940 = vadd.f32 %v6847, %v6939
        %v6941 = vpop.f32.mrf.mxu0
        %6942 = vmatprep.mubr.f32.mxu0 0.0
        %6943 = vmatmul.mubr.f32.gmra.mxu0 %v6853
        %v6944 = vpop.f32.mrf.mxu0
        %v6945 = vadd.f32 %v6847, %v6944
        %v6946 = vpop.f32.mrf.mxu0
        %6947 = vmatprep.mubr.f32.mxu0 0.0
        %6948 = vmatmul.mubr.f32.gmra.mxu0 %v6856
        %v6949 = vpop.f32.mrf.mxu0
        %v6950 = vadd.f32 %v6847, %v6949
        %v6951 = vpop.f32.mrf.mxu0
        %6952 = vmatprep.mubr.f32.mxu0 0.0
        %6953 = vmatmul.mubr.f32.gmra.mxu0 %v6859
        %v6954 = vpop.f32.mrf.mxu0
        %v6955 = vadd.f32 %v6847, %v6954
        %v6956 = vpop.f32.mrf.mxu0
        %6957 = vmatprep.mubr.f32.mxu0 0.0
        %6958 = vmatmul.mubr.f32.gmra.mxu0 %v6862
        %v6959 = vpop.f32.mrf.mxu0
        %v6960 = vadd.f32 %v6847, %v6959
        %v6961 = vpop.f32.mrf.mxu0
        %6962 = vmatprep.mubr.f32.mxu0 0.0
        %6963 = vmatmul.mubr.f32.gmra.mxu0 %v6865
        %v6964 = vpop.f32.mrf.mxu0
        %v6965 = vadd.f32 %v6847, %v6964
        %v6966 = vpop.f32.mrf.mxu0
        %6967 = vmatprep.mubr.f32.mxu0 0.0
        %6968 = vmatmul.mubr.f32.gmra.mxu0 %v6868
        %v6969 = vpop.f32.mrf.mxu0
        %v6970 = vadd.f32 %v6847, %v6969
        %v6971 = vpop.f32.mrf.mxu0
        %6972 = vmatprep.mubr.f32.mxu0 0.0
        %6973 = vmatmul.mubr.f32.gmra.mxu0 %v6871
        %v6974 = vpop.f32.mrf.mxu0
        %v6975 = vadd.f32 %v6847, %v6974
        %v6976 = vpop.f32.mrf.mxu0
        %6977 = vdwg.mxu0
        %v6978 = vmul.f32 %v6940, 0.5
        %v6979 = vmul.f32 %v6945, 0.5
        %v6980 = vmul.f32 %v6950, 0.5
        %v6981 = vmul.f32 %v6955, 0.5
        %v6982 = vmul.f32 %v6960, 0.5
        %v6983 = vmul.f32 %v6965, 0.5
        %v6984 = vmul.f32 %v6970, 0.5
        %v6985 = vmul.f32 %v6975, 0.5
        %v6986 = vmul.f32 %v6940, 0.044715
        %v6987 = vmul.f32 %v6945, 0.044715
        %v6988 = vmul.f32 %v6950, 0.044715
        %v6989 = vmul.f32 %v6955, 0.044715
        %v6990 = vmul.f32 %v6960, 0.044715
        %v6991 = vmul.f32 %v6965, 0.044715
        %v6992 = vmul.f32 %v6970, 0.044715
        %v6993 = vmul.f32 %v6975, 0.044715
        %v6994 = vmul.f32 %v6986, %v6940
        %v6995 = vmul.f32 %v6987, %v6945
        %v6996 = vmul.f32 %v6988, %v6950
        %v6997 = vmul.f32 %v6989, %v6955
        %v6998 = vmul.f32 %v6990, %v6960
        %v6999 = vmul.f32 %v6991, %v6965
        %v7000 = vmul.f32 %v6992, %v6970
        %v7001 = vmul.f32 %v6993, %v6975
        %v7002 = vmul.f32 %v6994, %v6940
        %v7003 = vmul.f32 %v6995, %v6945
        %v7004 = vmul.f32 %v6996, %v6950
        %v7005 = vmul.f32 %v6997, %v6955
        %v7006 = vmul.f32 %v6998, %v6960
        %v7007 = vmul.f32 %v6999, %v6965
        %v7008 = vmul.f32 %v7000, %v6970
        %v7009 = vmul.f32 %v7001, %v6975
        %v7010 = vadd.f32 %v6940, %v7002
        %v7011 = vadd.f32 %v6945, %v7003
        %v7012 = vadd.f32 %v6950, %v7004
        %v7013 = vadd.f32 %v6955, %v7005
        %v7014 = vadd.f32 %v6960, %v7006
        %v7015 = vadd.f32 %v6965, %v7007
        %v7016 = vadd.f32 %v6970, %v7008
        %v7017 = vadd.f32 %v6975, %v7009
        %v7018 = vmul.f32 %v7010, 0.7978846
        %v7019 = vmul.f32 %v7011, 0.7978846
        %v7020 = vmul.f32 %v7012, 0.7978846
        %v7021 = vmul.f32 %v7013, 0.7978846
        %v7022 = vmul.f32 %v7014, 0.7978846
        %v7023 = vmul.f32 %v7015, 0.7978846
        %v7024 = vmul.f32 %v7016, 0.7978846
        %v7025 = vmul.f32 %v7017, 0.7978846
        %v7026 = vtanh.pop %v7018
        %v7027 = vtanh.pop %v7019
        %v7028 = vtanh.pop %v7020
        %v7029 = vtanh.pop %v7021
        %v7030 = vtanh.pop %v7022
        %v7031 = vtanh.pop %v7023
        %v7032 = vtanh.pop %v7024
        %v7033 = vtanh.pop %v7025
        %v7034 = vadd.f32 %v7026, 1.0
        %v7035 = vadd.f32 %v7027, 1.0
        %v7036 = vadd.f32 %v7028, 1.0
        %v7037 = vadd.f32 %v7029, 1.0
        %v7038 = vadd.f32 %v7030, 1.0
        %v7039 = vadd.f32 %v7031, 1.0
        %v7040 = vadd.f32 %v7032, 1.0
        %v7041 = vadd.f32 %v7033, 1.0
        %v7042 = vmul.f32 %v6978, %v7034
        %v7043 = vmul.f32 %v6979, %v7035
        %v7044 = vmul.f32 %v6980, %v7036
        %v7045 = vmul.f32 %v6981, %v7037
        %v7046 = vmul.f32 %v6982, %v7038
        %v7047 = vmul.f32 %v6983, %v7039
        %v7048 = vmul.f32 %v6984, %v7040
        %v7049 = vmul.f32 %v6985, %v7041
        %v7050 = vld [vmem:[%s12] sm:$0xff]
        %v7051 = vld [vmem:[%s12 + $0x8] sm:$0xff]
        %v7052 = vld [vmem:[%s12 + $0x10] sm:$0xff]
        %v7053 = vld [vmem:[%s12 + $0x18] sm:$0xff]
        %v7054 = vld [vmem:[%s12 + $0x20] sm:$0xff]
        %v7055 = vld [vmem:[%s12 + $0x28] sm:$0xff]
        %v7056 = vld [vmem:[%s12 + $0x30] sm:$0xff]
        %v7057 = vld [vmem:[%s12 + $0x38] sm:$0xff]
        %v7058 = vld [vmem:[%s12 + $0x40] sm:$0xff]
        %v7059 = vld [vmem:[%s12 + $0x48] sm:$0xff]
        %v7060 = vld [vmem:[%s12 + $0x50] sm:$0xff]
        %v7061 = vld [vmem:[%s12 + $0x58] sm:$0xff]
        %v7062 = vld [vmem:[%s12 + $0x60] sm:$0xff]
        %v7063 = vld [vmem:[%s12 + $0x68] sm:$0xff]
        %v7064 = vld [vmem:[%s12 + $0x70] sm:$0xff]
        %v7065 = vld [vmem:[%s12 + $0x78] sm:$0xff]
        %7066 = vmatprep.subr.mxu0 0.0
        %7067 = vmatpush1.msra.mxu0 %v7065
        %7068 = vmatprep.subr.mxu0 0.0
        %7069 = vmatpush1.msra.mxu0 %v7064
        %7070 = vmatprep.subr.mxu0 0.0
        %7071 = vmatpush1.msra.mxu0 %v7063
        %7072 = vmatprep.subr.mxu0 0.0
        %7073 = vmatpush1.msra.mxu0 %v7062
        %7074 = vmatprep.subr.mxu0 0.0
        %7075 = vmatpush1.msra.mxu0 %v7061
        %7076 = vmatprep.subr.mxu0 0.0
        %7077 = vmatpush1.msra.mxu0 %v7060
        %7078 = vmatprep.subr.mxu0 0.0
        %7079 = vmatpush1.msra.mxu0 %v7059
        %7080 = vmatprep.subr.mxu0 0.0
        %7081 = vmatpush1.msra.mxu0 %v7058
        %7082 = vmatprep.subr.mxu0 0.0
        %7083 = vmatpush1.msra.mxu0 %v7057
        %7084 = vmatprep.subr.mxu0 0.0
        %7085 = vmatpush1.msra.mxu0 %v7056
        %7086 = vmatprep.subr.mxu0 0.0
        %7087 = vmatpush1.msra.mxu0 %v7055
        %7088 = vmatprep.subr.mxu0 0.0
        %7089 = vmatpush1.msra.mxu0 %v7054
        %7090 = vmatprep.subr.mxu0 0.0
        %7091 = vmatpush1.msra.mxu0 %v7053
        %7092 = vmatprep.subr.mxu0 0.0
        %7093 = vmatpush1.msra.mxu0 %v7052
        %7094 = vmatprep.subr.mxu0 0.0
        %7095 = vmatpush1.msra.mxu0 %v7051
        %7096 = vmatprep.subr.mxu0 0.0
        %7097 = vmatpush1.msra.mxu0 %v7050
        %7098 = vmatprep.subr.mxu0 0.0
        %7099 = vmatpush2.msra.mxu0 0.0
        %7100 = vmatprep.subr.mxu0 0.0
        %7101 = vmatpush2.msra.mxu0 0.0
        %7102 = vmatprep.subr.mxu0 0.0
        %7103 = vmatpush2.msra.mxu0 0.0
        %7104 = vmatprep.subr.mxu0 0.0
        %7105 = vmatpush2.msra.mxu0 0.0
        %7106 = vmatprep.subr.mxu0 0.0
        %7107 = vmatpush2.msra.mxu0 0.0
        %7108 = vmatprep.subr.mxu0 0.0
        %7109 = vmatpush2.msra.mxu0 0.0
        %7110 = vmatprep.subr.mxu0 0.0
        %7111 = vmatpush2.msra.mxu0 0.0
        %7112 = vmatprep.subr.mxu0 0.0
        %7113 = vmatpush2.msra.mxu0 0.0
        %7114 = vmatprep.subr.mxu0 0.0
        %7115 = vmatpush2.msra.mxu0 0.0
        %7116 = vmatprep.subr.mxu0 0.0
        %7117 = vmatpush2.msra.mxu0 0.0
        %7118 = vmatprep.subr.mxu0 0.0
        %7119 = vmatpush2.msra.mxu0 0.0
        %7120 = vmatprep.subr.mxu0 0.0
        %7121 = vmatpush2.msra.mxu0 0.0
        %7122 = vmatprep.subr.mxu0 0.0
        %7123 = vmatpush2.msra.mxu0 0.0
        %7124 = vmatprep.subr.mxu0 0.0
        %7125 = vmatpush2.msra.mxu0 0.0
        %7126 = vmatprep.subr.mxu0 0.0
        %7127 = vmatpush2.msra.mxu0 0.0
        %7128 = vmatprep.subr.mxu0 0.0
        %7129 = vmatpush2.msra.mxu0 0.0
        %7130 = vmatprep.mubr.f32.mxu0 0.0
        %7131 = vmatmul.mubr.f32.gmra.mxu0 %v7042
        %v7132 = vpop.f32.mrf.mxu0
        %v7133 = vadd.f32 0.0, %v7132
        %v7134 = vpop.f32.mrf.mxu0
        %7135 = vmatprep.mubr.f32.mxu0 0.0
        %7136 = vmatmul.mubr.f32.gmra.mxu0 %v7043
        %v7137 = vpop.f32.mrf.mxu0
        %v7138 = vadd.f32 0.0, %v7137
        %v7139 = vpop.f32.mrf.mxu0
        %7140 = vmatprep.mubr.f32.mxu0 0.0
        %7141 = vmatmul.mubr.f32.gmra.mxu0 %v7044
        %v7142 = vpop.f32.mrf.mxu0
        %v7143 = vadd.f32 0.0, %v7142
        %v7144 = vpop.f32.mrf.mxu0
        %7145 = vmatprep.mubr.f32.mxu0 0.0
        %7146 = vmatmul.mubr.f32.gmra.mxu0 %v7045
        %v7147 = vpop.f32.mrf.mxu0
        %v7148 = vadd.f32 0.0, %v7147
        %v7149 = vpop.f32.mrf.mxu0
        %7150 = vmatprep.mubr.f32.mxu0 0.0
        %7151 = vmatmul.mubr.f32.gmra.mxu0 %v7046
        %v7152 = vpop.f32.mrf.mxu0
        %v7153 = vadd.f32 0.0, %v7152
        %v7154 = vpop.f32.mrf.mxu0
        %7155 = vmatprep.mubr.f32.mxu0 0.0
        %7156 = vmatmul.mubr.f32.gmra.mxu0 %v7047
        %v7157 = vpop.f32.mrf.mxu0
        %v7158 = vadd.f32 0.0, %v7157
        %v7159 = vpop.f32.mrf.mxu0
        %7160 = vmatprep.mubr.f32.mxu0 0.0
        %7161 = vmatmul.mubr.f32.gmra.mxu0 %v7048
        %v7162 = vpop.f32.mrf.mxu0
        %v7163 = vadd.f32 0.0, %v7162
        %v7164 = vpop.f32.mrf.mxu0
        %7165 = vmatprep.mubr.f32.mxu0 0.0
        %7166 = vmatmul.mubr.f32.gmra.mxu0 %v7049
        %v7167 = vpop.f32.mrf.mxu0
        %v7168 = vadd.f32 0.0, %v7167
        %v7169 = vpop.f32.mrf.mxu0
        %7170 = vdwg.mxu0
        %v7171 = vadd.f32 %v1607, %v7133
        %v7172 = vadd.f32 %v2335, %v7138
        %v7173 = vadd.f32 %v3063, %v7143
        %v7174 = vadd.f32 %v3791, %v7148
        %v7175 = vadd.f32 %v4519, %v7153
        %v7176 = vadd.f32 %v5247, %v7158
        %v7177 = vadd.f32 %v5975, %v7163
        %v7178 = vadd.f32 %v6703, %v7168
        %v7179 = vld [vmem:[%s13] sm:$0x1]
        %v7181 = vlaneseq
        %v7182 = vshrl.u32 %v7181, 7
        %v7183 = vsub.s32 0, %v7182
        %v7184 = vrot.slane %v7179, %v7183
        %v7186 = vadd.f32 %v7171, %v7184
        %v7187 = vadd.f32 %v7172, %v7184
        %v7188 = vadd.f32 %v7173, %v7184
        %v7189 = vadd.f32 %v7174, %v7184
        %v7190 = vadd.f32 %v7175, %v7184
        %v7191 = vadd.f32 %v7176, %v7184
        %v7192 = vadd.f32 %v7177, %v7184
        %v7193 = vadd.f32 %v7178, %v7184
        %v7194 = vld [vmem:[%s14] sm:$0x1]
        %v7195 = vld [vmem:[%s15] sm:$0x1]
        %v7196 = vsel %vm676, %v7186, 0.0
        %7197 = vadd.xlane.f32.xlu0 %v7196
        %v7198 = vpop.xlane.xlu0 %7197
        %v7199 = vsel %vm676, %v7187, 0.0
        %7200 = vadd.xlane.f32.xlu0 %v7199
        %v7201 = vpop.xlane.xlu0 %7200
        %v7202 = vsel %vm676, %v7188, 0.0
        %7203 = vadd.xlane.f32.xlu0 %v7202
        %v7204 = vpop.xlane.xlu0 %7203
        %v7205 = vsel %vm676, %v7189, 0.0
        %7206 = vadd.xlane.f32.xlu0 %v7205
        %v7207 = vpop.xlane.xlu0 %7206
        %v7208 = vsel %vm676, %v7190, 0.0
        %7209 = vadd.xlane.f32.xlu0 %v7208
        %v7210 = vpop.xlane.xlu0 %7209
        %v7211 = vsel %vm676, %v7191, 0.0
        %7212 = vadd.xlane.f32.xlu0 %v7211
        %v7213 = vpop.xlane.xlu0 %7212
        %v7214 = vsel %vm676, %v7192, 0.0
        %7215 = vadd.xlane.f32.xlu0 %v7214
        %v7216 = vpop.xlane.xlu0 %7215
        %v7217 = vsel %vm676, %v7193, 0.0
        %7218 = vadd.xlane.f32.xlu0 %v7217
        %v7219 = vpop.xlane.xlu0 %7218
        %v7220 = vmul.f32 %v7198, %v689
        %v7221 = vmul.f32 %v7201, %v689
        %v7222 = vmul.f32 %v7204, %v689
        %v7223 = vmul.f32 %v7207, %v689
        %v7224 = vmul.f32 %v7210, %v689
        %v7225 = vmul.f32 %v7213, %v689
        %v7226 = vmul.f32 %v7216, %v689
        %v7227 = vmul.f32 %v7219, %v689
        %v7228 = vsub.f32 %v7186, %v7220
        %v7229 = vsub.f32 %v7187, %v7221
        %v7230 = vsub.f32 %v7188, %v7222
        %v7231 = vsub.f32 %v7189, %v7223
        %v7232 = vsub.f32 %v7190, %v7224
        %v7233 = vsub.f32 %v7191, %v7225
        %v7234 = vsub.f32 %v7192, %v7226
        %v7235 = vsub.f32 %v7193, %v7227
        %v7236 = vmul.f32 %v7228, %v7228
        %v7237 = vmul.f32 %v7229, %v7229
        %v7238 = vmul.f32 %v7230, %v7230
        %v7239 = vmul.f32 %v7231, %v7231
        %v7240 = vmul.f32 %v7232, %v7232
        %v7241 = vmul.f32 %v7233, %v7233
        %v7242 = vmul.f32 %v7234, %v7234
        %v7243 = vmul.f32 %v7235, %v7235
        %v7244 = vsel %vm676, %v7236, 0.0
        %7245 = vadd.xlane.f32.xlu0 %v7244
        %v7246 = vpop.xlane.xlu0 %7245
        %v7247 = vsel %vm676, %v7237, 0.0
        %7248 = vadd.xlane.f32.xlu0 %v7247
        %v7249 = vpop.xlane.xlu0 %7248
        %v7250 = vsel %vm676, %v7238, 0.0
        %7251 = vadd.xlane.f32.xlu0 %v7250
        %v7252 = vpop.xlane.xlu0 %7251
        %v7253 = vsel %vm676, %v7239, 0.0
        %7254 = vadd.xlane.f32.xlu0 %v7253
        %v7255 = vpop.xlane.xlu0 %7254
        %v7256 = vsel %vm676, %v7240, 0.0
        %7257 = vadd.xlane.f32.xlu0 %v7256
        %v7258 = vpop.xlane.xlu0 %7257
        %v7259 = vsel %vm676, %v7241, 0.0
        %7260 = vadd.xlane.f32.xlu0 %v7259
        %v7261 = vpop.xlane.xlu0 %7260
        %v7262 = vsel %vm676, %v7242, 0.0
        %7263 = vadd.xlane.f32.xlu0 %v7262
        %v7264 = vpop.xlane.xlu0 %7263
        %v7265 = vsel %vm676, %v7243, 0.0
        %7266 = vadd.xlane.f32.xlu0 %v7265
        %v7267 = vpop.xlane.xlu0 %7266
        %v7268 = vmul.f32 %v7246, %v689
        %v7269 = vmul.f32 %v7249, %v689
        %v7270 = vmul.f32 %v7252, %v689
        %v7271 = vmul.f32 %v7255, %v689
        %v7272 = vmul.f32 %v7258, %v689
        %v7273 = vmul.f32 %v7261, %v689
        %v7274 = vmul.f32 %v7264, %v689
        %v7275 = vmul.f32 %v7267, %v689
        %v7276 = vadd.f32 %v7268, 1e-05
        %v7277 = vadd.f32 %v7269, 1e-05
        %v7278 = vadd.f32 %v7270, 1e-05
        %v7279 = vadd.f32 %v7271, 1e-05
        %v7280 = vadd.f32 %v7272, 1e-05
        %v7281 = vadd.f32 %v7273, 1e-05
        %v7282 = vadd.f32 %v7274, 1e-05
        %v7283 = vadd.f32 %v7275, 1e-05
        %v7284 = vrsqrt.pop %v7276
        %v7285 = vrsqrt.pop %v7277
        %v7286 = vrsqrt.pop %v7278
        %v7287 = vrsqrt.pop %v7279
        %v7288 = vrsqrt.pop %v7280
        %v7289 = vrsqrt.pop %v7281
        %v7290 = vrsqrt.pop %v7282
        %v7291 = vrsqrt.pop %v7283
        %v7292 = vmul.f32 %v7228, %v7284
        %v7293 = vmul.f32 %v7229, %v7285
        %v7294 = vmul.f32 %v7230, %v7286
        %v7295 = vmul.f32 %v7231, %v7287
        %v7296 = vmul.f32 %v7232, %v7288
        %v7297 = vmul.f32 %v7233, %v7289
        %v7298 = vmul.f32 %v7234, %v7290
        %v7299 = vmul.f32 %v7235, %v7291
        %v7301 = vlaneseq
        %v7302 = vshrl.u32 %v7301, 7
        %v7303 = vsub.s32 0, %v7302
        %v7304 = vrot.slane %v7194, %v7303
        %v7306 = vmul.f32 %v7292, %v7304
        %v7307 = vmul.f32 %v7293, %v7304
        %v7308 = vmul.f32 %v7294, %v7304
        %v7309 = vmul.f32 %v7295, %v7304
        %v7310 = vmul.f32 %v7296, %v7304
        %v7311 = vmul.f32 %v7297, %v7304
        %v7312 = vmul.f32 %v7298, %v7304
        %v7313 = vmul.f32 %v7299, %v7304
        %v7315 = vlaneseq
        %v7316 = vshrl.u32 %v7315, 7
        %v7317 = vsub.s32 0, %v7316
        %v7318 = vrot.slane %v7195, %v7317
        %v7320 = vadd.f32 %v7306, %v7318
        %v7321 = vadd.f32 %v7307, %v7318
        %v7322 = vadd.f32 %v7308, %v7318
        %v7323 = vadd.f32 %v7309, %v7318
        %v7324 = vadd.f32 %v7310, %v7318
        %v7325 = vadd.f32 %v7311, %v7318
        %v7326 = vadd.f32 %v7312, %v7318
        %v7327 = vadd.f32 %v7313, %v7318
        %v7328 = vld [vmem:[%s16] sm:$0xff]
        %v7329 = vld [vmem:[%s16 + $0x8] sm:$0xff]
        %v7330 = vld [vmem:[%s16 + $0x10] sm:$0xff]
        %v7331 = vld [vmem:[%s16 + $0x18] sm:$0xff]
        %v7332 = vld [vmem:[%s21] sm:$0x1]
        %v7334 = vlaneseq
        %v7335 = vshrl.u32 %v7334, 7
        %v7336 = vsub.s32 0, %v7335
        %v7337 = vrot.slane %v7332, %v7336
        %v7340 = vsel %vm676, %v7320, 0
        %v7343 = vsel %vm676, %v7321, 0
        %v7346 = vsel %vm676, %v7322, 0
        %v7349 = vsel %vm676, %v7323, 0
        %v7352 = vsel %vm676, %v7324, 0
        %v7355 = vsel %vm676, %v7325, 0
        %v7358 = vsel %vm676, %v7326, 0
        %v7361 = vsel %vm676, %v7327, 0
        %7363 = vmatprep.subr.mxu0 0.0
        %7364 = vmatpush1.msra.mxu0 0.0
        %7365 = vmatprep.subr.mxu0 0.0
        %7366 = vmatpush1.msra.mxu0 0.0
        %7367 = vmatprep.subr.mxu0 0.0
        %7368 = vmatpush1.msra.mxu0 0.0
        %7369 = vmatprep.subr.mxu0 0.0
        %7370 = vmatpush1.msra.mxu0 0.0
        %7371 = vmatprep.subr.mxu0 0.0
        %7372 = vmatpush1.msra.mxu0 0.0
        %7373 = vmatprep.subr.mxu0 0.0
        %7374 = vmatpush1.msra.mxu0 0.0
        %7375 = vmatprep.subr.mxu0 0.0
        %7376 = vmatpush1.msra.mxu0 0.0
        %7377 = vmatprep.subr.mxu0 0.0
        %7378 = vmatpush1.msra.mxu0 0.0
        %7379 = vmatprep.subr.mxu0 0.0
        %7380 = vmatpush1.msra.mxu0 0.0
        %7381 = vmatprep.subr.mxu0 0.0
        %7382 = vmatpush1.msra.mxu0 0.0
        %7383 = vmatprep.subr.mxu0 0.0
        %7384 = vmatpush1.msra.mxu0 0.0
        %7385 = vmatprep.subr.mxu0 0.0
        %7386 = vmatpush1.msra.mxu0 0.0
        %7387 = vmatprep.subr.mxu0 0.0
        %7388 = vmatpush1.msra.mxu0 %v7331
        %7389 = vmatprep.subr.mxu0 0.0
        %7390 = vmatpush1.msra.mxu0 %v7330
        %7391 = vmatprep.subr.mxu0 0.0
        %7392 = vmatpush1.msra.mxu0 %v7329
        %7393 = vmatprep.subr.mxu0 0.0
        %7394 = vmatpush1.msra.mxu0 %v7328
        %7395 = vmatprep.subr.mxu0 0.0
        %7396 = vmatpush2.msra.mxu0 0.0
        %7397 = vmatprep.subr.mxu0 0.0
        %7398 = vmatpush2.msra.mxu0 0.0
        %7399 = vmatprep.subr.mxu0 0.0
        %7400 = vmatpush2.msra.mxu0 0.0
        %7401 = vmatprep.subr.mxu0 0.0
        %7402 = vmatpush2.msra.mxu0 0.0
        %7403 = vmatprep.subr.mxu0 0.0
        %7404 = vmatpush2.msra.mxu0 0.0
        %7405 = vmatprep.subr.mxu0 0.0
        %7406 = vmatpush2.msra.mxu0 0.0
        %7407 = vmatprep.subr.mxu0 0.0
        %7408 = vmatpush2.msra.mxu0 0.0
        %7409 = vmatprep.subr.mxu0 0.0
        %7410 = vmatpush2.msra.mxu0 0.0
        %7411 = vmatprep.subr.mxu0 0.0
        %7412 = vmatpush2.msra.mxu0 0.0
        %7413 = vmatprep.subr.mxu0 0.0
        %7414 = vmatpush2.msra.mxu0 0.0
        %7415 = vmatprep.subr.mxu0 0.0
        %7416 = vmatpush2.msra.mxu0 0.0
        %7417 = vmatprep.subr.mxu0 0.0
        %7418 = vmatpush2.msra.mxu0 0.0
        %7419 = vmatprep.subr.mxu0 0.0
        %7420 = vmatpush2.msra.mxu0 0.0
        %7421 = vmatprep.subr.mxu0 0.0
        %7422 = vmatpush2.msra.mxu0 0.0
        %7423 = vmatprep.subr.mxu0 0.0
        %7424 = vmatpush2.msra.mxu0 0.0
        %7425 = vmatprep.subr.mxu0 0.0
        %7426 = vmatpush2.msra.mxu0 0.0
        %7427 = vmatprep.mubr.f32.mxu0 0.0
        %7428 = vmatmul.mubr.f32.gmra.mxu0 %v7340
        %v7429 = vpop.f32.mrf.mxu0
        %v7430 = vadd.f32 %v7337, %v7429
        %v7431 = vpop.f32.mrf.mxu0
        %7432 = vmatprep.mubr.f32.mxu0 0.0
        %7433 = vmatmul.mubr.f32.gmra.mxu0 %v7343
        %v7434 = vpop.f32.mrf.mxu0
        %v7435 = vadd.f32 %v7337, %v7434
        %v7436 = vpop.f32.mrf.mxu0
        %7437 = vmatprep.mubr.f32.mxu0 0.0
        %7438 = vmatmul.mubr.f32.gmra.mxu0 %v7346
        %v7439 = vpop.f32.mrf.mxu0
        %v7440 = vadd.f32 %v7337, %v7439
        %v7441 = vpop.f32.mrf.mxu0
        %7442 = vmatprep.mubr.f32.mxu0 0.0
        %7443 = vmatmul.mubr.f32.gmra.mxu0 %v7349
        %v7444 = vpop.f32.mrf.mxu0
        %v7445 = vadd.f32 %v7337, %v7444
        %v7446 = vpop.f32.mrf.mxu0
        %7447 = vmatprep.mubr.f32.mxu0 0.0
        %7448 = vmatmul.mubr.f32.gmra.mxu0 %v7352
        %v7449 = vpop.f32.mrf.mxu0
        %v7450 = vadd.f32 %v7337, %v7449
        %v7451 = vpop.f32.mrf.mxu0
        %7452 = vmatprep.mubr.f32.mxu0 0.0
        %7453 = vmatmul.mubr.f32.gmra.mxu0 %v7355
        %v7454 = vpop.f32.mrf.mxu0
        %v7455 = vadd.f32 %v7337, %v7454
        %v7456 = vpop.f32.mrf.mxu0
        %7457 = vmatprep.mubr.f32.mxu0 0.0
        %7458 = vmatmul.mubr.f32.gmra.mxu0 %v7358
        %v7459 = vpop.f32.mrf.mxu0
        %v7460 = vadd.f32 %v7337, %v7459
        %v7461 = vpop.f32.mrf.mxu0
        %7462 = vmatprep.mubr.f32.mxu0 0.0
        %7463 = vmatmul.mubr.f32.gmra.mxu0 %v7361
        %v7464 = vpop.f32.mrf.mxu0
        %v7465 = vadd.f32 %v7337, %v7464
        %v7466 = vpop.f32.mrf.mxu0
        %7467 = vdwg.mxu0
        %7468 = vmax.xlane.f32.xlu0 %v7430
        %v7469 = vpop.xlane.xlu0 %7468
        %7470 = vmax.xlane.f32.xlu0 %v7435
        %v7471 = vpop.xlane.xlu0 %7470
        %7472 = vmax.xlane.f32.xlu0 %v7440
        %v7473 = vpop.xlane.xlu0 %7472
        %7474 = vmax.xlane.f32.xlu0 %v7445
        %v7475 = vpop.xlane.xlu0 %7474
        %7476 = vmax.xlane.f32.xlu0 %v7450
        %v7477 = vpop.xlane.xlu0 %7476
        %7478 = vmax.xlane.f32.xlu0 %v7455
        %v7479 = vpop.xlane.xlu0 %7478
        %7480 = vmax.xlane.f32.xlu0 %v7460
        %v7481 = vpop.xlane.xlu0 %7480
        %7482 = vmax.xlane.f32.xlu0 %v7465
        %v7483 = vpop.xlane.xlu0 %7482
        %v7484 = vsub.f32 %v7430, %v7469
        %v7485 = vsub.f32 %v7435, %v7471
        %v7486 = vsub.f32 %v7440, %v7473
        %v7487 = vsub.f32 %v7445, %v7475
        %v7488 = vsub.f32 %v7450, %v7477
        %v7489 = vsub.f32 %v7455, %v7479
        %v7490 = vsub.f32 %v7460, %v7481
        %v7491 = vsub.f32 %v7465, %v7483
        %v7492 = vmul.f32 %v7484, 1.442695
        %v7493 = vpow.pop %v7492
        %v7494 = vmul.f32 %v7485, 1.442695
        %v7495 = vpow.pop %v7494
        %v7496 = vmul.f32 %v7486, 1.442695
        %v7497 = vpow.pop %v7496
        %v7498 = vmul.f32 %v7487, 1.442695
        %v7499 = vpow.pop %v7498
        %v7500 = vmul.f32 %v7488, 1.442695
        %v7501 = vpow.pop %v7500
        %v7502 = vmul.f32 %v7489, 1.442695
        %v7503 = vpow.pop %v7502
        %v7504 = vmul.f32 %v7490, 1.442695
        %v7505 = vpow.pop %v7504
        %v7506 = vmul.f32 %v7491, 1.442695
        %v7507 = vpow.pop %v7506
        %7508 = vadd.xlane.f32.xlu0 %v7493
        %v7509 = vpop.xlane.xlu0 %7508
        %7510 = vadd.xlane.f32.xlu0 %v7495
        %v7511 = vpop.xlane.xlu0 %7510
        %7512 = vadd.xlane.f32.xlu0 %v7497
        %v7513 = vpop.xlane.xlu0 %7512
        %7514 = vadd.xlane.f32.xlu0 %v7499
        %v7515 = vpop.xlane.xlu0 %7514
        %7516 = vadd.xlane.f32.xlu0 %v7501
        %v7517 = vpop.xlane.xlu0 %7516
        %7518 = vadd.xlane.f32.xlu0 %v7503
        %v7519 = vpop.xlane.xlu0 %7518
        %7520 = vadd.xlane.f32.xlu0 %v7505
        %v7521 = vpop.xlane.xlu0 %7520
        %7522 = vadd.xlane.f32.xlu0 %v7507
        %v7523 = vpop.xlane.xlu0 %7522
        %v7524 = vlog2.pop %v7509
        %v7525 = vmul.f32 %v7524, 0.6931472
        %v7526 = vlog2.pop %v7511
        %v7527 = vmul.f32 %v7526, 0.6931472
        %v7528 = vlog2.pop %v7513
        %v7529 = vmul.f32 %v7528, 0.6931472
        %v7530 = vlog2.pop %v7515
        %v7531 = vmul.f32 %v7530, 0.6931472
        %v7532 = vlog2.pop %v7517
        %v7533 = vmul.f32 %v7532, 0.6931472
        %v7534 = vlog2.pop %v7519
        %v7535 = vmul.f32 %v7534, 0.6931472
        %v7536 = vlog2.pop %v7521
        %v7537 = vmul.f32 %v7536, 0.6931472
        %v7538 = vlog2.pop %v7523
        %v7539 = vmul.f32 %v7538, 0.6931472
        %v7540 = vsub.f32 %v7484, %v7525
        %v7541 = vsub.f32 %v7485, %v7527
        %v7542 = vsub.f32 %v7486, %v7529
        %v7543 = vsub.f32 %v7487, %v7531
        %v7544 = vsub.f32 %v7488, %v7533
        %v7545 = vsub.f32 %v7489, %v7535
        %v7546 = vsub.f32 %v7490, %v7537
        %v7547 = vsub.f32 %v7491, %v7539
        %7548 = vst [vmem:[%s659] sm:$0xff] %v7540
        %7549 = vst [vmem:[%s659 + $0x8] sm:$0xff] %v7541
        %7550 = vst [vmem:[%s659 + $0x10] sm:$0xff] %v7542
        %7551 = vst [vmem:[%s659 + $0x18] sm:$0xff] %v7543
        %7552 = vst [vmem:[%s659 + $0x20] sm:$0xff] %v7544
        %7553 = vst [vmem:[%s659 + $0x28] sm:$0xff] %v7545
        %7554 = vst [vmem:[%s659 + $0x30] sm:$0xff] %v7546
        %7555 = vst [vmem:[%s659 + $0x38] sm:$0xff] %v7547
        %s7556 = sand.u32 %s496, 1
        %s7557 = scalar_lea.sflag [#allocation5], %s7556
        %s7558 = sand.u32 %s496, 1
        %s7559 = smul.addr %s7558, 64
        %s7560 = scalar_lea.vmem [#allocation4], %s7559
        // Predicated region
        $region105: #{lm_logprob_windows.1} parent=103 // pred_check
          %p7561 = pneg %p506
        $region106: #{lm_logprob_windows.1} parent=103 // pred_check_branch
          %7563 = sbr.rel (%p7561) target = $region108
        $region107: #{lm_logprob_windows.1} parent=103 // pred_region
          %s7564 = smul.u32 8, %s42
          %s7566 = ssub.s32 1024, 1024
          %7567 = vsyncadd %s7557, %s7566
          %s7568 = smul.addr %s7564, 128
          %s7569 = scalar_lea.hbm %s22, %s7568
          %s7570 = sshll.u32 %s7560, 4
          %s7571 = int_to_ptr.vmem [resolvable:$true] %s7570
          %7576 = dma.vmem_to_hbm [thread:$0]  %s7571, 1024, %s7569, %s7557, 128, 128, 8
        $region108: #{lm_logprob_windows.1} parent=103 // pred_fallthru
          _
      $region104: #{lm_logprob_windows.1} parent=5 // pred_fallthru
        _
      %p7577 = scmp.le.s32.totalorder 2, %s37
      // Predicated region
      $region109: #{lm_logprob_windows.1} parent=5 // pred_check
        %p7578 = pneg %p7577
      $region110: #{lm_logprob_windows.1} parent=5 // pred_check_branch
        %7580 = sbr.rel (%p7578) target = $region112
      $region111: #{lm_logprob_windows.1} parent=5 // pred_region
        %s7581 = ssub.s32 %s37, 2
        // Predicated region
        $region113: #{lm_logprob_windows.1} parent=111 // pred_check
          %p7582 = pneg %p512
        $region114: #{lm_logprob_windows.1} parent=111 // pred_check_branch
          %7584 = sbr.rel (%p7582) target = $region116
        $region115: #{lm_logprob_windows.1} parent=111 // pred_region
          %s7585 = sand.u32 %s497, 1
          %s7586 = scalar_lea.sflag [#allocation5], %s7585
          %s7587 = sand.u32 %s497, 1
          %s7588 = smul.addr %s7587, 64
          %s7589 = scalar_lea.vmem [#allocation4], %s7588
          %7590 = dma.done %s7586, 1024
        $region116: #{lm_logprob_windows.1} parent=111 // pred_fallthru
          _
      $region112: #{lm_logprob_windows.1} parent=5 // pred_fallthru
        _
    $region6: #{lm_logprob_windows.1} parent=1 // loop_footer
      %s41 = sadd.s32 1, %s37
    $region7: #{lm_logprob_windows.1} parent=1 // loop_footer_branch
      %36 = sbr.rel target = $region3
    $region8: #{lm_logprob_windows.1} parent=1 // loop_exit
      _
    %7591 = vsyncpa [#allocation5], 1
    %s7592 = scalar_lea.sflag [#allocation5], 1
    %7593 = vsyncpa %s7592, 1

</llo_original>
